<compile_context>
chip_gen: v7x
topology: tpu7x:2x2x1
jax: 0.10.0
libtpu: 0.0.40
codegen_flags: <defaults>
</compile_context>

<pallas_src>
from functools import partial

import jax
import jax.numpy as jnp
from jax import lax
from jax.experimental import pallas as pl
from jax.experimental.pallas import tpu as pltpu


# ----------------------------- in-kernel math helpers -----------------------------

def _erf(x):
    # Abramowitz & Stegun 7.1.26 (|err| <= 1.5e-7): matches PyTorch's exact-erf GELU to far
    # below bf16 matmul noise.  f32 elementwise math (VPU/EUP), no approx reciprocal.
    a1, a2, a3, a4, a5 = 0.254829592, -0.284496736, 1.421413741, -1.453152027, 1.061405429
    p = 0.3275911
    ax = jnp.abs(x)
    t = 1.0 / (1.0 + p * ax)
    poly = ((((a5 * t + a4) * t + a3) * t + a2) * t + a1) * t
    y = 1.0 - poly * jnp.exp(-ax * ax)
    return jnp.where(x >= 0.0, y, -y)


def _gelu(x):
    return 0.5 * x * (1.0 + _erf(x * 0.7071067811865476))


def _im2col_3x3(h3d, Hh, Ww, C, pad_ref, p_ref):
    """Zero-pad the activated (Hh, Ww, C) f32 tile in VMEM and build the (Hh*Ww, 9*C) bf16
    im2col slab for a 3x3 / pad=1 / stride=1 convolution (column order: kh, kw, c)."""
    pad_ref[...] = jnp.zeros((Hh + 2, Ww + 2, C), jnp.float32)
    pad_ref[1:Hh + 1, 1:Ww + 1, :] = h3d              # in-kernel padding (no wrapper jnp.pad)
    for kh in range(3):                               # static, unrolled
        for kw in range(3):
            c0 = (kh * 3 + kw) * C
            tap = pad_ref[kh:kh + Hh, kw:kw + Ww, :]  # (Hh, Ww, C) f32
            p_ref[:, c0:c0 + C] = tap.reshape(Hh * Ww, C).astype(jnp.bfloat16)


# ----------------------------- fused PreActBasic block kernel -----------------------------

def _make_block_kernel(H, W, Cin, Cout, stride, has_proj):
    Hs = (H - 1) // stride + 1          # output spatial (== both 3x3-pad1 and 1x1-pad0 convs)
    Ws = (W - 1) // stride + 1
    M, Ms = H * W, Hs * Ws

    def kernel(*refs):
        it = iter(refs)
        x_ref = next(it)                              # (1, H, W, Cin) f32
        s1_ref, t1_ref = next(it), next(it)           # (1, Cin) BN1 affine
        w1_ref, b1_ref = next(it), next(it)           # (9*Cin, Cout) bf16, (1, Cout) f32
        s2_ref, t2_ref = next(it), next(it)           # (1, Cout) BN2 affine
        w2_ref, b2_ref = next(it), next(it)           # (9*Cout, Cout) bf16, (1, Cout) f32
        sel_ref = next(it) if stride > 1 else None    # (Ms, M) bf16 0/1 row-selection
        ws_ref = next(it) if has_proj else None       # (Cin, Cout) bf16
        bs_ref = next(it) if has_proj else None       # (1, Cout) f32
        o_ref = next(it)                              # (1, Hs, Ws, Cout) f32
        pad1_ref, p1_ref, pad2_ref, p2_ref = next(it), next(it), next(it), next(it)

        x3d = x_ref[0]                                                     # (H, W, Cin) f32

        # ---- residual: BN1 + GELU + conv1 (3x3, pad=1, stride) ----
        h1 = _gelu(x3d * s1_ref[...] + t1_ref[...])
        _im2col_3x3(h1, H, W, Cin, pad1_ref, p1_ref)
        if stride > 1:
            # In-kernel striding: exact 0/1 selection matmul picks the stride-s output rows
            # of the stride-1 im2col slab, so the conv matmul runs at strided resolution.
            patches1 = jnp.dot(sel_ref[...], p1_ref[...],
                               preferred_element_type=jnp.float32).astype(jnp.bfloat16)
        else:
            patches1 = p1_ref[...]
        y1 = jnp.dot(patches1, w1_ref[...],
                     preferred_element_type=jnp.float32) + b1_ref[...]      # (Ms, Cout) f32

        # ---- residual: BN2 + GELU + conv2 (3x3, pad=1, stride=1) ----
        h2 = _gelu(y1 * s2_ref[...] + t2_ref[...])
        _im2col_3x3(h2.reshape(Hs, Ws, Cout), Hs, Ws, Cout, pad2_ref, p2_ref)
        res = jnp.dot(p2_ref[...], w2_ref[...],
                      preferred_element_type=jnp.float32) + b2_ref[...]     # (Ms, Cout) f32

        # ---- shortcut (applied to the raw input x, as in the PyTorch module) ----
        if has_proj:
            x2d = x3d.reshape(M, Cin)
            if stride > 1:
                xs = jnp.dot(sel_ref[...], x2d.astype(jnp.bfloat16),
                             preferred_element_type=jnp.float32)            # strided 1x1 input
            else:
                xs = x2d
            sc = jnp.dot(xs.astype(jnp.bfloat16), ws_ref[...],
                         preferred_element_type=jnp.float32) + bs_ref[...]
        else:
            sc = x3d.reshape(M, Cin)                                        # identity (exact f32)

        o_ref[0] = (res + sc).reshape(Hs, Ws, Cout)                         # single write

    return kernel


# ----------------------------- wrapper -----------------------------

def _bn_affine(bn, eps=1e-5):
    scale = bn["gamma"] / jnp.sqrt(bn["var"] + eps)
    shift = bn["beta"] - bn["mean"] * scale
    return scale, shift


@partial(jax.jit, static_argnames=("stride",))
def preact_basic_forward(x_nchw, params, *, stride):
    """PreActBasic forward. x_nchw: (N, Cin, H, W) f32 -> (N, Cout, Hs, Ws) f32."""
    x = jnp.transpose(x_nchw, (0, 2, 3, 1)).astype(jnp.float32)     # NHWC
    N, H, W, Cin = x.shape
    Cout = params["conv1_w"].shape[-1]
    Hs = (H - 1) // stride + 1
    Ws = (W - 1) // stride + 1
    has_proj = (stride != 1) or (Cin != Cout)

    s1, t1 = _bn_affine(params["bn1"])
    s2, t2 = _bn_affine(params["bn2"])

    inputs = [
        x,
        s1.reshape(1, Cin), t1.reshape(1, Cin),
        params["conv1_w"].reshape(9 * Cin, Cout).astype(jnp.bfloat16),
        params["conv1_b"].reshape(1, Cout),
        s2.reshape(1, Cout), t2.reshape(1, Cout),
        params["conv2_w"].reshape(9 * Cout, Cout).astype(jnp.bfloat16),
        params["conv2_b"].reshape(1, Cout),
    ]
    in_specs = [
        pl.BlockSpec((1, H, W, Cin), lambda b: (b, 0, 0, 0)),
        pl.BlockSpec((1, Cin), lambda b: (0, 0)),
        pl.BlockSpec((1, Cin), lambda b: (0, 0)),
        pl.BlockSpec((9 * Cin, Cout), lambda b: (0, 0)),
        pl.BlockSpec((1, Cout), lambda b: (0, 0)),
        pl.BlockSpec((1, Cout), lambda b: (0, 0)),
        pl.BlockSpec((1, Cout), lambda b: (0, 0)),
        pl.BlockSpec((9 * Cout, Cout), lambda b: (0, 0)),
        pl.BlockSpec((1, Cout), lambda b: (0, 0)),
    ]
    if stride > 1:
        # 0/1 row-selection matrix: output row r <- full-res row (s*(r//Ws))*W + s*(r%Ws).
        r = jnp.arange(Hs * Ws, dtype=jnp.int32)
        src = (stride * (r // Ws)) * W + stride * (r % Ws)
        sel = (src[:, None] == jnp.arange(H * W, dtype=jnp.int32)[None, :]).astype(jnp.bfloat16)
        inputs.append(sel)
        in_specs.append(pl.BlockSpec((Hs * Ws, H * W), lambda b: (0, 0)))
    if has_proj:
        inputs.append(params["short_w"].reshape(Cin, Cout).astype(jnp.bfloat16))
        inputs.append(params["short_b"].reshape(1, Cout))
        in_specs.append(pl.BlockSpec((Cin, Cout), lambda b: (0, 0)))
        in_specs.append(pl.BlockSpec((1, Cout), lambda b: (0, 0)))

    out = pl.pallas_call(
        _make_block_kernel(H, W, Cin, Cout, stride, has_proj),
        out_shape=jax.ShapeDtypeStruct((N, Hs, Ws, Cout), jnp.float32),
        grid=(N,),                                   # one image per grid step
        in_specs=in_specs,
        out_specs=pl.BlockSpec((1, Hs, Ws, Cout), lambda b: (b, 0, 0, 0)),
        scratch_shapes=[
            pltpu.VMEM((H + 2, W + 2, Cin), jnp.float32),     # padded gelu(bn1(x))
            pltpu.VMEM((H * W, 9 * Cin), jnp.bfloat16),       # conv1 im2col slab
            pltpu.VMEM((Hs + 2, Ws + 2, Cout), jnp.float32),  # padded gelu(bn2(y1))
            pltpu.VMEM((Hs * Ws, 9 * Cout), jnp.bfloat16),    # conv2 im2col slab
        ],
        compiler_params=pltpu.CompilerParams(
            dimension_semantics=("parallel",),       # batch axis -> both TCs on v7x
            vmem_limit_bytes=32 * 1024 * 1024,
        ),
    )(*inputs)
    return jnp.transpose(out, (0, 3, 1, 2))          # back to NCHW


# ----------------------------- pure-JAX reference (for verification) -----------------------------

def preact_basic_reference(x_nchw, params, stride):
    x = jnp.transpose(x_nchw, (0, 2, 3, 1)).astype(jnp.float32)
    Cin = x.shape[-1]
    Cout = params["conv1_w"].shape[-1]

    def bn(v, bnp):
        s, t = _bn_affine(bnp)
        return v * s + t

    def gelu(v):
        return 0.5 * v * (1.0 + jax.scipy.special.erf(v * 0.7071067811865476))

    def conv(v, w, b, st, pad):
        out = lax.conv_general_dilated(
            v, w, window_strides=(st, st), padding=((pad, pad), (pad, pad)),
            dimension_numbers=("NHWC", "HWIO", "NHWC"), precision=lax.Precision.HIGHEST)
        return out + b.reshape(1, 1, 1, -1)

    h = conv(gelu(bn(x, params["bn1"])), params["conv1_w"], params["conv1_b"], stride, 1)
    res = conv(gelu(bn(h, params["bn2"])), params["conv2_w"], params["conv2_b"], 1, 1)
    if stride != 1 or Cin != Cout:
        sc = conv(x, params["short_w"], params["short_b"], stride, 0)
    else:
        sc = x
    return jnp.transpose(res + sc, (0, 3, 1, 2))


# ----------------------------- deterministic parameter init -----------------------------

def init_block_params(key, in_channels, out_channels, stride):
    keys = iter(jax.random.split(key, 16))

    def conv_w(k, ksize, cin, cout):
        fan_in = ksize * ksize * cin
        return jax.random.normal(k, (ksize, ksize, cin, cout), jnp.float32) * jnp.sqrt(2.0 / fan_in)

    def bias(k, c):
        return 0.01 * jax.random.normal(k, (c,), jnp.float32)

    def bn(k, c):
        k1, k2, k3, k4 = jax.random.split(k, 4)
        return {
            "gamma": 1.0 + 0.05 * jax.random.normal(k1, (c,), jnp.float32),
            "beta": 0.05 * jax.random.normal(k2, (c,), jnp.float32),
            "mean": 0.05 * jax.random.normal(k3, (c,), jnp.float32),
            "var": 1.0 + 0.05 * jax.random.uniform(k4, (c,), jnp.float32),
        }

    p = {
        "bn1": bn(next(keys), in_channels),
        "conv1_w": conv_w(next(keys), 3, in_channels, out_channels),
        "conv1_b": bias(next(keys), out_channels),
        "bn2": bn(next(keys), out_channels),
        "conv2_w": conv_w(next(keys), 3, out_channels, out_channels),
        "conv2_b": bias(next(keys), out_channels),
    }
    if stride != 1 or in_channels != out_channels:   # expansion = 1
        p["short_w"] = conv_w(next(keys), 1, in_channels, out_channels)
        p["short_b"] = bias(next(keys), out_channels)
    return p


def _check(out, ref):
    assert bool(jnp.all(jnp.isfinite(out)))
    diff = jnp.abs(out - ref)
    tol = 0.15 + 0.05 * jnp.abs(ref)     # generous: bf16 MXU operands vs f32 reference
    assert bool(jnp.all(diff <= tol)), float(jnp.max(diff))


# ----------------------------- main -----------------------------

if __name__ == "__main__":
    key = jax.random.PRNGKey(0)
    kx, kp1, kp2 = jax.random.split(key, 3)
    x = jax.random.normal(kx, (2, 64, 16, 16), dtype=jnp.float32)    # NCHW, batch=2

    # Config 1: identity shortcut (in == out, stride 1)
    params1 = init_block_params(kp1, 64, 64, stride=1)
    out1 = jax.block_until_ready(preact_basic_forward(x, params1, stride=1))
    assert out1.shape == (2, 64, 16, 16), out1.shape
    _check(out1, preact_basic_reference(x, params1, 1))

    # Config 2: projection shortcut + stride-2 downsampling (64 -> 128 channels)
    params2 = init_block_params(kp2, 64, 128, stride=2)
    out2 = jax.block_until_ready(preact_basic_forward(x, params2, stride=2))
    assert out2.shape == (2, 128, 8, 8), out2.shape
    _check(out2, preact_basic_reference(x, params2, 2))

    print("KERNEL_OK")
</pallas_src>

<mosaic_0001>
module attributes {stable_mosaic.version = 11 : i64} {
  func.func @kernel(%arg0: i32, %arg1: memref<1x16x16x64xf32, #tpu.memory_space<vmem>>, %arg2: memref<1x64xf32, #tpu.memory_space<vmem>>, %arg3: memref<1x64xf32, #tpu.memory_space<vmem>>, %arg4: memref<576x64xbf16, #tpu.memory_space<vmem>>, %arg5: memref<1x64xf32, #tpu.memory_space<vmem>>, %arg6: memref<1x64xf32, #tpu.memory_space<vmem>>, %arg7: memref<1x64xf32, #tpu.memory_space<vmem>>, %arg8: memref<576x64xbf16, #tpu.memory_space<vmem>>, %arg9: memref<1x64xf32, #tpu.memory_space<vmem>>, %arg10: memref<1x16x16x64xf32, #tpu.memory_space<vmem>>, %arg11: memref<18x18x64xf32, #tpu.memory_space<vmem>>, %arg12: memref<256x576xbf16, #tpu.memory_space<vmem>>, %arg13: memref<18x18x64xf32, #tpu.memory_space<vmem>>, %arg14: memref<256x576xbf16, #tpu.memory_space<vmem>>) attributes {dimension_semantics = [#tpu.dimension_semantics<parallel>], iteration_bounds = array<i64: 2>, scalar_prefetch = 0 : i64, scratch_operands = 4 : i64, tpu.core_type = #tpu.core_type<tc>, window_params = [{transform_indices = @transform_0, window_bounds = array<i64: 1, 16, 16, 64>}, {pipeline_mode = #tpu.pipeline_mode<synchronous>, transform_indices = @transform_1, window_bounds = array<i64: 1, 64>}, {pipeline_mode = #tpu.pipeline_mode<synchronous>, transform_indices = @transform_2, window_bounds = array<i64: 1, 64>}, {pipeline_mode = #tpu.pipeline_mode<synchronous>, transform_indices = @transform_3, window_bounds = array<i64: 576, 64>}, {pipeline_mode = #tpu.pipeline_mode<synchronous>, transform_indices = @transform_4, window_bounds = array<i64: 1, 64>}, {pipeline_mode = #tpu.pipeline_mode<synchronous>, transform_indices = @transform_5, window_bounds = array<i64: 1, 64>}, {pipeline_mode = #tpu.pipeline_mode<synchronous>, transform_indices = @transform_6, window_bounds = array<i64: 1, 64>}, {pipeline_mode = #tpu.pipeline_mode<synchronous>, transform_indices = @transform_7, window_bounds = array<i64: 576, 64>}, {pipeline_mode = #tpu.pipeline_mode<synchronous>, transform_indices = @transform_8, window_bounds = array<i64: 1, 64>}, {transform_indices = @transform_9, window_bounds = array<i64: 1, 16, 16, 64>}]} {
    %c0 = arith.constant 0 : index
    %c0_0 = arith.constant 0 : index
    %c0_1 = arith.constant 0 : index
    %c0_2 = arith.constant 0 : index
    %0 = vector.load %arg1[%c0, %c0_0, %c0_1, %c0_2] : memref<1x16x16x64xf32, #tpu.memory_space<vmem>>, vector<1x16x16x64xf32>
    %1 = vector.shape_cast %0 : vector<1x16x16x64xf32> to vector<16x16x64xf32>
    %c0_3 = arith.constant 0 : index
    %c0_4 = arith.constant 0 : index
    %2 = vector.load %arg2[%c0_3, %c0_4] : memref<1x64xf32, #tpu.memory_space<vmem>>, vector<1x64xf32>
    %3 = vector.shape_cast %2 : vector<1x64xf32> to vector<1x1x64xf32>
    %4 = vector.broadcast %3 : vector<1x1x64xf32> to vector<16x16x64xf32>
    %5 = arith.mulf %1, %4 : vector<16x16x64xf32>
    %c0_5 = arith.constant 0 : index
    %c0_6 = arith.constant 0 : index
    %6 = vector.load %arg3[%c0_5, %c0_6] : memref<1x64xf32, #tpu.memory_space<vmem>>, vector<1x64xf32>
    %7 = vector.shape_cast %6 : vector<1x64xf32> to vector<1x1x64xf32>
    %8 = vector.broadcast %7 : vector<1x1x64xf32> to vector<16x16x64xf32>
    %9 = arith.addf %5, %8 : vector<16x16x64xf32>
    %cst = arith.constant 5.000000e-01 : f32
    %10 = vector.broadcast %cst : f32 to vector<16x16x64xf32>
    %11 = arith.mulf %10, %9 : vector<16x16x64xf32>
    %cst_7 = arith.constant 0.707106769 : f32
    %12 = vector.broadcast %cst_7 : f32 to vector<16x16x64xf32>
    %13 = arith.mulf %9, %12 : vector<16x16x64xf32>
    %14 = math.absf %13 : vector<16x16x64xf32>
    %cst_8 = arith.constant 0.327591091 : f32
    %15 = vector.broadcast %cst_8 : f32 to vector<16x16x64xf32>
    %16 = arith.mulf %15, %14 : vector<16x16x64xf32>
    %cst_9 = arith.constant 1.000000e+00 : f32
    %17 = vector.broadcast %cst_9 : f32 to vector<16x16x64xf32>
    %18 = arith.addf %17, %16 : vector<16x16x64xf32>
    %cst_10 = arith.constant 1.000000e+00 : f32
    %19 = vector.broadcast %cst_10 : f32 to vector<16x16x64xf32>
    %20 = arith.divf %19, %18 : vector<16x16x64xf32>
    %cst_11 = arith.constant 1.06140542 : f32
    %21 = vector.broadcast %cst_11 : f32 to vector<16x16x64xf32>
    %22 = arith.mulf %21, %20 : vector<16x16x64xf32>
    %cst_12 = arith.constant -1.45315206 : f32
    %23 = vector.broadcast %cst_12 : f32 to vector<16x16x64xf32>
    %24 = arith.addf %22, %23 : vector<16x16x64xf32>
    %25 = arith.mulf %24, %20 : vector<16x16x64xf32>
    %cst_13 = arith.constant 1.42141378 : f32
    %26 = vector.broadcast %cst_13 : f32 to vector<16x16x64xf32>
    %27 = arith.addf %25, %26 : vector<16x16x64xf32>
    %28 = arith.mulf %27, %20 : vector<16x16x64xf32>
    %cst_14 = arith.constant -0.284496725 : f32
    %29 = vector.broadcast %cst_14 : f32 to vector<16x16x64xf32>
    %30 = arith.addf %28, %29 : vector<16x16x64xf32>
    %31 = arith.mulf %30, %20 : vector<16x16x64xf32>
    %cst_15 = arith.constant 0.254829586 : f32
    %32 = vector.broadcast %cst_15 : f32 to vector<16x16x64xf32>
    %33 = arith.addf %31, %32 : vector<16x16x64xf32>
    %34 = arith.mulf %33, %20 : vector<16x16x64xf32>
    %cst_16 = arith.constant 0.000000e+00 : f32
    %35 = vector.broadcast %cst_16 : f32 to vector<16x16x64xf32>
    %36 = arith.subf %35, %14 : vector<16x16x64xf32>
    %37 = arith.mulf %36, %14 : vector<16x16x64xf32>
    %38 = math.exp %37 : vector<16x16x64xf32>
    %39 = arith.mulf %34, %38 : vector<16x16x64xf32>
    %cst_17 = arith.constant 1.000000e+00 : f32
    %40 = vector.broadcast %cst_17 : f32 to vector<16x16x64xf32>
    %41 = arith.subf %40, %39 : vector<16x16x64xf32>
    %cst_18 = arith.constant 0.000000e+00 : f32
    %42 = vector.broadcast %cst_18 : f32 to vector<16x16x64xf32>
    %43 = arith.cmpf oge, %13, %42 : vector<16x16x64xf32>
    %cst_19 = arith.constant 0.000000e+00 : f32
    %44 = vector.broadcast %cst_19 : f32 to vector<16x16x64xf32>
    %45 = arith.subf %44, %41 : vector<16x16x64xf32>
    %46 = arith.select %43, %41, %45 : vector<16x16x64xi1>, vector<16x16x64xf32>
    %cst_20 = arith.constant 1.000000e+00 : f32
    %47 = vector.broadcast %cst_20 : f32 to vector<16x16x64xf32>
    %48 = arith.addf %47, %46 : vector<16x16x64xf32>
    %49 = arith.mulf %11, %48 : vector<16x16x64xf32>
    %cst_21 = arith.constant 0.000000e+00 : f32
    %50 = vector.broadcast %cst_21 : f32 to vector<18x18x64xf32>
    %c0_22 = arith.constant 0 : index
    %c0_23 = arith.constant 0 : index
    %c0_24 = arith.constant 0 : index
    %51 = vector.load %arg11[%c0_22, %c0_23, %c0_24] : memref<18x18x64xf32, #tpu.memory_space<vmem>>, vector<18x18x64xf32>
    tpu.vector_store %arg11[%c0_22, %c0_23, %c0_24], %50 {strides = array<i32>} : memref<18x18x64xf32, #tpu.memory_space<vmem>>, vector<18x18x64xf32>,
    %c1 = arith.constant 1 : index
    %c1_25 = arith.constant 1 : index
    %c0_26 = arith.constant 0 : index
    %52 = vector.load %arg11[%c1, %c1_25, %c0_26] : memref<18x18x64xf32, #tpu.memory_space<vmem>>, vector<16x16x64xf32>
    tpu.vector_store %arg11[%c1, %c1_25, %c0_26], %49 {strides = array<i32>} : memref<18x18x64xf32, #tpu.memory_space<vmem>>, vector<16x16x64xf32>,
    %c0_27 = arith.constant 0 : index
    %c0_28 = arith.constant 0 : index
    %c0_29 = arith.constant 0 : index
    %53 = vector.load %arg11[%c0_27, %c0_28, %c0_29] : memref<18x18x64xf32, #tpu.memory_space<vmem>>, vector<16x16x64xf32>
    %54 = vector.shape_cast %53 : vector<16x16x64xf32> to vector<256x64xf32>
    %55 = arith.truncf %54 : vector<256x64xf32> to vector<256x64xbf16>
    %c0_30 = arith.constant 0 : index
    %c0_31 = arith.constant 0 : index
    %56 = vector.load %arg12[%c0_30, %c0_31] : memref<256x576xbf16, #tpu.memory_space<vmem>>, vector<256x64xbf16>
    tpu.vector_store %arg12[%c0_30, %c0_31], %55 {strides = array<i32>} : memref<256x576xbf16, #tpu.memory_space<vmem>>, vector<256x64xbf16>,
    %c0_32 = arith.constant 0 : index
    %c1_33 = arith.constant 1 : index
    %c0_34 = arith.constant 0 : index
    %57 = vector.load %arg11[%c0_32, %c1_33, %c0_34] : memref<18x18x64xf32, #tpu.memory_space<vmem>>, vector<16x16x64xf32>
    %58 = vector.shape_cast %57 : vector<16x16x64xf32> to vector<256x64xf32>
    %59 = arith.truncf %58 : vector<256x64xf32> to vector<256x64xbf16>
    %c0_35 = arith.constant 0 : index
    %c64 = arith.constant 64 : index
    %60 = vector.load %arg12[%c0_35, %c64] : memref<256x576xbf16, #tpu.memory_space<vmem>>, vector<256x64xbf16>
    tpu.vector_store %arg12[%c0_35, %c64], %59 {strides = array<i32>} : memref<256x576xbf16, #tpu.memory_space<vmem>>, vector<256x64xbf16>,
    %c0_36 = arith.constant 0 : index
    %c2 = arith.constant 2 : index
    %c0_37 = arith.constant 0 : index
    %61 = vector.load %arg11[%c0_36, %c2, %c0_37] : memref<18x18x64xf32, #tpu.memory_space<vmem>>, vector<16x16x64xf32>
    %62 = vector.shape_cast %61 : vector<16x16x64xf32> to vector<256x64xf32>
    %63 = arith.truncf %62 : vector<256x64xf32> to vector<256x64xbf16>
    %c0_38 = arith.constant 0 : index
    %c128 = arith.constant 128 : index
    %64 = vector.load %arg12[%c0_38, %c128] : memref<256x576xbf16, #tpu.memory_space<vmem>>, vector<256x64xbf16>
    tpu.vector_store %arg12[%c0_38, %c128], %63 {strides = array<i32>} : memref<256x576xbf16, #tpu.memory_space<vmem>>, vector<256x64xbf16>,
    %c1_39 = arith.constant 1 : index
    %c0_40 = arith.constant 0 : index
    %c0_41 = arith.constant 0 : index
    %65 = vector.load %arg11[%c1_39, %c0_40, %c0_41] : memref<18x18x64xf32, #tpu.memory_space<vmem>>, vector<16x16x64xf32>
    %66 = vector.shape_cast %65 : vector<16x16x64xf32> to vector<256x64xf32>
    %67 = arith.truncf %66 : vector<256x64xf32> to vector<256x64xbf16>
    %c0_42 = arith.constant 0 : index
    %c192 = arith.constant 192 : index
    %68 = vector.load %arg12[%c0_42, %c192] : memref<256x576xbf16, #tpu.memory_space<vmem>>, vector<256x64xbf16>
    tpu.vector_store %arg12[%c0_42, %c192], %67 {strides = array<i32>} : memref<256x576xbf16, #tpu.memory_space<vmem>>, vector<256x64xbf16>,
    %c1_43 = arith.constant 1 : index
    %c1_44 = arith.constant 1 : index
    %c0_45 = arith.constant 0 : index
    %69 = vector.load %arg11[%c1_43, %c1_44, %c0_45] : memref<18x18x64xf32, #tpu.memory_space<vmem>>, vector<16x16x64xf32>
    %70 = vector.shape_cast %69 : vector<16x16x64xf32> to vector<256x64xf32>
    %71 = arith.truncf %70 : vector<256x64xf32> to vector<256x64xbf16>
    %c0_46 = arith.constant 0 : index
    %c256 = arith.constant 256 : index
    %72 = vector.load %arg12[%c0_46, %c256] : memref<256x576xbf16, #tpu.memory_space<vmem>>, vector<256x64xbf16>
    tpu.vector_store %arg12[%c0_46, %c256], %71 {strides = array<i32>} : memref<256x576xbf16, #tpu.memory_space<vmem>>, vector<256x64xbf16>,
    %c1_47 = arith.constant 1 : index
    %c2_48 = arith.constant 2 : index
    %c0_49 = arith.constant 0 : index
    %73 = vector.load %arg11[%c1_47, %c2_48, %c0_49] : memref<18x18x64xf32, #tpu.memory_space<vmem>>, vector<16x16x64xf32>
    %74 = vector.shape_cast %73 : vector<16x16x64xf32> to vector<256x64xf32>
    %75 = arith.truncf %74 : vector<256x64xf32> to vector<256x64xbf16>
    %c0_50 = arith.constant 0 : index
    %c320 = arith.constant 320 : index
    %76 = vector.load %arg12[%c0_50, %c320] : memref<256x576xbf16, #tpu.memory_space<vmem>>, vector<256x64xbf16>
    tpu.vector_store %arg12[%c0_50, %c320], %75 {strides = array<i32>} : memref<256x576xbf16, #tpu.memory_space<vmem>>, vector<256x64xbf16>,
    %c2_51 = arith.constant 2 : index
    %c0_52 = arith.constant 0 : index
    %c0_53 = arith.constant 0 : index
    %77 = vector.load %arg11[%c2_51, %c0_52, %c0_53] : memref<18x18x64xf32, #tpu.memory_space<vmem>>, vector<16x16x64xf32>
    %78 = vector.shape_cast %77 : vector<16x16x64xf32> to vector<256x64xf32>
    %79 = arith.truncf %78 : vector<256x64xf32> to vector<256x64xbf16>
    %c0_54 = arith.constant 0 : index
    %c384 = arith.constant 384 : index
    %80 = vector.load %arg12[%c0_54, %c384] : memref<256x576xbf16, #tpu.memory_space<vmem>>, vector<256x64xbf16>
    tpu.vector_store %arg12[%c0_54, %c384], %79 {strides = array<i32>} : memref<256x576xbf16, #tpu.memory_space<vmem>>, vector<256x64xbf16>,
    %c2_55 = arith.constant 2 : index
    %c1_56 = arith.constant 1 : index
    %c0_57 = arith.constant 0 : index
    %81 = vector.load %arg11[%c2_55, %c1_56, %c0_57] : memref<18x18x64xf32, #tpu.memory_space<vmem>>, vector<16x16x64xf32>
    %82 = vector.shape_cast %81 : vector<16x16x64xf32> to vector<256x64xf32>
    %83 = arith.truncf %82 : vector<256x64xf32> to vector<256x64xbf16>
    %c0_58 = arith.constant 0 : index
    %c448 = arith.constant 448 : index
    %84 = vector.load %arg12[%c0_58, %c448] : memref<256x576xbf16, #tpu.memory_space<vmem>>, vector<256x64xbf16>
    tpu.vector_store %arg12[%c0_58, %c448], %83 {strides = array<i32>} : memref<256x576xbf16, #tpu.memory_space<vmem>>, vector<256x64xbf16>,
    %c2_59 = arith.constant 2 : index
    %c2_60 = arith.constant 2 : index
    %c0_61 = arith.constant 0 : index
    %85 = vector.load %arg11[%c2_59, %c2_60, %c0_61] : memref<18x18x64xf32, #tpu.memory_space<vmem>>, vector<16x16x64xf32>
    %86 = vector.shape_cast %85 : vector<16x16x64xf32> to vector<256x64xf32>
    %87 = arith.truncf %86 : vector<256x64xf32> to vector<256x64xbf16>
    %c0_62 = arith.constant 0 : index
    %c512 = arith.constant 512 : index
    %88 = vector.load %arg12[%c0_62, %c512] : memref<256x576xbf16, #tpu.memory_space<vmem>>, vector<256x64xbf16>
    tpu.vector_store %arg12[%c0_62, %c512], %87 {strides = array<i32>} : memref<256x576xbf16, #tpu.memory_space<vmem>>, vector<256x64xbf16>,
    %c0_63 = arith.constant 0 : index
    %c0_64 = arith.constant 0 : index
    %89 = vector.load %arg12[%c0_63, %c0_64] : memref<256x576xbf16, #tpu.memory_space<vmem>>, vector<256x576xbf16>
    %c0_65 = arith.constant 0 : index
    %c0_66 = arith.constant 0 : index
    %90 = vector.load %arg4[%c0_65, %c0_66] : memref<576x64xbf16, #tpu.memory_space<vmem>>, vector<576x64xbf16>
    %cst_67 = arith.constant dense<0.000000e+00> : vector<256x64xf32>
    %91 = tpu.matmul %89, %90, %cst_67 {dimension_numbers = #tpu.dot_dimension_numbers<[1], [0], [0], [1], [0, 0, 1, 1], [], []>} : vector<256x576xbf16>, vector<576x64xbf16>, vector<256x64xf32> -> vector<256x64xf32>
    %c0_68 = arith.constant 0 : index
    %c0_69 = arith.constant 0 : index
    %92 = vector.load %arg5[%c0_68, %c0_69] : memref<1x64xf32, #tpu.memory_space<vmem>>, vector<1x64xf32>
    %93 = vector.broadcast %92 : vector<1x64xf32> to vector<256x64xf32>
    %94 = arith.addf %91, %93 : vector<256x64xf32>
    %c0_70 = arith.constant 0 : index
    %c0_71 = arith.constant 0 : index
    %95 = vector.load %arg6[%c0_70, %c0_71] : memref<1x64xf32, #tpu.memory_space<vmem>>, vector<1x64xf32>
    %96 = vector.broadcast %95 : vector<1x64xf32> to vector<256x64xf32>
    %97 = arith.mulf %94, %96 : vector<256x64xf32>
    %c0_72 = arith.constant 0 : index
    %c0_73 = arith.constant 0 : index
    %98 = vector.load %arg7[%c0_72, %c0_73] : memref<1x64xf32, #tpu.memory_space<vmem>>, vector<1x64xf32>
    %99 = vector.broadcast %98 : vector<1x64xf32> to vector<256x64xf32>
    %100 = arith.addf %97, %99 : vector<256x64xf32>
    %cst_74 = arith.constant 5.000000e-01 : f32
    %101 = vector.broadcast %cst_74 : f32 to vector<256x64xf32>
    %102 = arith.mulf %101, %100 : vector<256x64xf32>
    %cst_75 = arith.constant 0.707106769 : f32
    %103 = vector.broadcast %cst_75 : f32 to vector<256x64xf32>
    %104 = arith.mulf %100, %103 : vector<256x64xf32>
    %105 = math.absf %104 : vector<256x64xf32>
    %cst_76 = arith.constant 0.327591091 : f32
    %106 = vector.broadcast %cst_76 : f32 to vector<256x64xf32>
    %107 = arith.mulf %106, %105 : vector<256x64xf32>
    %cst_77 = arith.constant 1.000000e+00 : f32
    %108 = vector.broadcast %cst_77 : f32 to vector<256x64xf32>
    %109 = arith.addf %108, %107 : vector<256x64xf32>
    %cst_78 = arith.constant 1.000000e+00 : f32
    %110 = vector.broadcast %cst_78 : f32 to vector<256x64xf32>
    %111 = arith.divf %110, %109 : vector<256x64xf32>
    %cst_79 = arith.constant 1.06140542 : f32
    %112 = vector.broadcast %cst_79 : f32 to vector<256x64xf32>
    %113 = arith.mulf %112, %111 : vector<256x64xf32>
    %cst_80 = arith.constant -1.45315206 : f32
    %114 = vector.broadcast %cst_80 : f32 to vector<256x64xf32>
    %115 = arith.addf %113, %114 : vector<256x64xf32>
    %116 = arith.mulf %115, %111 : vector<256x64xf32>
    %cst_81 = arith.constant 1.42141378 : f32
    %117 = vector.broadcast %cst_81 : f32 to vector<256x64xf32>
    %118 = arith.addf %116, %117 : vector<256x64xf32>
    %119 = arith.mulf %118, %111 : vector<256x64xf32>
    %cst_82 = arith.constant -0.284496725 : f32
    %120 = vector.broadcast %cst_82 : f32 to vector<256x64xf32>
    %121 = arith.addf %119, %120 : vector<256x64xf32>
    %122 = arith.mulf %121, %111 : vector<256x64xf32>
    %cst_83 = arith.constant 0.254829586 : f32
    %123 = vector.broadcast %cst_83 : f32 to vector<256x64xf32>
    %124 = arith.addf %122, %123 : vector<256x64xf32>
    %125 = arith.mulf %124, %111 : vector<256x64xf32>
    %cst_84 = arith.constant 0.000000e+00 : f32
    %126 = vector.broadcast %cst_84 : f32 to vector<256x64xf32>
    %127 = arith.subf %126, %105 : vector<256x64xf32>
    %128 = arith.mulf %127, %105 : vector<256x64xf32>
    %129 = math.exp %128 : vector<256x64xf32>
    %130 = arith.mulf %125, %129 : vector<256x64xf32>
    %cst_85 = arith.constant 1.000000e+00 : f32
    %131 = vector.broadcast %cst_85 : f32 to vector<256x64xf32>
    %132 = arith.subf %131, %130 : vector<256x64xf32>
    %cst_86 = arith.constant 0.000000e+00 : f32
    %133 = vector.broadcast %cst_86 : f32 to vector<256x64xf32>
    %134 = arith.cmpf oge, %104, %133 : vector<256x64xf32>
    %cst_87 = arith.constant 0.000000e+00 : f32
    %135 = vector.broadcast %cst_87 : f32 to vector<256x64xf32>
    %136 = arith.subf %135, %132 : vector<256x64xf32>
    %137 = arith.select %134, %132, %136 : vector<256x64xi1>, vector<256x64xf32>
    %cst_88 = arith.constant 1.000000e+00 : f32
    %138 = vector.broadcast %cst_88 : f32 to vector<256x64xf32>
    %139 = arith.addf %138, %137 : vector<256x64xf32>
    %140 = arith.mulf %102, %139 : vector<256x64xf32>
    %141 = vector.shape_cast %140 : vector<256x64xf32> to vector<16x16x64xf32>
    %cst_89 = arith.constant 0.000000e+00 : f32
    %142 = vector.broadcast %cst_89 : f32 to vector<18x18x64xf32>
    %c0_90 = arith.constant 0 : index
    %c0_91 = arith.constant 0 : index
    %c0_92 = arith.constant 0 : index
    %143 = vector.load %arg13[%c0_90, %c0_91, %c0_92] : memref<18x18x64xf32, #tpu.memory_space<vmem>>, vector<18x18x64xf32>
    tpu.vector_store %arg13[%c0_90, %c0_91, %c0_92], %142 {strides = array<i32>} : memref<18x18x64xf32, #tpu.memory_space<vmem>>, vector<18x18x64xf32>,
    %c1_93 = arith.constant 1 : index
    %c1_94 = arith.constant 1 : index
    %c0_95 = arith.constant 0 : index
    %144 = vector.load %arg13[%c1_93, %c1_94, %c0_95] : memref<18x18x64xf32, #tpu.memory_space<vmem>>, vector<16x16x64xf32>
    tpu.vector_store %arg13[%c1_93, %c1_94, %c0_95], %141 {strides = array<i32>} : memref<18x18x64xf32, #tpu.memory_space<vmem>>, vector<16x16x64xf32>,
    %c0_96 = arith.constant 0 : index
    %c0_97 = arith.constant 0 : index
    %c0_98 = arith.constant 0 : index
    %145 = vector.load %arg13[%c0_96, %c0_97, %c0_98] : memref<18x18x64xf32, #tpu.memory_space<vmem>>, vector<16x16x64xf32>
    %146 = vector.shape_cast %145 : vector<16x16x64xf32> to vector<256x64xf32>
    %147 = arith.truncf %146 : vector<256x64xf32> to vector<256x64xbf16>
    %c0_99 = arith.constant 0 : index
    %c0_100 = arith.constant 0 : index
    %148 = vector.load %arg14[%c0_99, %c0_100] : memref<256x576xbf16, #tpu.memory_space<vmem>>, vector<256x64xbf16>
    tpu.vector_store %arg14[%c0_99, %c0_100], %147 {strides = array<i32>} : memref<256x576xbf16, #tpu.memory_space<vmem>>, vector<256x64xbf16>,
    %c0_101 = arith.constant 0 : index
    %c1_102 = arith.constant 1 : index
    %c0_103 = arith.constant 0 : index
    %149 = vector.load %arg13[%c0_101, %c1_102, %c0_103] : memref<18x18x64xf32, #tpu.memory_space<vmem>>, vector<16x16x64xf32>
    %150 = vector.shape_cast %149 : vector<16x16x64xf32> to vector<256x64xf32>
    %151 = arith.truncf %150 : vector<256x64xf32> to vector<256x64xbf16>
    %c0_104 = arith.constant 0 : index
    %c64_105 = arith.constant 64 : index
    %152 = vector.load %arg14[%c0_104, %c64_105] : memref<256x576xbf16, #tpu.memory_space<vmem>>, vector<256x64xbf16>
    tpu.vector_store %arg14[%c0_104, %c64_105], %151 {strides = array<i32>} : memref<256x576xbf16, #tpu.memory_space<vmem>>, vector<256x64xbf16>,
    %c0_106 = arith.constant 0 : index
    %c2_107 = arith.constant 2 : index
    %c0_108 = arith.constant 0 : index
    %153 = vector.load %arg13[%c0_106, %c2_107, %c0_108] : memref<18x18x64xf32, #tpu.memory_space<vmem>>, vector<16x16x64xf32>
    %154 = vector.shape_cast %153 : vector<16x16x64xf32> to vector<256x64xf32>
    %155 = arith.truncf %154 : vector<256x64xf32> to vector<256x64xbf16>
    %c0_109 = arith.constant 0 : index
    %c128_110 = arith.constant 128 : index
    %156 = vector.load %arg14[%c0_109, %c128_110] : memref<256x576xbf16, #tpu.memory_space<vmem>>, vector<256x64xbf16>
    tpu.vector_store %arg14[%c0_109, %c128_110], %155 {strides = array<i32>} : memref<256x576xbf16, #tpu.memory_space<vmem>>, vector<256x64xbf16>,
    %c1_111 = arith.constant 1 : index
    %c0_112 = arith.constant 0 : index
    %c0_113 = arith.constant 0 : index
    %157 = vector.load %arg13[%c1_111, %c0_112, %c0_113] : memref<18x18x64xf32, #tpu.memory_space<vmem>>, vector<16x16x64xf32>
    %158 = vector.shape_cast %157 : vector<16x16x64xf32> to vector<256x64xf32>
    %159 = arith.truncf %158 : vector<256x64xf32> to vector<256x64xbf16>
    %c0_114 = arith.constant 0 : index
    %c192_115 = arith.constant 192 : index
    %160 = vector.load %arg14[%c0_114, %c192_115] : memref<256x576xbf16, #tpu.memory_space<vmem>>, vector<256x64xbf16>
    tpu.vector_store %arg14[%c0_114, %c192_115], %159 {strides = array<i32>} : memref<256x576xbf16, #tpu.memory_space<vmem>>, vector<256x64xbf16>,
    %c1_116 = arith.constant 1 : index
    %c1_117 = arith.constant 1 : index
    %c0_118 = arith.constant 0 : index
    %161 = vector.load %arg13[%c1_116, %c1_117, %c0_118] : memref<18x18x64xf32, #tpu.memory_space<vmem>>, vector<16x16x64xf32>
    %162 = vector.shape_cast %161 : vector<16x16x64xf32> to vector<256x64xf32>
    %163 = arith.truncf %162 : vector<256x64xf32> to vector<256x64xbf16>
    %c0_119 = arith.constant 0 : index
    %c256_120 = arith.constant 256 : index
    %164 = vector.load %arg14[%c0_119, %c256_120] : memref<256x576xbf16, #tpu.memory_space<vmem>>, vector<256x64xbf16>
    tpu.vector_store %arg14[%c0_119, %c256_120], %163 {strides = array<i32>} : memref<256x576xbf16, #tpu.memory_space<vmem>>, vector<256x64xbf16>,
    %c1_121 = arith.constant 1 : index
    %c2_122 = arith.constant 2 : index
    %c0_123 = arith.constant 0 : index
    %165 = vector.load %arg13[%c1_121, %c2_122, %c0_123] : memref<18x18x64xf32, #tpu.memory_space<vmem>>, vector<16x16x64xf32>
    %166 = vector.shape_cast %165 : vector<16x16x64xf32> to vector<256x64xf32>
    %167 = arith.truncf %166 : vector<256x64xf32> to vector<256x64xbf16>
    %c0_124 = arith.constant 0 : index
    %c320_125 = arith.constant 320 : index
    %168 = vector.load %arg14[%c0_124, %c320_125] : memref<256x576xbf16, #tpu.memory_space<vmem>>, vector<256x64xbf16>
    tpu.vector_store %arg14[%c0_124, %c320_125], %167 {strides = array<i32>} : memref<256x576xbf16, #tpu.memory_space<vmem>>, vector<256x64xbf16>,
    %c2_126 = arith.constant 2 : index
    %c0_127 = arith.constant 0 : index
    %c0_128 = arith.constant 0 : index
    %169 = vector.load %arg13[%c2_126, %c0_127, %c0_128] : memref<18x18x64xf32, #tpu.memory_space<vmem>>, vector<16x16x64xf32>
    %170 = vector.shape_cast %169 : vector<16x16x64xf32> to vector<256x64xf32>
    %171 = arith.truncf %170 : vector<256x64xf32> to vector<256x64xbf16>
    %c0_129 = arith.constant 0 : index
    %c384_130 = arith.constant 384 : index
    %172 = vector.load %arg14[%c0_129, %c384_130] : memref<256x576xbf16, #tpu.memory_space<vmem>>, vector<256x64xbf16>
    tpu.vector_store %arg14[%c0_129, %c384_130], %171 {strides = array<i32>} : memref<256x576xbf16, #tpu.memory_space<vmem>>, vector<256x64xbf16>,
    %c2_131 = arith.constant 2 : index
    %c1_132 = arith.constant 1 : index
    %c0_133 = arith.constant 0 : index
    %173 = vector.load %arg13[%c2_131, %c1_132, %c0_133] : memref<18x18x64xf32, #tpu.memory_space<vmem>>, vector<16x16x64xf32>
    %174 = vector.shape_cast %173 : vector<16x16x64xf32> to vector<256x64xf32>
    %175 = arith.truncf %174 : vector<256x64xf32> to vector<256x64xbf16>
    %c0_134 = arith.constant 0 : index
    %c448_135 = arith.constant 448 : index
    %176 = vector.load %arg14[%c0_134, %c448_135] : memref<256x576xbf16, #tpu.memory_space<vmem>>, vector<256x64xbf16>
    tpu.vector_store %arg14[%c0_134, %c448_135], %175 {strides = array<i32>} : memref<256x576xbf16, #tpu.memory_space<vmem>>, vector<256x64xbf16>,
    %c2_136 = arith.constant 2 : index
    %c2_137 = arith.constant 2 : index
    %c0_138 = arith.constant 0 : index
    %177 = vector.load %arg13[%c2_136, %c2_137, %c0_138] : memref<18x18x64xf32, #tpu.memory_space<vmem>>, vector<16x16x64xf32>
    %178 = vector.shape_cast %177 : vector<16x16x64xf32> to vector<256x64xf32>
    %179 = arith.truncf %178 : vector<256x64xf32> to vector<256x64xbf16>
    %c0_139 = arith.constant 0 : index
    %c512_140 = arith.constant 512 : index
    %180 = vector.load %arg14[%c0_139, %c512_140] : memref<256x576xbf16, #tpu.memory_space<vmem>>, vector<256x64xbf16>
    tpu.vector_store %arg14[%c0_139, %c512_140], %179 {strides = array<i32>} : memref<256x576xbf16, #tpu.memory_space<vmem>>, vector<256x64xbf16>,
    %c0_141 = arith.constant 0 : index
    %c0_142 = arith.constant 0 : index
    %181 = vector.load %arg14[%c0_141, %c0_142] : memref<256x576xbf16, #tpu.memory_space<vmem>>, vector<256x576xbf16>
    %c0_143 = arith.constant 0 : index
    %c0_144 = arith.constant 0 : index
    %182 = vector.load %arg8[%c0_143, %c0_144] : memref<576x64xbf16, #tpu.memory_space<vmem>>, vector<576x64xbf16>
    %cst_145 = arith.constant dense<0.000000e+00> : vector<256x64xf32>
    %183 = tpu.matmul %181, %182, %cst_145 {dimension_numbers = #tpu.dot_dimension_numbers<[1], [0], [0], [1], [0, 0, 1, 1], [], []>} : vector<256x576xbf16>, vector<576x64xbf16>, vector<256x64xf32> -> vector<256x64xf32>
    %c0_146 = arith.constant 0 : index
    %c0_147 = arith.constant 0 : index
    %184 = vector.load %arg9[%c0_146, %c0_147] : memref<1x64xf32, #tpu.memory_space<vmem>>, vector<1x64xf32>
    %185 = vector.broadcast %184 : vector<1x64xf32> to vector<256x64xf32>
    %186 = arith.addf %183, %185 : vector<256x64xf32>
    %187 = vector.shape_cast %1 : vector<16x16x64xf32> to vector<256x64xf32>
    %188 = arith.addf %186, %187 : vector<256x64xf32>
    %189 = vector.shape_cast %188 : vector<256x64xf32> to vector<16x16x64xf32>
    %c0_148 = arith.constant 0 : index
    %c0_149 = arith.constant 0 : index
    %c0_150 = arith.constant 0 : index
    %c0_151 = arith.constant 0 : index
    %190 = vector.load %arg10[%c0_148, %c0_149, %c0_150, %c0_151] : memref<1x16x16x64xf32, #tpu.memory_space<vmem>>, vector<1x16x16x64xf32>
    %191 = vector.shape_cast %190 : vector<1x16x16x64xf32> to vector<16x16x64xf32>
    %192 = vector.shape_cast %189 : vector<16x16x64xf32> to vector<1x16x16x64xf32>
    tpu.vector_store %arg10[%c0_148, %c0_149, %c0_150, %c0_151], %192 {strides = array<i32>} : memref<1x16x16x64xf32, #tpu.memory_space<vmem>>, vector<1x16x16x64xf32>,
    return
  }
  func.func @transform_0(%arg0: i32) -> (i32, i32, i32, i32) {
    %c0_i32 = arith.constant 0 : i32
    %c0_i32_0 = arith.constant 0 : i32
    %c0_i32_1 = arith.constant 0 : i32
    %c0_i32_2 = arith.constant 0 : i32
    return %arg0, %c0_i32, %c0_i32_0, %c0_i32_1 : i32, i32, i32, i32
  }
  func.func @transform_1(%arg0: i32) -> (i32, i32) {
    %c0_i32 = arith.constant 0 : i32
    %c0_i32_0 = arith.constant 0 : i32
    %c0_i32_1 = arith.constant 0 : i32
    return %c0_i32, %c0_i32_0 : i32, i32
  }
  func.func @transform_2(%arg0: i32) -> (i32, i32) {
    %c0_i32 = arith.constant 0 : i32
    %c0_i32_0 = arith.constant 0 : i32
    %c0_i32_1 = arith.constant 0 : i32
    return %c0_i32, %c0_i32_0 : i32, i32
  }
  func.func @transform_3(%arg0: i32) -> (i32, i32) {
    %c0_i32 = arith.constant 0 : i32
    %c0_i32_0 = arith.constant 0 : i32
    %c0_i32_1 = arith.constant 0 : i32
    return %c0_i32, %c0_i32_0 : i32, i32
  }
  func.func @transform_4(%arg0: i32) -> (i32, i32) {
    %c0_i32 = arith.constant 0 : i32
    %c0_i32_0 = arith.constant 0 : i32
    %c0_i32_1 = arith.constant 0 : i32
    return %c0_i32, %c0_i32_0 : i32, i32
  }
  func.func @transform_5(%arg0: i32) -> (i32, i32) {
    %c0_i32 = arith.constant 0 : i32
    %c0_i32_0 = arith.constant 0 : i32
    %c0_i32_1 = arith.constant 0 : i32
    return %c0_i32, %c0_i32_0 : i32, i32
  }
  func.func @transform_6(%arg0: i32) -> (i32, i32) {
    %c0_i32 = arith.constant 0 : i32
    %c0_i32_0 = arith.constant 0 : i32
    %c0_i32_1 = arith.constant 0 : i32
    return %c0_i32, %c0_i32_0 : i32, i32
  }
  func.func @transform_7(%arg0: i32) -> (i32, i32) {
    %c0_i32 = arith.constant 0 : i32
    %c0_i32_0 = arith.constant 0 : i32
    %c0_i32_1 = arith.constant 0 : i32
    return %c0_i32, %c0_i32_0 : i32, i32
  }
  func.func @transform_8(%arg0: i32) -> (i32, i32) {
    %c0_i32 = arith.constant 0 : i32
    %c0_i32_0 = arith.constant 0 : i32
    %c0_i32_1 = arith.constant 0 : i32
    return %c0_i32, %c0_i32_0 : i32, i32
  }
  func.func @transform_9(%arg0: i32) -> (i32, i32, i32, i32) {
    %c0_i32 = arith.constant 0 : i32
    %c0_i32_0 = arith.constant 0 : i32
    %c0_i32_1 = arith.constant 0 : i32
    %c0_i32_2 = arith.constant 0 : i32
    return %arg0, %c0_i32, %c0_i32_0, %c0_i32_1 : i32, i32, i32, i32
  }
}

</mosaic_0001>

<llo_original>
// kernel: preact_basic_forward.1
$region0: #{preact_basic_forward.1}
  #allocation0 [shape = 'u32[]', space=smem, size = 0x4, offset = 0x4, fixed_abs, tag = 'smem constant byte address 0x4 - core index']
  #allocation1 [shape = 'u32[144,128]{1,0:T(1,128)}', space=vmem, size = 0x12000, scoped, tag = 'internal scratch']
  #allocation2 [shape = 'f32[18,18,64]{2,1,0:T(8,128)}', space=vmem, size = 0x36000, scoped, tag = 'scratch operand']
  #allocation3 [shape = 'bf16[256,576]{1,0:T(16,128)(2,1)}', space=vmem, size = 0x50000, scoped, tag = 'scratch operand']
  #allocation4 [shape = 'f32[18,18,64]{2,1,0:T(8,128)}', space=vmem, size = 0x36000, scoped, tag = 'scratch operand']
  #allocation5 [shape = 'bf16[256,576]{1,0:T(16,128)(2,1)}', space=vmem, size = 0x50000, scoped, tag = 'scratch operand']
  %s0 = inlined_call_operand.vmem [shape: f32[2,16,16,64], index: 0, kind: input, shape index: {}]
  %s1 = inlined_call_operand.vmem [shape: f32[1,64], index: 1, kind: input, shape index: {}]
  %s2 = inlined_call_operand.vmem [shape: f32[1,64], index: 2, kind: input, shape index: {}]
  %s3 = inlined_call_operand.vmem [shape: bf16[576,64], index: 3, kind: input, shape index: {}]
  %s4 = inlined_call_operand.vmem [shape: f32[1,64], index: 4, kind: input, shape index: {}]
  %s5 = inlined_call_operand.vmem [shape: f32[1,64], index: 5, kind: input, shape index: {}]
  %s6 = inlined_call_operand.vmem [shape: f32[1,64], index: 6, kind: input, shape index: {}]
  %s7 = inlined_call_operand.vmem [shape: bf16[576,64], index: 7, kind: input, shape index: {}]
  %s8 = inlined_call_operand.vmem [shape: f32[1,64], index: 8, kind: input, shape index: {}]
  %s9 = inlined_call_operand.hbm [shape: f32[2,16,16,64], index: 9, kind: output, shape index: {}]
  %s10 = sld [smem:[#allocation0]]
  $region69: #{preact_basic_forward.1} parent=0
    _
  %s12 = ssub.s32 1, %s10
  %s13 = scalar_select 0, %s12, %s10
  $region1: #{preact_basic_forward.1} parent=0
    #allocation6 [shape = 'u8[262144]{0}', space=vmem, size = 0x40000, scoped, tag = 'output window, operand 0']
    #allocation7 [shape = 's32[2]{0}', space=sflag, size = 0x8, scoped, tag = 'scoped memory for preact_basic_forward.1']
    %14 = vsyncpa [#allocation7], 0
    %s15 = scalar_lea.sflag [#allocation7], 1
    %16 = vsyncpa %s15, 0
    loop: start=0, step=1, limit=4
    $region2: #{preact_basic_forward.1} parent=1 // loop_pre_header
      _
    $region3: #{preact_basic_forward.1} parent=1 // loop_header
      %s18 = sphi 0, %s22
      %p19 = scmp.ge.s32.totalorder %s18, 4
      %s28 = sphi 0, %s30
      %s31 = sphi 0, %s28
      %s32 = sphi 0, %s31
      %s48 = sphi 0, %s32
      %s52 = sphi 0, %s52
      %s54 = sphi 0, %s52
      %s55 = sphi 0, %s54
      %s69 = sphi 0, %s55
      %s73 = sphi 0, %s73
      %s75 = sphi 0, %s73
      %s76 = sphi 0, %s75
      %s90 = sphi 0, %s76
      %s94 = sphi 0, %s94
      %s96 = sphi 0, %s94
      %s97 = sphi 0, %s96
      %s111 = sphi 0, %s97
      %s115 = sphi 0, %s115
      %s117 = sphi 0, %s115
      %s118 = sphi 0, %s117
      %s132 = sphi 0, %s118
      %s136 = sphi 0, %s136
      %s138 = sphi 0, %s136
      %s139 = sphi 0, %s138
      %s153 = sphi 0, %s139
      %s157 = sphi 0, %s157
      %s159 = sphi 0, %s157
      %s160 = sphi 0, %s159
      %s174 = sphi 0, %s160
      %s178 = sphi 0, %s178
      %s180 = sphi 0, %s178
      %s181 = sphi 0, %s180
      %s195 = sphi 0, %s181
      %s199 = sphi 0, %s199
      %s201 = sphi 0, %s199
      %s202 = sphi 0, %s201
      %s216 = sphi 0, %s202
      %s222 = sphi 0, %s224
      %s225 = sphi 0, %s222
      %s226 = sphi 0, %s225
      %s242 = sphi 0, %s226
    $region4: #{preact_basic_forward.1} parent=1 // loop_header_branch
      %21 = sbr.rel (%p19) target = $region8
    $region5: #{preact_basic_forward.1} parent=1 // loop_body
      %s23 = ssub.s32 %s18, 1
      %s24 = ssub.s32 %s18, 2
      %s25 = sadd.s32 %s18, 1
      %s26 = ssub.s32 %s18, %s25
      %p27 = scmp.eq.s32.totalorder %s26, 0
      %s29 = sadd.s32 %s28, 1
      %s30 = scalar_select %p27, %s28, %s29
      %p33 = pneg %p27
      %p34 = scmp.eq.s32.totalorder %s18, 1
      %p35 = por %p33, %p34
      %p36 = scmp.ne.s32.totalorder %s28, %s31
      %p37 = scmp.eq.s32.totalorder %s18, 0
      %p38 = por %p36, %p37
      %p39 = scmp.ne.s32.totalorder %s28, %s31
      %p40 = scmp.eq.s32.totalorder %s23, 1
      %p41 = por %p39, %p40
      %p42 = scmp.ne.s32.totalorder %s31, %s32
      %p43 = scmp.eq.s32.totalorder %s23, 0
      %p44 = por %p42, %p43
      %p45 = scmp.ne.s32.totalorder %s31, %s32
      %p46 = scmp.eq.s32.totalorder %s24, 1
      %p47 = por %p45, %p46
      %p49 = scmp.ne.s32.totalorder %s32, %s48
      %p50 = scmp.eq.s32.totalorder %s24, 0
      %p51 = por %p49, %p50
      %s53 = sadd.s32 %s52, 1
      %p56 = scmp.eq.s32.totalorder %s18, 1
      %p57 = scmp.ne.s32.totalorder %s52, %s54
      %p58 = scmp.eq.s32.totalorder %s18, 0
      %p59 = por %p57, %p58
      %p60 = scmp.ne.s32.totalorder %s52, %s54
      %p61 = scmp.eq.s32.totalorder %s23, 1
      %p62 = por %p60, %p61
      %p63 = scmp.ne.s32.totalorder %s54, %s55
      %p64 = scmp.eq.s32.totalorder %s23, 0
      %p65 = por %p63, %p64
      %p66 = scmp.ne.s32.totalorder %s54, %s55
      %p67 = scmp.eq.s32.totalorder %s24, 1
      %p68 = por %p66, %p67
      %p70 = scmp.ne.s32.totalorder %s55, %s69
      %p71 = scmp.eq.s32.totalorder %s24, 0
      %p72 = por %p70, %p71
      %s74 = sadd.s32 %s73, 1
      %p77 = scmp.eq.s32.totalorder %s18, 1
      %p78 = scmp.ne.s32.totalorder %s73, %s75
      %p79 = scmp.eq.s32.totalorder %s18, 0
      %p80 = por %p78, %p79
      %p81 = scmp.ne.s32.totalorder %s73, %s75
      %p82 = scmp.eq.s32.totalorder %s23, 1
      %p83 = por %p81, %p82
      %p84 = scmp.ne.s32.totalorder %s75, %s76
      %p85 = scmp.eq.s32.totalorder %s23, 0
      %p86 = por %p84, %p85
      %p87 = scmp.ne.s32.totalorder %s75, %s76
      %p88 = scmp.eq.s32.totalorder %s24, 1
      %p89 = por %p87, %p88
      %p91 = scmp.ne.s32.totalorder %s76, %s90
      %p92 = scmp.eq.s32.totalorder %s24, 0
      %p93 = por %p91, %p92
      %s95 = sadd.s32 %s94, 1
      %p98 = scmp.eq.s32.totalorder %s18, 1
      %p99 = scmp.ne.s32.totalorder %s94, %s96
      %p100 = scmp.eq.s32.totalorder %s18, 0
      %p101 = por %p99, %p100
      %p102 = scmp.ne.s32.totalorder %s94, %s96
      %p103 = scmp.eq.s32.totalorder %s23, 1
      %p104 = por %p102, %p103
      %p105 = scmp.ne.s32.totalorder %s96, %s97
      %p106 = scmp.eq.s32.totalorder %s23, 0
      %p107 = por %p105, %p106
      %p108 = scmp.ne.s32.totalorder %s96, %s97
      %p109 = scmp.eq.s32.totalorder %s24, 1
      %p110 = por %p108, %p109
      %p112 = scmp.ne.s32.totalorder %s97, %s111
      %p113 = scmp.eq.s32.totalorder %s24, 0
      %p114 = por %p112, %p113
      %s116 = sadd.s32 %s115, 1
      %p119 = scmp.eq.s32.totalorder %s18, 1
      %p120 = scmp.ne.s32.totalorder %s115, %s117
      %p121 = scmp.eq.s32.totalorder %s18, 0
      %p122 = por %p120, %p121
      %p123 = scmp.ne.s32.totalorder %s115, %s117
      %p124 = scmp.eq.s32.totalorder %s23, 1
      %p125 = por %p123, %p124
      %p126 = scmp.ne.s32.totalorder %s117, %s118
      %p127 = scmp.eq.s32.totalorder %s23, 0
      %p128 = por %p126, %p127
      %p129 = scmp.ne.s32.totalorder %s117, %s118
      %p130 = scmp.eq.s32.totalorder %s24, 1
      %p131 = por %p129, %p130
      %p133 = scmp.ne.s32.totalorder %s118, %s132
      %p134 = scmp.eq.s32.totalorder %s24, 0
      %p135 = por %p133, %p134
      %s137 = sadd.s32 %s136, 1
      %p140 = scmp.eq.s32.totalorder %s18, 1
      %p141 = scmp.ne.s32.totalorder %s136, %s138
      %p142 = scmp.eq.s32.totalorder %s18, 0
      %p143 = por %p141, %p142
      %p144 = scmp.ne.s32.totalorder %s136, %s138
      %p145 = scmp.eq.s32.totalorder %s23, 1
      %p146 = por %p144, %p145
      %p147 = scmp.ne.s32.totalorder %s138, %s139
      %p148 = scmp.eq.s32.totalorder %s23, 0
      %p149 = por %p147, %p148
      %p150 = scmp.ne.s32.totalorder %s138, %s139
      %p151 = scmp.eq.s32.totalorder %s24, 1
      %p152 = por %p150, %p151
      %p154 = scmp.ne.s32.totalorder %s139, %s153
      %p155 = scmp.eq.s32.totalorder %s24, 0
      %p156 = por %p154, %p155
      %s158 = sadd.s32 %s157, 1
      %p161 = scmp.eq.s32.totalorder %s18, 1
      %p162 = scmp.ne.s32.totalorder %s157, %s159
      %p163 = scmp.eq.s32.totalorder %s18, 0
      %p164 = por %p162, %p163
      %p165 = scmp.ne.s32.totalorder %s157, %s159
      %p166 = scmp.eq.s32.totalorder %s23, 1
      %p167 = por %p165, %p166
      %p168 = scmp.ne.s32.totalorder %s159, %s160
      %p169 = scmp.eq.s32.totalorder %s23, 0
      %p170 = por %p168, %p169
      %p171 = scmp.ne.s32.totalorder %s159, %s160
      %p172 = scmp.eq.s32.totalorder %s24, 1
      %p173 = por %p171, %p172
      %p175 = scmp.ne.s32.totalorder %s160, %s174
      %p176 = scmp.eq.s32.totalorder %s24, 0
      %p177 = por %p175, %p176
      %s179 = sadd.s32 %s178, 1
      %p182 = scmp.eq.s32.totalorder %s18, 1
      %p183 = scmp.ne.s32.totalorder %s178, %s180
      %p184 = scmp.eq.s32.totalorder %s18, 0
      %p185 = por %p183, %p184
      %p186 = scmp.ne.s32.totalorder %s178, %s180
      %p187 = scmp.eq.s32.totalorder %s23, 1
      %p188 = por %p186, %p187
      %p189 = scmp.ne.s32.totalorder %s180, %s181
      %p190 = scmp.eq.s32.totalorder %s23, 0
      %p191 = por %p189, %p190
      %p192 = scmp.ne.s32.totalorder %s180, %s181
      %p193 = scmp.eq.s32.totalorder %s24, 1
      %p194 = por %p192, %p193
      %p196 = scmp.ne.s32.totalorder %s181, %s195
      %p197 = scmp.eq.s32.totalorder %s24, 0
      %p198 = por %p196, %p197
      %s200 = sadd.s32 %s199, 1
      %p203 = scmp.eq.s32.totalorder %s18, 1
      %p204 = scmp.ne.s32.totalorder %s199, %s201
      %p205 = scmp.eq.s32.totalorder %s18, 0
      %p206 = por %p204, %p205
      %p207 = scmp.ne.s32.totalorder %s199, %s201
      %p208 = scmp.eq.s32.totalorder %s23, 1
      %p209 = por %p207, %p208
      %p210 = scmp.ne.s32.totalorder %s201, %s202
      %p211 = scmp.eq.s32.totalorder %s23, 0
      %p212 = por %p210, %p211
      %p213 = scmp.ne.s32.totalorder %s201, %s202
      %p214 = scmp.eq.s32.totalorder %s24, 1
      %p215 = por %p213, %p214
      %p217 = scmp.ne.s32.totalorder %s202, %s216
      %p218 = scmp.eq.s32.totalorder %s24, 0
      %p219 = por %p217, %p218
      %s220 = ssub.s32 %s18, %s25
      %p221 = scmp.eq.s32.totalorder %s220, 0
      %s223 = sadd.s32 %s222, 1
      %s224 = scalar_select %p221, %s222, %s223
      %p227 = pneg %p221
      %p228 = scmp.eq.s32.totalorder %s18, 1
      %p229 = por %p227, %p228
      %p230 = scmp.ne.s32.totalorder %s222, %s225
      %p231 = scmp.eq.s32.totalorder %s18, 0
      %p232 = por %p230, %p231
      %p233 = scmp.ne.s32.totalorder %s222, %s225
      %p234 = scmp.eq.s32.totalorder %s23, 1
      %p235 = por %p233, %p234
      %p236 = scmp.ne.s32.totalorder %s225, %s226
      %p237 = scmp.eq.s32.totalorder %s23, 0
      %p238 = por %p236, %p237
      %p239 = scmp.ne.s32.totalorder %s225, %s226
      %p240 = scmp.eq.s32.totalorder %s24, 1
      %p241 = por %p239, %p240
      %p243 = scmp.ne.s32.totalorder %s226, %s242
      %p244 = scmp.eq.s32.totalorder %s24, 0
      %p245 = por %p243, %p244
      %p246 = scmp.le.s32.totalorder 1, %s18
      %p247 = scmp.lt.s32.totalorder %s18, 3
      %p248 = pnand %p246, %p247
      %p249 = pneg %p248
      // Predicated region
      $region9: #{preact_basic_forward.1} parent=5 // pred_check
        _
      $region10: #{preact_basic_forward.1} parent=5 // pred_check_branch
        %251 = sbr.rel (%p248) target = $region12
      $region11: #{preact_basic_forward.1} parent=5 // pred_region
        %s252 = ssub.s32 %s18, 1
        // Predicated region
        $region13: #{preact_basic_forward.1} parent=11 // pred_check
          %p253 = pneg %p65
        $region14: #{preact_basic_forward.1} parent=11 // pred_check_branch
          %255 = sbr.rel (%p253) target = $region16
        $region15: #{preact_basic_forward.1} parent=11 // pred_region
          _
        $region16: #{preact_basic_forward.1} parent=11 // pred_fallthru
          _
        // Predicated region
        $region17: #{preact_basic_forward.1} parent=11 // pred_check
          %p256 = pneg %p86
        $region18: #{preact_basic_forward.1} parent=11 // pred_check_branch
          %258 = sbr.rel (%p256) target = $region20
        $region19: #{preact_basic_forward.1} parent=11 // pred_region
          _
        $region20: #{preact_basic_forward.1} parent=11 // pred_fallthru
          _
        // Predicated region
        $region21: #{preact_basic_forward.1} parent=11 // pred_check
          %p259 = pneg %p107
        $region22: #{preact_basic_forward.1} parent=11 // pred_check_branch
          %261 = sbr.rel (%p259) target = $region24
        $region23: #{preact_basic_forward.1} parent=11 // pred_region
          _
        $region24: #{preact_basic_forward.1} parent=11 // pred_fallthru
          _
        // Predicated region
        $region25: #{preact_basic_forward.1} parent=11 // pred_check
          %p262 = pneg %p128
        $region26: #{preact_basic_forward.1} parent=11 // pred_check_branch
          %264 = sbr.rel (%p262) target = $region28
        $region27: #{preact_basic_forward.1} parent=11 // pred_region
          _
        $region28: #{preact_basic_forward.1} parent=11 // pred_fallthru
          _
        // Predicated region
        $region29: #{preact_basic_forward.1} parent=11 // pred_check
          %p265 = pneg %p149
        $region30: #{preact_basic_forward.1} parent=11 // pred_check_branch
          %267 = sbr.rel (%p265) target = $region32
        $region31: #{preact_basic_forward.1} parent=11 // pred_region
          _
        $region32: #{preact_basic_forward.1} parent=11 // pred_fallthru
          _
        // Predicated region
        $region33: #{preact_basic_forward.1} parent=11 // pred_check
          %p268 = pneg %p170
        $region34: #{preact_basic_forward.1} parent=11 // pred_check_branch
          %270 = sbr.rel (%p268) target = $region36
        $region35: #{preact_basic_forward.1} parent=11 // pred_region
          _
        $region36: #{preact_basic_forward.1} parent=11 // pred_fallthru
          _
        // Predicated region
        $region37: #{preact_basic_forward.1} parent=11 // pred_check
          %p271 = pneg %p191
        $region38: #{preact_basic_forward.1} parent=11 // pred_check_branch
          %273 = sbr.rel (%p271) target = $region40
        $region39: #{preact_basic_forward.1} parent=11 // pred_region
          _
        $region40: #{preact_basic_forward.1} parent=11 // pred_fallthru
          _
        // Predicated region
        $region41: #{preact_basic_forward.1} parent=11 // pred_check
          %p274 = pneg %p212
        $region42: #{preact_basic_forward.1} parent=11 // pred_check_branch
          %276 = sbr.rel (%p274) target = $region44
        $region43: #{preact_basic_forward.1} parent=11 // pred_region
          _
        $region44: #{preact_basic_forward.1} parent=11 // pred_fallthru
          _
      $region12: #{preact_basic_forward.1} parent=5 // pred_fallthru
        _
      %p277 = scmp.lt.s32.totalorder %s18, 2
      // Predicated region
      $region45: #{preact_basic_forward.1} parent=5 // pred_check
        %p278 = pneg %p277
      $region46: #{preact_basic_forward.1} parent=5 // pred_check_branch
        %280 = sbr.rel (%p278) target = $region48
      $region47: #{preact_basic_forward.1} parent=5 // pred_region
        // Predicated region
        $region49: #{preact_basic_forward.1} parent=47 // pred_check
          %p281 = pneg %p38
        $region50: #{preact_basic_forward.1} parent=47 // pred_check_branch
          %283 = sbr.rel (%p281) target = $region52
        $region51: #{preact_basic_forward.1} parent=47 // pred_region
          %p284 = scmp.lt.s32.totalorder %s18, 1
          %s285 = scalar_select %p284, %s18, 1
          %s286 = smul.addr %s285, 32
          %s287 = smul.addr %s286, 8
          %s288 = scalar_lea.vmem %s0, %s287
        $region52: #{preact_basic_forward.1} parent=47 // pred_fallthru
          _
      $region48: #{preact_basic_forward.1} parent=5 // pred_fallthru
        _
      %p289 = scmp.le.s32.totalorder 1, %s18
      %p290 = scmp.lt.s32.totalorder %s18, 3
      %p291 = pnand %p289, %p290
      %p292 = pneg %p291
      // Predicated region
      $region53: #{preact_basic_forward.1} parent=5 // pred_check
        _
      $region54: #{preact_basic_forward.1} parent=5 // pred_check_branch
        %294 = sbr.rel (%p291) target = $region56
      $region55: #{preact_basic_forward.1} parent=5 // pred_region
        %s295 = ssub.s32 %s18, 1
        %p296 = scmp.lt.s32.totalorder %s23, 1
        %s297 = scalar_select %p296, %s23, 1
        %s298 = smul.addr %s297, 32
        %s299 = smul.addr %s298, 8
        %s300 = scalar_lea.vmem %s0, %s299
        %p301 = pneg %p44
        %p302 = pneg %p41
        %p303 = pneg %p65
        %p304 = pneg %p62
        %p305 = pneg %p86
        %p306 = pneg %p83
        %p307 = pneg %p107
        %p308 = pneg %p104
        %p309 = pneg %p128
        %p310 = pneg %p125
        %p311 = pneg %p149
        %p312 = pneg %p146
        %p313 = pneg %p170
        %p314 = pneg %p167
        %p315 = pneg %p191
        %p316 = pneg %p188
        %p317 = pneg %p212
        %p318 = pneg %p209
        %p319 = pneg %p238
        %p320 = pneg %p235
        %s321 = sand.u32 %s225, 1
        %s322 = scalar_lea.sflag [#allocation7], %s321
        %s323 = sand.u32 %s225, 1
        %s324 = smul.addr %s323, 256
        %s325 = scalar_lea.vmem [#allocation6], %s324
        %p326 = scmp.lt.s32.totalorder %s23, 1
        %s327 = scalar_select %p326, %s23, 1
        %s328 = smul.addr %s327, 32
        %s329 = smul.addr %s328, 8
        %s330 = scalar_lea.vmem %s0, %s329
        %v332 = vld [vmem:[%s330] sm:$0xff]
        %v333 = vld [vmem:[%s330 + $0x8] sm:$0xff]
        %v334 = vld [vmem:[%s330 + $0x10] sm:$0xff]
        %v335 = vld [vmem:[%s330 + $0x18] sm:$0xff]
        %v336 = vld [vmem:[%s330 + $0x20] sm:$0xff]
        %v337 = vld [vmem:[%s330 + $0x28] sm:$0xff]
        %v338 = vld [vmem:[%s330 + $0x30] sm:$0xff]
        %v339 = vld [vmem:[%s330 + $0x38] sm:$0xff]
        %v340 = vld [vmem:[%s330 + $0x40] sm:$0xff]
        %v341 = vld [vmem:[%s330 + $0x48] sm:$0xff]
        %v342 = vld [vmem:[%s330 + $0x50] sm:$0xff]
        %v343 = vld [vmem:[%s330 + $0x58] sm:$0xff]
        %v344 = vld [vmem:[%s330 + $0x60] sm:$0xff]
        %v345 = vld [vmem:[%s330 + $0x68] sm:$0xff]
        %v346 = vld [vmem:[%s330 + $0x70] sm:$0xff]
        %v347 = vld [vmem:[%s330 + $0x78] sm:$0xff]
        %v348 = vld [vmem:[%s330 + $0x80] sm:$0xff]
        %v349 = vld [vmem:[%s330 + $0x88] sm:$0xff]
        %v350 = vld [vmem:[%s330 + $0x90] sm:$0xff]
        %v351 = vld [vmem:[%s330 + $0x98] sm:$0xff]
        %v352 = vld [vmem:[%s330 + $0xa0] sm:$0xff]
        %v353 = vld [vmem:[%s330 + $0xa8] sm:$0xff]
        %v354 = vld [vmem:[%s330 + $0xb0] sm:$0xff]
        %v355 = vld [vmem:[%s330 + $0xb8] sm:$0xff]
        %v356 = vld [vmem:[%s330 + $0xc0] sm:$0xff]
        %v357 = vld [vmem:[%s330 + $0xc8] sm:$0xff]
        %v358 = vld [vmem:[%s330 + $0xd0] sm:$0xff]
        %v359 = vld [vmem:[%s330 + $0xd8] sm:$0xff]
        %v360 = vld [vmem:[%s330 + $0xe0] sm:$0xff]
        %v361 = vld [vmem:[%s330 + $0xe8] sm:$0xff]
        %v362 = vld [vmem:[%s330 + $0xf0] sm:$0xff]
        %v363 = vld [vmem:[%s330 + $0xf8] sm:$0xff]
        %v364 = vld [vmem:[%s1] sm:$0x1]
        %v366 = vlaneseq
        %v367 = vshrl.u32 %v366, 7
        %v368 = vsub.s32 0, %v367
        %v369 = vrot.slane %v364, %v368
        %v371 = vmul.f32 %v332, %v369
        %v372 = vmul.f32 %v333, %v369
        %v373 = vmul.f32 %v334, %v369
        %v374 = vmul.f32 %v335, %v369
        %v375 = vmul.f32 %v336, %v369
        %v376 = vmul.f32 %v337, %v369
        %v377 = vmul.f32 %v338, %v369
        %v378 = vmul.f32 %v339, %v369
        %v379 = vmul.f32 %v340, %v369
        %v380 = vmul.f32 %v341, %v369
        %v381 = vmul.f32 %v342, %v369
        %v382 = vmul.f32 %v343, %v369
        %v383 = vmul.f32 %v344, %v369
        %v384 = vmul.f32 %v345, %v369
        %v385 = vmul.f32 %v346, %v369
        %v386 = vmul.f32 %v347, %v369
        %v387 = vmul.f32 %v348, %v369
        %v388 = vmul.f32 %v349, %v369
        %v389 = vmul.f32 %v350, %v369
        %v390 = vmul.f32 %v351, %v369
        %v391 = vmul.f32 %v352, %v369
        %v392 = vmul.f32 %v353, %v369
        %v393 = vmul.f32 %v354, %v369
        %v394 = vmul.f32 %v355, %v369
        %v395 = vmul.f32 %v356, %v369
        %v396 = vmul.f32 %v357, %v369
        %v397 = vmul.f32 %v358, %v369
        %v398 = vmul.f32 %v359, %v369
        %v399 = vmul.f32 %v360, %v369
        %v400 = vmul.f32 %v361, %v369
        %v401 = vmul.f32 %v362, %v369
        %v402 = vmul.f32 %v363, %v369
        %v403 = vld [vmem:[%s2] sm:$0x1]
        %v405 = vlaneseq
        %v406 = vshrl.u32 %v405, 7
        %v407 = vsub.s32 0, %v406
        %v408 = vrot.slane %v403, %v407
        %v410 = vadd.f32 %v371, %v408
        %v411 = vadd.f32 %v372, %v408
        %v412 = vadd.f32 %v373, %v408
        %v413 = vadd.f32 %v374, %v408
        %v414 = vadd.f32 %v375, %v408
        %v415 = vadd.f32 %v376, %v408
        %v416 = vadd.f32 %v377, %v408
        %v417 = vadd.f32 %v378, %v408
        %v418 = vadd.f32 %v379, %v408
        %v419 = vadd.f32 %v380, %v408
        %v420 = vadd.f32 %v381, %v408
        %v421 = vadd.f32 %v382, %v408
        %v422 = vadd.f32 %v383, %v408
        %v423 = vadd.f32 %v384, %v408
        %v424 = vadd.f32 %v385, %v408
        %v425 = vadd.f32 %v386, %v408
        %v426 = vadd.f32 %v387, %v408
        %v427 = vadd.f32 %v388, %v408
        %v428 = vadd.f32 %v389, %v408
        %v429 = vadd.f32 %v390, %v408
        %v430 = vadd.f32 %v391, %v408
        %v431 = vadd.f32 %v392, %v408
        %v432 = vadd.f32 %v393, %v408
        %v433 = vadd.f32 %v394, %v408
        %v434 = vadd.f32 %v395, %v408
        %v435 = vadd.f32 %v396, %v408
        %v436 = vadd.f32 %v397, %v408
        %v437 = vadd.f32 %v398, %v408
        %v438 = vadd.f32 %v399, %v408
        %v439 = vadd.f32 %v400, %v408
        %v440 = vadd.f32 %v401, %v408
        %v441 = vadd.f32 %v402, %v408
        %v442 = vmul.f32 %v410, 0.5
        %v443 = vmul.f32 %v411, 0.5
        %v444 = vmul.f32 %v412, 0.5
        %v445 = vmul.f32 %v413, 0.5
        %v446 = vmul.f32 %v414, 0.5
        %v447 = vmul.f32 %v415, 0.5
        %v448 = vmul.f32 %v416, 0.5
        %v449 = vmul.f32 %v417, 0.5
        %v450 = vmul.f32 %v418, 0.5
        %v451 = vmul.f32 %v419, 0.5
        %v452 = vmul.f32 %v420, 0.5
        %v453 = vmul.f32 %v421, 0.5
        %v454 = vmul.f32 %v422, 0.5
        %v455 = vmul.f32 %v423, 0.5
        %v456 = vmul.f32 %v424, 0.5
        %v457 = vmul.f32 %v425, 0.5
        %v458 = vmul.f32 %v426, 0.5
        %v459 = vmul.f32 %v427, 0.5
        %v460 = vmul.f32 %v428, 0.5
        %v461 = vmul.f32 %v429, 0.5
        %v462 = vmul.f32 %v430, 0.5
        %v463 = vmul.f32 %v431, 0.5
        %v464 = vmul.f32 %v432, 0.5
        %v465 = vmul.f32 %v433, 0.5
        %v466 = vmul.f32 %v434, 0.5
        %v467 = vmul.f32 %v435, 0.5
        %v468 = vmul.f32 %v436, 0.5
        %v469 = vmul.f32 %v437, 0.5
        %v470 = vmul.f32 %v438, 0.5
        %v471 = vmul.f32 %v439, 0.5
        %v472 = vmul.f32 %v440, 0.5
        %v473 = vmul.f32 %v441, 0.5
        %v474 = vmul.f32 %v410, 0.70710677
        %v475 = vmul.f32 %v411, 0.70710677
        %v476 = vmul.f32 %v412, 0.70710677
        %v477 = vmul.f32 %v413, 0.70710677
        %v478 = vmul.f32 %v414, 0.70710677
        %v479 = vmul.f32 %v415, 0.70710677
        %v480 = vmul.f32 %v416, 0.70710677
        %v481 = vmul.f32 %v417, 0.70710677
        %v482 = vmul.f32 %v418, 0.70710677
        %v483 = vmul.f32 %v419, 0.70710677
        %v484 = vmul.f32 %v420, 0.70710677
        %v485 = vmul.f32 %v421, 0.70710677
        %v486 = vmul.f32 %v422, 0.70710677
        %v487 = vmul.f32 %v423, 0.70710677
        %v488 = vmul.f32 %v424, 0.70710677
        %v489 = vmul.f32 %v425, 0.70710677
        %v490 = vmul.f32 %v426, 0.70710677
        %v491 = vmul.f32 %v427, 0.70710677
        %v492 = vmul.f32 %v428, 0.70710677
        %v493 = vmul.f32 %v429, 0.70710677
        %v494 = vmul.f32 %v430, 0.70710677
        %v495 = vmul.f32 %v431, 0.70710677
        %v496 = vmul.f32 %v432, 0.70710677
        %v497 = vmul.f32 %v433, 0.70710677
        %v498 = vmul.f32 %v434, 0.70710677
        %v499 = vmul.f32 %v435, 0.70710677
        %v500 = vmul.f32 %v436, 0.70710677
        %v501 = vmul.f32 %v437, 0.70710677
        %v502 = vmul.f32 %v438, 0.70710677
        %v503 = vmul.f32 %v439, 0.70710677
        %v504 = vmul.f32 %v440, 0.70710677
        %v505 = vmul.f32 %v441, 0.70710677
        %v506 = vand.u32 2147483647, %v474
        %v507 = vand.u32 2147483647, %v475
        %v508 = vand.u32 2147483647, %v476
        %v509 = vand.u32 2147483647, %v477
        %v510 = vand.u32 2147483647, %v478
        %v511 = vand.u32 2147483647, %v479
        %v512 = vand.u32 2147483647, %v480
        %v513 = vand.u32 2147483647, %v481
        %v514 = vand.u32 2147483647, %v482
        %v515 = vand.u32 2147483647, %v483
        %v516 = vand.u32 2147483647, %v484
        %v517 = vand.u32 2147483647, %v485
        %v518 = vand.u32 2147483647, %v486
        %v519 = vand.u32 2147483647, %v487
        %v520 = vand.u32 2147483647, %v488
        %v521 = vand.u32 2147483647, %v489
        %v522 = vand.u32 2147483647, %v490
        %v523 = vand.u32 2147483647, %v491
        %v524 = vand.u32 2147483647, %v492
        %v525 = vand.u32 2147483647, %v493
        %v526 = vand.u32 2147483647, %v494
        %v527 = vand.u32 2147483647, %v495
        %v528 = vand.u32 2147483647, %v496
        %v529 = vand.u32 2147483647, %v497
        %v530 = vand.u32 2147483647, %v498
        %v531 = vand.u32 2147483647, %v499
        %v532 = vand.u32 2147483647, %v500
        %v533 = vand.u32 2147483647, %v501
        %v534 = vand.u32 2147483647, %v502
        %v535 = vand.u32 2147483647, %v503
        %v536 = vand.u32 2147483647, %v504
        %v537 = vand.u32 2147483647, %v505
        %v538 = vmul.f32 %v506, 0.3275911
        %v539 = vmul.f32 %v507, 0.3275911
        %v540 = vmul.f32 %v508, 0.3275911
        %v541 = vmul.f32 %v509, 0.3275911
        %v542 = vmul.f32 %v510, 0.3275911
        %v543 = vmul.f32 %v511, 0.3275911
        %v544 = vmul.f32 %v512, 0.3275911
        %v545 = vmul.f32 %v513, 0.3275911
        %v546 = vmul.f32 %v514, 0.3275911
        %v547 = vmul.f32 %v515, 0.3275911
        %v548 = vmul.f32 %v516, 0.3275911
        %v549 = vmul.f32 %v517, 0.3275911
        %v550 = vmul.f32 %v518, 0.3275911
        %v551 = vmul.f32 %v519, 0.3275911
        %v552 = vmul.f32 %v520, 0.3275911
        %v553 = vmul.f32 %v521, 0.3275911
        %v554 = vmul.f32 %v522, 0.3275911
        %v555 = vmul.f32 %v523, 0.3275911
        %v556 = vmul.f32 %v524, 0.3275911
        %v557 = vmul.f32 %v525, 0.3275911
        %v558 = vmul.f32 %v526, 0.3275911
        %v559 = vmul.f32 %v527, 0.3275911
        %v560 = vmul.f32 %v528, 0.3275911
        %v561 = vmul.f32 %v529, 0.3275911
        %v562 = vmul.f32 %v530, 0.3275911
        %v563 = vmul.f32 %v531, 0.3275911
        %v564 = vmul.f32 %v532, 0.3275911
        %v565 = vmul.f32 %v533, 0.3275911
        %v566 = vmul.f32 %v534, 0.3275911
        %v567 = vmul.f32 %v535, 0.3275911
        %v568 = vmul.f32 %v536, 0.3275911
        %v569 = vmul.f32 %v537, 0.3275911
        %v570 = vadd.f32 %v538, 1.0
        %v571 = vadd.f32 %v539, 1.0
        %v572 = vadd.f32 %v540, 1.0
        %v573 = vadd.f32 %v541, 1.0
        %v574 = vadd.f32 %v542, 1.0
        %v575 = vadd.f32 %v543, 1.0
        %v576 = vadd.f32 %v544, 1.0
        %v577 = vadd.f32 %v545, 1.0
        %v578 = vadd.f32 %v546, 1.0
        %v579 = vadd.f32 %v547, 1.0
        %v580 = vadd.f32 %v548, 1.0
        %v581 = vadd.f32 %v549, 1.0
        %v582 = vadd.f32 %v550, 1.0
        %v583 = vadd.f32 %v551, 1.0
        %v584 = vadd.f32 %v552, 1.0
        %v585 = vadd.f32 %v553, 1.0
        %v586 = vadd.f32 %v554, 1.0
        %v587 = vadd.f32 %v555, 1.0
        %v588 = vadd.f32 %v556, 1.0
        %v589 = vadd.f32 %v557, 1.0
        %v590 = vadd.f32 %v558, 1.0
        %v591 = vadd.f32 %v559, 1.0
        %v592 = vadd.f32 %v560, 1.0
        %v593 = vadd.f32 %v561, 1.0
        %v594 = vadd.f32 %v562, 1.0
        %v595 = vadd.f32 %v563, 1.0
        %v596 = vadd.f32 %v564, 1.0
        %v597 = vadd.f32 %v565, 1.0
        %v598 = vadd.f32 %v566, 1.0
        %v599 = vadd.f32 %v567, 1.0
        %v600 = vadd.f32 %v568, 1.0
        %v601 = vadd.f32 %v569, 1.0
        %v602 = vrcp.pop %v570
        %v603 = vmul.f32 1.0, %v602
        %v604 = vrcp.pop %v571
        %v605 = vmul.f32 1.0, %v604
        %v606 = vrcp.pop %v572
        %v607 = vmul.f32 1.0, %v606
        %v608 = vrcp.pop %v573
        %v609 = vmul.f32 1.0, %v608
        %v610 = vrcp.pop %v574
        %v611 = vmul.f32 1.0, %v610
        %v612 = vrcp.pop %v575
        %v613 = vmul.f32 1.0, %v612
        %v614 = vrcp.pop %v576
        %v615 = vmul.f32 1.0, %v614
        %v616 = vrcp.pop %v577
        %v617 = vmul.f32 1.0, %v616
        %v618 = vrcp.pop %v578
        %v619 = vmul.f32 1.0, %v618
        %v620 = vrcp.pop %v579
        %v621 = vmul.f32 1.0, %v620
        %v622 = vrcp.pop %v580
        %v623 = vmul.f32 1.0, %v622
        %v624 = vrcp.pop %v581
        %v625 = vmul.f32 1.0, %v624
        %v626 = vrcp.pop %v582
        %v627 = vmul.f32 1.0, %v626
        %v628 = vrcp.pop %v583
        %v629 = vmul.f32 1.0, %v628
        %v630 = vrcp.pop %v584
        %v631 = vmul.f32 1.0, %v630
        %v632 = vrcp.pop %v585
        %v633 = vmul.f32 1.0, %v632
        %v634 = vrcp.pop %v586
        %v635 = vmul.f32 1.0, %v634
        %v636 = vrcp.pop %v587
        %v637 = vmul.f32 1.0, %v636
        %v638 = vrcp.pop %v588
        %v639 = vmul.f32 1.0, %v638
        %v640 = vrcp.pop %v589
        %v641 = vmul.f32 1.0, %v640
        %v642 = vrcp.pop %v590
        %v643 = vmul.f32 1.0, %v642
        %v644 = vrcp.pop %v591
        %v645 = vmul.f32 1.0, %v644
        %v646 = vrcp.pop %v592
        %v647 = vmul.f32 1.0, %v646
        %v648 = vrcp.pop %v593
        %v649 = vmul.f32 1.0, %v648
        %v650 = vrcp.pop %v594
        %v651 = vmul.f32 1.0, %v650
        %v652 = vrcp.pop %v595
        %v653 = vmul.f32 1.0, %v652
        %v654 = vrcp.pop %v596
        %v655 = vmul.f32 1.0, %v654
        %v656 = vrcp.pop %v597
        %v657 = vmul.f32 1.0, %v656
        %v658 = vrcp.pop %v598
        %v659 = vmul.f32 1.0, %v658
        %v660 = vrcp.pop %v599
        %v661 = vmul.f32 1.0, %v660
        %v662 = vrcp.pop %v600
        %v663 = vmul.f32 1.0, %v662
        %v664 = vrcp.pop %v601
        %v665 = vmul.f32 1.0, %v664
        %v666 = vmul.f32 %v603, 1.0614054
        %v667 = vmul.f32 %v605, 1.0614054
        %v668 = vmul.f32 %v607, 1.0614054
        %v669 = vmul.f32 %v609, 1.0614054
        %v670 = vmul.f32 %v611, 1.0614054
        %v671 = vmul.f32 %v613, 1.0614054
        %v672 = vmul.f32 %v615, 1.0614054
        %v673 = vmul.f32 %v617, 1.0614054
        %v674 = vmul.f32 %v619, 1.0614054
        %v675 = vmul.f32 %v621, 1.0614054
        %v676 = vmul.f32 %v623, 1.0614054
        %v677 = vmul.f32 %v625, 1.0614054
        %v678 = vmul.f32 %v627, 1.0614054
        %v679 = vmul.f32 %v629, 1.0614054
        %v680 = vmul.f32 %v631, 1.0614054
        %v681 = vmul.f32 %v633, 1.0614054
        %v682 = vmul.f32 %v635, 1.0614054
        %v683 = vmul.f32 %v637, 1.0614054
        %v684 = vmul.f32 %v639, 1.0614054
        %v685 = vmul.f32 %v641, 1.0614054
        %v686 = vmul.f32 %v643, 1.0614054
        %v687 = vmul.f32 %v645, 1.0614054
        %v688 = vmul.f32 %v647, 1.0614054
        %v689 = vmul.f32 %v649, 1.0614054
        %v690 = vmul.f32 %v651, 1.0614054
        %v691 = vmul.f32 %v653, 1.0614054
        %v692 = vmul.f32 %v655, 1.0614054
        %v693 = vmul.f32 %v657, 1.0614054
        %v694 = vmul.f32 %v659, 1.0614054
        %v695 = vmul.f32 %v661, 1.0614054
        %v696 = vmul.f32 %v663, 1.0614054
        %v697 = vmul.f32 %v665, 1.0614054
        %v698 = vadd.f32 %v666, -1.4531521
        %v699 = vadd.f32 %v667, -1.4531521
        %v700 = vadd.f32 %v668, -1.4531521
        %v701 = vadd.f32 %v669, -1.4531521
        %v702 = vadd.f32 %v670, -1.4531521
        %v703 = vadd.f32 %v671, -1.4531521
        %v704 = vadd.f32 %v672, -1.4531521
        %v705 = vadd.f32 %v673, -1.4531521
        %v706 = vadd.f32 %v674, -1.4531521
        %v707 = vadd.f32 %v675, -1.4531521
        %v708 = vadd.f32 %v676, -1.4531521
        %v709 = vadd.f32 %v677, -1.4531521
        %v710 = vadd.f32 %v678, -1.4531521
        %v711 = vadd.f32 %v679, -1.4531521
        %v712 = vadd.f32 %v680, -1.4531521
        %v713 = vadd.f32 %v681, -1.4531521
        %v714 = vadd.f32 %v682, -1.4531521
        %v715 = vadd.f32 %v683, -1.4531521
        %v716 = vadd.f32 %v684, -1.4531521
        %v717 = vadd.f32 %v685, -1.4531521
        %v718 = vadd.f32 %v686, -1.4531521
        %v719 = vadd.f32 %v687, -1.4531521
        %v720 = vadd.f32 %v688, -1.4531521
        %v721 = vadd.f32 %v689, -1.4531521
        %v722 = vadd.f32 %v690, -1.4531521
        %v723 = vadd.f32 %v691, -1.4531521
        %v724 = vadd.f32 %v692, -1.4531521
        %v725 = vadd.f32 %v693, -1.4531521
        %v726 = vadd.f32 %v694, -1.4531521
        %v727 = vadd.f32 %v695, -1.4531521
        %v728 = vadd.f32 %v696, -1.4531521
        %v729 = vadd.f32 %v697, -1.4531521
        %v730 = vmul.f32 %v698, %v603
        %v731 = vmul.f32 %v699, %v605
        %v732 = vmul.f32 %v700, %v607
        %v733 = vmul.f32 %v701, %v609
        %v734 = vmul.f32 %v702, %v611
        %v735 = vmul.f32 %v703, %v613
        %v736 = vmul.f32 %v704, %v615
        %v737 = vmul.f32 %v705, %v617
        %v738 = vmul.f32 %v706, %v619
        %v739 = vmul.f32 %v707, %v621
        %v740 = vmul.f32 %v708, %v623
        %v741 = vmul.f32 %v709, %v625
        %v742 = vmul.f32 %v710, %v627
        %v743 = vmul.f32 %v711, %v629
        %v744 = vmul.f32 %v712, %v631
        %v745 = vmul.f32 %v713, %v633
        %v746 = vmul.f32 %v714, %v635
        %v747 = vmul.f32 %v715, %v637
        %v748 = vmul.f32 %v716, %v639
        %v749 = vmul.f32 %v717, %v641
        %v750 = vmul.f32 %v718, %v643
        %v751 = vmul.f32 %v719, %v645
        %v752 = vmul.f32 %v720, %v647
        %v753 = vmul.f32 %v721, %v649
        %v754 = vmul.f32 %v722, %v651
        %v755 = vmul.f32 %v723, %v653
        %v756 = vmul.f32 %v724, %v655
        %v757 = vmul.f32 %v725, %v657
        %v758 = vmul.f32 %v726, %v659
        %v759 = vmul.f32 %v727, %v661
        %v760 = vmul.f32 %v728, %v663
        %v761 = vmul.f32 %v729, %v665
        %v762 = vadd.f32 %v730, 1.4214138
        %v763 = vadd.f32 %v731, 1.4214138
        %v764 = vadd.f32 %v732, 1.4214138
        %v765 = vadd.f32 %v733, 1.4214138
        %v766 = vadd.f32 %v734, 1.4214138
        %v767 = vadd.f32 %v735, 1.4214138
        %v768 = vadd.f32 %v736, 1.4214138
        %v769 = vadd.f32 %v737, 1.4214138
        %v770 = vadd.f32 %v738, 1.4214138
        %v771 = vadd.f32 %v739, 1.4214138
        %v772 = vadd.f32 %v740, 1.4214138
        %v773 = vadd.f32 %v741, 1.4214138
        %v774 = vadd.f32 %v742, 1.4214138
        %v775 = vadd.f32 %v743, 1.4214138
        %v776 = vadd.f32 %v744, 1.4214138
        %v777 = vadd.f32 %v745, 1.4214138
        %v778 = vadd.f32 %v746, 1.4214138
        %v779 = vadd.f32 %v747, 1.4214138
        %v780 = vadd.f32 %v748, 1.4214138
        %v781 = vadd.f32 %v749, 1.4214138
        %v782 = vadd.f32 %v750, 1.4214138
        %v783 = vadd.f32 %v751, 1.4214138
        %v784 = vadd.f32 %v752, 1.4214138
        %v785 = vadd.f32 %v753, 1.4214138
        %v786 = vadd.f32 %v754, 1.4214138
        %v787 = vadd.f32 %v755, 1.4214138
        %v788 = vadd.f32 %v756, 1.4214138
        %v789 = vadd.f32 %v757, 1.4214138
        %v790 = vadd.f32 %v758, 1.4214138
        %v791 = vadd.f32 %v759, 1.4214138
        %v792 = vadd.f32 %v760, 1.4214138
        %v793 = vadd.f32 %v761, 1.4214138
        %v794 = vmul.f32 %v762, %v603
        %v795 = vmul.f32 %v763, %v605
        %v796 = vmul.f32 %v764, %v607
        %v797 = vmul.f32 %v765, %v609
        %v798 = vmul.f32 %v766, %v611
        %v799 = vmul.f32 %v767, %v613
        %v800 = vmul.f32 %v768, %v615
        %v801 = vmul.f32 %v769, %v617
        %v802 = vmul.f32 %v770, %v619
        %v803 = vmul.f32 %v771, %v621
        %v804 = vmul.f32 %v772, %v623
        %v805 = vmul.f32 %v773, %v625
        %v806 = vmul.f32 %v774, %v627
        %v807 = vmul.f32 %v775, %v629
        %v808 = vmul.f32 %v776, %v631
        %v809 = vmul.f32 %v777, %v633
        %v810 = vmul.f32 %v778, %v635
        %v811 = vmul.f32 %v779, %v637
        %v812 = vmul.f32 %v780, %v639
        %v813 = vmul.f32 %v781, %v641
        %v814 = vmul.f32 %v782, %v643
        %v815 = vmul.f32 %v783, %v645
        %v816 = vmul.f32 %v784, %v647
        %v817 = vmul.f32 %v785, %v649
        %v818 = vmul.f32 %v786, %v651
        %v819 = vmul.f32 %v787, %v653
        %v820 = vmul.f32 %v788, %v655
        %v821 = vmul.f32 %v789, %v657
        %v822 = vmul.f32 %v790, %v659
        %v823 = vmul.f32 %v791, %v661
        %v824 = vmul.f32 %v792, %v663
        %v825 = vmul.f32 %v793, %v665
        %v826 = vadd.f32 %v794, -0.28449672
        %v827 = vadd.f32 %v795, -0.28449672
        %v828 = vadd.f32 %v796, -0.28449672
        %v829 = vadd.f32 %v797, -0.28449672
        %v830 = vadd.f32 %v798, -0.28449672
        %v831 = vadd.f32 %v799, -0.28449672
        %v832 = vadd.f32 %v800, -0.28449672
        %v833 = vadd.f32 %v801, -0.28449672
        %v834 = vadd.f32 %v802, -0.28449672
        %v835 = vadd.f32 %v803, -0.28449672
        %v836 = vadd.f32 %v804, -0.28449672
        %v837 = vadd.f32 %v805, -0.28449672
        %v838 = vadd.f32 %v806, -0.28449672
        %v839 = vadd.f32 %v807, -0.28449672
        %v840 = vadd.f32 %v808, -0.28449672
        %v841 = vadd.f32 %v809, -0.28449672
        %v842 = vadd.f32 %v810, -0.28449672
        %v843 = vadd.f32 %v811, -0.28449672
        %v844 = vadd.f32 %v812, -0.28449672
        %v845 = vadd.f32 %v813, -0.28449672
        %v846 = vadd.f32 %v814, -0.28449672
        %v847 = vadd.f32 %v815, -0.28449672
        %v848 = vadd.f32 %v816, -0.28449672
        %v849 = vadd.f32 %v817, -0.28449672
        %v850 = vadd.f32 %v818, -0.28449672
        %v851 = vadd.f32 %v819, -0.28449672
        %v852 = vadd.f32 %v820, -0.28449672
        %v853 = vadd.f32 %v821, -0.28449672
        %v854 = vadd.f32 %v822, -0.28449672
        %v855 = vadd.f32 %v823, -0.28449672
        %v856 = vadd.f32 %v824, -0.28449672
        %v857 = vadd.f32 %v825, -0.28449672
        %v858 = vmul.f32 %v826, %v603
        %v859 = vmul.f32 %v827, %v605
        %v860 = vmul.f32 %v828, %v607
        %v861 = vmul.f32 %v829, %v609
        %v862 = vmul.f32 %v830, %v611
        %v863 = vmul.f32 %v831, %v613
        %v864 = vmul.f32 %v832, %v615
        %v865 = vmul.f32 %v833, %v617
        %v866 = vmul.f32 %v834, %v619
        %v867 = vmul.f32 %v835, %v621
        %v868 = vmul.f32 %v836, %v623
        %v869 = vmul.f32 %v837, %v625
        %v870 = vmul.f32 %v838, %v627
        %v871 = vmul.f32 %v839, %v629
        %v872 = vmul.f32 %v840, %v631
        %v873 = vmul.f32 %v841, %v633
        %v874 = vmul.f32 %v842, %v635
        %v875 = vmul.f32 %v843, %v637
        %v876 = vmul.f32 %v844, %v639
        %v877 = vmul.f32 %v845, %v641
        %v878 = vmul.f32 %v846, %v643
        %v879 = vmul.f32 %v847, %v645
        %v880 = vmul.f32 %v848, %v647
        %v881 = vmul.f32 %v849, %v649
        %v882 = vmul.f32 %v850, %v651
        %v883 = vmul.f32 %v851, %v653
        %v884 = vmul.f32 %v852, %v655
        %v885 = vmul.f32 %v853, %v657
        %v886 = vmul.f32 %v854, %v659
        %v887 = vmul.f32 %v855, %v661
        %v888 = vmul.f32 %v856, %v663
        %v889 = vmul.f32 %v857, %v665
        %v890 = vadd.f32 %v858, 0.2548296
        %v891 = vadd.f32 %v859, 0.2548296
        %v892 = vadd.f32 %v860, 0.2548296
        %v893 = vadd.f32 %v861, 0.2548296
        %v894 = vadd.f32 %v862, 0.2548296
        %v895 = vadd.f32 %v863, 0.2548296
        %v896 = vadd.f32 %v864, 0.2548296
        %v897 = vadd.f32 %v865, 0.2548296
        %v898 = vadd.f32 %v866, 0.2548296
        %v899 = vadd.f32 %v867, 0.2548296
        %v900 = vadd.f32 %v868, 0.2548296
        %v901 = vadd.f32 %v869, 0.2548296
        %v902 = vadd.f32 %v870, 0.2548296
        %v903 = vadd.f32 %v871, 0.2548296
        %v904 = vadd.f32 %v872, 0.2548296
        %v905 = vadd.f32 %v873, 0.2548296
        %v906 = vadd.f32 %v874, 0.2548296
        %v907 = vadd.f32 %v875, 0.2548296
        %v908 = vadd.f32 %v876, 0.2548296
        %v909 = vadd.f32 %v877, 0.2548296
        %v910 = vadd.f32 %v878, 0.2548296
        %v911 = vadd.f32 %v879, 0.2548296
        %v912 = vadd.f32 %v880, 0.2548296
        %v913 = vadd.f32 %v881, 0.2548296
        %v914 = vadd.f32 %v882, 0.2548296
        %v915 = vadd.f32 %v883, 0.2548296
        %v916 = vadd.f32 %v884, 0.2548296
        %v917 = vadd.f32 %v885, 0.2548296
        %v918 = vadd.f32 %v886, 0.2548296
        %v919 = vadd.f32 %v887, 0.2548296
        %v920 = vadd.f32 %v888, 0.2548296
        %v921 = vadd.f32 %v889, 0.2548296
        %v922 = vmul.f32 %v890, %v603
        %v923 = vmul.f32 %v891, %v605
        %v924 = vmul.f32 %v892, %v607
        %v925 = vmul.f32 %v893, %v609
        %v926 = vmul.f32 %v894, %v611
        %v927 = vmul.f32 %v895, %v613
        %v928 = vmul.f32 %v896, %v615
        %v929 = vmul.f32 %v897, %v617
        %v930 = vmul.f32 %v898, %v619
        %v931 = vmul.f32 %v899, %v621
        %v932 = vmul.f32 %v900, %v623
        %v933 = vmul.f32 %v901, %v625
        %v934 = vmul.f32 %v902, %v627
        %v935 = vmul.f32 %v903, %v629
        %v936 = vmul.f32 %v904, %v631
        %v937 = vmul.f32 %v905, %v633
        %v938 = vmul.f32 %v906, %v635
        %v939 = vmul.f32 %v907, %v637
        %v940 = vmul.f32 %v908, %v639
        %v941 = vmul.f32 %v909, %v641
        %v942 = vmul.f32 %v910, %v643
        %v943 = vmul.f32 %v911, %v645
        %v944 = vmul.f32 %v912, %v647
        %v945 = vmul.f32 %v913, %v649
        %v946 = vmul.f32 %v914, %v651
        %v947 = vmul.f32 %v915, %v653
        %v948 = vmul.f32 %v916, %v655
        %v949 = vmul.f32 %v917, %v657
        %v950 = vmul.f32 %v918, %v659
        %v951 = vmul.f32 %v919, %v661
        %v952 = vmul.f32 %v920, %v663
        %v953 = vmul.f32 %v921, %v665
        %v954 = vsub.f32 0.0, %v506
        %v955 = vsub.f32 0.0, %v507
        %v956 = vsub.f32 0.0, %v508
        %v957 = vsub.f32 0.0, %v509
        %v958 = vsub.f32 0.0, %v510
        %v959 = vsub.f32 0.0, %v511
        %v960 = vsub.f32 0.0, %v512
        %v961 = vsub.f32 0.0, %v513
        %v962 = vsub.f32 0.0, %v514
        %v963 = vsub.f32 0.0, %v515
        %v964 = vsub.f32 0.0, %v516
        %v965 = vsub.f32 0.0, %v517
        %v966 = vsub.f32 0.0, %v518
        %v967 = vsub.f32 0.0, %v519
        %v968 = vsub.f32 0.0, %v520
        %v969 = vsub.f32 0.0, %v521
        %v970 = vsub.f32 0.0, %v522
        %v971 = vsub.f32 0.0, %v523
        %v972 = vsub.f32 0.0, %v524
        %v973 = vsub.f32 0.0, %v525
        %v974 = vsub.f32 0.0, %v526
        %v975 = vsub.f32 0.0, %v527
        %v976 = vsub.f32 0.0, %v528
        %v977 = vsub.f32 0.0, %v529
        %v978 = vsub.f32 0.0, %v530
        %v979 = vsub.f32 0.0, %v531
        %v980 = vsub.f32 0.0, %v532
        %v981 = vsub.f32 0.0, %v533
        %v982 = vsub.f32 0.0, %v534
        %v983 = vsub.f32 0.0, %v535
        %v984 = vsub.f32 0.0, %v536
        %v985 = vsub.f32 0.0, %v537
        %v986 = vmul.f32 %v954, %v506
        %v987 = vmul.f32 %v955, %v507
        %v988 = vmul.f32 %v956, %v508
        %v989 = vmul.f32 %v957, %v509
        %v990 = vmul.f32 %v958, %v510
        %v991 = vmul.f32 %v959, %v511
        %v992 = vmul.f32 %v960, %v512
        %v993 = vmul.f32 %v961, %v513
        %v994 = vmul.f32 %v962, %v514
        %v995 = vmul.f32 %v963, %v515
        %v996 = vmul.f32 %v964, %v516
        %v997 = vmul.f32 %v965, %v517
        %v998 = vmul.f32 %v966, %v518
        %v999 = vmul.f32 %v967, %v519
        %v1000 = vmul.f32 %v968, %v520
        %v1001 = vmul.f32 %v969, %v521
        %v1002 = vmul.f32 %v970, %v522
        %v1003 = vmul.f32 %v971, %v523
        %v1004 = vmul.f32 %v972, %v524
        %v1005 = vmul.f32 %v973, %v525
        %v1006 = vmul.f32 %v974, %v526
        %v1007 = vmul.f32 %v975, %v527
        %v1008 = vmul.f32 %v976, %v528
        %v1009 = vmul.f32 %v977, %v529
        %v1010 = vmul.f32 %v978, %v530
        %v1011 = vmul.f32 %v979, %v531
        %v1012 = vmul.f32 %v980, %v532
        %v1013 = vmul.f32 %v981, %v533
        %v1014 = vmul.f32 %v982, %v534
        %v1015 = vmul.f32 %v983, %v535
        %v1016 = vmul.f32 %v984, %v536
        %v1017 = vmul.f32 %v985, %v537
        %v1018 = vmul.f32 %v986, 1.442695
        %v1019 = vpow.pop %v1018
        %v1020 = vmul.f32 %v987, 1.442695
        %v1021 = vpow.pop %v1020
        %v1022 = vmul.f32 %v988, 1.442695
        %v1023 = vpow.pop %v1022
        %v1024 = vmul.f32 %v989, 1.442695
        %v1025 = vpow.pop %v1024
        %v1026 = vmul.f32 %v990, 1.442695
        %v1027 = vpow.pop %v1026
        %v1028 = vmul.f32 %v991, 1.442695
        %v1029 = vpow.pop %v1028
        %v1030 = vmul.f32 %v992, 1.442695
        %v1031 = vpow.pop %v1030
        %v1032 = vmul.f32 %v993, 1.442695
        %v1033 = vpow.pop %v1032
        %v1034 = vmul.f32 %v994, 1.442695
        %v1035 = vpow.pop %v1034
        %v1036 = vmul.f32 %v995, 1.442695
        %v1037 = vpow.pop %v1036
        %v1038 = vmul.f32 %v996, 1.442695
        %v1039 = vpow.pop %v1038
        %v1040 = vmul.f32 %v997, 1.442695
        %v1041 = vpow.pop %v1040
        %v1042 = vmul.f32 %v998, 1.442695
        %v1043 = vpow.pop %v1042
        %v1044 = vmul.f32 %v999, 1.442695
        %v1045 = vpow.pop %v1044
        %v1046 = vmul.f32 %v1000, 1.442695
        %v1047 = vpow.pop %v1046
        %v1048 = vmul.f32 %v1001, 1.442695
        %v1049 = vpow.pop %v1048
        %v1050 = vmul.f32 %v1002, 1.442695
        %v1051 = vpow.pop %v1050
        %v1052 = vmul.f32 %v1003, 1.442695
        %v1053 = vpow.pop %v1052
        %v1054 = vmul.f32 %v1004, 1.442695
        %v1055 = vpow.pop %v1054
        %v1056 = vmul.f32 %v1005, 1.442695
        %v1057 = vpow.pop %v1056
        %v1058 = vmul.f32 %v1006, 1.442695
        %v1059 = vpow.pop %v1058
        %v1060 = vmul.f32 %v1007, 1.442695
        %v1061 = vpow.pop %v1060
        %v1062 = vmul.f32 %v1008, 1.442695
        %v1063 = vpow.pop %v1062
        %v1064 = vmul.f32 %v1009, 1.442695
        %v1065 = vpow.pop %v1064
        %v1066 = vmul.f32 %v1010, 1.442695
        %v1067 = vpow.pop %v1066
        %v1068 = vmul.f32 %v1011, 1.442695
        %v1069 = vpow.pop %v1068
        %v1070 = vmul.f32 %v1012, 1.442695
        %v1071 = vpow.pop %v1070
        %v1072 = vmul.f32 %v1013, 1.442695
        %v1073 = vpow.pop %v1072
        %v1074 = vmul.f32 %v1014, 1.442695
        %v1075 = vpow.pop %v1074
        %v1076 = vmul.f32 %v1015, 1.442695
        %v1077 = vpow.pop %v1076
        %v1078 = vmul.f32 %v1016, 1.442695
        %v1079 = vpow.pop %v1078
        %v1080 = vmul.f32 %v1017, 1.442695
        %v1081 = vpow.pop %v1080
        %v1082 = vmul.f32 %v922, %v1019
        %v1083 = vmul.f32 %v923, %v1021
        %v1084 = vmul.f32 %v924, %v1023
        %v1085 = vmul.f32 %v925, %v1025
        %v1086 = vmul.f32 %v926, %v1027
        %v1087 = vmul.f32 %v927, %v1029
        %v1088 = vmul.f32 %v928, %v1031
        %v1089 = vmul.f32 %v929, %v1033
        %v1090 = vmul.f32 %v930, %v1035
        %v1091 = vmul.f32 %v931, %v1037
        %v1092 = vmul.f32 %v932, %v1039
        %v1093 = vmul.f32 %v933, %v1041
        %v1094 = vmul.f32 %v934, %v1043
        %v1095 = vmul.f32 %v935, %v1045
        %v1096 = vmul.f32 %v936, %v1047
        %v1097 = vmul.f32 %v937, %v1049
        %v1098 = vmul.f32 %v938, %v1051
        %v1099 = vmul.f32 %v939, %v1053
        %v1100 = vmul.f32 %v940, %v1055
        %v1101 = vmul.f32 %v941, %v1057
        %v1102 = vmul.f32 %v942, %v1059
        %v1103 = vmul.f32 %v943, %v1061
        %v1104 = vmul.f32 %v944, %v1063
        %v1105 = vmul.f32 %v945, %v1065
        %v1106 = vmul.f32 %v946, %v1067
        %v1107 = vmul.f32 %v947, %v1069
        %v1108 = vmul.f32 %v948, %v1071
        %v1109 = vmul.f32 %v949, %v1073
        %v1110 = vmul.f32 %v950, %v1075
        %v1111 = vmul.f32 %v951, %v1077
        %v1112 = vmul.f32 %v952, %v1079
        %v1113 = vmul.f32 %v953, %v1081
        %v1114 = vsub.f32 1.0, %v1082
        %v1115 = vsub.f32 1.0, %v1083
        %v1116 = vsub.f32 1.0, %v1084
        %v1117 = vsub.f32 1.0, %v1085
        %v1118 = vsub.f32 1.0, %v1086
        %v1119 = vsub.f32 1.0, %v1087
        %v1120 = vsub.f32 1.0, %v1088
        %v1121 = vsub.f32 1.0, %v1089
        %v1122 = vsub.f32 1.0, %v1090
        %v1123 = vsub.f32 1.0, %v1091
        %v1124 = vsub.f32 1.0, %v1092
        %v1125 = vsub.f32 1.0, %v1093
        %v1126 = vsub.f32 1.0, %v1094
        %v1127 = vsub.f32 1.0, %v1095
        %v1128 = vsub.f32 1.0, %v1096
        %v1129 = vsub.f32 1.0, %v1097
        %v1130 = vsub.f32 1.0, %v1098
        %v1131 = vsub.f32 1.0, %v1099
        %v1132 = vsub.f32 1.0, %v1100
        %v1133 = vsub.f32 1.0, %v1101
        %v1134 = vsub.f32 1.0, %v1102
        %v1135 = vsub.f32 1.0, %v1103
        %v1136 = vsub.f32 1.0, %v1104
        %v1137 = vsub.f32 1.0, %v1105
        %v1138 = vsub.f32 1.0, %v1106
        %v1139 = vsub.f32 1.0, %v1107
        %v1140 = vsub.f32 1.0, %v1108
        %v1141 = vsub.f32 1.0, %v1109
        %v1142 = vsub.f32 1.0, %v1110
        %v1143 = vsub.f32 1.0, %v1111
        %v1144 = vsub.f32 1.0, %v1112
        %v1145 = vsub.f32 1.0, %v1113
        %vm1146 = vcmp.ge.f32.partialorder %v474, 0.0
        %vm1147 = vcmp.ge.f32.partialorder %v475, 0.0
        %vm1148 = vcmp.ge.f32.partialorder %v476, 0.0
        %vm1149 = vcmp.ge.f32.partialorder %v477, 0.0
        %vm1150 = vcmp.ge.f32.partialorder %v478, 0.0
        %vm1151 = vcmp.ge.f32.partialorder %v479, 0.0
        %vm1152 = vcmp.ge.f32.partialorder %v480, 0.0
        %vm1153 = vcmp.ge.f32.partialorder %v481, 0.0
        %vm1154 = vcmp.ge.f32.partialorder %v482, 0.0
        %vm1155 = vcmp.ge.f32.partialorder %v483, 0.0
        %vm1156 = vcmp.ge.f32.partialorder %v484, 0.0
        %vm1157 = vcmp.ge.f32.partialorder %v485, 0.0
        %vm1158 = vcmp.ge.f32.partialorder %v486, 0.0
        %vm1159 = vcmp.ge.f32.partialorder %v487, 0.0
        %vm1160 = vcmp.ge.f32.partialorder %v488, 0.0
        %vm1161 = vcmp.ge.f32.partialorder %v489, 0.0
        %vm1162 = vcmp.ge.f32.partialorder %v490, 0.0
        %vm1163 = vcmp.ge.f32.partialorder %v491, 0.0
        %vm1164 = vcmp.ge.f32.partialorder %v492, 0.0
        %vm1165 = vcmp.ge.f32.partialorder %v493, 0.0
        %vm1166 = vcmp.ge.f32.partialorder %v494, 0.0
        %vm1167 = vcmp.ge.f32.partialorder %v495, 0.0
        %vm1168 = vcmp.ge.f32.partialorder %v496, 0.0
        %vm1169 = vcmp.ge.f32.partialorder %v497, 0.0
        %vm1170 = vcmp.ge.f32.partialorder %v498, 0.0
        %vm1171 = vcmp.ge.f32.partialorder %v499, 0.0
        %vm1172 = vcmp.ge.f32.partialorder %v500, 0.0
        %vm1173 = vcmp.ge.f32.partialorder %v501, 0.0
        %vm1174 = vcmp.ge.f32.partialorder %v502, 0.0
        %vm1175 = vcmp.ge.f32.partialorder %v503, 0.0
        %vm1176 = vcmp.ge.f32.partialorder %v504, 0.0
        %vm1177 = vcmp.ge.f32.partialorder %v505, 0.0
        %v1178 = vsub.f32 0.0, %v1114
        %v1179 = vsub.f32 0.0, %v1115
        %v1180 = vsub.f32 0.0, %v1116
        %v1181 = vsub.f32 0.0, %v1117
        %v1182 = vsub.f32 0.0, %v1118
        %v1183 = vsub.f32 0.0, %v1119
        %v1184 = vsub.f32 0.0, %v1120
        %v1185 = vsub.f32 0.0, %v1121
        %v1186 = vsub.f32 0.0, %v1122
        %v1187 = vsub.f32 0.0, %v1123
        %v1188 = vsub.f32 0.0, %v1124
        %v1189 = vsub.f32 0.0, %v1125
        %v1190 = vsub.f32 0.0, %v1126
        %v1191 = vsub.f32 0.0, %v1127
        %v1192 = vsub.f32 0.0, %v1128
        %v1193 = vsub.f32 0.0, %v1129
        %v1194 = vsub.f32 0.0, %v1130
        %v1195 = vsub.f32 0.0, %v1131
        %v1196 = vsub.f32 0.0, %v1132
        %v1197 = vsub.f32 0.0, %v1133
        %v1198 = vsub.f32 0.0, %v1134
        %v1199 = vsub.f32 0.0, %v1135
        %v1200 = vsub.f32 0.0, %v1136
        %v1201 = vsub.f32 0.0, %v1137
        %v1202 = vsub.f32 0.0, %v1138
        %v1203 = vsub.f32 0.0, %v1139
        %v1204 = vsub.f32 0.0, %v1140
        %v1205 = vsub.f32 0.0, %v1141
        %v1206 = vsub.f32 0.0, %v1142
        %v1207 = vsub.f32 0.0, %v1143
        %v1208 = vsub.f32 0.0, %v1144
        %v1209 = vsub.f32 0.0, %v1145
        %v1210 = vsel %vm1146, %v1114, %v1178
        %v1211 = vsel %vm1147, %v1115, %v1179
        %v1212 = vsel %vm1148, %v1116, %v1180
        %v1213 = vsel %vm1149, %v1117, %v1181
        %v1214 = vsel %vm1150, %v1118, %v1182
        %v1215 = vsel %vm1151, %v1119, %v1183
        %v1216 = vsel %vm1152, %v1120, %v1184
        %v1217 = vsel %vm1153, %v1121, %v1185
        %v1218 = vsel %vm1154, %v1122, %v1186
        %v1219 = vsel %vm1155, %v1123, %v1187
        %v1220 = vsel %vm1156, %v1124, %v1188
        %v1221 = vsel %vm1157, %v1125, %v1189
        %v1222 = vsel %vm1158, %v1126, %v1190
        %v1223 = vsel %vm1159, %v1127, %v1191
        %v1224 = vsel %vm1160, %v1128, %v1192
        %v1225 = vsel %vm1161, %v1129, %v1193
        %v1226 = vsel %vm1162, %v1130, %v1194
        %v1227 = vsel %vm1163, %v1131, %v1195
        %v1228 = vsel %vm1164, %v1132, %v1196
        %v1229 = vsel %vm1165, %v1133, %v1197
        %v1230 = vsel %vm1166, %v1134, %v1198
        %v1231 = vsel %vm1167, %v1135, %v1199
        %v1232 = vsel %vm1168, %v1136, %v1200
        %v1233 = vsel %vm1169, %v1137, %v1201
        %v1234 = vsel %vm1170, %v1138, %v1202
        %v1235 = vsel %vm1171, %v1139, %v1203
        %v1236 = vsel %vm1172, %v1140, %v1204
        %v1237 = vsel %vm1173, %v1141, %v1205
        %v1238 = vsel %vm1174, %v1142, %v1206
        %v1239 = vsel %vm1175, %v1143, %v1207
        %v1240 = vsel %vm1176, %v1144, %v1208
        %v1241 = vsel %vm1177, %v1145, %v1209
        %v1242 = vadd.f32 %v1210, 1.0
        %v1243 = vadd.f32 %v1211, 1.0
        %v1244 = vadd.f32 %v1212, 1.0
        %v1245 = vadd.f32 %v1213, 1.0
        %v1246 = vadd.f32 %v1214, 1.0
        %v1247 = vadd.f32 %v1215, 1.0
        %v1248 = vadd.f32 %v1216, 1.0
        %v1249 = vadd.f32 %v1217, 1.0
        %v1250 = vadd.f32 %v1218, 1.0
        %v1251 = vadd.f32 %v1219, 1.0
        %v1252 = vadd.f32 %v1220, 1.0
        %v1253 = vadd.f32 %v1221, 1.0
        %v1254 = vadd.f32 %v1222, 1.0
        %v1255 = vadd.f32 %v1223, 1.0
        %v1256 = vadd.f32 %v1224, 1.0
        %v1257 = vadd.f32 %v1225, 1.0
        %v1258 = vadd.f32 %v1226, 1.0
        %v1259 = vadd.f32 %v1227, 1.0
        %v1260 = vadd.f32 %v1228, 1.0
        %v1261 = vadd.f32 %v1229, 1.0
        %v1262 = vadd.f32 %v1230, 1.0
        %v1263 = vadd.f32 %v1231, 1.0
        %v1264 = vadd.f32 %v1232, 1.0
        %v1265 = vadd.f32 %v1233, 1.0
        %v1266 = vadd.f32 %v1234, 1.0
        %v1267 = vadd.f32 %v1235, 1.0
        %v1268 = vadd.f32 %v1236, 1.0
        %v1269 = vadd.f32 %v1237, 1.0
        %v1270 = vadd.f32 %v1238, 1.0
        %v1271 = vadd.f32 %v1239, 1.0
        %v1272 = vadd.f32 %v1240, 1.0
        %v1273 = vadd.f32 %v1241, 1.0
        %v1274 = vmul.f32 %v442, %v1242
        %v1275 = vmul.f32 %v443, %v1243
        %v1276 = vmul.f32 %v444, %v1244
        %v1277 = vmul.f32 %v445, %v1245
        %v1278 = vmul.f32 %v446, %v1246
        %v1279 = vmul.f32 %v447, %v1247
        %v1280 = vmul.f32 %v448, %v1248
        %v1281 = vmul.f32 %v449, %v1249
        %v1282 = vmul.f32 %v450, %v1250
        %v1283 = vmul.f32 %v451, %v1251
        %v1284 = vmul.f32 %v452, %v1252
        %v1285 = vmul.f32 %v453, %v1253
        %v1286 = vmul.f32 %v454, %v1254
        %v1287 = vmul.f32 %v455, %v1255
        %v1288 = vmul.f32 %v456, %v1256
        %v1289 = vmul.f32 %v457, %v1257
        %v1290 = vmul.f32 %v458, %v1258
        %v1291 = vmul.f32 %v459, %v1259
        %v1292 = vmul.f32 %v460, %v1260
        %v1293 = vmul.f32 %v461, %v1261
        %v1294 = vmul.f32 %v462, %v1262
        %v1295 = vmul.f32 %v463, %v1263
        %v1296 = vmul.f32 %v464, %v1264
        %v1297 = vmul.f32 %v465, %v1265
        %v1298 = vmul.f32 %v466, %v1266
        %v1299 = vmul.f32 %v467, %v1267
        %v1300 = vmul.f32 %v468, %v1268
        %v1301 = vmul.f32 %v469, %v1269
        %v1302 = vmul.f32 %v470, %v1270
        %v1303 = vmul.f32 %v471, %v1271
        %v1304 = vmul.f32 %v472, %v1272
        %v1305 = vmul.f32 %v473, %v1273
        %vm1306 = vcmask 523264
        %1307 = vst.msk [vmem:[#allocation2] sm:$0xff] %vm1306, 0.0
        %1308 = vst.msk [vmem:[#allocation2 + $0x8] sm:$0xff] %vm1306, 0.0
        %vm1309 = vcmask 517120
        %1310 = vst.msk [vmem:[#allocation2 + $0x10] sm:$0x3] %vm1309, 0.0
        %1311 = vst.msk [vmem:[#allocation2 + $0x18] sm:$0xff] %vm1306, 0.0
        %1312 = vst.msk [vmem:[#allocation2 + $0x20] sm:$0xff] %vm1306, 0.0
        %1313 = vst.msk [vmem:[#allocation2 + $0x28] sm:$0x3] %vm1309, 0.0
        %1314 = vst.msk [vmem:[#allocation2 + $0x30] sm:$0xff] %vm1306, 0.0
        %1315 = vst.msk [vmem:[#allocation2 + $0x38] sm:$0xff] %vm1306, 0.0
        %1316 = vst.msk [vmem:[#allocation2 + $0x40] sm:$0x3] %vm1309, 0.0
        %1317 = vst.msk [vmem:[#allocation2 + $0x48] sm:$0xff] %vm1306, 0.0
        %1318 = vst.msk [vmem:[#allocation2 + $0x50] sm:$0xff] %vm1306, 0.0
        %1319 = vst.msk [vmem:[#allocation2 + $0x58] sm:$0x3] %vm1309, 0.0
        %1320 = vst.msk [vmem:[#allocation2 + $0x60] sm:$0xff] %vm1306, 0.0
        %1321 = vst.msk [vmem:[#allocation2 + $0x68] sm:$0xff] %vm1306, 0.0
        %1322 = vst.msk [vmem:[#allocation2 + $0x70] sm:$0x3] %vm1309, 0.0
        %1323 = vst.msk [vmem:[#allocation2 + $0x78] sm:$0xff] %vm1306, 0.0
        %1324 = vst.msk [vmem:[#allocation2 + $0x80] sm:$0xff] %vm1306, 0.0
        %1325 = vst.msk [vmem:[#allocation2 + $0x88] sm:$0x3] %vm1309, 0.0
        %1326 = vst.msk [vmem:[#allocation2 + $0x90] sm:$0xff] %vm1306, 0.0
        %1327 = vst.msk [vmem:[#allocation2 + $0x98] sm:$0xff] %vm1306, 0.0
        %1328 = vst.msk [vmem:[#allocation2 + $0xa0] sm:$0x3] %vm1309, 0.0
        %1329 = vst.msk [vmem:[#allocation2 + $0xa8] sm:$0xff] %vm1306, 0.0
        %1330 = vst.msk [vmem:[#allocation2 + $0xb0] sm:$0xff] %vm1306, 0.0
        %1331 = vst.msk [vmem:[#allocation2 + $0xb8] sm:$0x3] %vm1309, 0.0
        %1332 = vst.msk [vmem:[#allocation2 + $0xc0] sm:$0xff] %vm1306, 0.0
        %1333 = vst.msk [vmem:[#allocation2 + $0xc8] sm:$0xff] %vm1306, 0.0
        %1334 = vst.msk [vmem:[#allocation2 + $0xd0] sm:$0x3] %vm1309, 0.0
        %1335 = vst.msk [vmem:[#allocation2 + $0xd8] sm:$0xff] %vm1306, 0.0
        %1336 = vst.msk [vmem:[#allocation2 + $0xe0] sm:$0xff] %vm1306, 0.0
        %1337 = vst.msk [vmem:[#allocation2 + $0xe8] sm:$0x3] %vm1309, 0.0
        %1338 = vst.msk [vmem:[#allocation2 + $0xf0] sm:$0xff] %vm1306, 0.0
        %1339 = vst.msk [vmem:[#allocation2 + $0xf8] sm:$0xff] %vm1306, 0.0
        %1340 = vst.msk [vmem:[#allocation2 + $0x100] sm:$0x3] %vm1309, 0.0
        %1341 = vst.msk [vmem:[#allocation2 + $0x108] sm:$0xff] %vm1306, 0.0
        %1342 = vst.msk [vmem:[#allocation2 + $0x110] sm:$0xff] %vm1306, 0.0
        %1343 = vst.msk [vmem:[#allocation2 + $0x118] sm:$0x3] %vm1309, 0.0
        %1344 = vst.msk [vmem:[#allocation2 + $0x120] sm:$0xff] %vm1306, 0.0
        %1345 = vst.msk [vmem:[#allocation2 + $0x128] sm:$0xff] %vm1306, 0.0
        %1346 = vst.msk [vmem:[#allocation2 + $0x130] sm:$0x3] %vm1309, 0.0
        %1347 = vst.msk [vmem:[#allocation2 + $0x138] sm:$0xff] %vm1306, 0.0
        %1348 = vst.msk [vmem:[#allocation2 + $0x140] sm:$0xff] %vm1306, 0.0
        %1349 = vst.msk [vmem:[#allocation2 + $0x148] sm:$0x3] %vm1309, 0.0
        %1350 = vst.msk [vmem:[#allocation2 + $0x150] sm:$0xff] %vm1306, 0.0
        %1351 = vst.msk [vmem:[#allocation2 + $0x158] sm:$0xff] %vm1306, 0.0
        %1352 = vst.msk [vmem:[#allocation2 + $0x160] sm:$0x3] %vm1309, 0.0
        %1353 = vst.msk [vmem:[#allocation2 + $0x168] sm:$0xff] %vm1306, 0.0
        %1354 = vst.msk [vmem:[#allocation2 + $0x170] sm:$0xff] %vm1306, 0.0
        %1355 = vst.msk [vmem:[#allocation2 + $0x178] sm:$0x3] %vm1309, 0.0
        %1356 = vst.msk [vmem:[#allocation2 + $0x180] sm:$0xff] %vm1306, 0.0
        %1357 = vst.msk [vmem:[#allocation2 + $0x188] sm:$0xff] %vm1306, 0.0
        %1358 = vst.msk [vmem:[#allocation2 + $0x190] sm:$0x3] %vm1309, 0.0
        %1359 = vst.msk [vmem:[#allocation2 + $0x198] sm:$0xff] %vm1306, 0.0
        %1360 = vst.msk [vmem:[#allocation2 + $0x1a0] sm:$0xff] %vm1306, 0.0
        %1361 = vst.msk [vmem:[#allocation2 + $0x1a8] sm:$0x3] %vm1309, 0.0
        %s1362 = scalar_lea.vmem [#allocation2], 24
        %1363 = vst.msk [vmem:[%s1362 + $0x1] sm:$0xff] %vm1306, %v1274
        %1364 = vst.msk [vmem:[%s1362 + $0x9] sm:$0xff] %vm1306, %v1275
        %1365 = vst.msk [vmem:[%s1362 + $0x19] sm:$0xff] %vm1306, %v1276
        %1366 = vst.msk [vmem:[%s1362 + $0x21] sm:$0xff] %vm1306, %v1277
        %1367 = vst.msk [vmem:[%s1362 + $0x31] sm:$0xff] %vm1306, %v1278
        %1368 = vst.msk [vmem:[%s1362 + $0x39] sm:$0xff] %vm1306, %v1279
        %1369 = vst.msk [vmem:[%s1362 + $0x49] sm:$0xff] %vm1306, %v1280
        %1370 = vst.msk [vmem:[%s1362 + $0x51] sm:$0xff] %vm1306, %v1281
        %1371 = vst.msk [vmem:[%s1362 + $0x61] sm:$0xff] %vm1306, %v1282
        %1372 = vst.msk [vmem:[%s1362 + $0x69] sm:$0xff] %vm1306, %v1283
        %1373 = vst.msk [vmem:[%s1362 + $0x79] sm:$0xff] %vm1306, %v1284
        %1374 = vst.msk [vmem:[%s1362 + $0x81] sm:$0xff] %vm1306, %v1285
        %1375 = vst.msk [vmem:[%s1362 + $0x91] sm:$0xff] %vm1306, %v1286
        %1376 = vst.msk [vmem:[%s1362 + $0x99] sm:$0xff] %vm1306, %v1287
        %1377 = vst.msk [vmem:[%s1362 + $0xa9] sm:$0xff] %vm1306, %v1288
        %1378 = vst.msk [vmem:[%s1362 + $0xb1] sm:$0xff] %vm1306, %v1289
        %1379 = vst.msk [vmem:[%s1362 + $0xc1] sm:$0xff] %vm1306, %v1290
        %1380 = vst.msk [vmem:[%s1362 + $0xc9] sm:$0xff] %vm1306, %v1291
        %1381 = vst.msk [vmem:[%s1362 + $0xd9] sm:$0xff] %vm1306, %v1292
        %1382 = vst.msk [vmem:[%s1362 + $0xe1] sm:$0xff] %vm1306, %v1293
        %1383 = vst.msk [vmem:[%s1362 + $0xf1] sm:$0xff] %vm1306, %v1294
        %1384 = vst.msk [vmem:[%s1362 + $0xf9] sm:$0xff] %vm1306, %v1295
        %1385 = vst.msk [vmem:[%s1362 + $0x109] sm:$0xff] %vm1306, %v1296
        %1386 = vst.msk [vmem:[%s1362 + $0x111] sm:$0xff] %vm1306, %v1297
        %1387 = vst.msk [vmem:[%s1362 + $0x121] sm:$0xff] %vm1306, %v1298
        %1388 = vst.msk [vmem:[%s1362 + $0x129] sm:$0xff] %vm1306, %v1299
        %1389 = vst.msk [vmem:[%s1362 + $0x139] sm:$0xff] %vm1306, %v1300
        %1390 = vst.msk [vmem:[%s1362 + $0x141] sm:$0xff] %vm1306, %v1301
        %1391 = vst.msk [vmem:[%s1362 + $0x151] sm:$0xff] %vm1306, %v1302
        %1392 = vst.msk [vmem:[%s1362 + $0x159] sm:$0xff] %vm1306, %v1303
        %1393 = vst.msk [vmem:[%s1362 + $0x169] sm:$0xff] %vm1306, %v1304
        %1394 = vst.msk [vmem:[%s1362 + $0x171] sm:$0xff] %vm1306, %v1305
        %v1395 = vld [vmem:[#allocation2] sm:$0xff]
        %v1396 = vld [vmem:[#allocation2 + $0x8] sm:$0xff]
        %v1397 = vld [vmem:[#allocation2 + $0x18] sm:$0xff]
        %v1398 = vld [vmem:[#allocation2 + $0x20] sm:$0xff]
        %v1399 = vld [vmem:[#allocation2 + $0x30] sm:$0xff]
        %v1400 = vld [vmem:[#allocation2 + $0x38] sm:$0xff]
        %v1401 = vld [vmem:[#allocation2 + $0x48] sm:$0xff]
        %v1402 = vld [vmem:[#allocation2 + $0x50] sm:$0xff]
        %v1403 = vld [vmem:[#allocation2 + $0x60] sm:$0xff]
        %v1404 = vld [vmem:[#allocation2 + $0x68] sm:$0xff]
        %v1405 = vld [vmem:[#allocation2 + $0x78] sm:$0xff]
        %v1406 = vld [vmem:[#allocation2 + $0x80] sm:$0xff]
        %v1407 = vld [vmem:[#allocation2 + $0x90] sm:$0xff]
        %v1408 = vld [vmem:[#allocation2 + $0x98] sm:$0xff]
        %v1409 = vld [vmem:[#allocation2 + $0xa8] sm:$0xff]
        %v1410 = vld [vmem:[#allocation2 + $0xb0] sm:$0xff]
        %v1411 = vld [vmem:[#allocation2 + $0xc0] sm:$0xff]
        %v1412 = vld [vmem:[#allocation2 + $0xc8] sm:$0xff]
        %v1413 = vld [vmem:[#allocation2 + $0xd8] sm:$0xff]
        %v1414 = vld [vmem:[#allocation2 + $0xe0] sm:$0xff]
        %v1415 = vld [vmem:[#allocation2 + $0xf0] sm:$0xff]
        %v1416 = vld [vmem:[#allocation2 + $0xf8] sm:$0xff]
        %v1417 = vld [vmem:[#allocation2 + $0x108] sm:$0xff]
        %v1418 = vld [vmem:[#allocation2 + $0x110] sm:$0xff]
        %v1419 = vld [vmem:[#allocation2 + $0x120] sm:$0xff]
        %v1420 = vld [vmem:[#allocation2 + $0x128] sm:$0xff]
        %v1421 = vld [vmem:[#allocation2 + $0x138] sm:$0xff]
        %v1422 = vld [vmem:[#allocation2 + $0x140] sm:$0xff]
        %v1423 = vld [vmem:[#allocation2 + $0x150] sm:$0xff]
        %v1424 = vld [vmem:[#allocation2 + $0x158] sm:$0xff]
        %v1425 = vld [vmem:[#allocation2 + $0x168] sm:$0xff]
        %v1426 = vld [vmem:[#allocation2 + $0x170] sm:$0xff]
        %v1427 = vpack.c.bf16 %v1396, %v1395
        %v1428 = vpack.c.bf16 %v1398, %v1397
        %v1429 = vpack.c.bf16 %v1400, %v1399
        %v1430 = vpack.c.bf16 %v1402, %v1401
        %v1431 = vpack.c.bf16 %v1404, %v1403
        %v1432 = vpack.c.bf16 %v1406, %v1405
        %v1433 = vpack.c.bf16 %v1408, %v1407
        %v1434 = vpack.c.bf16 %v1410, %v1409
        %v1435 = vpack.c.bf16 %v1412, %v1411
        %v1436 = vpack.c.bf16 %v1414, %v1413
        %v1437 = vpack.c.bf16 %v1416, %v1415
        %v1438 = vpack.c.bf16 %v1418, %v1417
        %v1439 = vpack.c.bf16 %v1420, %v1419
        %v1440 = vpack.c.bf16 %v1422, %v1421
        %v1441 = vpack.c.bf16 %v1424, %v1423
        %v1442 = vpack.c.bf16 %v1426, %v1425
        %1443 = vst.msk [vmem:[#allocation3] sm:$0xff] %vm1306, %v1427
        %1444 = vst.msk [vmem:[#allocation3 + $0x28] sm:$0xff] %vm1306, %v1428
        %1445 = vst.msk [vmem:[#allocation3 + $0x50] sm:$0xff] %vm1306, %v1429
        %1446 = vst.msk [vmem:[#allocation3 + $0x78] sm:$0xff] %vm1306, %v1430
        %1447 = vst.msk [vmem:[#allocation3 + $0xa0] sm:$0xff] %vm1306, %v1431
        %1448 = vst.msk [vmem:[#allocation3 + $0xc8] sm:$0xff] %vm1306, %v1432
        %1449 = vst.msk [vmem:[#allocation3 + $0xf0] sm:$0xff] %vm1306, %v1433
        %1450 = vst.msk [vmem:[#allocation3 + $0x118] sm:$0xff] %vm1306, %v1434
        %1451 = vst.msk [vmem:[#allocation3 + $0x140] sm:$0xff] %vm1306, %v1435
        %1452 = vst.msk [vmem:[#allocation3 + $0x168] sm:$0xff] %vm1306, %v1436
        %1453 = vst.msk [vmem:[#allocation3 + $0x190] sm:$0xff] %vm1306, %v1437
        %1454 = vst.msk [vmem:[#allocation3 + $0x1b8] sm:$0xff] %vm1306, %v1438
        %1455 = vst.msk [vmem:[#allocation3 + $0x1e0] sm:$0xff] %vm1306, %v1439
        %1456 = vst.msk [vmem:[#allocation3 + $0x208] sm:$0xff] %vm1306, %v1440
        %1457 = vst.msk [vmem:[#allocation3 + $0x230] sm:$0xff] %vm1306, %v1441
        %1458 = vst.msk [vmem:[#allocation3 + $0x258] sm:$0xff] %vm1306, %v1442
        %v1459 = vld [vmem:[#allocation2 + $0x1] sm:$0xff]
        %v1460 = vld [vmem:[#allocation2 + $0x9] sm:$0xff]
        %v1461 = vld [vmem:[#allocation2 + $0x19] sm:$0xff]
        %v1462 = vld [vmem:[#allocation2 + $0x21] sm:$0xff]
        %v1463 = vld [vmem:[#allocation2 + $0x31] sm:$0xff]
        %v1464 = vld [vmem:[#allocation2 + $0x39] sm:$0xff]
        %v1465 = vld [vmem:[#allocation2 + $0x49] sm:$0xff]
        %v1466 = vld [vmem:[#allocation2 + $0x51] sm:$0xff]
        %v1467 = vld [vmem:[#allocation2 + $0x61] sm:$0xff]
        %v1468 = vld [vmem:[#allocation2 + $0x69] sm:$0xff]
        %v1469 = vld [vmem:[#allocation2 + $0x79] sm:$0xff]
        %v1470 = vld [vmem:[#allocation2 + $0x81] sm:$0xff]
        %v1471 = vld [vmem:[#allocation2 + $0x91] sm:$0xff]
        %v1472 = vld [vmem:[#allocation2 + $0x99] sm:$0xff]
        %v1473 = vld [vmem:[#allocation2 + $0xa9] sm:$0xff]
        %v1474 = vld [vmem:[#allocation2 + $0xb1] sm:$0xff]
        %v1475 = vld [vmem:[#allocation2 + $0xc1] sm:$0xff]
        %v1476 = vld [vmem:[#allocation2 + $0xc9] sm:$0xff]
        %v1477 = vld [vmem:[#allocation2 + $0xd9] sm:$0xff]
        %v1478 = vld [vmem:[#allocation2 + $0xe1] sm:$0xff]
        %v1479 = vld [vmem:[#allocation2 + $0xf1] sm:$0xff]
        %v1480 = vld [vmem:[#allocation2 + $0xf9] sm:$0xff]
        %v1481 = vld [vmem:[#allocation2 + $0x109] sm:$0xff]
        %v1482 = vld [vmem:[#allocation2 + $0x111] sm:$0xff]
        %v1483 = vld [vmem:[#allocation2 + $0x121] sm:$0xff]
        %v1484 = vld [vmem:[#allocation2 + $0x129] sm:$0xff]
        %v1485 = vld [vmem:[#allocation2 + $0x139] sm:$0xff]
        %v1486 = vld [vmem:[#allocation2 + $0x141] sm:$0xff]
        %v1487 = vld [vmem:[#allocation2 + $0x151] sm:$0xff]
        %v1488 = vld [vmem:[#allocation2 + $0x159] sm:$0xff]
        %v1489 = vld [vmem:[#allocation2 + $0x169] sm:$0xff]
        %v1490 = vld [vmem:[#allocation2 + $0x171] sm:$0xff]
        %v1491 = vpack.c.bf16 %v1460, %v1459
        %v1492 = vpack.c.bf16 %v1462, %v1461
        %v1493 = vpack.c.bf16 %v1464, %v1463
        %v1494 = vpack.c.bf16 %v1466, %v1465
        %v1495 = vpack.c.bf16 %v1468, %v1467
        %v1496 = vpack.c.bf16 %v1470, %v1469
        %v1497 = vpack.c.bf16 %v1472, %v1471
        %v1498 = vpack.c.bf16 %v1474, %v1473
        %v1499 = vpack.c.bf16 %v1476, %v1475
        %v1500 = vpack.c.bf16 %v1478, %v1477
        %v1501 = vpack.c.bf16 %v1480, %v1479
        %v1502 = vpack.c.bf16 %v1482, %v1481
        %v1503 = vpack.c.bf16 %v1484, %v1483
        %v1504 = vpack.c.bf16 %v1486, %v1485
        %v1505 = vpack.c.bf16 %v1488, %v1487
        %v1506 = vpack.c.bf16 %v1490, %v1489
        %1523 = vrot.lane.b32.xlu0 %v1491, 64
        %v1524 = vpop.permute.xlu0 %1523
        %1525 = vrot.lane.b32.xlu0 %v1492, 64
        %v1526 = vpop.permute.xlu0 %1525
        %1527 = vrot.lane.b32.xlu0 %v1493, 64
        %v1528 = vpop.permute.xlu0 %1527
        %1529 = vrot.lane.b32.xlu0 %v1494, 64
        %v1530 = vpop.permute.xlu0 %1529
        %1531 = vrot.lane.b32.xlu0 %v1495, 64
        %v1532 = vpop.permute.xlu0 %1531
        %1533 = vrot.lane.b32.xlu0 %v1496, 64
        %v1534 = vpop.permute.xlu0 %1533
        %1535 = vrot.lane.b32.xlu0 %v1497, 64
        %v1536 = vpop.permute.xlu0 %1535
        %1537 = vrot.lane.b32.xlu0 %v1498, 64
        %v1538 = vpop.permute.xlu0 %1537
        %1539 = vrot.lane.b32.xlu0 %v1499, 64
        %v1540 = vpop.permute.xlu0 %1539
        %1541 = vrot.lane.b32.xlu0 %v1500, 64
        %v1542 = vpop.permute.xlu0 %1541
        %1543 = vrot.lane.b32.xlu0 %v1501, 64
        %v1544 = vpop.permute.xlu0 %1543
        %1545 = vrot.lane.b32.xlu0 %v1502, 64
        %v1546 = vpop.permute.xlu0 %1545
        %1547 = vrot.lane.b32.xlu0 %v1503, 64
        %v1548 = vpop.permute.xlu0 %1547
        %1549 = vrot.lane.b32.xlu0 %v1504, 64
        %v1550 = vpop.permute.xlu0 %1549
        %1551 = vrot.lane.b32.xlu0 %v1505, 64
        %v1552 = vpop.permute.xlu0 %1551
        %1553 = vrot.lane.b32.xlu0 %v1506, 64
        %v1554 = vpop.permute.xlu0 %1553
        %vm1571 = vcmask 1048064
        %1572 = vst.msk [vmem:[#allocation3] sm:$0xff] %vm1571, %v1524
        %1573 = vst.msk [vmem:[#allocation3 + $0x28] sm:$0xff] %vm1571, %v1526
        %1574 = vst.msk [vmem:[#allocation3 + $0x50] sm:$0xff] %vm1571, %v1528
        %1575 = vst.msk [vmem:[#allocation3 + $0x78] sm:$0xff] %vm1571, %v1530
        %1576 = vst.msk [vmem:[#allocation3 + $0xa0] sm:$0xff] %vm1571, %v1532
        %1577 = vst.msk [vmem:[#allocation3 + $0xc8] sm:$0xff] %vm1571, %v1534
        %1578 = vst.msk [vmem:[#allocation3 + $0xf0] sm:$0xff] %vm1571, %v1536
        %1579 = vst.msk [vmem:[#allocation3 + $0x118] sm:$0xff] %vm1571, %v1538
        %1580 = vst.msk [vmem:[#allocation3 + $0x140] sm:$0xff] %vm1571, %v1540
        %1581 = vst.msk [vmem:[#allocation3 + $0x168] sm:$0xff] %vm1571, %v1542
        %1582 = vst.msk [vmem:[#allocation3 + $0x190] sm:$0xff] %vm1571, %v1544
        %1583 = vst.msk [vmem:[#allocation3 + $0x1b8] sm:$0xff] %vm1571, %v1546
        %1584 = vst.msk [vmem:[#allocation3 + $0x1e0] sm:$0xff] %vm1571, %v1548
        %1585 = vst.msk [vmem:[#allocation3 + $0x208] sm:$0xff] %vm1571, %v1550
        %1586 = vst.msk [vmem:[#allocation3 + $0x230] sm:$0xff] %vm1571, %v1552
        %1587 = vst.msk [vmem:[#allocation3 + $0x258] sm:$0xff] %vm1571, %v1554
        %v1588 = vld [vmem:[#allocation2 + $0x2] sm:$0xff]
        %v1589 = vld [vmem:[#allocation2 + $0xa] sm:$0xff]
        %v1590 = vld [vmem:[#allocation2 + $0x1a] sm:$0xff]
        %v1591 = vld [vmem:[#allocation2 + $0x22] sm:$0xff]
        %v1592 = vld [vmem:[#allocation2 + $0x32] sm:$0xff]
        %v1593 = vld [vmem:[#allocation2 + $0x3a] sm:$0xff]
        %v1594 = vld [vmem:[#allocation2 + $0x4a] sm:$0xff]
        %v1595 = vld [vmem:[#allocation2 + $0x52] sm:$0xff]
        %v1596 = vld [vmem:[#allocation2 + $0x62] sm:$0xff]
        %v1597 = vld [vmem:[#allocation2 + $0x6a] sm:$0xff]
        %v1598 = vld [vmem:[#allocation2 + $0x7a] sm:$0xff]
        %v1599 = vld [vmem:[#allocation2 + $0x82] sm:$0xff]
        %v1600 = vld [vmem:[#allocation2 + $0x92] sm:$0xff]
        %v1601 = vld [vmem:[#allocation2 + $0x9a] sm:$0xff]
        %v1602 = vld [vmem:[#allocation2 + $0xaa] sm:$0xff]
        %v1603 = vld [vmem:[#allocation2 + $0xb2] sm:$0xff]
        %v1604 = vld [vmem:[#allocation2 + $0xc2] sm:$0xff]
        %v1605 = vld [vmem:[#allocation2 + $0xca] sm:$0xff]
        %v1606 = vld [vmem:[#allocation2 + $0xda] sm:$0xff]
        %v1607 = vld [vmem:[#allocation2 + $0xe2] sm:$0xff]
        %v1608 = vld [vmem:[#allocation2 + $0xf2] sm:$0xff]
        %v1609 = vld [vmem:[#allocation2 + $0xfa] sm:$0xff]
        %v1610 = vld [vmem:[#allocation2 + $0x10a] sm:$0xff]
        %v1611 = vld [vmem:[#allocation2 + $0x112] sm:$0xff]
        %v1612 = vld [vmem:[#allocation2 + $0x122] sm:$0xff]
        %v1613 = vld [vmem:[#allocation2 + $0x12a] sm:$0xff]
        %v1614 = vld [vmem:[#allocation2 + $0x13a] sm:$0xff]
        %v1615 = vld [vmem:[#allocation2 + $0x142] sm:$0xff]
        %v1616 = vld [vmem:[#allocation2 + $0x152] sm:$0xff]
        %v1617 = vld [vmem:[#allocation2 + $0x15a] sm:$0xff]
        %v1618 = vld [vmem:[#allocation2 + $0x16a] sm:$0xff]
        %v1619 = vld [vmem:[#allocation2 + $0x172] sm:$0xff]
        %v1620 = vpack.c.bf16 %v1589, %v1588
        %v1621 = vpack.c.bf16 %v1591, %v1590
        %v1622 = vpack.c.bf16 %v1593, %v1592
        %v1623 = vpack.c.bf16 %v1595, %v1594
        %v1624 = vpack.c.bf16 %v1597, %v1596
        %v1625 = vpack.c.bf16 %v1599, %v1598
        %v1626 = vpack.c.bf16 %v1601, %v1600
        %v1627 = vpack.c.bf16 %v1603, %v1602
        %v1628 = vpack.c.bf16 %v1605, %v1604
        %v1629 = vpack.c.bf16 %v1607, %v1606
        %v1630 = vpack.c.bf16 %v1609, %v1608
        %v1631 = vpack.c.bf16 %v1611, %v1610
        %v1632 = vpack.c.bf16 %v1613, %v1612
        %v1633 = vpack.c.bf16 %v1615, %v1614
        %v1634 = vpack.c.bf16 %v1617, %v1616
        %v1635 = vpack.c.bf16 %v1619, %v1618
        %1636 = vst.msk [vmem:[#allocation3 + $0x8] sm:$0xff] %vm1306, %v1620
        %1637 = vst.msk [vmem:[#allocation3 + $0x30] sm:$0xff] %vm1306, %v1621
        %1638 = vst.msk [vmem:[#allocation3 + $0x58] sm:$0xff] %vm1306, %v1622
        %1639 = vst.msk [vmem:[#allocation3 + $0x80] sm:$0xff] %vm1306, %v1623
        %1640 = vst.msk [vmem:[#allocation3 + $0xa8] sm:$0xff] %vm1306, %v1624
        %1641 = vst.msk [vmem:[#allocation3 + $0xd0] sm:$0xff] %vm1306, %v1625
        %1642 = vst.msk [vmem:[#allocation3 + $0xf8] sm:$0xff] %vm1306, %v1626
        %1643 = vst.msk [vmem:[#allocation3 + $0x120] sm:$0xff] %vm1306, %v1627
        %1644 = vst.msk [vmem:[#allocation3 + $0x148] sm:$0xff] %vm1306, %v1628
        %1645 = vst.msk [vmem:[#allocation3 + $0x170] sm:$0xff] %vm1306, %v1629
        %1646 = vst.msk [vmem:[#allocation3 + $0x198] sm:$0xff] %vm1306, %v1630
        %1647 = vst.msk [vmem:[#allocation3 + $0x1c0] sm:$0xff] %vm1306, %v1631
        %1648 = vst.msk [vmem:[#allocation3 + $0x1e8] sm:$0xff] %vm1306, %v1632
        %1649 = vst.msk [vmem:[#allocation3 + $0x210] sm:$0xff] %vm1306, %v1633
        %1650 = vst.msk [vmem:[#allocation3 + $0x238] sm:$0xff] %vm1306, %v1634
        %1651 = vst.msk [vmem:[#allocation3 + $0x260] sm:$0xff] %vm1306, %v1635
        %v1652 = vld [vmem:[%s1362] sm:$0xff]
        %v1653 = vld [vmem:[%s1362 + $0x8] sm:$0xff]
        %v1654 = vld [vmem:[%s1362 + $0x18] sm:$0xff]
        %v1655 = vld [vmem:[%s1362 + $0x20] sm:$0xff]
        %v1656 = vld [vmem:[%s1362 + $0x30] sm:$0xff]
        %v1657 = vld [vmem:[%s1362 + $0x38] sm:$0xff]
        %v1658 = vld [vmem:[%s1362 + $0x48] sm:$0xff]
        %v1659 = vld [vmem:[%s1362 + $0x50] sm:$0xff]
        %v1660 = vld [vmem:[%s1362 + $0x60] sm:$0xff]
        %v1661 = vld [vmem:[%s1362 + $0x68] sm:$0xff]
        %v1662 = vld [vmem:[%s1362 + $0x78] sm:$0xff]
        %v1663 = vld [vmem:[%s1362 + $0x80] sm:$0xff]
        %v1664 = vld [vmem:[%s1362 + $0x90] sm:$0xff]
        %v1665 = vld [vmem:[%s1362 + $0x98] sm:$0xff]
        %v1666 = vld [vmem:[%s1362 + $0xa8] sm:$0xff]
        %v1667 = vld [vmem:[%s1362 + $0xb0] sm:$0xff]
        %v1668 = vld [vmem:[%s1362 + $0xc0] sm:$0xff]
        %v1669 = vld [vmem:[%s1362 + $0xc8] sm:$0xff]
        %v1670 = vld [vmem:[%s1362 + $0xd8] sm:$0xff]
        %v1671 = vld [vmem:[%s1362 + $0xe0] sm:$0xff]
        %v1672 = vld [vmem:[%s1362 + $0xf0] sm:$0xff]
        %v1673 = vld [vmem:[%s1362 + $0xf8] sm:$0xff]
        %v1674 = vld [vmem:[%s1362 + $0x108] sm:$0xff]
        %v1675 = vld [vmem:[%s1362 + $0x110] sm:$0xff]
        %v1676 = vld [vmem:[%s1362 + $0x120] sm:$0xff]
        %v1677 = vld [vmem:[%s1362 + $0x128] sm:$0xff]
        %v1678 = vld [vmem:[%s1362 + $0x138] sm:$0xff]
        %v1679 = vld [vmem:[%s1362 + $0x140] sm:$0xff]
        %v1680 = vld [vmem:[%s1362 + $0x150] sm:$0xff]
        %v1681 = vld [vmem:[%s1362 + $0x158] sm:$0xff]
        %v1682 = vld [vmem:[%s1362 + $0x168] sm:$0xff]
        %v1683 = vld [vmem:[%s1362 + $0x170] sm:$0xff]
        %v1684 = vpack.c.bf16 %v1653, %v1652
        %v1685 = vpack.c.bf16 %v1655, %v1654
        %v1686 = vpack.c.bf16 %v1657, %v1656
        %v1687 = vpack.c.bf16 %v1659, %v1658
        %v1688 = vpack.c.bf16 %v1661, %v1660
        %v1689 = vpack.c.bf16 %v1663, %v1662
        %v1690 = vpack.c.bf16 %v1665, %v1664
        %v1691 = vpack.c.bf16 %v1667, %v1666
        %v1692 = vpack.c.bf16 %v1669, %v1668
        %v1693 = vpack.c.bf16 %v1671, %v1670
        %v1694 = vpack.c.bf16 %v1673, %v1672
        %v1695 = vpack.c.bf16 %v1675, %v1674
        %v1696 = vpack.c.bf16 %v1677, %v1676
        %v1697 = vpack.c.bf16 %v1679, %v1678
        %v1698 = vpack.c.bf16 %v1681, %v1680
        %v1699 = vpack.c.bf16 %v1683, %v1682
        %1716 = vrot.lane.b32.xlu0 %v1684, 64
        %v1717 = vpop.permute.xlu0 %1716
        %1718 = vrot.lane.b32.xlu0 %v1685, 64
        %v1719 = vpop.permute.xlu0 %1718
        %1720 = vrot.lane.b32.xlu0 %v1686, 64
        %v1721 = vpop.permute.xlu0 %1720
        %1722 = vrot.lane.b32.xlu0 %v1687, 64
        %v1723 = vpop.permute.xlu0 %1722
        %1724 = vrot.lane.b32.xlu0 %v1688, 64
        %v1725 = vpop.permute.xlu0 %1724
        %1726 = vrot.lane.b32.xlu0 %v1689, 64
        %v1727 = vpop.permute.xlu0 %1726
        %1728 = vrot.lane.b32.xlu0 %v1690, 64
        %v1729 = vpop.permute.xlu0 %1728
        %1730 = vrot.lane.b32.xlu0 %v1691, 64
        %v1731 = vpop.permute.xlu0 %1730
        %1732 = vrot.lane.b32.xlu0 %v1692, 64
        %v1733 = vpop.permute.xlu0 %1732
        %1734 = vrot.lane.b32.xlu0 %v1693, 64
        %v1735 = vpop.permute.xlu0 %1734
        %1736 = vrot.lane.b32.xlu0 %v1694, 64
        %v1737 = vpop.permute.xlu0 %1736
        %1738 = vrot.lane.b32.xlu0 %v1695, 64
        %v1739 = vpop.permute.xlu0 %1738
        %1740 = vrot.lane.b32.xlu0 %v1696, 64
        %v1741 = vpop.permute.xlu0 %1740
        %1742 = vrot.lane.b32.xlu0 %v1697, 64
        %v1743 = vpop.permute.xlu0 %1742
        %1744 = vrot.lane.b32.xlu0 %v1698, 64
        %v1745 = vpop.permute.xlu0 %1744
        %1746 = vrot.lane.b32.xlu0 %v1699, 64
        %v1747 = vpop.permute.xlu0 %1746
        %1764 = vst.msk [vmem:[#allocation3 + $0x8] sm:$0xff] %vm1571, %v1717
        %1765 = vst.msk [vmem:[#allocation3 + $0x30] sm:$0xff] %vm1571, %v1719
        %1766 = vst.msk [vmem:[#allocation3 + $0x58] sm:$0xff] %vm1571, %v1721
        %1767 = vst.msk [vmem:[#allocation3 + $0x80] sm:$0xff] %vm1571, %v1723
        %1768 = vst.msk [vmem:[#allocation3 + $0xa8] sm:$0xff] %vm1571, %v1725
        %1769 = vst.msk [vmem:[#allocation3 + $0xd0] sm:$0xff] %vm1571, %v1727
        %1770 = vst.msk [vmem:[#allocation3 + $0xf8] sm:$0xff] %vm1571, %v1729
        %1771 = vst.msk [vmem:[#allocation3 + $0x120] sm:$0xff] %vm1571, %v1731
        %1772 = vst.msk [vmem:[#allocation3 + $0x148] sm:$0xff] %vm1571, %v1733
        %1773 = vst.msk [vmem:[#allocation3 + $0x170] sm:$0xff] %vm1571, %v1735
        %1774 = vst.msk [vmem:[#allocation3 + $0x198] sm:$0xff] %vm1571, %v1737
        %1775 = vst.msk [vmem:[#allocation3 + $0x1c0] sm:$0xff] %vm1571, %v1739
        %1776 = vst.msk [vmem:[#allocation3 + $0x1e8] sm:$0xff] %vm1571, %v1741
        %1777 = vst.msk [vmem:[#allocation3 + $0x210] sm:$0xff] %vm1571, %v1743
        %1778 = vst.msk [vmem:[#allocation3 + $0x238] sm:$0xff] %vm1571, %v1745
        %1779 = vst.msk [vmem:[#allocation3 + $0x260] sm:$0xff] %vm1571, %v1747
        %v1780 = vld [vmem:[%s1362 + $0x1] sm:$0xff]
        %v1781 = vld [vmem:[%s1362 + $0x9] sm:$0xff]
        %v1782 = vld [vmem:[%s1362 + $0x19] sm:$0xff]
        %v1783 = vld [vmem:[%s1362 + $0x21] sm:$0xff]
        %v1784 = vld [vmem:[%s1362 + $0x31] sm:$0xff]
        %v1785 = vld [vmem:[%s1362 + $0x39] sm:$0xff]
        %v1786 = vld [vmem:[%s1362 + $0x49] sm:$0xff]
        %v1787 = vld [vmem:[%s1362 + $0x51] sm:$0xff]
        %v1788 = vld [vmem:[%s1362 + $0x61] sm:$0xff]
        %v1789 = vld [vmem:[%s1362 + $0x69] sm:$0xff]
        %v1790 = vld [vmem:[%s1362 + $0x79] sm:$0xff]
        %v1791 = vld [vmem:[%s1362 + $0x81] sm:$0xff]
        %v1792 = vld [vmem:[%s1362 + $0x91] sm:$0xff]
        %v1793 = vld [vmem:[%s1362 + $0x99] sm:$0xff]
        %v1794 = vld [vmem:[%s1362 + $0xa9] sm:$0xff]
        %v1795 = vld [vmem:[%s1362 + $0xb1] sm:$0xff]
        %v1796 = vld [vmem:[%s1362 + $0xc1] sm:$0xff]
        %v1797 = vld [vmem:[%s1362 + $0xc9] sm:$0xff]
        %v1798 = vld [vmem:[%s1362 + $0xd9] sm:$0xff]
        %v1799 = vld [vmem:[%s1362 + $0xe1] sm:$0xff]
        %v1800 = vld [vmem:[%s1362 + $0xf1] sm:$0xff]
        %v1801 = vld [vmem:[%s1362 + $0xf9] sm:$0xff]
        %v1802 = vld [vmem:[%s1362 + $0x109] sm:$0xff]
        %v1803 = vld [vmem:[%s1362 + $0x111] sm:$0xff]
        %v1804 = vld [vmem:[%s1362 + $0x121] sm:$0xff]
        %v1805 = vld [vmem:[%s1362 + $0x129] sm:$0xff]
        %v1806 = vld [vmem:[%s1362 + $0x139] sm:$0xff]
        %v1807 = vld [vmem:[%s1362 + $0x141] sm:$0xff]
        %v1808 = vld [vmem:[%s1362 + $0x151] sm:$0xff]
        %v1809 = vld [vmem:[%s1362 + $0x159] sm:$0xff]
        %v1810 = vld [vmem:[%s1362 + $0x169] sm:$0xff]
        %v1811 = vld [vmem:[%s1362 + $0x171] sm:$0xff]
        %v1812 = vpack.c.bf16 %v1781, %v1780
        %v1813 = vpack.c.bf16 %v1783, %v1782
        %v1814 = vpack.c.bf16 %v1785, %v1784
        %v1815 = vpack.c.bf16 %v1787, %v1786
        %v1816 = vpack.c.bf16 %v1789, %v1788
        %v1817 = vpack.c.bf16 %v1791, %v1790
        %v1818 = vpack.c.bf16 %v1793, %v1792
        %v1819 = vpack.c.bf16 %v1795, %v1794
        %v1820 = vpack.c.bf16 %v1797, %v1796
        %v1821 = vpack.c.bf16 %v1799, %v1798
        %v1822 = vpack.c.bf16 %v1801, %v1800
        %v1823 = vpack.c.bf16 %v1803, %v1802
        %v1824 = vpack.c.bf16 %v1805, %v1804
        %v1825 = vpack.c.bf16 %v1807, %v1806
        %v1826 = vpack.c.bf16 %v1809, %v1808
        %v1827 = vpack.c.bf16 %v1811, %v1810
        %1828 = vst.msk [vmem:[#allocation3 + $0x10] sm:$0xff] %vm1306, %v1812
        %1829 = vst.msk [vmem:[#allocation3 + $0x38] sm:$0xff] %vm1306, %v1813
        %1830 = vst.msk [vmem:[#allocation3 + $0x60] sm:$0xff] %vm1306, %v1814
        %1831 = vst.msk [vmem:[#allocation3 + $0x88] sm:$0xff] %vm1306, %v1815
        %1832 = vst.msk [vmem:[#allocation3 + $0xb0] sm:$0xff] %vm1306, %v1816
        %1833 = vst.msk [vmem:[#allocation3 + $0xd8] sm:$0xff] %vm1306, %v1817
        %1834 = vst.msk [vmem:[#allocation3 + $0x100] sm:$0xff] %vm1306, %v1818
        %1835 = vst.msk [vmem:[#allocation3 + $0x128] sm:$0xff] %vm1306, %v1819
        %1836 = vst.msk [vmem:[#allocation3 + $0x150] sm:$0xff] %vm1306, %v1820
        %1837 = vst.msk [vmem:[#allocation3 + $0x178] sm:$0xff] %vm1306, %v1821
        %1838 = vst.msk [vmem:[#allocation3 + $0x1a0] sm:$0xff] %vm1306, %v1822
        %1839 = vst.msk [vmem:[#allocation3 + $0x1c8] sm:$0xff] %vm1306, %v1823
        %1840 = vst.msk [vmem:[#allocation3 + $0x1f0] sm:$0xff] %vm1306, %v1824
        %1841 = vst.msk [vmem:[#allocation3 + $0x218] sm:$0xff] %vm1306, %v1825
        %1842 = vst.msk [vmem:[#allocation3 + $0x240] sm:$0xff] %vm1306, %v1826
        %1843 = vst.msk [vmem:[#allocation3 + $0x268] sm:$0xff] %vm1306, %v1827
        %v1844 = vld [vmem:[%s1362 + $0x2] sm:$0xff]
        %v1845 = vld [vmem:[%s1362 + $0xa] sm:$0xff]
        %v1846 = vld [vmem:[%s1362 + $0x1a] sm:$0xff]
        %v1847 = vld [vmem:[%s1362 + $0x22] sm:$0xff]
        %v1848 = vld [vmem:[%s1362 + $0x32] sm:$0xff]
        %v1849 = vld [vmem:[%s1362 + $0x3a] sm:$0xff]
        %v1850 = vld [vmem:[%s1362 + $0x4a] sm:$0xff]
        %v1851 = vld [vmem:[%s1362 + $0x52] sm:$0xff]
        %v1852 = vld [vmem:[%s1362 + $0x62] sm:$0xff]
        %v1853 = vld [vmem:[%s1362 + $0x6a] sm:$0xff]
        %v1854 = vld [vmem:[%s1362 + $0x7a] sm:$0xff]
        %v1855 = vld [vmem:[%s1362 + $0x82] sm:$0xff]
        %v1856 = vld [vmem:[%s1362 + $0x92] sm:$0xff]
        %v1857 = vld [vmem:[%s1362 + $0x9a] sm:$0xff]
        %v1858 = vld [vmem:[%s1362 + $0xaa] sm:$0xff]
        %v1859 = vld [vmem:[%s1362 + $0xb2] sm:$0xff]
        %v1860 = vld [vmem:[%s1362 + $0xc2] sm:$0xff]
        %v1861 = vld [vmem:[%s1362 + $0xca] sm:$0xff]
        %v1862 = vld [vmem:[%s1362 + $0xda] sm:$0xff]
        %v1863 = vld [vmem:[%s1362 + $0xe2] sm:$0xff]
        %v1864 = vld [vmem:[%s1362 + $0xf2] sm:$0xff]
        %v1865 = vld [vmem:[%s1362 + $0xfa] sm:$0xff]
        %v1866 = vld [vmem:[%s1362 + $0x10a] sm:$0xff]
        %v1867 = vld [vmem:[%s1362 + $0x112] sm:$0xff]
        %v1868 = vld [vmem:[%s1362 + $0x122] sm:$0xff]
        %v1869 = vld [vmem:[%s1362 + $0x12a] sm:$0xff]
        %v1870 = vld [vmem:[%s1362 + $0x13a] sm:$0xff]
        %v1871 = vld [vmem:[%s1362 + $0x142] sm:$0xff]
        %v1872 = vld [vmem:[%s1362 + $0x152] sm:$0xff]
        %v1873 = vld [vmem:[%s1362 + $0x15a] sm:$0xff]
        %v1874 = vld [vmem:[%s1362 + $0x16a] sm:$0xff]
        %v1875 = vld [vmem:[%s1362 + $0x172] sm:$0xff]
        %v1876 = vpack.c.bf16 %v1845, %v1844
        %v1877 = vpack.c.bf16 %v1847, %v1846
        %v1878 = vpack.c.bf16 %v1849, %v1848
        %v1879 = vpack.c.bf16 %v1851, %v1850
        %v1880 = vpack.c.bf16 %v1853, %v1852
        %v1881 = vpack.c.bf16 %v1855, %v1854
        %v1882 = vpack.c.bf16 %v1857, %v1856
        %v1883 = vpack.c.bf16 %v1859, %v1858
        %v1884 = vpack.c.bf16 %v1861, %v1860
        %v1885 = vpack.c.bf16 %v1863, %v1862
        %v1886 = vpack.c.bf16 %v1865, %v1864
        %v1887 = vpack.c.bf16 %v1867, %v1866
        %v1888 = vpack.c.bf16 %v1869, %v1868
        %v1889 = vpack.c.bf16 %v1871, %v1870
        %v1890 = vpack.c.bf16 %v1873, %v1872
        %v1891 = vpack.c.bf16 %v1875, %v1874
        %1908 = vrot.lane.b32.xlu0 %v1876, 64
        %v1909 = vpop.permute.xlu0 %1908
        %1910 = vrot.lane.b32.xlu0 %v1877, 64
        %v1911 = vpop.permute.xlu0 %1910
        %1912 = vrot.lane.b32.xlu0 %v1878, 64
        %v1913 = vpop.permute.xlu0 %1912
        %1914 = vrot.lane.b32.xlu0 %v1879, 64
        %v1915 = vpop.permute.xlu0 %1914
        %1916 = vrot.lane.b32.xlu0 %v1880, 64
        %v1917 = vpop.permute.xlu0 %1916
        %1918 = vrot.lane.b32.xlu0 %v1881, 64
        %v1919 = vpop.permute.xlu0 %1918
        %1920 = vrot.lane.b32.xlu0 %v1882, 64
        %v1921 = vpop.permute.xlu0 %1920
        %1922 = vrot.lane.b32.xlu0 %v1883, 64
        %v1923 = vpop.permute.xlu0 %1922
        %1924 = vrot.lane.b32.xlu0 %v1884, 64
        %v1925 = vpop.permute.xlu0 %1924
        %1926 = vrot.lane.b32.xlu0 %v1885, 64
        %v1927 = vpop.permute.xlu0 %1926
        %1928 = vrot.lane.b32.xlu0 %v1886, 64
        %v1929 = vpop.permute.xlu0 %1928
        %1930 = vrot.lane.b32.xlu0 %v1887, 64
        %v1931 = vpop.permute.xlu0 %1930
        %1932 = vrot.lane.b32.xlu0 %v1888, 64
        %v1933 = vpop.permute.xlu0 %1932
        %1934 = vrot.lane.b32.xlu0 %v1889, 64
        %v1935 = vpop.permute.xlu0 %1934
        %1936 = vrot.lane.b32.xlu0 %v1890, 64
        %v1937 = vpop.permute.xlu0 %1936
        %1938 = vrot.lane.b32.xlu0 %v1891, 64
        %v1939 = vpop.permute.xlu0 %1938
        %1956 = vst.msk [vmem:[#allocation3 + $0x10] sm:$0xff] %vm1571, %v1909
        %1957 = vst.msk [vmem:[#allocation3 + $0x38] sm:$0xff] %vm1571, %v1911
        %1958 = vst.msk [vmem:[#allocation3 + $0x60] sm:$0xff] %vm1571, %v1913
        %1959 = vst.msk [vmem:[#allocation3 + $0x88] sm:$0xff] %vm1571, %v1915
        %1960 = vst.msk [vmem:[#allocation3 + $0xb0] sm:$0xff] %vm1571, %v1917
        %1961 = vst.msk [vmem:[#allocation3 + $0xd8] sm:$0xff] %vm1571, %v1919
        %1962 = vst.msk [vmem:[#allocation3 + $0x100] sm:$0xff] %vm1571, %v1921
        %1963 = vst.msk [vmem:[#allocation3 + $0x128] sm:$0xff] %vm1571, %v1923
        %1964 = vst.msk [vmem:[#allocation3 + $0x150] sm:$0xff] %vm1571, %v1925
        %1965 = vst.msk [vmem:[#allocation3 + $0x178] sm:$0xff] %vm1571, %v1927
        %1966 = vst.msk [vmem:[#allocation3 + $0x1a0] sm:$0xff] %vm1571, %v1929
        %1967 = vst.msk [vmem:[#allocation3 + $0x1c8] sm:$0xff] %vm1571, %v1931
        %1968 = vst.msk [vmem:[#allocation3 + $0x1f0] sm:$0xff] %vm1571, %v1933
        %1969 = vst.msk [vmem:[#allocation3 + $0x218] sm:$0xff] %vm1571, %v1935
        %1970 = vst.msk [vmem:[#allocation3 + $0x240] sm:$0xff] %vm1571, %v1937
        %1971 = vst.msk [vmem:[#allocation3 + $0x268] sm:$0xff] %vm1571, %v1939
        %s1972 = scalar_lea.vmem [#allocation2], 48
        %v1973 = vld [vmem:[%s1972] sm:$0xff]
        %v1974 = vld [vmem:[%s1972 + $0x8] sm:$0xff]
        %v1975 = vld [vmem:[%s1972 + $0x18] sm:$0xff]
        %v1976 = vld [vmem:[%s1972 + $0x20] sm:$0xff]
        %v1977 = vld [vmem:[%s1972 + $0x30] sm:$0xff]
        %v1978 = vld [vmem:[%s1972 + $0x38] sm:$0xff]
        %v1979 = vld [vmem:[%s1972 + $0x48] sm:$0xff]
        %v1980 = vld [vmem:[%s1972 + $0x50] sm:$0xff]
        %v1981 = vld [vmem:[%s1972 + $0x60] sm:$0xff]
        %v1982 = vld [vmem:[%s1972 + $0x68] sm:$0xff]
        %v1983 = vld [vmem:[%s1972 + $0x78] sm:$0xff]
        %v1984 = vld [vmem:[%s1972 + $0x80] sm:$0xff]
        %v1985 = vld [vmem:[%s1972 + $0x90] sm:$0xff]
        %v1986 = vld [vmem:[%s1972 + $0x98] sm:$0xff]
        %v1987 = vld [vmem:[%s1972 + $0xa8] sm:$0xff]
        %v1988 = vld [vmem:[%s1972 + $0xb0] sm:$0xff]
        %v1989 = vld [vmem:[%s1972 + $0xc0] sm:$0xff]
        %v1990 = vld [vmem:[%s1972 + $0xc8] sm:$0xff]
        %v1991 = vld [vmem:[%s1972 + $0xd8] sm:$0xff]
        %v1992 = vld [vmem:[%s1972 + $0xe0] sm:$0xff]
        %v1993 = vld [vmem:[%s1972 + $0xf0] sm:$0xff]
        %v1994 = vld [vmem:[%s1972 + $0xf8] sm:$0xff]
        %v1995 = vld [vmem:[%s1972 + $0x108] sm:$0xff]
        %v1996 = vld [vmem:[%s1972 + $0x110] sm:$0xff]
        %v1997 = vld [vmem:[%s1972 + $0x120] sm:$0xff]
        %v1998 = vld [vmem:[%s1972 + $0x128] sm:$0xff]
        %v1999 = vld [vmem:[%s1972 + $0x138] sm:$0xff]
        %v2000 = vld [vmem:[%s1972 + $0x140] sm:$0xff]
        %v2001 = vld [vmem:[%s1972 + $0x150] sm:$0xff]
        %v2002 = vld [vmem:[%s1972 + $0x158] sm:$0xff]
        %v2003 = vld [vmem:[%s1972 + $0x168] sm:$0xff]
        %v2004 = vld [vmem:[%s1972 + $0x170] sm:$0xff]
        %v2005 = vpack.c.bf16 %v1974, %v1973
        %v2006 = vpack.c.bf16 %v1976, %v1975
        %v2007 = vpack.c.bf16 %v1978, %v1977
        %v2008 = vpack.c.bf16 %v1980, %v1979
        %v2009 = vpack.c.bf16 %v1982, %v1981
        %v2010 = vpack.c.bf16 %v1984, %v1983
        %v2011 = vpack.c.bf16 %v1986, %v1985
        %v2012 = vpack.c.bf16 %v1988, %v1987
        %v2013 = vpack.c.bf16 %v1990, %v1989
        %v2014 = vpack.c.bf16 %v1992, %v1991
        %v2015 = vpack.c.bf16 %v1994, %v1993
        %v2016 = vpack.c.bf16 %v1996, %v1995
        %v2017 = vpack.c.bf16 %v1998, %v1997
        %v2018 = vpack.c.bf16 %v2000, %v1999
        %v2019 = vpack.c.bf16 %v2002, %v2001
        %v2020 = vpack.c.bf16 %v2004, %v2003
        %2021 = vst.msk [vmem:[#allocation3 + $0x18] sm:$0xff] %vm1306, %v2005
        %2022 = vst.msk [vmem:[#allocation3 + $0x40] sm:$0xff] %vm1306, %v2006
        %2023 = vst.msk [vmem:[#allocation3 + $0x68] sm:$0xff] %vm1306, %v2007
        %2024 = vst.msk [vmem:[#allocation3 + $0x90] sm:$0xff] %vm1306, %v2008
        %2025 = vst.msk [vmem:[#allocation3 + $0xb8] sm:$0xff] %vm1306, %v2009
        %2026 = vst.msk [vmem:[#allocation3 + $0xe0] sm:$0xff] %vm1306, %v2010
        %2027 = vst.msk [vmem:[#allocation3 + $0x108] sm:$0xff] %vm1306, %v2011
        %2028 = vst.msk [vmem:[#allocation3 + $0x130] sm:$0xff] %vm1306, %v2012
        %2029 = vst.msk [vmem:[#allocation3 + $0x158] sm:$0xff] %vm1306, %v2013
        %2030 = vst.msk [vmem:[#allocation3 + $0x180] sm:$0xff] %vm1306, %v2014
        %2031 = vst.msk [vmem:[#allocation3 + $0x1a8] sm:$0xff] %vm1306, %v2015
        %2032 = vst.msk [vmem:[#allocation3 + $0x1d0] sm:$0xff] %vm1306, %v2016
        %2033 = vst.msk [vmem:[#allocation3 + $0x1f8] sm:$0xff] %vm1306, %v2017
        %2034 = vst.msk [vmem:[#allocation3 + $0x220] sm:$0xff] %vm1306, %v2018
        %2035 = vst.msk [vmem:[#allocation3 + $0x248] sm:$0xff] %vm1306, %v2019
        %2036 = vst.msk [vmem:[#allocation3 + $0x270] sm:$0xff] %vm1306, %v2020
        %v2037 = vld [vmem:[%s1972 + $0x1] sm:$0xff]
        %v2038 = vld [vmem:[%s1972 + $0x9] sm:$0xff]
        %v2039 = vld [vmem:[%s1972 + $0x19] sm:$0xff]
        %v2040 = vld [vmem:[%s1972 + $0x21] sm:$0xff]
        %v2041 = vld [vmem:[%s1972 + $0x31] sm:$0xff]
        %v2042 = vld [vmem:[%s1972 + $0x39] sm:$0xff]
        %v2043 = vld [vmem:[%s1972 + $0x49] sm:$0xff]
        %v2044 = vld [vmem:[%s1972 + $0x51] sm:$0xff]
        %v2045 = vld [vmem:[%s1972 + $0x61] sm:$0xff]
        %v2046 = vld [vmem:[%s1972 + $0x69] sm:$0xff]
        %v2047 = vld [vmem:[%s1972 + $0x79] sm:$0xff]
        %v2048 = vld [vmem:[%s1972 + $0x81] sm:$0xff]
        %v2049 = vld [vmem:[%s1972 + $0x91] sm:$0xff]
        %v2050 = vld [vmem:[%s1972 + $0x99] sm:$0xff]
        %v2051 = vld [vmem:[%s1972 + $0xa9] sm:$0xff]
        %v2052 = vld [vmem:[%s1972 + $0xb1] sm:$0xff]
        %v2053 = vld [vmem:[%s1972 + $0xc1] sm:$0xff]
        %v2054 = vld [vmem:[%s1972 + $0xc9] sm:$0xff]
        %v2055 = vld [vmem:[%s1972 + $0xd9] sm:$0xff]
        %v2056 = vld [vmem:[%s1972 + $0xe1] sm:$0xff]
        %v2057 = vld [vmem:[%s1972 + $0xf1] sm:$0xff]
        %v2058 = vld [vmem:[%s1972 + $0xf9] sm:$0xff]
        %v2059 = vld [vmem:[%s1972 + $0x109] sm:$0xff]
        %v2060 = vld [vmem:[%s1972 + $0x111] sm:$0xff]
        %v2061 = vld [vmem:[%s1972 + $0x121] sm:$0xff]
        %v2062 = vld [vmem:[%s1972 + $0x129] sm:$0xff]
        %v2063 = vld [vmem:[%s1972 + $0x139] sm:$0xff]
        %v2064 = vld [vmem:[%s1972 + $0x141] sm:$0xff]
        %v2065 = vld [vmem:[%s1972 + $0x151] sm:$0xff]
        %v2066 = vld [vmem:[%s1972 + $0x159] sm:$0xff]
        %v2067 = vld [vmem:[%s1972 + $0x169] sm:$0xff]
        %v2068 = vld [vmem:[%s1972 + $0x171] sm:$0xff]
        %v2069 = vpack.c.bf16 %v2038, %v2037
        %v2070 = vpack.c.bf16 %v2040, %v2039
        %v2071 = vpack.c.bf16 %v2042, %v2041
        %v2072 = vpack.c.bf16 %v2044, %v2043
        %v2073 = vpack.c.bf16 %v2046, %v2045
        %v2074 = vpack.c.bf16 %v2048, %v2047
        %v2075 = vpack.c.bf16 %v2050, %v2049
        %v2076 = vpack.c.bf16 %v2052, %v2051
        %v2077 = vpack.c.bf16 %v2054, %v2053
        %v2078 = vpack.c.bf16 %v2056, %v2055
        %v2079 = vpack.c.bf16 %v2058, %v2057
        %v2080 = vpack.c.bf16 %v2060, %v2059
        %v2081 = vpack.c.bf16 %v2062, %v2061
        %v2082 = vpack.c.bf16 %v2064, %v2063
        %v2083 = vpack.c.bf16 %v2066, %v2065
        %v2084 = vpack.c.bf16 %v2068, %v2067
        %2101 = vrot.lane.b32.xlu0 %v2069, 64
        %v2102 = vpop.permute.xlu0 %2101
        %2103 = vrot.lane.b32.xlu0 %v2070, 64
        %v2104 = vpop.permute.xlu0 %2103
        %2105 = vrot.lane.b32.xlu0 %v2071, 64
        %v2106 = vpop.permute.xlu0 %2105
        %2107 = vrot.lane.b32.xlu0 %v2072, 64
        %v2108 = vpop.permute.xlu0 %2107
        %2109 = vrot.lane.b32.xlu0 %v2073, 64
        %v2110 = vpop.permute.xlu0 %2109
        %2111 = vrot.lane.b32.xlu0 %v2074, 64
        %v2112 = vpop.permute.xlu0 %2111
        %2113 = vrot.lane.b32.xlu0 %v2075, 64
        %v2114 = vpop.permute.xlu0 %2113
        %2115 = vrot.lane.b32.xlu0 %v2076, 64
        %v2116 = vpop.permute.xlu0 %2115
        %2117 = vrot.lane.b32.xlu0 %v2077, 64
        %v2118 = vpop.permute.xlu0 %2117
        %2119 = vrot.lane.b32.xlu0 %v2078, 64
        %v2120 = vpop.permute.xlu0 %2119
        %2121 = vrot.lane.b32.xlu0 %v2079, 64
        %v2122 = vpop.permute.xlu0 %2121
        %2123 = vrot.lane.b32.xlu0 %v2080, 64
        %v2124 = vpop.permute.xlu0 %2123
        %2125 = vrot.lane.b32.xlu0 %v2081, 64
        %v2126 = vpop.permute.xlu0 %2125
        %2127 = vrot.lane.b32.xlu0 %v2082, 64
        %v2128 = vpop.permute.xlu0 %2127
        %2129 = vrot.lane.b32.xlu0 %v2083, 64
        %v2130 = vpop.permute.xlu0 %2129
        %2131 = vrot.lane.b32.xlu0 %v2084, 64
        %v2132 = vpop.permute.xlu0 %2131
        %2149 = vst.msk [vmem:[#allocation3 + $0x18] sm:$0xff] %vm1571, %v2102
        %2150 = vst.msk [vmem:[#allocation3 + $0x40] sm:$0xff] %vm1571, %v2104
        %2151 = vst.msk [vmem:[#allocation3 + $0x68] sm:$0xff] %vm1571, %v2106
        %2152 = vst.msk [vmem:[#allocation3 + $0x90] sm:$0xff] %vm1571, %v2108
        %2153 = vst.msk [vmem:[#allocation3 + $0xb8] sm:$0xff] %vm1571, %v2110
        %2154 = vst.msk [vmem:[#allocation3 + $0xe0] sm:$0xff] %vm1571, %v2112
        %2155 = vst.msk [vmem:[#allocation3 + $0x108] sm:$0xff] %vm1571, %v2114
        %2156 = vst.msk [vmem:[#allocation3 + $0x130] sm:$0xff] %vm1571, %v2116
        %2157 = vst.msk [vmem:[#allocation3 + $0x158] sm:$0xff] %vm1571, %v2118
        %2158 = vst.msk [vmem:[#allocation3 + $0x180] sm:$0xff] %vm1571, %v2120
        %2159 = vst.msk [vmem:[#allocation3 + $0x1a8] sm:$0xff] %vm1571, %v2122
        %2160 = vst.msk [vmem:[#allocation3 + $0x1d0] sm:$0xff] %vm1571, %v2124
        %2161 = vst.msk [vmem:[#allocation3 + $0x1f8] sm:$0xff] %vm1571, %v2126
        %2162 = vst.msk [vmem:[#allocation3 + $0x220] sm:$0xff] %vm1571, %v2128
        %2163 = vst.msk [vmem:[#allocation3 + $0x248] sm:$0xff] %vm1571, %v2130
        %2164 = vst.msk [vmem:[#allocation3 + $0x270] sm:$0xff] %vm1571, %v2132
        %v2165 = vld [vmem:[%s1972 + $0x2] sm:$0xff]
        %v2166 = vld [vmem:[%s1972 + $0xa] sm:$0xff]
        %v2167 = vld [vmem:[%s1972 + $0x1a] sm:$0xff]
        %v2168 = vld [vmem:[%s1972 + $0x22] sm:$0xff]
        %v2169 = vld [vmem:[%s1972 + $0x32] sm:$0xff]
        %v2170 = vld [vmem:[%s1972 + $0x3a] sm:$0xff]
        %v2171 = vld [vmem:[%s1972 + $0x4a] sm:$0xff]
        %v2172 = vld [vmem:[%s1972 + $0x52] sm:$0xff]
        %v2173 = vld [vmem:[%s1972 + $0x62] sm:$0xff]
        %v2174 = vld [vmem:[%s1972 + $0x6a] sm:$0xff]
        %v2175 = vld [vmem:[%s1972 + $0x7a] sm:$0xff]
        %v2176 = vld [vmem:[%s1972 + $0x82] sm:$0xff]
        %v2177 = vld [vmem:[%s1972 + $0x92] sm:$0xff]
        %v2178 = vld [vmem:[%s1972 + $0x9a] sm:$0xff]
        %v2179 = vld [vmem:[%s1972 + $0xaa] sm:$0xff]
        %v2180 = vld [vmem:[%s1972 + $0xb2] sm:$0xff]
        %v2181 = vld [vmem:[%s1972 + $0xc2] sm:$0xff]
        %v2182 = vld [vmem:[%s1972 + $0xca] sm:$0xff]
        %v2183 = vld [vmem:[%s1972 + $0xda] sm:$0xff]
        %v2184 = vld [vmem:[%s1972 + $0xe2] sm:$0xff]
        %v2185 = vld [vmem:[%s1972 + $0xf2] sm:$0xff]
        %v2186 = vld [vmem:[%s1972 + $0xfa] sm:$0xff]
        %v2187 = vld [vmem:[%s1972 + $0x10a] sm:$0xff]
        %v2188 = vld [vmem:[%s1972 + $0x112] sm:$0xff]
        %v2189 = vld [vmem:[%s1972 + $0x122] sm:$0xff]
        %v2190 = vld [vmem:[%s1972 + $0x12a] sm:$0xff]
        %v2191 = vld [vmem:[%s1972 + $0x13a] sm:$0xff]
        %v2192 = vld [vmem:[%s1972 + $0x142] sm:$0xff]
        %v2193 = vld [vmem:[%s1972 + $0x152] sm:$0xff]
        %v2194 = vld [vmem:[%s1972 + $0x15a] sm:$0xff]
        %v2195 = vld [vmem:[%s1972 + $0x16a] sm:$0xff]
        %v2196 = vld [vmem:[%s1972 + $0x172] sm:$0xff]
        %v2197 = vpack.c.bf16 %v2166, %v2165
        %v2198 = vpack.c.bf16 %v2168, %v2167
        %v2199 = vpack.c.bf16 %v2170, %v2169
        %v2200 = vpack.c.bf16 %v2172, %v2171
        %v2201 = vpack.c.bf16 %v2174, %v2173
        %v2202 = vpack.c.bf16 %v2176, %v2175
        %v2203 = vpack.c.bf16 %v2178, %v2177
        %v2204 = vpack.c.bf16 %v2180, %v2179
        %v2205 = vpack.c.bf16 %v2182, %v2181
        %v2206 = vpack.c.bf16 %v2184, %v2183
        %v2207 = vpack.c.bf16 %v2186, %v2185
        %v2208 = vpack.c.bf16 %v2188, %v2187
        %v2209 = vpack.c.bf16 %v2190, %v2189
        %v2210 = vpack.c.bf16 %v2192, %v2191
        %v2211 = vpack.c.bf16 %v2194, %v2193
        %v2212 = vpack.c.bf16 %v2196, %v2195
        %2213 = vst.msk [vmem:[#allocation3 + $0x20] sm:$0xff] %vm1306, %v2197
        %2214 = vst.msk [vmem:[#allocation3 + $0x48] sm:$0xff] %vm1306, %v2198
        %2215 = vst.msk [vmem:[#allocation3 + $0x70] sm:$0xff] %vm1306, %v2199
        %2216 = vst.msk [vmem:[#allocation3 + $0x98] sm:$0xff] %vm1306, %v2200
        %2217 = vst.msk [vmem:[#allocation3 + $0xc0] sm:$0xff] %vm1306, %v2201
        %2218 = vst.msk [vmem:[#allocation3 + $0xe8] sm:$0xff] %vm1306, %v2202
        %2219 = vst.msk [vmem:[#allocation3 + $0x110] sm:$0xff] %vm1306, %v2203
        %2220 = vst.msk [vmem:[#allocation3 + $0x138] sm:$0xff] %vm1306, %v2204
        %2221 = vst.msk [vmem:[#allocation3 + $0x160] sm:$0xff] %vm1306, %v2205
        %2222 = vst.msk [vmem:[#allocation3 + $0x188] sm:$0xff] %vm1306, %v2206
        %2223 = vst.msk [vmem:[#allocation3 + $0x1b0] sm:$0xff] %vm1306, %v2207
        %2224 = vst.msk [vmem:[#allocation3 + $0x1d8] sm:$0xff] %vm1306, %v2208
        %2225 = vst.msk [vmem:[#allocation3 + $0x200] sm:$0xff] %vm1306, %v2209
        %2226 = vst.msk [vmem:[#allocation3 + $0x228] sm:$0xff] %vm1306, %v2210
        %2227 = vst.msk [vmem:[#allocation3 + $0x250] sm:$0xff] %vm1306, %v2211
        %2228 = vst.msk [vmem:[#allocation3 + $0x278] sm:$0xff] %vm1306, %v2212
        %v2229 = vld [vmem:[#allocation3] sm:$0xff]
        %v2230 = vld [vmem:[#allocation3 + $0x8] sm:$0xff]
        %v2231 = vld [vmem:[#allocation3 + $0x10] sm:$0xff]
        %v2232 = vld [vmem:[#allocation3 + $0x18] sm:$0xff]
        %v2233 = vld [vmem:[#allocation3 + $0x20] sm:$0xff]
        %v2234 = vld [vmem:[#allocation3 + $0x28] sm:$0xff]
        %v2235 = vld [vmem:[#allocation3 + $0x30] sm:$0xff]
        %v2236 = vld [vmem:[#allocation3 + $0x38] sm:$0xff]
        %v2237 = vld [vmem:[#allocation3 + $0x40] sm:$0xff]
        %v2238 = vld [vmem:[#allocation3 + $0x48] sm:$0xff]
        %v2239 = vld [vmem:[#allocation3 + $0x50] sm:$0xff]
        %v2240 = vld [vmem:[#allocation3 + $0x58] sm:$0xff]
        %v2241 = vld [vmem:[#allocation3 + $0x60] sm:$0xff]
        %v2242 = vld [vmem:[#allocation3 + $0x68] sm:$0xff]
        %v2243 = vld [vmem:[#allocation3 + $0x70] sm:$0xff]
        %v2244 = vld [vmem:[#allocation3 + $0x78] sm:$0xff]
        %v2245 = vld [vmem:[#allocation3 + $0x80] sm:$0xff]
        %v2246 = vld [vmem:[#allocation3 + $0x88] sm:$0xff]
        %v2247 = vld [vmem:[#allocation3 + $0x90] sm:$0xff]
        %v2248 = vld [vmem:[#allocation3 + $0x98] sm:$0xff]
        %v2249 = vld [vmem:[#allocation3 + $0xa0] sm:$0xff]
        %v2250 = vld [vmem:[#allocation3 + $0xa8] sm:$0xff]
        %v2251 = vld [vmem:[#allocation3 + $0xb0] sm:$0xff]
        %v2252 = vld [vmem:[#allocation3 + $0xb8] sm:$0xff]
        %v2253 = vld [vmem:[#allocation3 + $0xc0] sm:$0xff]
        %v2254 = vld [vmem:[#allocation3 + $0xc8] sm:$0xff]
        %v2255 = vld [vmem:[#allocation3 + $0xd0] sm:$0xff]
        %v2256 = vld [vmem:[#allocation3 + $0xd8] sm:$0xff]
        %v2257 = vld [vmem:[#allocation3 + $0xe0] sm:$0xff]
        %v2258 = vld [vmem:[#allocation3 + $0xe8] sm:$0xff]
        %v2259 = vld [vmem:[#allocation3 + $0xf0] sm:$0xff]
        %v2260 = vld [vmem:[#allocation3 + $0xf8] sm:$0xff]
        %v2261 = vld [vmem:[#allocation3 + $0x100] sm:$0xff]
        %v2262 = vld [vmem:[#allocation3 + $0x108] sm:$0xff]
        %v2263 = vld [vmem:[#allocation3 + $0x110] sm:$0xff]
        %v2264 = vld [vmem:[#allocation3 + $0x118] sm:$0xff]
        %v2265 = vld [vmem:[#allocation3 + $0x120] sm:$0xff]
        %v2266 = vld [vmem:[#allocation3 + $0x128] sm:$0xff]
        %v2267 = vld [vmem:[#allocation3 + $0x130] sm:$0xff]
        %v2268 = vld [vmem:[#allocation3 + $0x138] sm:$0xff]
        %v2269 = vld [vmem:[#allocation3 + $0x140] sm:$0xff]
        %v2270 = vld [vmem:[#allocation3 + $0x148] sm:$0xff]
        %v2271 = vld [vmem:[#allocation3 + $0x150] sm:$0xff]
        %v2272 = vld [vmem:[#allocation3 + $0x158] sm:$0xff]
        %v2273 = vld [vmem:[#allocation3 + $0x160] sm:$0xff]
        %v2274 = vld [vmem:[#allocation3 + $0x168] sm:$0xff]
        %v2275 = vld [vmem:[#allocation3 + $0x170] sm:$0xff]
        %v2276 = vld [vmem:[#allocation3 + $0x178] sm:$0xff]
        %v2277 = vld [vmem:[#allocation3 + $0x180] sm:$0xff]
        %v2278 = vld [vmem:[#allocation3 + $0x188] sm:$0xff]
        %v2279 = vld [vmem:[#allocation3 + $0x190] sm:$0xff]
        %v2280 = vld [vmem:[#allocation3 + $0x198] sm:$0xff]
        %v2281 = vld [vmem:[#allocation3 + $0x1a0] sm:$0xff]
        %v2282 = vld [vmem:[#allocation3 + $0x1a8] sm:$0xff]
        %v2283 = vld [vmem:[#allocation3 + $0x1b0] sm:$0xff]
        %v2284 = vld [vmem:[#allocation3 + $0x1b8] sm:$0xff]
        %v2285 = vld [vmem:[#allocation3 + $0x1c0] sm:$0xff]
        %v2286 = vld [vmem:[#allocation3 + $0x1c8] sm:$0xff]
        %v2287 = vld [vmem:[#allocation3 + $0x1d0] sm:$0xff]
        %v2288 = vld [vmem:[#allocation3 + $0x1d8] sm:$0xff]
        %v2289 = vld [vmem:[#allocation3 + $0x1e0] sm:$0xff]
        %v2290 = vld [vmem:[#allocation3 + $0x1e8] sm:$0xff]
        %v2291 = vld [vmem:[#allocation3 + $0x1f0] sm:$0xff]
        %v2292 = vld [vmem:[#allocation3 + $0x1f8] sm:$0xff]
        %v2293 = vld [vmem:[#allocation3 + $0x200] sm:$0xff]
        %v2294 = vld [vmem:[#allocation3 + $0x208] sm:$0xff]
        %v2295 = vld [vmem:[#allocation3 + $0x210] sm:$0xff]
        %v2296 = vld [vmem:[#allocation3 + $0x218] sm:$0xff]
        %v2297 = vld [vmem:[#allocation3 + $0x220] sm:$0xff]
        %v2298 = vld [vmem:[#allocation3 + $0x228] sm:$0xff]
        %v2299 = vld [vmem:[#allocation3 + $0x230] sm:$0xff]
        %v2300 = vld [vmem:[#allocation3 + $0x238] sm:$0xff]
        %v2301 = vld [vmem:[#allocation3 + $0x240] sm:$0xff]
        %v2302 = vld [vmem:[#allocation3 + $0x248] sm:$0xff]
        %v2303 = vld [vmem:[#allocation3 + $0x250] sm:$0xff]
        %v2304 = vld [vmem:[#allocation3 + $0x258] sm:$0xff]
        %v2305 = vld [vmem:[#allocation3 + $0x260] sm:$0xff]
        %v2306 = vld [vmem:[#allocation3 + $0x268] sm:$0xff]
        %v2307 = vld [vmem:[#allocation3 + $0x270] sm:$0xff]
        %v2308 = vld [vmem:[#allocation3 + $0x278] sm:$0xff]
        %v2309 = vld [vmem:[%s3] sm:$0xf]
        %v2310 = vld [vmem:[%s3 + $0x4] sm:$0xf]
        %v2311 = vld [vmem:[%s3 + $0x8] sm:$0xf]
        %v2312 = vld [vmem:[%s3 + $0xc] sm:$0xf]
        %v2313 = vld [vmem:[%s3 + $0x10] sm:$0xf]
        %v2314 = vld [vmem:[%s3 + $0x14] sm:$0xf]
        %v2315 = vld [vmem:[%s3 + $0x18] sm:$0xf]
        %v2316 = vld [vmem:[%s3 + $0x1c] sm:$0xf]
        %v2317 = vld [vmem:[%s3 + $0x20] sm:$0xf]
        %v2318 = vld [vmem:[%s3 + $0x24] sm:$0xf]
        %v2319 = vld [vmem:[%s3 + $0x28] sm:$0xf]
        %v2320 = vld [vmem:[%s3 + $0x2c] sm:$0xf]
        %v2321 = vld [vmem:[%s3 + $0x30] sm:$0xf]
        %v2322 = vld [vmem:[%s3 + $0x34] sm:$0xf]
        %v2323 = vld [vmem:[%s3 + $0x38] sm:$0xf]
        %v2324 = vld [vmem:[%s3 + $0x3c] sm:$0xf]
        %v2325 = vld [vmem:[%s3 + $0x40] sm:$0xf]
        %v2326 = vld [vmem:[%s3 + $0x44] sm:$0xf]
        %v2327 = vld [vmem:[%s3 + $0x48] sm:$0xf]
        %v2328 = vld [vmem:[%s3 + $0x4c] sm:$0xf]
        %v2329 = vld [vmem:[%s3 + $0x50] sm:$0xf]
        %v2330 = vld [vmem:[%s3 + $0x54] sm:$0xf]
        %v2331 = vld [vmem:[%s3 + $0x58] sm:$0xf]
        %v2332 = vld [vmem:[%s3 + $0x5c] sm:$0xf]
        %v2333 = vld [vmem:[%s3 + $0x60] sm:$0xf]
        %v2334 = vld [vmem:[%s3 + $0x64] sm:$0xf]
        %v2335 = vld [vmem:[%s3 + $0x68] sm:$0xf]
        %v2336 = vld [vmem:[%s3 + $0x6c] sm:$0xf]
        %v2337 = vld [vmem:[%s3 + $0x70] sm:$0xf]
        %v2338 = vld [vmem:[%s3 + $0x74] sm:$0xf]
        %v2339 = vld [vmem:[%s3 + $0x78] sm:$0xf]
        %v2340 = vld [vmem:[%s3 + $0x7c] sm:$0xf]
        %v2341 = vld [vmem:[%s3 + $0x80] sm:$0xf]
        %v2342 = vld [vmem:[%s3 + $0x84] sm:$0xf]
        %v2343 = vld [vmem:[%s3 + $0x88] sm:$0xf]
        %v2344 = vld [vmem:[%s3 + $0x8c] sm:$0xf]
        %v2345 = vld [vmem:[%s3 + $0x90] sm:$0xf]
        %v2346 = vld [vmem:[%s3 + $0x94] sm:$0xf]
        %v2347 = vld [vmem:[%s3 + $0x98] sm:$0xf]
        %v2348 = vld [vmem:[%s3 + $0x9c] sm:$0xf]
        %v2349 = vld [vmem:[%s3 + $0xa0] sm:$0xf]
        %v2350 = vld [vmem:[%s3 + $0xa4] sm:$0xf]
        %v2351 = vld [vmem:[%s3 + $0xa8] sm:$0xf]
        %v2352 = vld [vmem:[%s3 + $0xac] sm:$0xf]
        %v2353 = vld [vmem:[%s3 + $0xb0] sm:$0xf]
        %v2354 = vld [vmem:[%s3 + $0xb4] sm:$0xf]
        %v2355 = vld [vmem:[%s3 + $0xb8] sm:$0xf]
        %v2356 = vld [vmem:[%s3 + $0xbc] sm:$0xf]
        %v2357 = vld [vmem:[%s3 + $0xc0] sm:$0xf]
        %v2358 = vld [vmem:[%s3 + $0xc4] sm:$0xf]
        %v2359 = vld [vmem:[%s3 + $0xc8] sm:$0xf]
        %v2360 = vld [vmem:[%s3 + $0xcc] sm:$0xf]
        %v2361 = vld [vmem:[%s3 + $0xd0] sm:$0xf]
        %v2362 = vld [vmem:[%s3 + $0xd4] sm:$0xf]
        %v2363 = vld [vmem:[%s3 + $0xd8] sm:$0xf]
        %v2364 = vld [vmem:[%s3 + $0xdc] sm:$0xf]
        %v2365 = vld [vmem:[%s3 + $0xe0] sm:$0xf]
        %v2366 = vld [vmem:[%s3 + $0xe4] sm:$0xf]
        %v2367 = vld [vmem:[%s3 + $0xe8] sm:$0xf]
        %v2368 = vld [vmem:[%s3 + $0xec] sm:$0xf]
        %v2369 = vld [vmem:[%s3 + $0xf0] sm:$0xf]
        %v2370 = vld [vmem:[%s3 + $0xf4] sm:$0xf]
        %v2371 = vld [vmem:[%s3 + $0xf8] sm:$0xf]
        %v2372 = vld [vmem:[%s3 + $0xfc] sm:$0xf]
        %v2373 = vld [vmem:[%s3 + $0x100] sm:$0xf]
        %v2374 = vld [vmem:[%s3 + $0x104] sm:$0xf]
        %v2375 = vld [vmem:[%s3 + $0x108] sm:$0xf]
        %v2376 = vld [vmem:[%s3 + $0x10c] sm:$0xf]
        %v2377 = vld [vmem:[%s3 + $0x110] sm:$0xf]
        %v2378 = vld [vmem:[%s3 + $0x114] sm:$0xf]
        %v2379 = vld [vmem:[%s3 + $0x118] sm:$0xf]
        %v2380 = vld [vmem:[%s3 + $0x11c] sm:$0xf]
        %v2381 = vld [vmem:[%s4] sm:$0x1]
        %v2383 = vlaneseq
        %v2384 = vshrl.u32 %v2383, 7
        %v2385 = vsub.s32 0, %v2384
        %v2386 = vrot.slane %v2381, %v2385
        %v2460 = vunpack.c.l.b16 %v2309
        %v2461 = vunpack.c.l.b16 %v2310
        %v2462 = vunpack.c.l.b16 %v2311
        %v2463 = vunpack.c.l.b16 %v2312
        %v2464 = vunpack.c.l.b16 %v2313
        %v2465 = vunpack.c.l.b16 %v2314
        %v2466 = vunpack.c.l.b16 %v2315
        %v2467 = vunpack.c.l.b16 %v2316
        %v2468 = vunpack.c.l.b16 %v2317
        %v2469 = vunpack.c.l.b16 %v2318
        %v2470 = vunpack.c.l.b16 %v2319
        %v2471 = vunpack.c.l.b16 %v2320
        %v2472 = vunpack.c.l.b16 %v2321
        %v2473 = vunpack.c.l.b16 %v2322
        %v2474 = vunpack.c.l.b16 %v2323
        %v2475 = vunpack.c.l.b16 %v2324
        %v2476 = vunpack.c.l.b16 %v2325
        %v2477 = vunpack.c.l.b16 %v2326
        %v2478 = vunpack.c.l.b16 %v2327
        %v2479 = vunpack.c.l.b16 %v2328
        %v2480 = vunpack.c.l.b16 %v2329
        %v2481 = vunpack.c.l.b16 %v2330
        %v2482 = vunpack.c.l.b16 %v2331
        %v2483 = vunpack.c.l.b16 %v2332
        %v2484 = vunpack.c.l.b16 %v2333
        %v2485 = vunpack.c.l.b16 %v2334
        %v2486 = vunpack.c.l.b16 %v2335
        %v2487 = vunpack.c.l.b16 %v2336
        %v2488 = vunpack.c.l.b16 %v2337
        %v2489 = vunpack.c.l.b16 %v2338
        %v2490 = vunpack.c.l.b16 %v2339
        %v2491 = vunpack.c.l.b16 %v2340
        %v2492 = vunpack.c.l.b16 %v2341
        %v2493 = vunpack.c.l.b16 %v2342
        %v2494 = vunpack.c.l.b16 %v2343
        %v2495 = vunpack.c.l.b16 %v2344
        %v2496 = vunpack.c.l.b16 %v2345
        %v2497 = vunpack.c.l.b16 %v2346
        %v2498 = vunpack.c.l.b16 %v2347
        %v2499 = vunpack.c.l.b16 %v2348
        %v2500 = vunpack.c.l.b16 %v2349
        %v2501 = vunpack.c.l.b16 %v2350
        %v2502 = vunpack.c.l.b16 %v2351
        %v2503 = vunpack.c.l.b16 %v2352
        %v2504 = vunpack.c.l.b16 %v2353
        %v2505 = vunpack.c.l.b16 %v2354
        %v2506 = vunpack.c.l.b16 %v2355
        %v2507 = vunpack.c.l.b16 %v2356
        %v2508 = vunpack.c.l.b16 %v2357
        %v2509 = vunpack.c.l.b16 %v2358
        %v2510 = vunpack.c.l.b16 %v2359
        %v2511 = vunpack.c.l.b16 %v2360
        %v2512 = vunpack.c.l.b16 %v2361
        %v2513 = vunpack.c.l.b16 %v2362
        %v2514 = vunpack.c.l.b16 %v2363
        %v2515 = vunpack.c.l.b16 %v2364
        %v2516 = vunpack.c.l.b16 %v2365
        %v2517 = vunpack.c.l.b16 %v2366
        %v2518 = vunpack.c.l.b16 %v2367
        %v2519 = vunpack.c.l.b16 %v2368
        %v2520 = vunpack.c.l.b16 %v2369
        %v2521 = vunpack.c.l.b16 %v2370
        %v2522 = vunpack.c.l.b16 %v2371
        %v2523 = vunpack.c.l.b16 %v2372
        %v2524 = vunpack.c.l.b16 %v2373
        %v2525 = vunpack.c.l.b16 %v2374
        %v2526 = vunpack.c.l.b16 %v2375
        %v2527 = vunpack.c.l.b16 %v2376
        %v2528 = vunpack.c.l.b16 %v2377
        %v2529 = vunpack.c.l.b16 %v2378
        %v2530 = vunpack.c.l.b16 %v2379
        %v2531 = vunpack.c.l.b16 %v2380
        %v2532 = vpack.c.b16 %v2461, %v2460
        %v2533 = vpack.c.b16 %v2463, %v2462
        %v2534 = vpack.c.b16 %v2465, %v2464
        %v2535 = vpack.c.b16 %v2467, %v2466
        %v2536 = vpack.c.b16 %v2469, %v2468
        %v2537 = vpack.c.b16 %v2471, %v2470
        %v2538 = vpack.c.b16 %v2473, %v2472
        %v2539 = vpack.c.b16 %v2475, %v2474
        %v2540 = vpack.c.b16 %v2477, %v2476
        %v2541 = vpack.c.b16 %v2479, %v2478
        %v2542 = vpack.c.b16 %v2481, %v2480
        %v2543 = vpack.c.b16 %v2483, %v2482
        %v2544 = vpack.c.b16 %v2485, %v2484
        %v2545 = vpack.c.b16 %v2487, %v2486
        %v2546 = vpack.c.b16 %v2489, %v2488
        %v2547 = vpack.c.b16 %v2491, %v2490
        %v2548 = vpack.c.b16 %v2493, %v2492
        %v2549 = vpack.c.b16 %v2495, %v2494
        %v2550 = vpack.c.b16 %v2497, %v2496
        %v2551 = vpack.c.b16 %v2499, %v2498
        %v2552 = vpack.c.b16 %v2501, %v2500
        %v2553 = vpack.c.b16 %v2503, %v2502
        %v2554 = vpack.c.b16 %v2505, %v2504
        %v2555 = vpack.c.b16 %v2507, %v2506
        %v2556 = vpack.c.b16 %v2509, %v2508
        %v2557 = vpack.c.b16 %v2511, %v2510
        %v2558 = vpack.c.b16 %v2513, %v2512
        %v2559 = vpack.c.b16 %v2515, %v2514
        %v2560 = vpack.c.b16 %v2517, %v2516
        %v2561 = vpack.c.b16 %v2519, %v2518
        %v2562 = vpack.c.b16 %v2521, %v2520
        %v2563 = vpack.c.b16 %v2523, %v2522
        %v2564 = vpack.c.b16 %v2525, %v2524
        %v2565 = vpack.c.b16 %v2527, %v2526
        %v2566 = vpack.c.b16 %v2529, %v2528
        %v2567 = vpack.c.b16 %v2531, %v2530
        %v2605 = vsel %vm1306, %v2233, 0
        %v2608 = vsel %vm1306, %v2238, 0
        %v2611 = vsel %vm1306, %v2243, 0
        %v2614 = vsel %vm1306, %v2248, 0
        %v2617 = vsel %vm1306, %v2253, 0
        %v2620 = vsel %vm1306, %v2258, 0
        %v2623 = vsel %vm1306, %v2263, 0
        %v2626 = vsel %vm1306, %v2268, 0
        %v2629 = vsel %vm1306, %v2273, 0
        %v2632 = vsel %vm1306, %v2278, 0
        %v2635 = vsel %vm1306, %v2283, 0
        %v2638 = vsel %vm1306, %v2288, 0
        %v2641 = vsel %vm1306, %v2293, 0
        %v2644 = vsel %vm1306, %v2298, 0
        %v2647 = vsel %vm1306, %v2303, 0
        %v2650 = vsel %vm1306, %v2308, 0
        %2652 = vmatprep.subr.bf16.mxu0 0
        %2653 = vmatpush1.bf16.msra.mxu0 %v2532
        %2654 = vmatprep.subr.bf16.mxu0 0
        %2655 = vmatpush1.bf16.msra.mxu0 %v2533
        %2656 = vmatprep.subr.bf16.mxu0 0
        %2657 = vmatpush1.bf16.msra.mxu0 %v2534
        %2658 = vmatprep.subr.bf16.mxu0 0
        %2659 = vmatpush1.bf16.msra.mxu0 %v2535
        %2660 = vmatprep.subr.bf16.mxu0 0
        %2661 = vmatpush1.bf16.msra.mxu0 %v2536
        %2662 = vmatprep.subr.bf16.mxu0 0
        %2663 = vmatpush1.bf16.msra.mxu0 %v2537
        %2664 = vmatprep.subr.bf16.mxu0 0
        %2665 = vmatpush1.bf16.msra.mxu0 %v2538
        %2666 = vmatprep.subr.bf16.mxu0 0
        %2667 = vmatpush1.bf16.msra.mxu0 %v2539
        %2668 = vmatprep.subr.bf16.mxu0 0
        %2669 = vmatpush1.bf16.msra.mxu0 %v2540
        %2670 = vmatprep.subr.bf16.mxu0 0
        %2671 = vmatpush1.bf16.msra.mxu0 %v2541
        %2672 = vmatprep.subr.bf16.mxu0 0
        %2673 = vmatpush1.bf16.msra.mxu0 %v2542
        %2674 = vmatprep.subr.bf16.mxu0 0
        %2675 = vmatpush1.bf16.msra.mxu0 %v2543
        %2676 = vmatprep.subr.bf16.mxu0 0
        %2677 = vmatpush1.bf16.msra.mxu0 %v2544
        %2678 = vmatprep.subr.bf16.mxu0 0
        %2679 = vmatpush1.bf16.msra.mxu0 %v2545
        %2680 = vmatprep.subr.bf16.mxu0 0
        %2681 = vmatpush1.bf16.msra.mxu0 %v2546
        %2682 = vmatprep.subr.bf16.mxu0 0
        %2683 = vmatpush1.bf16.msra.mxu0 %v2547
        %2684 = vmatprep.mubr.bf16.mxu0 %v2230
        %2685 = vmatmul.mubr.bf16.gmra.mrb[0].mxu0 %v2229
        %v2686 = vpop.f32.mrb[0].mxu0
        %v2687 = vadd.f32 %v2386, %v2686
        %v2688 = vpop.f32.mrb[0].mxu0
        %v2689 = vpop.f32.mrb[0].mxu0
        %v2690 = vadd.f32 %v2386, %v2689
        %v2691 = vpop.f32.mrb[0].mxu0
        %2692 = vmatprep.mubr.bf16.mxu0 %v2235
        %2693 = vmatmul.mubr.bf16.gmra.mrb[0].mxu0 %v2234
        %v2694 = vpop.f32.mrb[0].mxu0
        %v2695 = vadd.f32 %v2386, %v2694
        %v2696 = vpop.f32.mrb[0].mxu0
        %v2697 = vpop.f32.mrb[0].mxu0
        %v2698 = vadd.f32 %v2386, %v2697
        %v2699 = vpop.f32.mrb[0].mxu0
        %2700 = vmatprep.mubr.bf16.mxu0 %v2240
        %2701 = vmatmul.mubr.bf16.gmra.mrb[0].mxu0 %v2239
        %v2702 = vpop.f32.mrb[0].mxu0
        %v2703 = vadd.f32 %v2386, %v2702
        %v2704 = vpop.f32.mrb[0].mxu0
        %v2705 = vpop.f32.mrb[0].mxu0
        %v2706 = vadd.f32 %v2386, %v2705
        %v2707 = vpop.f32.mrb[0].mxu0
        %2708 = vmatprep.mubr.bf16.mxu0 %v2245
        %2709 = vmatmul.mubr.bf16.gmra.mrb[0].mxu0 %v2244
        %v2710 = vpop.f32.mrb[0].mxu0
        %v2711 = vadd.f32 %v2386, %v2710
        %v2712 = vpop.f32.mrb[0].mxu0
        %v2713 = vpop.f32.mrb[0].mxu0
        %v2714 = vadd.f32 %v2386, %v2713
        %v2715 = vpop.f32.mrb[0].mxu0
        %2716 = vmatprep.mubr.bf16.mxu0 %v2250
        %2717 = vmatmul.mubr.bf16.gmra.mrb[0].mxu0 %v2249
        %v2718 = vpop.f32.mrb[0].mxu0
        %v2719 = vadd.f32 %v2386, %v2718
        %v2720 = vpop.f32.mrb[0].mxu0
        %v2721 = vpop.f32.mrb[0].mxu0
        %v2722 = vadd.f32 %v2386, %v2721
        %v2723 = vpop.f32.mrb[0].mxu0
        %2724 = vmatprep.mubr.bf16.mxu0 %v2255
        %2725 = vmatmul.mubr.bf16.gmra.mrb[0].mxu0 %v2254
        %v2726 = vpop.f32.mrb[0].mxu0
        %v2727 = vadd.f32 %v2386, %v2726
        %v2728 = vpop.f32.mrb[0].mxu0
        %v2729 = vpop.f32.mrb[0].mxu0
        %v2730 = vadd.f32 %v2386, %v2729
        %v2731 = vpop.f32.mrb[0].mxu0
        %2732 = vmatprep.mubr.bf16.mxu0 %v2260
        %2733 = vmatmul.mubr.bf16.gmra.mrb[0].mxu0 %v2259
        %v2734 = vpop.f32.mrb[0].mxu0
        %v2735 = vadd.f32 %v2386, %v2734
        %v2736 = vpop.f32.mrb[0].mxu0
        %v2737 = vpop.f32.mrb[0].mxu0
        %v2738 = vadd.f32 %v2386, %v2737
        %v2739 = vpop.f32.mrb[0].mxu0
        %2740 = vmatprep.mubr.bf16.mxu0 %v2265
        %2741 = vmatmul.mubr.bf16.gmra.mrb[0].mxu0 %v2264
        %v2742 = vpop.f32.mrb[0].mxu0
        %v2743 = vadd.f32 %v2386, %v2742
        %v2744 = vpop.f32.mrb[0].mxu0
        %v2745 = vpop.f32.mrb[0].mxu0
        %v2746 = vadd.f32 %v2386, %v2745
        %v2747 = vpop.f32.mrb[0].mxu0
        %2748 = vmatprep.mubr.bf16.mxu0 %v2270
        %2749 = vmatmul.mubr.bf16.gmra.mrb[0].mxu0 %v2269
        %v2750 = vpop.f32.mrb[0].mxu0
        %v2751 = vadd.f32 %v2386, %v2750
        %v2752 = vpop.f32.mrb[0].mxu0
        %v2753 = vpop.f32.mrb[0].mxu0
        %v2754 = vadd.f32 %v2386, %v2753
        %v2755 = vpop.f32.mrb[0].mxu0
        %2756 = vmatprep.mubr.bf16.mxu0 %v2275
        %2757 = vmatmul.mubr.bf16.gmra.mrb[0].mxu0 %v2274
        %v2758 = vpop.f32.mrb[0].mxu0
        %v2759 = vadd.f32 %v2386, %v2758
        %v2760 = vpop.f32.mrb[0].mxu0
        %v2761 = vpop.f32.mrb[0].mxu0
        %v2762 = vadd.f32 %v2386, %v2761
        %v2763 = vpop.f32.mrb[0].mxu0
        %2764 = vmatprep.mubr.bf16.mxu0 %v2280
        %2765 = vmatmul.mubr.bf16.gmra.mrb[0].mxu0 %v2279
        %v2766 = vpop.f32.mrb[0].mxu0
        %v2767 = vadd.f32 %v2386, %v2766
        %v2768 = vpop.f32.mrb[0].mxu0
        %v2769 = vpop.f32.mrb[0].mxu0
        %v2770 = vadd.f32 %v2386, %v2769
        %v2771 = vpop.f32.mrb[0].mxu0
        %2772 = vmatprep.mubr.bf16.mxu0 %v2285
        %2773 = vmatmul.mubr.bf16.gmra.mrb[0].mxu0 %v2284
        %v2774 = vpop.f32.mrb[0].mxu0
        %v2775 = vadd.f32 %v2386, %v2774
        %v2776 = vpop.f32.mrb[0].mxu0
        %v2777 = vpop.f32.mrb[0].mxu0
        %v2778 = vadd.f32 %v2386, %v2777
        %v2779 = vpop.f32.mrb[0].mxu0
        %2780 = vmatprep.mubr.bf16.mxu0 %v2290
        %2781 = vmatmul.mubr.bf16.gmra.mrb[0].mxu0 %v2289
        %v2782 = vpop.f32.mrb[0].mxu0
        %v2783 = vadd.f32 %v2386, %v2782
        %v2784 = vpop.f32.mrb[0].mxu0
        %v2785 = vpop.f32.mrb[0].mxu0
        %v2786 = vadd.f32 %v2386, %v2785
        %v2787 = vpop.f32.mrb[0].mxu0
        %2788 = vmatprep.mubr.bf16.mxu0 %v2295
        %2789 = vmatmul.mubr.bf16.gmra.mrb[0].mxu0 %v2294
        %v2790 = vpop.f32.mrb[0].mxu0
        %v2791 = vadd.f32 %v2386, %v2790
        %v2792 = vpop.f32.mrb[0].mxu0
        %v2793 = vpop.f32.mrb[0].mxu0
        %v2794 = vadd.f32 %v2386, %v2793
        %v2795 = vpop.f32.mrb[0].mxu0
        %2796 = vmatprep.mubr.bf16.mxu0 %v2300
        %2797 = vmatmul.mubr.bf16.gmra.mrb[0].mxu0 %v2299
        %v2798 = vpop.f32.mrb[0].mxu0
        %v2799 = vadd.f32 %v2386, %v2798
        %v2800 = vpop.f32.mrb[0].mxu0
        %v2801 = vpop.f32.mrb[0].mxu0
        %v2802 = vadd.f32 %v2386, %v2801
        %v2803 = vpop.f32.mrb[0].mxu0
        %2804 = vmatprep.mubr.bf16.mxu0 %v2305
        %2805 = vmatmul.mubr.bf16.gmra.mrb[0].mxu0 %v2304
        %v2806 = vpop.f32.mrb[0].mxu0
        %v2807 = vadd.f32 %v2386, %v2806
        %v2808 = vpop.f32.mrb[0].mxu0
        %v2809 = vpop.f32.mrb[0].mxu0
        %v2810 = vadd.f32 %v2386, %v2809
        %v2811 = vpop.f32.mrb[0].mxu0
        %2812 = vdwg.mxu0
        %2813 = vmatprep.subr.bf16.mxu0 0
        %2814 = vmatpush1.bf16.msra.mxu0 %v2548
        %2815 = vmatprep.subr.bf16.mxu0 0
        %2816 = vmatpush1.bf16.msra.mxu0 %v2549
        %2817 = vmatprep.subr.bf16.mxu0 0
        %2818 = vmatpush1.bf16.msra.mxu0 %v2550
        %2819 = vmatprep.subr.bf16.mxu0 0
        %2820 = vmatpush1.bf16.msra.mxu0 %v2551
        %2821 = vmatprep.subr.bf16.mxu0 0
        %2822 = vmatpush1.bf16.msra.mxu0 %v2552
        %2823 = vmatprep.subr.bf16.mxu0 0
        %2824 = vmatpush1.bf16.msra.mxu0 %v2553
        %2825 = vmatprep.subr.bf16.mxu0 0
        %2826 = vmatpush1.bf16.msra.mxu0 %v2554
        %2827 = vmatprep.subr.bf16.mxu0 0
        %2828 = vmatpush1.bf16.msra.mxu0 %v2555
        %2829 = vmatprep.subr.bf16.mxu0 0
        %2830 = vmatpush1.bf16.msra.mxu0 %v2556
        %2831 = vmatprep.subr.bf16.mxu0 0
        %2832 = vmatpush1.bf16.msra.mxu0 %v2557
        %2833 = vmatprep.subr.bf16.mxu0 0
        %2834 = vmatpush1.bf16.msra.mxu0 %v2558
        %2835 = vmatprep.subr.bf16.mxu0 0
        %2836 = vmatpush1.bf16.msra.mxu0 %v2559
        %2837 = vmatprep.subr.bf16.mxu0 0
        %2838 = vmatpush1.bf16.msra.mxu0 %v2560
        %2839 = vmatprep.subr.bf16.mxu0 0
        %2840 = vmatpush1.bf16.msra.mxu0 %v2561
        %2841 = vmatprep.subr.bf16.mxu0 0
        %2842 = vmatpush1.bf16.msra.mxu0 %v2562
        %2843 = vmatprep.subr.bf16.mxu0 0
        %2844 = vmatpush1.bf16.msra.mxu0 %v2563
        %2845 = vmatprep.mubr.bf16.mxu0 %v2232
        %2846 = vmatmul.mubr.bf16.gmra.mrb[0].mxu0 %v2231
        %v2847 = vpop.f32.mrb[0].mxu0
        %v2848 = vadd.f32 %v2687, %v2847
        %v2849 = vpop.f32.mrb[0].mxu0
        %v2850 = vpop.f32.mrb[0].mxu0
        %v2851 = vadd.f32 %v2690, %v2850
        %v2852 = vpop.f32.mrb[0].mxu0
        %2853 = vmatprep.mubr.bf16.mxu0 %v2237
        %2854 = vmatmul.mubr.bf16.gmra.mrb[0].mxu0 %v2236
        %v2855 = vpop.f32.mrb[0].mxu0
        %v2856 = vadd.f32 %v2695, %v2855
        %v2857 = vpop.f32.mrb[0].mxu0
        %v2858 = vpop.f32.mrb[0].mxu0
        %v2859 = vadd.f32 %v2698, %v2858
        %v2860 = vpop.f32.mrb[0].mxu0
        %2861 = vmatprep.mubr.bf16.mxu0 %v2242
        %2862 = vmatmul.mubr.bf16.gmra.mrb[0].mxu0 %v2241
        %v2863 = vpop.f32.mrb[0].mxu0
        %v2864 = vadd.f32 %v2703, %v2863
        %v2865 = vpop.f32.mrb[0].mxu0
        %v2866 = vpop.f32.mrb[0].mxu0
        %v2867 = vadd.f32 %v2706, %v2866
        %v2868 = vpop.f32.mrb[0].mxu0
        %2869 = vmatprep.mubr.bf16.mxu0 %v2247
        %2870 = vmatmul.mubr.bf16.gmra.mrb[0].mxu0 %v2246
        %v2871 = vpop.f32.mrb[0].mxu0
        %v2872 = vadd.f32 %v2711, %v2871
        %v2873 = vpop.f32.mrb[0].mxu0
        %v2874 = vpop.f32.mrb[0].mxu0
        %v2875 = vadd.f32 %v2714, %v2874
        %v2876 = vpop.f32.mrb[0].mxu0
        %2877 = vmatprep.mubr.bf16.mxu0 %v2252
        %2878 = vmatmul.mubr.bf16.gmra.mrb[0].mxu0 %v2251
        %v2879 = vpop.f32.mrb[0].mxu0
        %v2880 = vadd.f32 %v2719, %v2879
        %v2881 = vpop.f32.mrb[0].mxu0
        %v2882 = vpop.f32.mrb[0].mxu0
        %v2883 = vadd.f32 %v2722, %v2882
        %v2884 = vpop.f32.mrb[0].mxu0
        %2885 = vmatprep.mubr.bf16.mxu0 %v2257
        %2886 = vmatmul.mubr.bf16.gmra.mrb[0].mxu0 %v2256
        %v2887 = vpop.f32.mrb[0].mxu0
        %v2888 = vadd.f32 %v2727, %v2887
        %v2889 = vpop.f32.mrb[0].mxu0
        %v2890 = vpop.f32.mrb[0].mxu0
        %v2891 = vadd.f32 %v2730, %v2890
        %v2892 = vpop.f32.mrb[0].mxu0
        %2893 = vmatprep.mubr.bf16.mxu0 %v2262
        %2894 = vmatmul.mubr.bf16.gmra.mrb[0].mxu0 %v2261
        %v2895 = vpop.f32.mrb[0].mxu0
        %v2896 = vadd.f32 %v2735, %v2895
        %v2897 = vpop.f32.mrb[0].mxu0
        %v2898 = vpop.f32.mrb[0].mxu0
        %v2899 = vadd.f32 %v2738, %v2898
        %v2900 = vpop.f32.mrb[0].mxu0
        %2901 = vmatprep.mubr.bf16.mxu0 %v2267
        %2902 = vmatmul.mubr.bf16.gmra.mrb[0].mxu0 %v2266
        %v2903 = vpop.f32.mrb[0].mxu0
        %v2904 = vadd.f32 %v2743, %v2903
        %v2905 = vpop.f32.mrb[0].mxu0
        %v2906 = vpop.f32.mrb[0].mxu0
        %v2907 = vadd.f32 %v2746, %v2906
        %v2908 = vpop.f32.mrb[0].mxu0
        %2909 = vmatprep.mubr.bf16.mxu0 %v2272
        %2910 = vmatmul.mubr.bf16.gmra.mrb[0].mxu0 %v2271
        %v2911 = vpop.f32.mrb[0].mxu0
        %v2912 = vadd.f32 %v2751, %v2911
        %v2913 = vpop.f32.mrb[0].mxu0
        %v2914 = vpop.f32.mrb[0].mxu0
        %v2915 = vadd.f32 %v2754, %v2914
        %v2916 = vpop.f32.mrb[0].mxu0
        %2917 = vmatprep.mubr.bf16.mxu0 %v2277
        %2918 = vmatmul.mubr.bf16.gmra.mrb[0].mxu0 %v2276
        %v2919 = vpop.f32.mrb[0].mxu0
        %v2920 = vadd.f32 %v2759, %v2919
        %v2921 = vpop.f32.mrb[0].mxu0
        %v2922 = vpop.f32.mrb[0].mxu0
        %v2923 = vadd.f32 %v2762, %v2922
        %v2924 = vpop.f32.mrb[0].mxu0
        %2925 = vmatprep.mubr.bf16.mxu0 %v2282
        %2926 = vmatmul.mubr.bf16.gmra.mrb[0].mxu0 %v2281
        %v2927 = vpop.f32.mrb[0].mxu0
        %v2928 = vadd.f32 %v2767, %v2927
        %v2929 = vpop.f32.mrb[0].mxu0
        %v2930 = vpop.f32.mrb[0].mxu0
        %v2931 = vadd.f32 %v2770, %v2930
        %v2932 = vpop.f32.mrb[0].mxu0
        %2933 = vmatprep.mubr.bf16.mxu0 %v2287
        %2934 = vmatmul.mubr.bf16.gmra.mrb[0].mxu0 %v2286
        %v2935 = vpop.f32.mrb[0].mxu0
        %v2936 = vadd.f32 %v2775, %v2935
        %v2937 = vpop.f32.mrb[0].mxu0
        %v2938 = vpop.f32.mrb[0].mxu0
        %v2939 = vadd.f32 %v2778, %v2938
        %v2940 = vpop.f32.mrb[0].mxu0
        %2941 = vmatprep.mubr.bf16.mxu0 %v2292
        %2942 = vmatmul.mubr.bf16.gmra.mrb[0].mxu0 %v2291
        %v2943 = vpop.f32.mrb[0].mxu0
        %v2944 = vadd.f32 %v2783, %v2943
        %v2945 = vpop.f32.mrb[0].mxu0
        %v2946 = vpop.f32.mrb[0].mxu0
        %v2947 = vadd.f32 %v2786, %v2946
        %v2948 = vpop.f32.mrb[0].mxu0
        %2949 = vmatprep.mubr.bf16.mxu0 %v2297
        %2950 = vmatmul.mubr.bf16.gmra.mrb[0].mxu0 %v2296
        %v2951 = vpop.f32.mrb[0].mxu0
        %v2952 = vadd.f32 %v2791, %v2951
        %v2953 = vpop.f32.mrb[0].mxu0
        %v2954 = vpop.f32.mrb[0].mxu0
        %v2955 = vadd.f32 %v2794, %v2954
        %v2956 = vpop.f32.mrb[0].mxu0
        %2957 = vmatprep.mubr.bf16.mxu0 %v2302
        %2958 = vmatmul.mubr.bf16.gmra.mrb[0].mxu0 %v2301
        %v2959 = vpop.f32.mrb[0].mxu0
        %v2960 = vadd.f32 %v2799, %v2959
        %v2961 = vpop.f32.mrb[0].mxu0
        %v2962 = vpop.f32.mrb[0].mxu0
        %v2963 = vadd.f32 %v2802, %v2962
        %v2964 = vpop.f32.mrb[0].mxu0
        %2965 = vmatprep.mubr.bf16.mxu0 %v2307
        %2966 = vmatmul.mubr.bf16.gmra.mrb[0].mxu0 %v2306
        %v2967 = vpop.f32.mrb[0].mxu0
        %v2968 = vadd.f32 %v2807, %v2967
        %v2969 = vpop.f32.mrb[0].mxu0
        %v2970 = vpop.f32.mrb[0].mxu0
        %v2971 = vadd.f32 %v2810, %v2970
        %v2972 = vpop.f32.mrb[0].mxu0
        %2973 = vdwg.mxu0
        %2974 = vmatprep.subr.bf16.mxu0 0
        %2975 = vmatpush1.bf16.msra.mxu0 %v2564
        %2976 = vmatprep.subr.bf16.mxu0 0
        %2977 = vmatpush1.bf16.msra.mxu0 %v2565
        %2978 = vmatprep.subr.bf16.mxu0 0
        %2979 = vmatpush1.bf16.msra.mxu0 %v2566
        %2980 = vmatprep.subr.bf16.mxu0 0
        %2981 = vmatpush1.bf16.msra.mxu0 %v2567
        %2982 = vmatprep.subr.bf16.mxu0 0
        %2983 = vmatpush1.bf16.msra.mxu0 0
        %2984 = vmatprep.subr.bf16.mxu0 0
        %2985 = vmatpush1.bf16.msra.mxu0 0
        %2986 = vmatprep.subr.bf16.mxu0 0
        %2987 = vmatpush1.bf16.msra.mxu0 0
        %2988 = vmatprep.subr.bf16.mxu0 0
        %2989 = vmatpush1.bf16.msra.mxu0 0
        %2990 = vmatprep.subr.bf16.mxu0 0
        %2991 = vmatpush1.bf16.msra.mxu0 0
        %2992 = vmatprep.subr.bf16.mxu0 0
        %2993 = vmatpush1.bf16.msra.mxu0 0
        %2994 = vmatprep.subr.bf16.mxu0 0
        %2995 = vmatpush1.bf16.msra.mxu0 0
        %2996 = vmatprep.subr.bf16.mxu0 0
        %2997 = vmatpush1.bf16.msra.mxu0 0
        %2998 = vmatprep.subr.bf16.mxu0 0
        %2999 = vmatpush1.bf16.msra.mxu0 0
        %3000 = vmatprep.subr.bf16.mxu0 0
        %3001 = vmatpush1.bf16.msra.mxu0 0
        %3002 = vmatprep.subr.bf16.mxu0 0
        %3003 = vmatpush1.bf16.msra.mxu0 0
        %3004 = vmatprep.subr.bf16.mxu0 0
        %3005 = vmatpush1.bf16.msra.mxu0 0
        %3006 = vmatprep.mubr.bf16.mxu0 0
        %3007 = vmatmul.mubr.bf16.gmra.mrb[0].mxu0 %v2605
        %v3008 = vpop.f32.mrb[0].mxu0
        %v3009 = vadd.f32 %v2848, %v3008
        %v3010 = vpop.f32.mrb[0].mxu0
        %v3011 = vpop.f32.mrb[0].mxu0
        %v3012 = vadd.f32 %v2851, %v3011
        %v3013 = vpop.f32.mrb[0].mxu0
        %3014 = vmatprep.mubr.bf16.mxu0 0
        %3015 = vmatmul.mubr.bf16.gmra.mrb[0].mxu0 %v2608
        %v3016 = vpop.f32.mrb[0].mxu0
        %v3017 = vadd.f32 %v2856, %v3016
        %v3018 = vpop.f32.mrb[0].mxu0
        %v3019 = vpop.f32.mrb[0].mxu0
        %v3020 = vadd.f32 %v2859, %v3019
        %v3021 = vpop.f32.mrb[0].mxu0
        %3022 = vmatprep.mubr.bf16.mxu0 0
        %3023 = vmatmul.mubr.bf16.gmra.mrb[0].mxu0 %v2611
        %v3024 = vpop.f32.mrb[0].mxu0
        %v3025 = vadd.f32 %v2864, %v3024
        %v3026 = vpop.f32.mrb[0].mxu0
        %v3027 = vpop.f32.mrb[0].mxu0
        %v3028 = vadd.f32 %v2867, %v3027
        %v3029 = vpop.f32.mrb[0].mxu0
        %3030 = vmatprep.mubr.bf16.mxu0 0
        %3031 = vmatmul.mubr.bf16.gmra.mrb[0].mxu0 %v2614
        %v3032 = vpop.f32.mrb[0].mxu0
        %v3033 = vadd.f32 %v2872, %v3032
        %v3034 = vpop.f32.mrb[0].mxu0
        %v3035 = vpop.f32.mrb[0].mxu0
        %v3036 = vadd.f32 %v2875, %v3035
        %v3037 = vpop.f32.mrb[0].mxu0
        %3038 = vmatprep.mubr.bf16.mxu0 0
        %3039 = vmatmul.mubr.bf16.gmra.mrb[0].mxu0 %v2617
        %v3040 = vpop.f32.mrb[0].mxu0
        %v3041 = vadd.f32 %v2880, %v3040
        %v3042 = vpop.f32.mrb[0].mxu0
        %v3043 = vpop.f32.mrb[0].mxu0
        %v3044 = vadd.f32 %v2883, %v3043
        %v3045 = vpop.f32.mrb[0].mxu0
        %3046 = vmatprep.mubr.bf16.mxu0 0
        %3047 = vmatmul.mubr.bf16.gmra.mrb[0].mxu0 %v2620
        %v3048 = vpop.f32.mrb[0].mxu0
        %v3049 = vadd.f32 %v2888, %v3048
        %v3050 = vpop.f32.mrb[0].mxu0
        %v3051 = vpop.f32.mrb[0].mxu0
        %v3052 = vadd.f32 %v2891, %v3051
        %v3053 = vpop.f32.mrb[0].mxu0
        %3054 = vmatprep.mubr.bf16.mxu0 0
        %3055 = vmatmul.mubr.bf16.gmra.mrb[0].mxu0 %v2623
        %v3056 = vpop.f32.mrb[0].mxu0
        %v3057 = vadd.f32 %v2896, %v3056
        %v3058 = vpop.f32.mrb[0].mxu0
        %v3059 = vpop.f32.mrb[0].mxu0
        %v3060 = vadd.f32 %v2899, %v3059
        %v3061 = vpop.f32.mrb[0].mxu0
        %3062 = vmatprep.mubr.bf16.mxu0 0
        %3063 = vmatmul.mubr.bf16.gmra.mrb[0].mxu0 %v2626
        %v3064 = vpop.f32.mrb[0].mxu0
        %v3065 = vadd.f32 %v2904, %v3064
        %v3066 = vpop.f32.mrb[0].mxu0
        %v3067 = vpop.f32.mrb[0].mxu0
        %v3068 = vadd.f32 %v2907, %v3067
        %v3069 = vpop.f32.mrb[0].mxu0
        %3070 = vmatprep.mubr.bf16.mxu0 0
        %3071 = vmatmul.mubr.bf16.gmra.mrb[0].mxu0 %v2629
        %v3072 = vpop.f32.mrb[0].mxu0
        %v3073 = vadd.f32 %v2912, %v3072
        %v3074 = vpop.f32.mrb[0].mxu0
        %v3075 = vpop.f32.mrb[0].mxu0
        %v3076 = vadd.f32 %v2915, %v3075
        %v3077 = vpop.f32.mrb[0].mxu0
        %3078 = vmatprep.mubr.bf16.mxu0 0
        %3079 = vmatmul.mubr.bf16.gmra.mrb[0].mxu0 %v2632
        %v3080 = vpop.f32.mrb[0].mxu0
        %v3081 = vadd.f32 %v2920, %v3080
        %v3082 = vpop.f32.mrb[0].mxu0
        %v3083 = vpop.f32.mrb[0].mxu0
        %v3084 = vadd.f32 %v2923, %v3083
        %v3085 = vpop.f32.mrb[0].mxu0
        %3086 = vmatprep.mubr.bf16.mxu0 0
        %3087 = vmatmul.mubr.bf16.gmra.mrb[0].mxu0 %v2635
        %v3088 = vpop.f32.mrb[0].mxu0
        %v3089 = vadd.f32 %v2928, %v3088
        %v3090 = vpop.f32.mrb[0].mxu0
        %v3091 = vpop.f32.mrb[0].mxu0
        %v3092 = vadd.f32 %v2931, %v3091
        %v3093 = vpop.f32.mrb[0].mxu0
        %3094 = vmatprep.mubr.bf16.mxu0 0
        %3095 = vmatmul.mubr.bf16.gmra.mrb[0].mxu0 %v2638
        %v3096 = vpop.f32.mrb[0].mxu0
        %v3097 = vadd.f32 %v2936, %v3096
        %v3098 = vpop.f32.mrb[0].mxu0
        %v3099 = vpop.f32.mrb[0].mxu0
        %v3100 = vadd.f32 %v2939, %v3099
        %v3101 = vpop.f32.mrb[0].mxu0
        %3102 = vmatprep.mubr.bf16.mxu0 0
        %3103 = vmatmul.mubr.bf16.gmra.mrb[0].mxu0 %v2641
        %v3104 = vpop.f32.mrb[0].mxu0
        %v3105 = vadd.f32 %v2944, %v3104
        %v3106 = vpop.f32.mrb[0].mxu0
        %v3107 = vpop.f32.mrb[0].mxu0
        %v3108 = vadd.f32 %v2947, %v3107
        %v3109 = vpop.f32.mrb[0].mxu0
        %3110 = vmatprep.mubr.bf16.mxu0 0
        %3111 = vmatmul.mubr.bf16.gmra.mrb[0].mxu0 %v2644
        %v3112 = vpop.f32.mrb[0].mxu0
        %v3113 = vadd.f32 %v2952, %v3112
        %v3114 = vpop.f32.mrb[0].mxu0
        %v3115 = vpop.f32.mrb[0].mxu0
        %v3116 = vadd.f32 %v2955, %v3115
        %v3117 = vpop.f32.mrb[0].mxu0
        %3118 = vmatprep.mubr.bf16.mxu0 0
        %3119 = vmatmul.mubr.bf16.gmra.mrb[0].mxu0 %v2647
        %v3120 = vpop.f32.mrb[0].mxu0
        %v3121 = vadd.f32 %v2960, %v3120
        %v3122 = vpop.f32.mrb[0].mxu0
        %v3123 = vpop.f32.mrb[0].mxu0
        %v3124 = vadd.f32 %v2963, %v3123
        %v3125 = vpop.f32.mrb[0].mxu0
        %3126 = vmatprep.mubr.bf16.mxu0 0
        %3127 = vmatmul.mubr.bf16.gmra.mrb[0].mxu0 %v2650
        %v3128 = vpop.f32.mrb[0].mxu0
        %v3129 = vadd.f32 %v2968, %v3128
        %v3130 = vpop.f32.mrb[0].mxu0
        %v3131 = vpop.f32.mrb[0].mxu0
        %v3132 = vadd.f32 %v2971, %v3131
        %v3133 = vpop.f32.mrb[0].mxu0
        %3134 = vdwg.mxu0
        %v3135 = vld [vmem:[%s5] sm:$0x1]
        %v3137 = vlaneseq
        %v3138 = vshrl.u32 %v3137, 7
        %v3139 = vsub.s32 0, %v3138
        %v3140 = vrot.slane %v3135, %v3139
        %v3142 = vmul.f32 %v3009, %v3140
        %v3143 = vmul.f32 %v3012, %v3140
        %v3144 = vmul.f32 %v3017, %v3140
        %v3145 = vmul.f32 %v3020, %v3140
        %v3146 = vmul.f32 %v3025, %v3140
        %v3147 = vmul.f32 %v3028, %v3140
        %v3148 = vmul.f32 %v3033, %v3140
        %v3149 = vmul.f32 %v3036, %v3140
        %v3150 = vmul.f32 %v3041, %v3140
        %v3151 = vmul.f32 %v3044, %v3140
        %v3152 = vmul.f32 %v3049, %v3140
        %v3153 = vmul.f32 %v3052, %v3140
        %v3154 = vmul.f32 %v3057, %v3140
        %v3155 = vmul.f32 %v3060, %v3140
        %v3156 = vmul.f32 %v3065, %v3140
        %v3157 = vmul.f32 %v3068, %v3140
        %v3158 = vmul.f32 %v3073, %v3140
        %v3159 = vmul.f32 %v3076, %v3140
        %v3160 = vmul.f32 %v3081, %v3140
        %v3161 = vmul.f32 %v3084, %v3140
        %v3162 = vmul.f32 %v3089, %v3140
        %v3163 = vmul.f32 %v3092, %v3140
        %v3164 = vmul.f32 %v3097, %v3140
        %v3165 = vmul.f32 %v3100, %v3140
        %v3166 = vmul.f32 %v3105, %v3140
        %v3167 = vmul.f32 %v3108, %v3140
        %v3168 = vmul.f32 %v3113, %v3140
        %v3169 = vmul.f32 %v3116, %v3140
        %v3170 = vmul.f32 %v3121, %v3140
        %v3171 = vmul.f32 %v3124, %v3140
        %v3172 = vmul.f32 %v3129, %v3140
        %v3173 = vmul.f32 %v3132, %v3140
        %v3174 = vld [vmem:[%s6] sm:$0x1]
        %v3176 = vlaneseq
        %v3177 = vshrl.u32 %v3176, 7
        %v3178 = vsub.s32 0, %v3177
        %v3179 = vrot.slane %v3174, %v3178
        %v3181 = vadd.f32 %v3142, %v3179
        %v3182 = vadd.f32 %v3143, %v3179
        %v3183 = vadd.f32 %v3144, %v3179
        %v3184 = vadd.f32 %v3145, %v3179
        %v3185 = vadd.f32 %v3146, %v3179
        %v3186 = vadd.f32 %v3147, %v3179
        %v3187 = vadd.f32 %v3148, %v3179
        %v3188 = vadd.f32 %v3149, %v3179
        %v3189 = vadd.f32 %v3150, %v3179
        %v3190 = vadd.f32 %v3151, %v3179
        %v3191 = vadd.f32 %v3152, %v3179
        %v3192 = vadd.f32 %v3153, %v3179
        %v3193 = vadd.f32 %v3154, %v3179
        %v3194 = vadd.f32 %v3155, %v3179
        %v3195 = vadd.f32 %v3156, %v3179
        %v3196 = vadd.f32 %v3157, %v3179
        %v3197 = vadd.f32 %v3158, %v3179
        %v3198 = vadd.f32 %v3159, %v3179
        %v3199 = vadd.f32 %v3160, %v3179
        %v3200 = vadd.f32 %v3161, %v3179
        %v3201 = vadd.f32 %v3162, %v3179
        %v3202 = vadd.f32 %v3163, %v3179
        %v3203 = vadd.f32 %v3164, %v3179
        %v3204 = vadd.f32 %v3165, %v3179
        %v3205 = vadd.f32 %v3166, %v3179
        %v3206 = vadd.f32 %v3167, %v3179
        %v3207 = vadd.f32 %v3168, %v3179
        %v3208 = vadd.f32 %v3169, %v3179
        %v3209 = vadd.f32 %v3170, %v3179
        %v3210 = vadd.f32 %v3171, %v3179
        %v3211 = vadd.f32 %v3172, %v3179
        %v3212 = vadd.f32 %v3173, %v3179
        %v3213 = vmul.f32 %v3181, 0.5
        %v3214 = vmul.f32 %v3182, 0.5
        %v3215 = vmul.f32 %v3183, 0.5
        %v3216 = vmul.f32 %v3184, 0.5
        %v3217 = vmul.f32 %v3185, 0.5
        %v3218 = vmul.f32 %v3186, 0.5
        %v3219 = vmul.f32 %v3187, 0.5
        %v3220 = vmul.f32 %v3188, 0.5
        %v3221 = vmul.f32 %v3189, 0.5
        %v3222 = vmul.f32 %v3190, 0.5
        %v3223 = vmul.f32 %v3191, 0.5
        %v3224 = vmul.f32 %v3192, 0.5
        %v3225 = vmul.f32 %v3193, 0.5
        %v3226 = vmul.f32 %v3194, 0.5
        %v3227 = vmul.f32 %v3195, 0.5
        %v3228 = vmul.f32 %v3196, 0.5
        %v3229 = vmul.f32 %v3197, 0.5
        %v3230 = vmul.f32 %v3198, 0.5
        %v3231 = vmul.f32 %v3199, 0.5
        %v3232 = vmul.f32 %v3200, 0.5
        %v3233 = vmul.f32 %v3201, 0.5
        %v3234 = vmul.f32 %v3202, 0.5
        %v3235 = vmul.f32 %v3203, 0.5
        %v3236 = vmul.f32 %v3204, 0.5
        %v3237 = vmul.f32 %v3205, 0.5
        %v3238 = vmul.f32 %v3206, 0.5
        %v3239 = vmul.f32 %v3207, 0.5
        %v3240 = vmul.f32 %v3208, 0.5
        %v3241 = vmul.f32 %v3209, 0.5
        %v3242 = vmul.f32 %v3210, 0.5
        %v3243 = vmul.f32 %v3211, 0.5
        %v3244 = vmul.f32 %v3212, 0.5
        %v3245 = vmul.f32 %v3181, 0.70710677
        %v3246 = vmul.f32 %v3182, 0.70710677
        %v3247 = vmul.f32 %v3183, 0.70710677
        %v3248 = vmul.f32 %v3184, 0.70710677
        %v3249 = vmul.f32 %v3185, 0.70710677
        %v3250 = vmul.f32 %v3186, 0.70710677
        %v3251 = vmul.f32 %v3187, 0.70710677
        %v3252 = vmul.f32 %v3188, 0.70710677
        %v3253 = vmul.f32 %v3189, 0.70710677
        %v3254 = vmul.f32 %v3190, 0.70710677
        %v3255 = vmul.f32 %v3191, 0.70710677
        %v3256 = vmul.f32 %v3192, 0.70710677
        %v3257 = vmul.f32 %v3193, 0.70710677
        %v3258 = vmul.f32 %v3194, 0.70710677
        %v3259 = vmul.f32 %v3195, 0.70710677
        %v3260 = vmul.f32 %v3196, 0.70710677
        %v3261 = vmul.f32 %v3197, 0.70710677
        %v3262 = vmul.f32 %v3198, 0.70710677
        %v3263 = vmul.f32 %v3199, 0.70710677
        %v3264 = vmul.f32 %v3200, 0.70710677
        %v3265 = vmul.f32 %v3201, 0.70710677
        %v3266 = vmul.f32 %v3202, 0.70710677
        %v3267 = vmul.f32 %v3203, 0.70710677
        %v3268 = vmul.f32 %v3204, 0.70710677
        %v3269 = vmul.f32 %v3205, 0.70710677
        %v3270 = vmul.f32 %v3206, 0.70710677
        %v3271 = vmul.f32 %v3207, 0.70710677
        %v3272 = vmul.f32 %v3208, 0.70710677
        %v3273 = vmul.f32 %v3209, 0.70710677
        %v3274 = vmul.f32 %v3210, 0.70710677
        %v3275 = vmul.f32 %v3211, 0.70710677
        %v3276 = vmul.f32 %v3212, 0.70710677
        %v3277 = vand.u32 2147483647, %v3245
        %v3278 = vand.u32 2147483647, %v3246
        %v3279 = vand.u32 2147483647, %v3247
        %v3280 = vand.u32 2147483647, %v3248
        %v3281 = vand.u32 2147483647, %v3249
        %v3282 = vand.u32 2147483647, %v3250
        %v3283 = vand.u32 2147483647, %v3251
        %v3284 = vand.u32 2147483647, %v3252
        %v3285 = vand.u32 2147483647, %v3253
        %v3286 = vand.u32 2147483647, %v3254
        %v3287 = vand.u32 2147483647, %v3255
        %v3288 = vand.u32 2147483647, %v3256
        %v3289 = vand.u32 2147483647, %v3257
        %v3290 = vand.u32 2147483647, %v3258
        %v3291 = vand.u32 2147483647, %v3259
        %v3292 = vand.u32 2147483647, %v3260
        %v3293 = vand.u32 2147483647, %v3261
        %v3294 = vand.u32 2147483647, %v3262
        %v3295 = vand.u32 2147483647, %v3263
        %v3296 = vand.u32 2147483647, %v3264
        %v3297 = vand.u32 2147483647, %v3265
        %v3298 = vand.u32 2147483647, %v3266
        %v3299 = vand.u32 2147483647, %v3267
        %v3300 = vand.u32 2147483647, %v3268
        %v3301 = vand.u32 2147483647, %v3269
        %v3302 = vand.u32 2147483647, %v3270
        %v3303 = vand.u32 2147483647, %v3271
        %v3304 = vand.u32 2147483647, %v3272
        %v3305 = vand.u32 2147483647, %v3273
        %v3306 = vand.u32 2147483647, %v3274
        %v3307 = vand.u32 2147483647, %v3275
        %v3308 = vand.u32 2147483647, %v3276
        %v3309 = vmul.f32 %v3277, 0.3275911
        %v3310 = vmul.f32 %v3278, 0.3275911
        %v3311 = vmul.f32 %v3279, 0.3275911
        %v3312 = vmul.f32 %v3280, 0.3275911
        %v3313 = vmul.f32 %v3281, 0.3275911
        %v3314 = vmul.f32 %v3282, 0.3275911
        %v3315 = vmul.f32 %v3283, 0.3275911
        %v3316 = vmul.f32 %v3284, 0.3275911
        %v3317 = vmul.f32 %v3285, 0.3275911
        %v3318 = vmul.f32 %v3286, 0.3275911
        %v3319 = vmul.f32 %v3287, 0.3275911
        %v3320 = vmul.f32 %v3288, 0.3275911
        %v3321 = vmul.f32 %v3289, 0.3275911
        %v3322 = vmul.f32 %v3290, 0.3275911
        %v3323 = vmul.f32 %v3291, 0.3275911
        %v3324 = vmul.f32 %v3292, 0.3275911
        %v3325 = vmul.f32 %v3293, 0.3275911
        %v3326 = vmul.f32 %v3294, 0.3275911
        %v3327 = vmul.f32 %v3295, 0.3275911
        %v3328 = vmul.f32 %v3296, 0.3275911
        %v3329 = vmul.f32 %v3297, 0.3275911
        %v3330 = vmul.f32 %v3298, 0.3275911
        %v3331 = vmul.f32 %v3299, 0.3275911
        %v3332 = vmul.f32 %v3300, 0.3275911
        %v3333 = vmul.f32 %v3301, 0.3275911
        %v3334 = vmul.f32 %v3302, 0.3275911
        %v3335 = vmul.f32 %v3303, 0.3275911
        %v3336 = vmul.f32 %v3304, 0.3275911
        %v3337 = vmul.f32 %v3305, 0.3275911
        %v3338 = vmul.f32 %v3306, 0.3275911
        %v3339 = vmul.f32 %v3307, 0.3275911
        %v3340 = vmul.f32 %v3308, 0.3275911
        %v3341 = vadd.f32 %v3309, 1.0
        %v3342 = vadd.f32 %v3310, 1.0
        %v3343 = vadd.f32 %v3311, 1.0
        %v3344 = vadd.f32 %v3312, 1.0
        %v3345 = vadd.f32 %v3313, 1.0
        %v3346 = vadd.f32 %v3314, 1.0
        %v3347 = vadd.f32 %v3315, 1.0
        %v3348 = vadd.f32 %v3316, 1.0
        %v3349 = vadd.f32 %v3317, 1.0
        %v3350 = vadd.f32 %v3318, 1.0
        %v3351 = vadd.f32 %v3319, 1.0
        %v3352 = vadd.f32 %v3320, 1.0
        %v3353 = vadd.f32 %v3321, 1.0
        %v3354 = vadd.f32 %v3322, 1.0
        %v3355 = vadd.f32 %v3323, 1.0
        %v3356 = vadd.f32 %v3324, 1.0
        %v3357 = vadd.f32 %v3325, 1.0
        %v3358 = vadd.f32 %v3326, 1.0
        %v3359 = vadd.f32 %v3327, 1.0
        %v3360 = vadd.f32 %v3328, 1.0
        %v3361 = vadd.f32 %v3329, 1.0
        %v3362 = vadd.f32 %v3330, 1.0
        %v3363 = vadd.f32 %v3331, 1.0
        %v3364 = vadd.f32 %v3332, 1.0
        %v3365 = vadd.f32 %v3333, 1.0
        %v3366 = vadd.f32 %v3334, 1.0
        %v3367 = vadd.f32 %v3335, 1.0
        %v3368 = vadd.f32 %v3336, 1.0
        %v3369 = vadd.f32 %v3337, 1.0
        %v3370 = vadd.f32 %v3338, 1.0
        %v3371 = vadd.f32 %v3339, 1.0
        %v3372 = vadd.f32 %v3340, 1.0
        %v3373 = vrcp.pop %v3341
        %v3374 = vmul.f32 1.0, %v3373
        %v3375 = vrcp.pop %v3342
        %v3376 = vmul.f32 1.0, %v3375
        %v3377 = vrcp.pop %v3343
        %v3378 = vmul.f32 1.0, %v3377
        %v3379 = vrcp.pop %v3344
        %v3380 = vmul.f32 1.0, %v3379
        %v3381 = vrcp.pop %v3345
        %v3382 = vmul.f32 1.0, %v3381
        %v3383 = vrcp.pop %v3346
        %v3384 = vmul.f32 1.0, %v3383
        %v3385 = vrcp.pop %v3347
        %v3386 = vmul.f32 1.0, %v3385
        %v3387 = vrcp.pop %v3348
        %v3388 = vmul.f32 1.0, %v3387
        %v3389 = vrcp.pop %v3349
        %v3390 = vmul.f32 1.0, %v3389
        %v3391 = vrcp.pop %v3350
        %v3392 = vmul.f32 1.0, %v3391
        %v3393 = vrcp.pop %v3351
        %v3394 = vmul.f32 1.0, %v3393
        %v3395 = vrcp.pop %v3352
        %v3396 = vmul.f32 1.0, %v3395
        %v3397 = vrcp.pop %v3353
        %v3398 = vmul.f32 1.0, %v3397
        %v3399 = vrcp.pop %v3354
        %v3400 = vmul.f32 1.0, %v3399
        %v3401 = vrcp.pop %v3355
        %v3402 = vmul.f32 1.0, %v3401
        %v3403 = vrcp.pop %v3356
        %v3404 = vmul.f32 1.0, %v3403
        %v3405 = vrcp.pop %v3357
        %v3406 = vmul.f32 1.0, %v3405
        %v3407 = vrcp.pop %v3358
        %v3408 = vmul.f32 1.0, %v3407
        %v3409 = vrcp.pop %v3359
        %v3410 = vmul.f32 1.0, %v3409
        %v3411 = vrcp.pop %v3360
        %v3412 = vmul.f32 1.0, %v3411
        %v3413 = vrcp.pop %v3361
        %v3414 = vmul.f32 1.0, %v3413
        %v3415 = vrcp.pop %v3362
        %v3416 = vmul.f32 1.0, %v3415
        %v3417 = vrcp.pop %v3363
        %v3418 = vmul.f32 1.0, %v3417
        %v3419 = vrcp.pop %v3364
        %v3420 = vmul.f32 1.0, %v3419
        %v3421 = vrcp.pop %v3365
        %v3422 = vmul.f32 1.0, %v3421
        %v3423 = vrcp.pop %v3366
        %v3424 = vmul.f32 1.0, %v3423
        %v3425 = vrcp.pop %v3367
        %v3426 = vmul.f32 1.0, %v3425
        %v3427 = vrcp.pop %v3368
        %v3428 = vmul.f32 1.0, %v3427
        %v3429 = vrcp.pop %v3369
        %v3430 = vmul.f32 1.0, %v3429
        %v3431 = vrcp.pop %v3370
        %v3432 = vmul.f32 1.0, %v3431
        %v3433 = vrcp.pop %v3371
        %v3434 = vmul.f32 1.0, %v3433
        %v3435 = vrcp.pop %v3372
        %v3436 = vmul.f32 1.0, %v3435
        %v3437 = vmul.f32 %v3374, 1.0614054
        %v3438 = vmul.f32 %v3376, 1.0614054
        %v3439 = vmul.f32 %v3378, 1.0614054
        %v3440 = vmul.f32 %v3380, 1.0614054
        %v3441 = vmul.f32 %v3382, 1.0614054
        %v3442 = vmul.f32 %v3384, 1.0614054
        %v3443 = vmul.f32 %v3386, 1.0614054
        %v3444 = vmul.f32 %v3388, 1.0614054
        %v3445 = vmul.f32 %v3390, 1.0614054
        %v3446 = vmul.f32 %v3392, 1.0614054
        %v3447 = vmul.f32 %v3394, 1.0614054
        %v3448 = vmul.f32 %v3396, 1.0614054
        %v3449 = vmul.f32 %v3398, 1.0614054
        %v3450 = vmul.f32 %v3400, 1.0614054
        %v3451 = vmul.f32 %v3402, 1.0614054
        %v3452 = vmul.f32 %v3404, 1.0614054
        %v3453 = vmul.f32 %v3406, 1.0614054
        %v3454 = vmul.f32 %v3408, 1.0614054
        %v3455 = vmul.f32 %v3410, 1.0614054
        %v3456 = vmul.f32 %v3412, 1.0614054
        %v3457 = vmul.f32 %v3414, 1.0614054
        %v3458 = vmul.f32 %v3416, 1.0614054
        %v3459 = vmul.f32 %v3418, 1.0614054
        %v3460 = vmul.f32 %v3420, 1.0614054
        %v3461 = vmul.f32 %v3422, 1.0614054
        %v3462 = vmul.f32 %v3424, 1.0614054
        %v3463 = vmul.f32 %v3426, 1.0614054
        %v3464 = vmul.f32 %v3428, 1.0614054
        %v3465 = vmul.f32 %v3430, 1.0614054
        %v3466 = vmul.f32 %v3432, 1.0614054
        %v3467 = vmul.f32 %v3434, 1.0614054
        %v3468 = vmul.f32 %v3436, 1.0614054
        %v3469 = vadd.f32 %v3437, -1.4531521
        %v3470 = vadd.f32 %v3438, -1.4531521
        %v3471 = vadd.f32 %v3439, -1.4531521
        %v3472 = vadd.f32 %v3440, -1.4531521
        %v3473 = vadd.f32 %v3441, -1.4531521
        %v3474 = vadd.f32 %v3442, -1.4531521
        %v3475 = vadd.f32 %v3443, -1.4531521
        %v3476 = vadd.f32 %v3444, -1.4531521
        %v3477 = vadd.f32 %v3445, -1.4531521
        %v3478 = vadd.f32 %v3446, -1.4531521
        %v3479 = vadd.f32 %v3447, -1.4531521
        %v3480 = vadd.f32 %v3448, -1.4531521
        %v3481 = vadd.f32 %v3449, -1.4531521
        %v3482 = vadd.f32 %v3450, -1.4531521
        %v3483 = vadd.f32 %v3451, -1.4531521
        %v3484 = vadd.f32 %v3452, -1.4531521
        %v3485 = vadd.f32 %v3453, -1.4531521
        %v3486 = vadd.f32 %v3454, -1.4531521
        %v3487 = vadd.f32 %v3455, -1.4531521
        %v3488 = vadd.f32 %v3456, -1.4531521
        %v3489 = vadd.f32 %v3457, -1.4531521
        %v3490 = vadd.f32 %v3458, -1.4531521
        %v3491 = vadd.f32 %v3459, -1.4531521
        %v3492 = vadd.f32 %v3460, -1.4531521
        %v3493 = vadd.f32 %v3461, -1.4531521
        %v3494 = vadd.f32 %v3462, -1.4531521
        %v3495 = vadd.f32 %v3463, -1.4531521
        %v3496 = vadd.f32 %v3464, -1.4531521
        %v3497 = vadd.f32 %v3465, -1.4531521
        %v3498 = vadd.f32 %v3466, -1.4531521
        %v3499 = vadd.f32 %v3467, -1.4531521
        %v3500 = vadd.f32 %v3468, -1.4531521
        %v3501 = vmul.f32 %v3469, %v3374
        %v3502 = vmul.f32 %v3470, %v3376
        %v3503 = vmul.f32 %v3471, %v3378
        %v3504 = vmul.f32 %v3472, %v3380
        %v3505 = vmul.f32 %v3473, %v3382
        %v3506 = vmul.f32 %v3474, %v3384
        %v3507 = vmul.f32 %v3475, %v3386
        %v3508 = vmul.f32 %v3476, %v3388
        %v3509 = vmul.f32 %v3477, %v3390
        %v3510 = vmul.f32 %v3478, %v3392
        %v3511 = vmul.f32 %v3479, %v3394
        %v3512 = vmul.f32 %v3480, %v3396
        %v3513 = vmul.f32 %v3481, %v3398
        %v3514 = vmul.f32 %v3482, %v3400
        %v3515 = vmul.f32 %v3483, %v3402
        %v3516 = vmul.f32 %v3484, %v3404
        %v3517 = vmul.f32 %v3485, %v3406
        %v3518 = vmul.f32 %v3486, %v3408
        %v3519 = vmul.f32 %v3487, %v3410
        %v3520 = vmul.f32 %v3488, %v3412
        %v3521 = vmul.f32 %v3489, %v3414
        %v3522 = vmul.f32 %v3490, %v3416
        %v3523 = vmul.f32 %v3491, %v3418
        %v3524 = vmul.f32 %v3492, %v3420
        %v3525 = vmul.f32 %v3493, %v3422
        %v3526 = vmul.f32 %v3494, %v3424
        %v3527 = vmul.f32 %v3495, %v3426
        %v3528 = vmul.f32 %v3496, %v3428
        %v3529 = vmul.f32 %v3497, %v3430
        %v3530 = vmul.f32 %v3498, %v3432
        %v3531 = vmul.f32 %v3499, %v3434
        %v3532 = vmul.f32 %v3500, %v3436
        %v3533 = vadd.f32 %v3501, 1.4214138
        %v3534 = vadd.f32 %v3502, 1.4214138
        %v3535 = vadd.f32 %v3503, 1.4214138
        %v3536 = vadd.f32 %v3504, 1.4214138
        %v3537 = vadd.f32 %v3505, 1.4214138
        %v3538 = vadd.f32 %v3506, 1.4214138
        %v3539 = vadd.f32 %v3507, 1.4214138
        %v3540 = vadd.f32 %v3508, 1.4214138
        %v3541 = vadd.f32 %v3509, 1.4214138
        %v3542 = vadd.f32 %v3510, 1.4214138
        %v3543 = vadd.f32 %v3511, 1.4214138
        %v3544 = vadd.f32 %v3512, 1.4214138
        %v3545 = vadd.f32 %v3513, 1.4214138
        %v3546 = vadd.f32 %v3514, 1.4214138
        %v3547 = vadd.f32 %v3515, 1.4214138
        %v3548 = vadd.f32 %v3516, 1.4214138
        %v3549 = vadd.f32 %v3517, 1.4214138
        %v3550 = vadd.f32 %v3518, 1.4214138
        %v3551 = vadd.f32 %v3519, 1.4214138
        %v3552 = vadd.f32 %v3520, 1.4214138
        %v3553 = vadd.f32 %v3521, 1.4214138
        %v3554 = vadd.f32 %v3522, 1.4214138
        %v3555 = vadd.f32 %v3523, 1.4214138
        %v3556 = vadd.f32 %v3524, 1.4214138
        %v3557 = vadd.f32 %v3525, 1.4214138
        %v3558 = vadd.f32 %v3526, 1.4214138
        %v3559 = vadd.f32 %v3527, 1.4214138
        %v3560 = vadd.f32 %v3528, 1.4214138
        %v3561 = vadd.f32 %v3529, 1.4214138
        %v3562 = vadd.f32 %v3530, 1.4214138
        %v3563 = vadd.f32 %v3531, 1.4214138
        %v3564 = vadd.f32 %v3532, 1.4214138
        %v3565 = vmul.f32 %v3533, %v3374
        %v3566 = vmul.f32 %v3534, %v3376
        %v3567 = vmul.f32 %v3535, %v3378
        %v3568 = vmul.f32 %v3536, %v3380
        %v3569 = vmul.f32 %v3537, %v3382
        %v3570 = vmul.f32 %v3538, %v3384
        %v3571 = vmul.f32 %v3539, %v3386
        %v3572 = vmul.f32 %v3540, %v3388
        %v3573 = vmul.f32 %v3541, %v3390
        %v3574 = vmul.f32 %v3542, %v3392
        %v3575 = vmul.f32 %v3543, %v3394
        %v3576 = vmul.f32 %v3544, %v3396
        %v3577 = vmul.f32 %v3545, %v3398
        %v3578 = vmul.f32 %v3546, %v3400
        %v3579 = vmul.f32 %v3547, %v3402
        %v3580 = vmul.f32 %v3548, %v3404
        %v3581 = vmul.f32 %v3549, %v3406
        %v3582 = vmul.f32 %v3550, %v3408
        %v3583 = vmul.f32 %v3551, %v3410
        %v3584 = vmul.f32 %v3552, %v3412
        %v3585 = vmul.f32 %v3553, %v3414
        %v3586 = vmul.f32 %v3554, %v3416
        %v3587 = vmul.f32 %v3555, %v3418
        %v3588 = vmul.f32 %v3556, %v3420
        %v3589 = vmul.f32 %v3557, %v3422
        %v3590 = vmul.f32 %v3558, %v3424
        %v3591 = vmul.f32 %v3559, %v3426
        %v3592 = vmul.f32 %v3560, %v3428
        %v3593 = vmul.f32 %v3561, %v3430
        %v3594 = vmul.f32 %v3562, %v3432
        %v3595 = vmul.f32 %v3563, %v3434
        %v3596 = vmul.f32 %v3564, %v3436
        %v3597 = vadd.f32 %v3565, -0.28449672
        %v3598 = vadd.f32 %v3566, -0.28449672
        %v3599 = vadd.f32 %v3567, -0.28449672
        %v3600 = vadd.f32 %v3568, -0.28449672
        %v3601 = vadd.f32 %v3569, -0.28449672
        %v3602 = vadd.f32 %v3570, -0.28449672
        %v3603 = vadd.f32 %v3571, -0.28449672
        %v3604 = vadd.f32 %v3572, -0.28449672
        %v3605 = vadd.f32 %v3573, -0.28449672
        %v3606 = vadd.f32 %v3574, -0.28449672
        %v3607 = vadd.f32 %v3575, -0.28449672
        %v3608 = vadd.f32 %v3576, -0.28449672
        %v3609 = vadd.f32 %v3577, -0.28449672
        %v3610 = vadd.f32 %v3578, -0.28449672
        %v3611 = vadd.f32 %v3579, -0.28449672
        %v3612 = vadd.f32 %v3580, -0.28449672
        %v3613 = vadd.f32 %v3581, -0.28449672
        %v3614 = vadd.f32 %v3582, -0.28449672
        %v3615 = vadd.f32 %v3583, -0.28449672
        %v3616 = vadd.f32 %v3584, -0.28449672
        %v3617 = vadd.f32 %v3585, -0.28449672
        %v3618 = vadd.f32 %v3586, -0.28449672
        %v3619 = vadd.f32 %v3587, -0.28449672
        %v3620 = vadd.f32 %v3588, -0.28449672
        %v3621 = vadd.f32 %v3589, -0.28449672
        %v3622 = vadd.f32 %v3590, -0.28449672
        %v3623 = vadd.f32 %v3591, -0.28449672
        %v3624 = vadd.f32 %v3592, -0.28449672
        %v3625 = vadd.f32 %v3593, -0.28449672
        %v3626 = vadd.f32 %v3594, -0.28449672
        %v3627 = vadd.f32 %v3595, -0.28449672
        %v3628 = vadd.f32 %v3596, -0.28449672
        %v3629 = vmul.f32 %v3597, %v3374
        %v3630 = vmul.f32 %v3598, %v3376
        %v3631 = vmul.f32 %v3599, %v3378
        %v3632 = vmul.f32 %v3600, %v3380
        %v3633 = vmul.f32 %v3601, %v3382
        %v3634 = vmul.f32 %v3602, %v3384
        %v3635 = vmul.f32 %v3603, %v3386
        %v3636 = vmul.f32 %v3604, %v3388
        %v3637 = vmul.f32 %v3605, %v3390
        %v3638 = vmul.f32 %v3606, %v3392
        %v3639 = vmul.f32 %v3607, %v3394
        %v3640 = vmul.f32 %v3608, %v3396
        %v3641 = vmul.f32 %v3609, %v3398
        %v3642 = vmul.f32 %v3610, %v3400
        %v3643 = vmul.f32 %v3611, %v3402
        %v3644 = vmul.f32 %v3612, %v3404
        %v3645 = vmul.f32 %v3613, %v3406
        %v3646 = vmul.f32 %v3614, %v3408
        %v3647 = vmul.f32 %v3615, %v3410
        %v3648 = vmul.f32 %v3616, %v3412
        %v3649 = vmul.f32 %v3617, %v3414
        %v3650 = vmul.f32 %v3618, %v3416
        %v3651 = vmul.f32 %v3619, %v3418
        %v3652 = vmul.f32 %v3620, %v3420
        %v3653 = vmul.f32 %v3621, %v3422
        %v3654 = vmul.f32 %v3622, %v3424
        %v3655 = vmul.f32 %v3623, %v3426
        %v3656 = vmul.f32 %v3624, %v3428
        %v3657 = vmul.f32 %v3625, %v3430
        %v3658 = vmul.f32 %v3626, %v3432
        %v3659 = vmul.f32 %v3627, %v3434
        %v3660 = vmul.f32 %v3628, %v3436
        %v3661 = vadd.f32 %v3629, 0.2548296
        %v3662 = vadd.f32 %v3630, 0.2548296
        %v3663 = vadd.f32 %v3631, 0.2548296
        %v3664 = vadd.f32 %v3632, 0.2548296
        %v3665 = vadd.f32 %v3633, 0.2548296
        %v3666 = vadd.f32 %v3634, 0.2548296
        %v3667 = vadd.f32 %v3635, 0.2548296
        %v3668 = vadd.f32 %v3636, 0.2548296
        %v3669 = vadd.f32 %v3637, 0.2548296
        %v3670 = vadd.f32 %v3638, 0.2548296
        %v3671 = vadd.f32 %v3639, 0.2548296
        %v3672 = vadd.f32 %v3640, 0.2548296
        %v3673 = vadd.f32 %v3641, 0.2548296
        %v3674 = vadd.f32 %v3642, 0.2548296
        %v3675 = vadd.f32 %v3643, 0.2548296
        %v3676 = vadd.f32 %v3644, 0.2548296
        %v3677 = vadd.f32 %v3645, 0.2548296
        %v3678 = vadd.f32 %v3646, 0.2548296
        %v3679 = vadd.f32 %v3647, 0.2548296
        %v3680 = vadd.f32 %v3648, 0.2548296
        %v3681 = vadd.f32 %v3649, 0.2548296
        %v3682 = vadd.f32 %v3650, 0.2548296
        %v3683 = vadd.f32 %v3651, 0.2548296
        %v3684 = vadd.f32 %v3652, 0.2548296
        %v3685 = vadd.f32 %v3653, 0.2548296
        %v3686 = vadd.f32 %v3654, 0.2548296
        %v3687 = vadd.f32 %v3655, 0.2548296
        %v3688 = vadd.f32 %v3656, 0.2548296
        %v3689 = vadd.f32 %v3657, 0.2548296
        %v3690 = vadd.f32 %v3658, 0.2548296
        %v3691 = vadd.f32 %v3659, 0.2548296
        %v3692 = vadd.f32 %v3660, 0.2548296
        %v3693 = vmul.f32 %v3661, %v3374
        %v3694 = vmul.f32 %v3662, %v3376
        %v3695 = vmul.f32 %v3663, %v3378
        %v3696 = vmul.f32 %v3664, %v3380
        %v3697 = vmul.f32 %v3665, %v3382
        %v3698 = vmul.f32 %v3666, %v3384
        %v3699 = vmul.f32 %v3667, %v3386
        %v3700 = vmul.f32 %v3668, %v3388
        %v3701 = vmul.f32 %v3669, %v3390
        %v3702 = vmul.f32 %v3670, %v3392
        %v3703 = vmul.f32 %v3671, %v3394
        %v3704 = vmul.f32 %v3672, %v3396
        %v3705 = vmul.f32 %v3673, %v3398
        %v3706 = vmul.f32 %v3674, %v3400
        %v3707 = vmul.f32 %v3675, %v3402
        %v3708 = vmul.f32 %v3676, %v3404
        %v3709 = vmul.f32 %v3677, %v3406
        %v3710 = vmul.f32 %v3678, %v3408
        %v3711 = vmul.f32 %v3679, %v3410
        %v3712 = vmul.f32 %v3680, %v3412
        %v3713 = vmul.f32 %v3681, %v3414
        %v3714 = vmul.f32 %v3682, %v3416
        %v3715 = vmul.f32 %v3683, %v3418
        %v3716 = vmul.f32 %v3684, %v3420
        %v3717 = vmul.f32 %v3685, %v3422
        %v3718 = vmul.f32 %v3686, %v3424
        %v3719 = vmul.f32 %v3687, %v3426
        %v3720 = vmul.f32 %v3688, %v3428
        %v3721 = vmul.f32 %v3689, %v3430
        %v3722 = vmul.f32 %v3690, %v3432
        %v3723 = vmul.f32 %v3691, %v3434
        %v3724 = vmul.f32 %v3692, %v3436
        %v3725 = vsub.f32 0.0, %v3277
        %v3726 = vsub.f32 0.0, %v3278
        %v3727 = vsub.f32 0.0, %v3279
        %v3728 = vsub.f32 0.0, %v3280
        %v3729 = vsub.f32 0.0, %v3281
        %v3730 = vsub.f32 0.0, %v3282
        %v3731 = vsub.f32 0.0, %v3283
        %v3732 = vsub.f32 0.0, %v3284
        %v3733 = vsub.f32 0.0, %v3285
        %v3734 = vsub.f32 0.0, %v3286
        %v3735 = vsub.f32 0.0, %v3287
        %v3736 = vsub.f32 0.0, %v3288
        %v3737 = vsub.f32 0.0, %v3289
        %v3738 = vsub.f32 0.0, %v3290
        %v3739 = vsub.f32 0.0, %v3291
        %v3740 = vsub.f32 0.0, %v3292
        %v3741 = vsub.f32 0.0, %v3293
        %v3742 = vsub.f32 0.0, %v3294
        %v3743 = vsub.f32 0.0, %v3295
        %v3744 = vsub.f32 0.0, %v3296
        %v3745 = vsub.f32 0.0, %v3297
        %v3746 = vsub.f32 0.0, %v3298
        %v3747 = vsub.f32 0.0, %v3299
        %v3748 = vsub.f32 0.0, %v3300
        %v3749 = vsub.f32 0.0, %v3301
        %v3750 = vsub.f32 0.0, %v3302
        %v3751 = vsub.f32 0.0, %v3303
        %v3752 = vsub.f32 0.0, %v3304
        %v3753 = vsub.f32 0.0, %v3305
        %v3754 = vsub.f32 0.0, %v3306
        %v3755 = vsub.f32 0.0, %v3307
        %v3756 = vsub.f32 0.0, %v3308
        %v3757 = vmul.f32 %v3725, %v3277
        %v3758 = vmul.f32 %v3726, %v3278
        %v3759 = vmul.f32 %v3727, %v3279
        %v3760 = vmul.f32 %v3728, %v3280
        %v3761 = vmul.f32 %v3729, %v3281
        %v3762 = vmul.f32 %v3730, %v3282
        %v3763 = vmul.f32 %v3731, %v3283
        %v3764 = vmul.f32 %v3732, %v3284
        %v3765 = vmul.f32 %v3733, %v3285
        %v3766 = vmul.f32 %v3734, %v3286
        %v3767 = vmul.f32 %v3735, %v3287
        %v3768 = vmul.f32 %v3736, %v3288
        %v3769 = vmul.f32 %v3737, %v3289
        %v3770 = vmul.f32 %v3738, %v3290
        %v3771 = vmul.f32 %v3739, %v3291
        %v3772 = vmul.f32 %v3740, %v3292
        %v3773 = vmul.f32 %v3741, %v3293
        %v3774 = vmul.f32 %v3742, %v3294
        %v3775 = vmul.f32 %v3743, %v3295
        %v3776 = vmul.f32 %v3744, %v3296
        %v3777 = vmul.f32 %v3745, %v3297
        %v3778 = vmul.f32 %v3746, %v3298
        %v3779 = vmul.f32 %v3747, %v3299
        %v3780 = vmul.f32 %v3748, %v3300
        %v3781 = vmul.f32 %v3749, %v3301
        %v3782 = vmul.f32 %v3750, %v3302
        %v3783 = vmul.f32 %v3751, %v3303
        %v3784 = vmul.f32 %v3752, %v3304
        %v3785 = vmul.f32 %v3753, %v3305
        %v3786 = vmul.f32 %v3754, %v3306
        %v3787 = vmul.f32 %v3755, %v3307
        %v3788 = vmul.f32 %v3756, %v3308
        %v3789 = vmul.f32 %v3757, 1.442695
        %v3790 = vpow.pop %v3789
        %v3791 = vmul.f32 %v3758, 1.442695
        %v3792 = vpow.pop %v3791
        %v3793 = vmul.f32 %v3759, 1.442695
        %v3794 = vpow.pop %v3793
        %v3795 = vmul.f32 %v3760, 1.442695
        %v3796 = vpow.pop %v3795
        %v3797 = vmul.f32 %v3761, 1.442695
        %v3798 = vpow.pop %v3797
        %v3799 = vmul.f32 %v3762, 1.442695
        %v3800 = vpow.pop %v3799
        %v3801 = vmul.f32 %v3763, 1.442695
        %v3802 = vpow.pop %v3801
        %v3803 = vmul.f32 %v3764, 1.442695
        %v3804 = vpow.pop %v3803
        %v3805 = vmul.f32 %v3765, 1.442695
        %v3806 = vpow.pop %v3805
        %v3807 = vmul.f32 %v3766, 1.442695
        %v3808 = vpow.pop %v3807
        %v3809 = vmul.f32 %v3767, 1.442695
        %v3810 = vpow.pop %v3809
        %v3811 = vmul.f32 %v3768, 1.442695
        %v3812 = vpow.pop %v3811
        %v3813 = vmul.f32 %v3769, 1.442695
        %v3814 = vpow.pop %v3813
        %v3815 = vmul.f32 %v3770, 1.442695
        %v3816 = vpow.pop %v3815
        %v3817 = vmul.f32 %v3771, 1.442695
        %v3818 = vpow.pop %v3817
        %v3819 = vmul.f32 %v3772, 1.442695
        %v3820 = vpow.pop %v3819
        %v3821 = vmul.f32 %v3773, 1.442695
        %v3822 = vpow.pop %v3821
        %v3823 = vmul.f32 %v3774, 1.442695
        %v3824 = vpow.pop %v3823
        %v3825 = vmul.f32 %v3775, 1.442695
        %v3826 = vpow.pop %v3825
        %v3827 = vmul.f32 %v3776, 1.442695
        %v3828 = vpow.pop %v3827
        %v3829 = vmul.f32 %v3777, 1.442695
        %v3830 = vpow.pop %v3829
        %v3831 = vmul.f32 %v3778, 1.442695
        %v3832 = vpow.pop %v3831
        %v3833 = vmul.f32 %v3779, 1.442695
        %v3834 = vpow.pop %v3833
        %v3835 = vmul.f32 %v3780, 1.442695
        %v3836 = vpow.pop %v3835
        %v3837 = vmul.f32 %v3781, 1.442695
        %v3838 = vpow.pop %v3837
        %v3839 = vmul.f32 %v3782, 1.442695
        %v3840 = vpow.pop %v3839
        %v3841 = vmul.f32 %v3783, 1.442695
        %v3842 = vpow.pop %v3841
        %v3843 = vmul.f32 %v3784, 1.442695
        %v3844 = vpow.pop %v3843
        %v3845 = vmul.f32 %v3785, 1.442695
        %v3846 = vpow.pop %v3845
        %v3847 = vmul.f32 %v3786, 1.442695
        %v3848 = vpow.pop %v3847
        %v3849 = vmul.f32 %v3787, 1.442695
        %v3850 = vpow.pop %v3849
        %v3851 = vmul.f32 %v3788, 1.442695
        %v3852 = vpow.pop %v3851
        %v3853 = vmul.f32 %v3693, %v3790
        %v3854 = vmul.f32 %v3694, %v3792
        %v3855 = vmul.f32 %v3695, %v3794
        %v3856 = vmul.f32 %v3696, %v3796
        %v3857 = vmul.f32 %v3697, %v3798
        %v3858 = vmul.f32 %v3698, %v3800
        %v3859 = vmul.f32 %v3699, %v3802
        %v3860 = vmul.f32 %v3700, %v3804
        %v3861 = vmul.f32 %v3701, %v3806
        %v3862 = vmul.f32 %v3702, %v3808
        %v3863 = vmul.f32 %v3703, %v3810
        %v3864 = vmul.f32 %v3704, %v3812
        %v3865 = vmul.f32 %v3705, %v3814
        %v3866 = vmul.f32 %v3706, %v3816
        %v3867 = vmul.f32 %v3707, %v3818
        %v3868 = vmul.f32 %v3708, %v3820
        %v3869 = vmul.f32 %v3709, %v3822
        %v3870 = vmul.f32 %v3710, %v3824
        %v3871 = vmul.f32 %v3711, %v3826
        %v3872 = vmul.f32 %v3712, %v3828
        %v3873 = vmul.f32 %v3713, %v3830
        %v3874 = vmul.f32 %v3714, %v3832
        %v3875 = vmul.f32 %v3715, %v3834
        %v3876 = vmul.f32 %v3716, %v3836
        %v3877 = vmul.f32 %v3717, %v3838
        %v3878 = vmul.f32 %v3718, %v3840
        %v3879 = vmul.f32 %v3719, %v3842
        %v3880 = vmul.f32 %v3720, %v3844
        %v3881 = vmul.f32 %v3721, %v3846
        %v3882 = vmul.f32 %v3722, %v3848
        %v3883 = vmul.f32 %v3723, %v3850
        %v3884 = vmul.f32 %v3724, %v3852
        %v3885 = vsub.f32 1.0, %v3853
        %v3886 = vsub.f32 1.0, %v3854
        %v3887 = vsub.f32 1.0, %v3855
        %v3888 = vsub.f32 1.0, %v3856
        %v3889 = vsub.f32 1.0, %v3857
        %v3890 = vsub.f32 1.0, %v3858
        %v3891 = vsub.f32 1.0, %v3859
        %v3892 = vsub.f32 1.0, %v3860
        %v3893 = vsub.f32 1.0, %v3861
        %v3894 = vsub.f32 1.0, %v3862
        %v3895 = vsub.f32 1.0, %v3863
        %v3896 = vsub.f32 1.0, %v3864
        %v3897 = vsub.f32 1.0, %v3865
        %v3898 = vsub.f32 1.0, %v3866
        %v3899 = vsub.f32 1.0, %v3867
        %v3900 = vsub.f32 1.0, %v3868
        %v3901 = vsub.f32 1.0, %v3869
        %v3902 = vsub.f32 1.0, %v3870
        %v3903 = vsub.f32 1.0, %v3871
        %v3904 = vsub.f32 1.0, %v3872
        %v3905 = vsub.f32 1.0, %v3873
        %v3906 = vsub.f32 1.0, %v3874
        %v3907 = vsub.f32 1.0, %v3875
        %v3908 = vsub.f32 1.0, %v3876
        %v3909 = vsub.f32 1.0, %v3877
        %v3910 = vsub.f32 1.0, %v3878
        %v3911 = vsub.f32 1.0, %v3879
        %v3912 = vsub.f32 1.0, %v3880
        %v3913 = vsub.f32 1.0, %v3881
        %v3914 = vsub.f32 1.0, %v3882
        %v3915 = vsub.f32 1.0, %v3883
        %v3916 = vsub.f32 1.0, %v3884
        %vm3917 = vcmp.ge.f32.partialorder %v3245, 0.0
        %vm3918 = vcmp.ge.f32.partialorder %v3246, 0.0
        %vm3919 = vcmp.ge.f32.partialorder %v3247, 0.0
        %vm3920 = vcmp.ge.f32.partialorder %v3248, 0.0
        %vm3921 = vcmp.ge.f32.partialorder %v3249, 0.0
        %vm3922 = vcmp.ge.f32.partialorder %v3250, 0.0
        %vm3923 = vcmp.ge.f32.partialorder %v3251, 0.0
        %vm3924 = vcmp.ge.f32.partialorder %v3252, 0.0
        %vm3925 = vcmp.ge.f32.partialorder %v3253, 0.0
        %vm3926 = vcmp.ge.f32.partialorder %v3254, 0.0
        %vm3927 = vcmp.ge.f32.partialorder %v3255, 0.0
        %vm3928 = vcmp.ge.f32.partialorder %v3256, 0.0
        %vm3929 = vcmp.ge.f32.partialorder %v3257, 0.0
        %vm3930 = vcmp.ge.f32.partialorder %v3258, 0.0
        %vm3931 = vcmp.ge.f32.partialorder %v3259, 0.0
        %vm3932 = vcmp.ge.f32.partialorder %v3260, 0.0
        %vm3933 = vcmp.ge.f32.partialorder %v3261, 0.0
        %vm3934 = vcmp.ge.f32.partialorder %v3262, 0.0
        %vm3935 = vcmp.ge.f32.partialorder %v3263, 0.0
        %vm3936 = vcmp.ge.f32.partialorder %v3264, 0.0
        %vm3937 = vcmp.ge.f32.partialorder %v3265, 0.0
        %vm3938 = vcmp.ge.f32.partialorder %v3266, 0.0
        %vm3939 = vcmp.ge.f32.partialorder %v3267, 0.0
        %vm3940 = vcmp.ge.f32.partialorder %v3268, 0.0
        %vm3941 = vcmp.ge.f32.partialorder %v3269, 0.0
        %vm3942 = vcmp.ge.f32.partialorder %v3270, 0.0
        %vm3943 = vcmp.ge.f32.partialorder %v3271, 0.0
        %vm3944 = vcmp.ge.f32.partialorder %v3272, 0.0
        %vm3945 = vcmp.ge.f32.partialorder %v3273, 0.0
        %vm3946 = vcmp.ge.f32.partialorder %v3274, 0.0
        %vm3947 = vcmp.ge.f32.partialorder %v3275, 0.0
        %vm3948 = vcmp.ge.f32.partialorder %v3276, 0.0
        %v3949 = vsub.f32 0.0, %v3885
        %v3950 = vsub.f32 0.0, %v3886
        %v3951 = vsub.f32 0.0, %v3887
        %v3952 = vsub.f32 0.0, %v3888
        %v3953 = vsub.f32 0.0, %v3889
        %v3954 = vsub.f32 0.0, %v3890
        %v3955 = vsub.f32 0.0, %v3891
        %v3956 = vsub.f32 0.0, %v3892
        %v3957 = vsub.f32 0.0, %v3893
        %v3958 = vsub.f32 0.0, %v3894
        %v3959 = vsub.f32 0.0, %v3895
        %v3960 = vsub.f32 0.0, %v3896
        %v3961 = vsub.f32 0.0, %v3897
        %v3962 = vsub.f32 0.0, %v3898
        %v3963 = vsub.f32 0.0, %v3899
        %v3964 = vsub.f32 0.0, %v3900
        %v3965 = vsub.f32 0.0, %v3901
        %v3966 = vsub.f32 0.0, %v3902
        %v3967 = vsub.f32 0.0, %v3903
        %v3968 = vsub.f32 0.0, %v3904
        %v3969 = vsub.f32 0.0, %v3905
        %v3970 = vsub.f32 0.0, %v3906
        %v3971 = vsub.f32 0.0, %v3907
        %v3972 = vsub.f32 0.0, %v3908
        %v3973 = vsub.f32 0.0, %v3909
        %v3974 = vsub.f32 0.0, %v3910
        %v3975 = vsub.f32 0.0, %v3911
        %v3976 = vsub.f32 0.0, %v3912
        %v3977 = vsub.f32 0.0, %v3913
        %v3978 = vsub.f32 0.0, %v3914
        %v3979 = vsub.f32 0.0, %v3915
        %v3980 = vsub.f32 0.0, %v3916
        %v3981 = vsel %vm3917, %v3885, %v3949
        %v3982 = vsel %vm3918, %v3886, %v3950
        %v3983 = vsel %vm3919, %v3887, %v3951
        %v3984 = vsel %vm3920, %v3888, %v3952
        %v3985 = vsel %vm3921, %v3889, %v3953
        %v3986 = vsel %vm3922, %v3890, %v3954
        %v3987 = vsel %vm3923, %v3891, %v3955
        %v3988 = vsel %vm3924, %v3892, %v3956
        %v3989 = vsel %vm3925, %v3893, %v3957
        %v3990 = vsel %vm3926, %v3894, %v3958
        %v3991 = vsel %vm3927, %v3895, %v3959
        %v3992 = vsel %vm3928, %v3896, %v3960
        %v3993 = vsel %vm3929, %v3897, %v3961
        %v3994 = vsel %vm3930, %v3898, %v3962
        %v3995 = vsel %vm3931, %v3899, %v3963
        %v3996 = vsel %vm3932, %v3900, %v3964
        %v3997 = vsel %vm3933, %v3901, %v3965
        %v3998 = vsel %vm3934, %v3902, %v3966
        %v3999 = vsel %vm3935, %v3903, %v3967
        %v4000 = vsel %vm3936, %v3904, %v3968
        %v4001 = vsel %vm3937, %v3905, %v3969
        %v4002 = vsel %vm3938, %v3906, %v3970
        %v4003 = vsel %vm3939, %v3907, %v3971
        %v4004 = vsel %vm3940, %v3908, %v3972
        %v4005 = vsel %vm3941, %v3909, %v3973
        %v4006 = vsel %vm3942, %v3910, %v3974
        %v4007 = vsel %vm3943, %v3911, %v3975
        %v4008 = vsel %vm3944, %v3912, %v3976
        %v4009 = vsel %vm3945, %v3913, %v3977
        %v4010 = vsel %vm3946, %v3914, %v3978
        %v4011 = vsel %vm3947, %v3915, %v3979
        %v4012 = vsel %vm3948, %v3916, %v3980
        %v4013 = vadd.f32 %v3981, 1.0
        %v4014 = vadd.f32 %v3982, 1.0
        %v4015 = vadd.f32 %v3983, 1.0
        %v4016 = vadd.f32 %v3984, 1.0
        %v4017 = vadd.f32 %v3985, 1.0
        %v4018 = vadd.f32 %v3986, 1.0
        %v4019 = vadd.f32 %v3987, 1.0
        %v4020 = vadd.f32 %v3988, 1.0
        %v4021 = vadd.f32 %v3989, 1.0
        %v4022 = vadd.f32 %v3990, 1.0
        %v4023 = vadd.f32 %v3991, 1.0
        %v4024 = vadd.f32 %v3992, 1.0
        %v4025 = vadd.f32 %v3993, 1.0
        %v4026 = vadd.f32 %v3994, 1.0
        %v4027 = vadd.f32 %v3995, 1.0
        %v4028 = vadd.f32 %v3996, 1.0
        %v4029 = vadd.f32 %v3997, 1.0
        %v4030 = vadd.f32 %v3998, 1.0
        %v4031 = vadd.f32 %v3999, 1.0
        %v4032 = vadd.f32 %v4000, 1.0
        %v4033 = vadd.f32 %v4001, 1.0
        %v4034 = vadd.f32 %v4002, 1.0
        %v4035 = vadd.f32 %v4003, 1.0
        %v4036 = vadd.f32 %v4004, 1.0
        %v4037 = vadd.f32 %v4005, 1.0
        %v4038 = vadd.f32 %v4006, 1.0
        %v4039 = vadd.f32 %v4007, 1.0
        %v4040 = vadd.f32 %v4008, 1.0
        %v4041 = vadd.f32 %v4009, 1.0
        %v4042 = vadd.f32 %v4010, 1.0
        %v4043 = vadd.f32 %v4011, 1.0
        %v4044 = vadd.f32 %v4012, 1.0
        %v4045 = vmul.f32 %v3213, %v4013
        %v4046 = vmul.f32 %v3214, %v4014
        %v4047 = vmul.f32 %v3215, %v4015
        %v4048 = vmul.f32 %v3216, %v4016
        %v4049 = vmul.f32 %v3217, %v4017
        %v4050 = vmul.f32 %v3218, %v4018
        %v4051 = vmul.f32 %v3219, %v4019
        %v4052 = vmul.f32 %v3220, %v4020
        %v4053 = vmul.f32 %v3221, %v4021
        %v4054 = vmul.f32 %v3222, %v4022
        %v4055 = vmul.f32 %v3223, %v4023
        %v4056 = vmul.f32 %v3224, %v4024
        %v4057 = vmul.f32 %v3225, %v4025
        %v4058 = vmul.f32 %v3226, %v4026
        %v4059 = vmul.f32 %v3227, %v4027
        %v4060 = vmul.f32 %v3228, %v4028
        %v4061 = vmul.f32 %v3229, %v4029
        %v4062 = vmul.f32 %v3230, %v4030
        %v4063 = vmul.f32 %v3231, %v4031
        %v4064 = vmul.f32 %v3232, %v4032
        %v4065 = vmul.f32 %v3233, %v4033
        %v4066 = vmul.f32 %v3234, %v4034
        %v4067 = vmul.f32 %v3235, %v4035
        %v4068 = vmul.f32 %v3236, %v4036
        %v4069 = vmul.f32 %v3237, %v4037
        %v4070 = vmul.f32 %v3238, %v4038
        %v4071 = vmul.f32 %v3239, %v4039
        %v4072 = vmul.f32 %v3240, %v4040
        %v4073 = vmul.f32 %v3241, %v4041
        %v4074 = vmul.f32 %v3242, %v4042
        %v4075 = vmul.f32 %v3243, %v4043
        %v4076 = vmul.f32 %v3244, %v4044
        %4077 = vst.msk [vmem:[#allocation4] sm:$0xff] %vm1306, 0.0
        %4078 = vst.msk [vmem:[#allocation4 + $0x8] sm:$0xff] %vm1306, 0.0
        %4079 = vst.msk [vmem:[#allocation4 + $0x10] sm:$0x3] %vm1309, 0.0
        %4080 = vst.msk [vmem:[#allocation4 + $0x18] sm:$0xff] %vm1306, 0.0
        %4081 = vst.msk [vmem:[#allocation4 + $0x20] sm:$0xff] %vm1306, 0.0
        %4082 = vst.msk [vmem:[#allocation4 + $0x28] sm:$0x3] %vm1309, 0.0
        %4083 = vst.msk [vmem:[#allocation4 + $0x30] sm:$0xff] %vm1306, 0.0
        %4084 = vst.msk [vmem:[#allocation4 + $0x38] sm:$0xff] %vm1306, 0.0
        %4085 = vst.msk [vmem:[#allocation4 + $0x40] sm:$0x3] %vm1309, 0.0
        %4086 = vst.msk [vmem:[#allocation4 + $0x48] sm:$0xff] %vm1306, 0.0
        %4087 = vst.msk [vmem:[#allocation4 + $0x50] sm:$0xff] %vm1306, 0.0
        %4088 = vst.msk [vmem:[#allocation4 + $0x58] sm:$0x3] %vm1309, 0.0
        %4089 = vst.msk [vmem:[#allocation4 + $0x60] sm:$0xff] %vm1306, 0.0
        %4090 = vst.msk [vmem:[#allocation4 + $0x68] sm:$0xff] %vm1306, 0.0
        %4091 = vst.msk [vmem:[#allocation4 + $0x70] sm:$0x3] %vm1309, 0.0
        %4092 = vst.msk [vmem:[#allocation4 + $0x78] sm:$0xff] %vm1306, 0.0
        %4093 = vst.msk [vmem:[#allocation4 + $0x80] sm:$0xff] %vm1306, 0.0
        %4094 = vst.msk [vmem:[#allocation4 + $0x88] sm:$0x3] %vm1309, 0.0
        %4095 = vst.msk [vmem:[#allocation4 + $0x90] sm:$0xff] %vm1306, 0.0
        %4096 = vst.msk [vmem:[#allocation4 + $0x98] sm:$0xff] %vm1306, 0.0
        %4097 = vst.msk [vmem:[#allocation4 + $0xa0] sm:$0x3] %vm1309, 0.0
        %4098 = vst.msk [vmem:[#allocation4 + $0xa8] sm:$0xff] %vm1306, 0.0
        %4099 = vst.msk [vmem:[#allocation4 + $0xb0] sm:$0xff] %vm1306, 0.0
        %4100 = vst.msk [vmem:[#allocation4 + $0xb8] sm:$0x3] %vm1309, 0.0
        %4101 = vst.msk [vmem:[#allocation4 + $0xc0] sm:$0xff] %vm1306, 0.0
        %4102 = vst.msk [vmem:[#allocation4 + $0xc8] sm:$0xff] %vm1306, 0.0
        %4103 = vst.msk [vmem:[#allocation4 + $0xd0] sm:$0x3] %vm1309, 0.0
        %4104 = vst.msk [vmem:[#allocation4 + $0xd8] sm:$0xff] %vm1306, 0.0
        %4105 = vst.msk [vmem:[#allocation4 + $0xe0] sm:$0xff] %vm1306, 0.0
        %4106 = vst.msk [vmem:[#allocation4 + $0xe8] sm:$0x3] %vm1309, 0.0
        %4107 = vst.msk [vmem:[#allocation4 + $0xf0] sm:$0xff] %vm1306, 0.0
        %4108 = vst.msk [vmem:[#allocation4 + $0xf8] sm:$0xff] %vm1306, 0.0
        %4109 = vst.msk [vmem:[#allocation4 + $0x100] sm:$0x3] %vm1309, 0.0
        %4110 = vst.msk [vmem:[#allocation4 + $0x108] sm:$0xff] %vm1306, 0.0
        %4111 = vst.msk [vmem:[#allocation4 + $0x110] sm:$0xff] %vm1306, 0.0
        %4112 = vst.msk [vmem:[#allocation4 + $0x118] sm:$0x3] %vm1309, 0.0
        %4113 = vst.msk [vmem:[#allocation4 + $0x120] sm:$0xff] %vm1306, 0.0
        %4114 = vst.msk [vmem:[#allocation4 + $0x128] sm:$0xff] %vm1306, 0.0
        %4115 = vst.msk [vmem:[#allocation4 + $0x130] sm:$0x3] %vm1309, 0.0
        %4116 = vst.msk [vmem:[#allocation4 + $0x138] sm:$0xff] %vm1306, 0.0
        %4117 = vst.msk [vmem:[#allocation4 + $0x140] sm:$0xff] %vm1306, 0.0
        %4118 = vst.msk [vmem:[#allocation4 + $0x148] sm:$0x3] %vm1309, 0.0
        %4119 = vst.msk [vmem:[#allocation4 + $0x150] sm:$0xff] %vm1306, 0.0
        %4120 = vst.msk [vmem:[#allocation4 + $0x158] sm:$0xff] %vm1306, 0.0
        %4121 = vst.msk [vmem:[#allocation4 + $0x160] sm:$0x3] %vm1309, 0.0
        %4122 = vst.msk [vmem:[#allocation4 + $0x168] sm:$0xff] %vm1306, 0.0
        %4123 = vst.msk [vmem:[#allocation4 + $0x170] sm:$0xff] %vm1306, 0.0
        %4124 = vst.msk [vmem:[#allocation4 + $0x178] sm:$0x3] %vm1309, 0.0
        %4125 = vst.msk [vmem:[#allocation4 + $0x180] sm:$0xff] %vm1306, 0.0
        %4126 = vst.msk [vmem:[#allocation4 + $0x188] sm:$0xff] %vm1306, 0.0
        %4127 = vst.msk [vmem:[#allocation4 + $0x190] sm:$0x3] %vm1309, 0.0
        %4128 = vst.msk [vmem:[#allocation4 + $0x198] sm:$0xff] %vm1306, 0.0
        %4129 = vst.msk [vmem:[#allocation4 + $0x1a0] sm:$0xff] %vm1306, 0.0
        %4130 = vst.msk [vmem:[#allocation4 + $0x1a8] sm:$0x3] %vm1309, 0.0
        %s4131 = scalar_lea.vmem [#allocation4], 24
        %4132 = vst.msk [vmem:[%s4131 + $0x1] sm:$0xff] %vm1306, %v4045
        %4133 = vst.msk [vmem:[%s4131 + $0x9] sm:$0xff] %vm1306, %v4046
        %4134 = vst.msk [vmem:[%s4131 + $0x19] sm:$0xff] %vm1306, %v4047
        %4135 = vst.msk [vmem:[%s4131 + $0x21] sm:$0xff] %vm1306, %v4048
        %4136 = vst.msk [vmem:[%s4131 + $0x31] sm:$0xff] %vm1306, %v4049
        %4137 = vst.msk [vmem:[%s4131 + $0x39] sm:$0xff] %vm1306, %v4050
        %4138 = vst.msk [vmem:[%s4131 + $0x49] sm:$0xff] %vm1306, %v4051
        %4139 = vst.msk [vmem:[%s4131 + $0x51] sm:$0xff] %vm1306, %v4052
        %4140 = vst.msk [vmem:[%s4131 + $0x61] sm:$0xff] %vm1306, %v4053
        %4141 = vst.msk [vmem:[%s4131 + $0x69] sm:$0xff] %vm1306, %v4054
        %4142 = vst.msk [vmem:[%s4131 + $0x79] sm:$0xff] %vm1306, %v4055
        %4143 = vst.msk [vmem:[%s4131 + $0x81] sm:$0xff] %vm1306, %v4056
        %4144 = vst.msk [vmem:[%s4131 + $0x91] sm:$0xff] %vm1306, %v4057
        %4145 = vst.msk [vmem:[%s4131 + $0x99] sm:$0xff] %vm1306, %v4058
        %4146 = vst.msk [vmem:[%s4131 + $0xa9] sm:$0xff] %vm1306, %v4059
        %4147 = vst.msk [vmem:[%s4131 + $0xb1] sm:$0xff] %vm1306, %v4060
        %4148 = vst.msk [vmem:[%s4131 + $0xc1] sm:$0xff] %vm1306, %v4061
        %4149 = vst.msk [vmem:[%s4131 + $0xc9] sm:$0xff] %vm1306, %v4062
        %4150 = vst.msk [vmem:[%s4131 + $0xd9] sm:$0xff] %vm1306, %v4063
        %4151 = vst.msk [vmem:[%s4131 + $0xe1] sm:$0xff] %vm1306, %v4064
        %4152 = vst.msk [vmem:[%s4131 + $0xf1] sm:$0xff] %vm1306, %v4065
        %4153 = vst.msk [vmem:[%s4131 + $0xf9] sm:$0xff] %vm1306, %v4066
        %4154 = vst.msk [vmem:[%s4131 + $0x109] sm:$0xff] %vm1306, %v4067
        %4155 = vst.msk [vmem:[%s4131 + $0x111] sm:$0xff] %vm1306, %v4068
        %4156 = vst.msk [vmem:[%s4131 + $0x121] sm:$0xff] %vm1306, %v4069
        %4157 = vst.msk [vmem:[%s4131 + $0x129] sm:$0xff] %vm1306, %v4070
        %4158 = vst.msk [vmem:[%s4131 + $0x139] sm:$0xff] %vm1306, %v4071
        %4159 = vst.msk [vmem:[%s4131 + $0x141] sm:$0xff] %vm1306, %v4072
        %4160 = vst.msk [vmem:[%s4131 + $0x151] sm:$0xff] %vm1306, %v4073
        %4161 = vst.msk [vmem:[%s4131 + $0x159] sm:$0xff] %vm1306, %v4074
        %4162 = vst.msk [vmem:[%s4131 + $0x169] sm:$0xff] %vm1306, %v4075
        %4163 = vst.msk [vmem:[%s4131 + $0x171] sm:$0xff] %vm1306, %v4076
        %v4164 = vld [vmem:[#allocation4] sm:$0xff]
        %v4165 = vld [vmem:[#allocation4 + $0x8] sm:$0xff]
        %v4166 = vld [vmem:[#allocation4 + $0x18] sm:$0xff]
        %v4167 = vld [vmem:[#allocation4 + $0x20] sm:$0xff]
        %v4168 = vld [vmem:[#allocation4 + $0x30] sm:$0xff]
        %v4169 = vld [vmem:[#allocation4 + $0x38] sm:$0xff]
        %v4170 = vld [vmem:[#allocation4 + $0x48] sm:$0xff]
        %v4171 = vld [vmem:[#allocation4 + $0x50] sm:$0xff]
        %v4172 = vld [vmem:[#allocation4 + $0x60] sm:$0xff]
        %v4173 = vld [vmem:[#allocation4 + $0x68] sm:$0xff]
        %v4174 = vld [vmem:[#allocation4 + $0x78] sm:$0xff]
        %v4175 = vld [vmem:[#allocation4 + $0x80] sm:$0xff]
        %v4176 = vld [vmem:[#allocation4 + $0x90] sm:$0xff]
        %v4177 = vld [vmem:[#allocation4 + $0x98] sm:$0xff]
        %v4178 = vld [vmem:[#allocation4 + $0xa8] sm:$0xff]
        %v4179 = vld [vmem:[#allocation4 + $0xb0] sm:$0xff]
        %v4180 = vld [vmem:[#allocation4 + $0xc0] sm:$0xff]
        %v4181 = vld [vmem:[#allocation4 + $0xc8] sm:$0xff]
        %v4182 = vld [vmem:[#allocation4 + $0xd8] sm:$0xff]
        %v4183 = vld [vmem:[#allocation4 + $0xe0] sm:$0xff]
        %v4184 = vld [vmem:[#allocation4 + $0xf0] sm:$0xff]
        %v4185 = vld [vmem:[#allocation4 + $0xf8] sm:$0xff]
        %v4186 = vld [vmem:[#allocation4 + $0x108] sm:$0xff]
        %v4187 = vld [vmem:[#allocation4 + $0x110] sm:$0xff]
        %v4188 = vld [vmem:[#allocation4 + $0x120] sm:$0xff]
        %v4189 = vld [vmem:[#allocation4 + $0x128] sm:$0xff]
        %v4190 = vld [vmem:[#allocation4 + $0x138] sm:$0xff]
        %v4191 = vld [vmem:[#allocation4 + $0x140] sm:$0xff]
        %v4192 = vld [vmem:[#allocation4 + $0x150] sm:$0xff]
        %v4193 = vld [vmem:[#allocation4 + $0x158] sm:$0xff]
        %v4194 = vld [vmem:[#allocation4 + $0x168] sm:$0xff]
        %v4195 = vld [vmem:[#allocation4 + $0x170] sm:$0xff]
        %v4196 = vpack.c.bf16 %v4165, %v4164
        %v4197 = vpack.c.bf16 %v4167, %v4166
        %v4198 = vpack.c.bf16 %v4169, %v4168
        %v4199 = vpack.c.bf16 %v4171, %v4170
        %v4200 = vpack.c.bf16 %v4173, %v4172
        %v4201 = vpack.c.bf16 %v4175, %v4174
        %v4202 = vpack.c.bf16 %v4177, %v4176
        %v4203 = vpack.c.bf16 %v4179, %v4178
        %v4204 = vpack.c.bf16 %v4181, %v4180
        %v4205 = vpack.c.bf16 %v4183, %v4182
        %v4206 = vpack.c.bf16 %v4185, %v4184
        %v4207 = vpack.c.bf16 %v4187, %v4186
        %v4208 = vpack.c.bf16 %v4189, %v4188
        %v4209 = vpack.c.bf16 %v4191, %v4190
        %v4210 = vpack.c.bf16 %v4193, %v4192
        %v4211 = vpack.c.bf16 %v4195, %v4194
        %4212 = vst.msk [vmem:[#allocation5] sm:$0xff] %vm1306, %v4196
        %4213 = vst.msk [vmem:[#allocation5 + $0x28] sm:$0xff] %vm1306, %v4197
        %4214 = vst.msk [vmem:[#allocation5 + $0x50] sm:$0xff] %vm1306, %v4198
        %4215 = vst.msk [vmem:[#allocation5 + $0x78] sm:$0xff] %vm1306, %v4199
        %4216 = vst.msk [vmem:[#allocation5 + $0xa0] sm:$0xff] %vm1306, %v4200
        %4217 = vst.msk [vmem:[#allocation5 + $0xc8] sm:$0xff] %vm1306, %v4201
        %4218 = vst.msk [vmem:[#allocation5 + $0xf0] sm:$0xff] %vm1306, %v4202
        %4219 = vst.msk [vmem:[#allocation5 + $0x118] sm:$0xff] %vm1306, %v4203
        %4220 = vst.msk [vmem:[#allocation5 + $0x140] sm:$0xff] %vm1306, %v4204
        %4221 = vst.msk [vmem:[#allocation5 + $0x168] sm:$0xff] %vm1306, %v4205
        %4222 = vst.msk [vmem:[#allocation5 + $0x190] sm:$0xff] %vm1306, %v4206
        %4223 = vst.msk [vmem:[#allocation5 + $0x1b8] sm:$0xff] %vm1306, %v4207
        %4224 = vst.msk [vmem:[#allocation5 + $0x1e0] sm:$0xff] %vm1306, %v4208
        %4225 = vst.msk [vmem:[#allocation5 + $0x208] sm:$0xff] %vm1306, %v4209
        %4226 = vst.msk [vmem:[#allocation5 + $0x230] sm:$0xff] %vm1306, %v4210
        %4227 = vst.msk [vmem:[#allocation5 + $0x258] sm:$0xff] %vm1306, %v4211
        %v4228 = vld [vmem:[#allocation4 + $0x1] sm:$0xff]
        %v4229 = vld [vmem:[#allocation4 + $0x9] sm:$0xff]
        %v4230 = vld [vmem:[#allocation4 + $0x19] sm:$0xff]
        %v4231 = vld [vmem:[#allocation4 + $0x21] sm:$0xff]
        %v4232 = vld [vmem:[#allocation4 + $0x31] sm:$0xff]
        %v4233 = vld [vmem:[#allocation4 + $0x39] sm:$0xff]
        %v4234 = vld [vmem:[#allocation4 + $0x49] sm:$0xff]
        %v4235 = vld [vmem:[#allocation4 + $0x51] sm:$0xff]
        %v4236 = vld [vmem:[#allocation4 + $0x61] sm:$0xff]
        %v4237 = vld [vmem:[#allocation4 + $0x69] sm:$0xff]
        %v4238 = vld [vmem:[#allocation4 + $0x79] sm:$0xff]
        %v4239 = vld [vmem:[#allocation4 + $0x81] sm:$0xff]
        %v4240 = vld [vmem:[#allocation4 + $0x91] sm:$0xff]
        %v4241 = vld [vmem:[#allocation4 + $0x99] sm:$0xff]
        %v4242 = vld [vmem:[#allocation4 + $0xa9] sm:$0xff]
        %v4243 = vld [vmem:[#allocation4 + $0xb1] sm:$0xff]
        %v4244 = vld [vmem:[#allocation4 + $0xc1] sm:$0xff]
        %v4245 = vld [vmem:[#allocation4 + $0xc9] sm:$0xff]
        %v4246 = vld [vmem:[#allocation4 + $0xd9] sm:$0xff]
        %v4247 = vld [vmem:[#allocation4 + $0xe1] sm:$0xff]
        %v4248 = vld [vmem:[#allocation4 + $0xf1] sm:$0xff]
        %v4249 = vld [vmem:[#allocation4 + $0xf9] sm:$0xff]
        %v4250 = vld [vmem:[#allocation4 + $0x109] sm:$0xff]
        %v4251 = vld [vmem:[#allocation4 + $0x111] sm:$0xff]
        %v4252 = vld [vmem:[#allocation4 + $0x121] sm:$0xff]
        %v4253 = vld [vmem:[#allocation4 + $0x129] sm:$0xff]
        %v4254 = vld [vmem:[#allocation4 + $0x139] sm:$0xff]
        %v4255 = vld [vmem:[#allocation4 + $0x141] sm:$0xff]
        %v4256 = vld [vmem:[#allocation4 + $0x151] sm:$0xff]
        %v4257 = vld [vmem:[#allocation4 + $0x159] sm:$0xff]
        %v4258 = vld [vmem:[#allocation4 + $0x169] sm:$0xff]
        %v4259 = vld [vmem:[#allocation4 + $0x171] sm:$0xff]
        %v4260 = vpack.c.bf16 %v4229, %v4228
        %v4261 = vpack.c.bf16 %v4231, %v4230
        %v4262 = vpack.c.bf16 %v4233, %v4232
        %v4263 = vpack.c.bf16 %v4235, %v4234
        %v4264 = vpack.c.bf16 %v4237, %v4236
        %v4265 = vpack.c.bf16 %v4239, %v4238
        %v4266 = vpack.c.bf16 %v4241, %v4240
        %v4267 = vpack.c.bf16 %v4243, %v4242
        %v4268 = vpack.c.bf16 %v4245, %v4244
        %v4269 = vpack.c.bf16 %v4247, %v4246
        %v4270 = vpack.c.bf16 %v4249, %v4248
        %v4271 = vpack.c.bf16 %v4251, %v4250
        %v4272 = vpack.c.bf16 %v4253, %v4252
        %v4273 = vpack.c.bf16 %v4255, %v4254
        %v4274 = vpack.c.bf16 %v4257, %v4256
        %v4275 = vpack.c.bf16 %v4259, %v4258
        %4292 = vrot.lane.b32.xlu0 %v4260, 64
        %v4293 = vpop.permute.xlu0 %4292
        %4294 = vrot.lane.b32.xlu0 %v4261, 64
        %v4295 = vpop.permute.xlu0 %4294
        %4296 = vrot.lane.b32.xlu0 %v4262, 64
        %v4297 = vpop.permute.xlu0 %4296
        %4298 = vrot.lane.b32.xlu0 %v4263, 64
        %v4299 = vpop.permute.xlu0 %4298
        %4300 = vrot.lane.b32.xlu0 %v4264, 64
        %v4301 = vpop.permute.xlu0 %4300
        %4302 = vrot.lane.b32.xlu0 %v4265, 64
        %v4303 = vpop.permute.xlu0 %4302
        %4304 = vrot.lane.b32.xlu0 %v4266, 64
        %v4305 = vpop.permute.xlu0 %4304
        %4306 = vrot.lane.b32.xlu0 %v4267, 64
        %v4307 = vpop.permute.xlu0 %4306
        %4308 = vrot.lane.b32.xlu0 %v4268, 64
        %v4309 = vpop.permute.xlu0 %4308
        %4310 = vrot.lane.b32.xlu0 %v4269, 64
        %v4311 = vpop.permute.xlu0 %4310
        %4312 = vrot.lane.b32.xlu0 %v4270, 64
        %v4313 = vpop.permute.xlu0 %4312
        %4314 = vrot.lane.b32.xlu0 %v4271, 64
        %v4315 = vpop.permute.xlu0 %4314
        %4316 = vrot.lane.b32.xlu0 %v4272, 64
        %v4317 = vpop.permute.xlu0 %4316
        %4318 = vrot.lane.b32.xlu0 %v4273, 64
        %v4319 = vpop.permute.xlu0 %4318
        %4320 = vrot.lane.b32.xlu0 %v4274, 64
        %v4321 = vpop.permute.xlu0 %4320
        %4322 = vrot.lane.b32.xlu0 %v4275, 64
        %v4323 = vpop.permute.xlu0 %4322
        %4340 = vst.msk [vmem:[#allocation5] sm:$0xff] %vm1571, %v4293
        %4341 = vst.msk [vmem:[#allocation5 + $0x28] sm:$0xff] %vm1571, %v4295
        %4342 = vst.msk [vmem:[#allocation5 + $0x50] sm:$0xff] %vm1571, %v4297
        %4343 = vst.msk [vmem:[#allocation5 + $0x78] sm:$0xff] %vm1571, %v4299
        %4344 = vst.msk [vmem:[#allocation5 + $0xa0] sm:$0xff] %vm1571, %v4301
        %4345 = vst.msk [vmem:[#allocation5 + $0xc8] sm:$0xff] %vm1571, %v4303
        %4346 = vst.msk [vmem:[#allocation5 + $0xf0] sm:$0xff] %vm1571, %v4305
        %4347 = vst.msk [vmem:[#allocation5 + $0x118] sm:$0xff] %vm1571, %v4307
        %4348 = vst.msk [vmem:[#allocation5 + $0x140] sm:$0xff] %vm1571, %v4309
        %4349 = vst.msk [vmem:[#allocation5 + $0x168] sm:$0xff] %vm1571, %v4311
        %4350 = vst.msk [vmem:[#allocation5 + $0x190] sm:$0xff] %vm1571, %v4313
        %4351 = vst.msk [vmem:[#allocation5 + $0x1b8] sm:$0xff] %vm1571, %v4315
        %4352 = vst.msk [vmem:[#allocation5 + $0x1e0] sm:$0xff] %vm1571, %v4317
        %4353 = vst.msk [vmem:[#allocation5 + $0x208] sm:$0xff] %vm1571, %v4319
        %4354 = vst.msk [vmem:[#allocation5 + $0x230] sm:$0xff] %vm1571, %v4321
        %4355 = vst.msk [vmem:[#allocation5 + $0x258] sm:$0xff] %vm1571, %v4323
        %v4356 = vld [vmem:[#allocation4 + $0x2] sm:$0xff]
        %v4357 = vld [vmem:[#allocation4 + $0xa] sm:$0xff]
        %v4358 = vld [vmem:[#allocation4 + $0x1a] sm:$0xff]
        %v4359 = vld [vmem:[#allocation4 + $0x22] sm:$0xff]
        %v4360 = vld [vmem:[#allocation4 + $0x32] sm:$0xff]
        %v4361 = vld [vmem:[#allocation4 + $0x3a] sm:$0xff]
        %v4362 = vld [vmem:[#allocation4 + $0x4a] sm:$0xff]
        %v4363 = vld [vmem:[#allocation4 + $0x52] sm:$0xff]
        %v4364 = vld [vmem:[#allocation4 + $0x62] sm:$0xff]
        %v4365 = vld [vmem:[#allocation4 + $0x6a] sm:$0xff]
        %v4366 = vld [vmem:[#allocation4 + $0x7a] sm:$0xff]
        %v4367 = vld [vmem:[#allocation4 + $0x82] sm:$0xff]
        %v4368 = vld [vmem:[#allocation4 + $0x92] sm:$0xff]
        %v4369 = vld [vmem:[#allocation4 + $0x9a] sm:$0xff]
        %v4370 = vld [vmem:[#allocation4 + $0xaa] sm:$0xff]
        %v4371 = vld [vmem:[#allocation4 + $0xb2] sm:$0xff]
        %v4372 = vld [vmem:[#allocation4 + $0xc2] sm:$0xff]
        %v4373 = vld [vmem:[#allocation4 + $0xca] sm:$0xff]
        %v4374 = vld [vmem:[#allocation4 + $0xda] sm:$0xff]
        %v4375 = vld [vmem:[#allocation4 + $0xe2] sm:$0xff]
        %v4376 = vld [vmem:[#allocation4 + $0xf2] sm:$0xff]
        %v4377 = vld [vmem:[#allocation4 + $0xfa] sm:$0xff]
        %v4378 = vld [vmem:[#allocation4 + $0x10a] sm:$0xff]
        %v4379 = vld [vmem:[#allocation4 + $0x112] sm:$0xff]
        %v4380 = vld [vmem:[#allocation4 + $0x122] sm:$0xff]
        %v4381 = vld [vmem:[#allocation4 + $0x12a] sm:$0xff]
        %v4382 = vld [vmem:[#allocation4 + $0x13a] sm:$0xff]
        %v4383 = vld [vmem:[#allocation4 + $0x142] sm:$0xff]
        %v4384 = vld [vmem:[#allocation4 + $0x152] sm:$0xff]
        %v4385 = vld [vmem:[#allocation4 + $0x15a] sm:$0xff]
        %v4386 = vld [vmem:[#allocation4 + $0x16a] sm:$0xff]
        %v4387 = vld [vmem:[#allocation4 + $0x172] sm:$0xff]
        %v4388 = vpack.c.bf16 %v4357, %v4356
        %v4389 = vpack.c.bf16 %v4359, %v4358
        %v4390 = vpack.c.bf16 %v4361, %v4360
        %v4391 = vpack.c.bf16 %v4363, %v4362
        %v4392 = vpack.c.bf16 %v4365, %v4364
        %v4393 = vpack.c.bf16 %v4367, %v4366
        %v4394 = vpack.c.bf16 %v4369, %v4368
        %v4395 = vpack.c.bf16 %v4371, %v4370
        %v4396 = vpack.c.bf16 %v4373, %v4372
        %v4397 = vpack.c.bf16 %v4375, %v4374
        %v4398 = vpack.c.bf16 %v4377, %v4376
        %v4399 = vpack.c.bf16 %v4379, %v4378
        %v4400 = vpack.c.bf16 %v4381, %v4380
        %v4401 = vpack.c.bf16 %v4383, %v4382
        %v4402 = vpack.c.bf16 %v4385, %v4384
        %v4403 = vpack.c.bf16 %v4387, %v4386
        %4404 = vst.msk [vmem:[#allocation5 + $0x8] sm:$0xff] %vm1306, %v4388
        %4405 = vst.msk [vmem:[#allocation5 + $0x30] sm:$0xff] %vm1306, %v4389
        %4406 = vst.msk [vmem:[#allocation5 + $0x58] sm:$0xff] %vm1306, %v4390
        %4407 = vst.msk [vmem:[#allocation5 + $0x80] sm:$0xff] %vm1306, %v4391
        %4408 = vst.msk [vmem:[#allocation5 + $0xa8] sm:$0xff] %vm1306, %v4392
        %4409 = vst.msk [vmem:[#allocation5 + $0xd0] sm:$0xff] %vm1306, %v4393
        %4410 = vst.msk [vmem:[#allocation5 + $0xf8] sm:$0xff] %vm1306, %v4394
        %4411 = vst.msk [vmem:[#allocation5 + $0x120] sm:$0xff] %vm1306, %v4395
        %4412 = vst.msk [vmem:[#allocation5 + $0x148] sm:$0xff] %vm1306, %v4396
        %4413 = vst.msk [vmem:[#allocation5 + $0x170] sm:$0xff] %vm1306, %v4397
        %4414 = vst.msk [vmem:[#allocation5 + $0x198] sm:$0xff] %vm1306, %v4398
        %4415 = vst.msk [vmem:[#allocation5 + $0x1c0] sm:$0xff] %vm1306, %v4399
        %4416 = vst.msk [vmem:[#allocation5 + $0x1e8] sm:$0xff] %vm1306, %v4400
        %4417 = vst.msk [vmem:[#allocation5 + $0x210] sm:$0xff] %vm1306, %v4401
        %4418 = vst.msk [vmem:[#allocation5 + $0x238] sm:$0xff] %vm1306, %v4402
        %4419 = vst.msk [vmem:[#allocation5 + $0x260] sm:$0xff] %vm1306, %v4403
        %v4420 = vld [vmem:[%s4131] sm:$0xff]
        %v4421 = vld [vmem:[%s4131 + $0x8] sm:$0xff]
        %v4422 = vld [vmem:[%s4131 + $0x18] sm:$0xff]
        %v4423 = vld [vmem:[%s4131 + $0x20] sm:$0xff]
        %v4424 = vld [vmem:[%s4131 + $0x30] sm:$0xff]
        %v4425 = vld [vmem:[%s4131 + $0x38] sm:$0xff]
        %v4426 = vld [vmem:[%s4131 + $0x48] sm:$0xff]
        %v4427 = vld [vmem:[%s4131 + $0x50] sm:$0xff]
        %v4428 = vld [vmem:[%s4131 + $0x60] sm:$0xff]
        %v4429 = vld [vmem:[%s4131 + $0x68] sm:$0xff]
        %v4430 = vld [vmem:[%s4131 + $0x78] sm:$0xff]
        %v4431 = vld [vmem:[%s4131 + $0x80] sm:$0xff]
        %v4432 = vld [vmem:[%s4131 + $0x90] sm:$0xff]
        %v4433 = vld [vmem:[%s4131 + $0x98] sm:$0xff]
        %v4434 = vld [vmem:[%s4131 + $0xa8] sm:$0xff]
        %v4435 = vld [vmem:[%s4131 + $0xb0] sm:$0xff]
        %v4436 = vld [vmem:[%s4131 + $0xc0] sm:$0xff]
        %v4437 = vld [vmem:[%s4131 + $0xc8] sm:$0xff]
        %v4438 = vld [vmem:[%s4131 + $0xd8] sm:$0xff]
        %v4439 = vld [vmem:[%s4131 + $0xe0] sm:$0xff]
        %v4440 = vld [vmem:[%s4131 + $0xf0] sm:$0xff]
        %v4441 = vld [vmem:[%s4131 + $0xf8] sm:$0xff]
        %v4442 = vld [vmem:[%s4131 + $0x108] sm:$0xff]
        %v4443 = vld [vmem:[%s4131 + $0x110] sm:$0xff]
        %v4444 = vld [vmem:[%s4131 + $0x120] sm:$0xff]
        %v4445 = vld [vmem:[%s4131 + $0x128] sm:$0xff]
        %v4446 = vld [vmem:[%s4131 + $0x138] sm:$0xff]
        %v4447 = vld [vmem:[%s4131 + $0x140] sm:$0xff]
        %v4448 = vld [vmem:[%s4131 + $0x150] sm:$0xff]
        %v4449 = vld [vmem:[%s4131 + $0x158] sm:$0xff]
        %v4450 = vld [vmem:[%s4131 + $0x168] sm:$0xff]
        %v4451 = vld [vmem:[%s4131 + $0x170] sm:$0xff]
        %v4452 = vpack.c.bf16 %v4421, %v4420
        %v4453 = vpack.c.bf16 %v4423, %v4422
        %v4454 = vpack.c.bf16 %v4425, %v4424
        %v4455 = vpack.c.bf16 %v4427, %v4426
        %v4456 = vpack.c.bf16 %v4429, %v4428
        %v4457 = vpack.c.bf16 %v4431, %v4430
        %v4458 = vpack.c.bf16 %v4433, %v4432
        %v4459 = vpack.c.bf16 %v4435, %v4434
        %v4460 = vpack.c.bf16 %v4437, %v4436
        %v4461 = vpack.c.bf16 %v4439, %v4438
        %v4462 = vpack.c.bf16 %v4441, %v4440
        %v4463 = vpack.c.bf16 %v4443, %v4442
        %v4464 = vpack.c.bf16 %v4445, %v4444
        %v4465 = vpack.c.bf16 %v4447, %v4446
        %v4466 = vpack.c.bf16 %v4449, %v4448
        %v4467 = vpack.c.bf16 %v4451, %v4450
        %4484 = vrot.lane.b32.xlu0 %v4452, 64
        %v4485 = vpop.permute.xlu0 %4484
        %4486 = vrot.lane.b32.xlu0 %v4453, 64
        %v4487 = vpop.permute.xlu0 %4486
        %4488 = vrot.lane.b32.xlu0 %v4454, 64
        %v4489 = vpop.permute.xlu0 %4488
        %4490 = vrot.lane.b32.xlu0 %v4455, 64
        %v4491 = vpop.permute.xlu0 %4490
        %4492 = vrot.lane.b32.xlu0 %v4456, 64
        %v4493 = vpop.permute.xlu0 %4492
        %4494 = vrot.lane.b32.xlu0 %v4457, 64
        %v4495 = vpop.permute.xlu0 %4494
        %4496 = vrot.lane.b32.xlu0 %v4458, 64
        %v4497 = vpop.permute.xlu0 %4496
        %4498 = vrot.lane.b32.xlu0 %v4459, 64
        %v4499 = vpop.permute.xlu0 %4498
        %4500 = vrot.lane.b32.xlu0 %v4460, 64
        %v4501 = vpop.permute.xlu0 %4500
        %4502 = vrot.lane.b32.xlu0 %v4461, 64
        %v4503 = vpop.permute.xlu0 %4502
        %4504 = vrot.lane.b32.xlu0 %v4462, 64
        %v4505 = vpop.permute.xlu0 %4504
        %4506 = vrot.lane.b32.xlu0 %v4463, 64
        %v4507 = vpop.permute.xlu0 %4506
        %4508 = vrot.lane.b32.xlu0 %v4464, 64
        %v4509 = vpop.permute.xlu0 %4508
        %4510 = vrot.lane.b32.xlu0 %v4465, 64
        %v4511 = vpop.permute.xlu0 %4510
        %4512 = vrot.lane.b32.xlu0 %v4466, 64
        %v4513 = vpop.permute.xlu0 %4512
        %4514 = vrot.lane.b32.xlu0 %v4467, 64
        %v4515 = vpop.permute.xlu0 %4514
        %4532 = vst.msk [vmem:[#allocation5 + $0x8] sm:$0xff] %vm1571, %v4485
        %4533 = vst.msk [vmem:[#allocation5 + $0x30] sm:$0xff] %vm1571, %v4487
        %4534 = vst.msk [vmem:[#allocation5 + $0x58] sm:$0xff] %vm1571, %v4489
        %4535 = vst.msk [vmem:[#allocation5 + $0x80] sm:$0xff] %vm1571, %v4491
        %4536 = vst.msk [vmem:[#allocation5 + $0xa8] sm:$0xff] %vm1571, %v4493
        %4537 = vst.msk [vmem:[#allocation5 + $0xd0] sm:$0xff] %vm1571, %v4495
        %4538 = vst.msk [vmem:[#allocation5 + $0xf8] sm:$0xff] %vm1571, %v4497
        %4539 = vst.msk [vmem:[#allocation5 + $0x120] sm:$0xff] %vm1571, %v4499
        %4540 = vst.msk [vmem:[#allocation5 + $0x148] sm:$0xff] %vm1571, %v4501
        %4541 = vst.msk [vmem:[#allocation5 + $0x170] sm:$0xff] %vm1571, %v4503
        %4542 = vst.msk [vmem:[#allocation5 + $0x198] sm:$0xff] %vm1571, %v4505
        %4543 = vst.msk [vmem:[#allocation5 + $0x1c0] sm:$0xff] %vm1571, %v4507
        %4544 = vst.msk [vmem:[#allocation5 + $0x1e8] sm:$0xff] %vm1571, %v4509
        %4545 = vst.msk [vmem:[#allocation5 + $0x210] sm:$0xff] %vm1571, %v4511
        %4546 = vst.msk [vmem:[#allocation5 + $0x238] sm:$0xff] %vm1571, %v4513
        %4547 = vst.msk [vmem:[#allocation5 + $0x260] sm:$0xff] %vm1571, %v4515
        %v4548 = vld [vmem:[%s4131 + $0x1] sm:$0xff]
        %v4549 = vld [vmem:[%s4131 + $0x9] sm:$0xff]
        %v4550 = vld [vmem:[%s4131 + $0x19] sm:$0xff]
        %v4551 = vld [vmem:[%s4131 + $0x21] sm:$0xff]
        %v4552 = vld [vmem:[%s4131 + $0x31] sm:$0xff]
        %v4553 = vld [vmem:[%s4131 + $0x39] sm:$0xff]
        %v4554 = vld [vmem:[%s4131 + $0x49] sm:$0xff]
        %v4555 = vld [vmem:[%s4131 + $0x51] sm:$0xff]
        %v4556 = vld [vmem:[%s4131 + $0x61] sm:$0xff]
        %v4557 = vld [vmem:[%s4131 + $0x69] sm:$0xff]
        %v4558 = vld [vmem:[%s4131 + $0x79] sm:$0xff]
        %v4559 = vld [vmem:[%s4131 + $0x81] sm:$0xff]
        %v4560 = vld [vmem:[%s4131 + $0x91] sm:$0xff]
        %v4561 = vld [vmem:[%s4131 + $0x99] sm:$0xff]
        %v4562 = vld [vmem:[%s4131 + $0xa9] sm:$0xff]
        %v4563 = vld [vmem:[%s4131 + $0xb1] sm:$0xff]
        %v4564 = vld [vmem:[%s4131 + $0xc1] sm:$0xff]
        %v4565 = vld [vmem:[%s4131 + $0xc9] sm:$0xff]
        %v4566 = vld [vmem:[%s4131 + $0xd9] sm:$0xff]
        %v4567 = vld [vmem:[%s4131 + $0xe1] sm:$0xff]
        %v4568 = vld [vmem:[%s4131 + $0xf1] sm:$0xff]
        %v4569 = vld [vmem:[%s4131 + $0xf9] sm:$0xff]
        %v4570 = vld [vmem:[%s4131 + $0x109] sm:$0xff]
        %v4571 = vld [vmem:[%s4131 + $0x111] sm:$0xff]
        %v4572 = vld [vmem:[%s4131 + $0x121] sm:$0xff]
        %v4573 = vld [vmem:[%s4131 + $0x129] sm:$0xff]
        %v4574 = vld [vmem:[%s4131 + $0x139] sm:$0xff]
        %v4575 = vld [vmem:[%s4131 + $0x141] sm:$0xff]
        %v4576 = vld [vmem:[%s4131 + $0x151] sm:$0xff]
        %v4577 = vld [vmem:[%s4131 + $0x159] sm:$0xff]
        %v4578 = vld [vmem:[%s4131 + $0x169] sm:$0xff]
        %v4579 = vld [vmem:[%s4131 + $0x171] sm:$0xff]
        %v4580 = vpack.c.bf16 %v4549, %v4548
        %v4581 = vpack.c.bf16 %v4551, %v4550
        %v4582 = vpack.c.bf16 %v4553, %v4552
        %v4583 = vpack.c.bf16 %v4555, %v4554
        %v4584 = vpack.c.bf16 %v4557, %v4556
        %v4585 = vpack.c.bf16 %v4559, %v4558
        %v4586 = vpack.c.bf16 %v4561, %v4560
        %v4587 = vpack.c.bf16 %v4563, %v4562
        %v4588 = vpack.c.bf16 %v4565, %v4564
        %v4589 = vpack.c.bf16 %v4567, %v4566
        %v4590 = vpack.c.bf16 %v4569, %v4568
        %v4591 = vpack.c.bf16 %v4571, %v4570
        %v4592 = vpack.c.bf16 %v4573, %v4572
        %v4593 = vpack.c.bf16 %v4575, %v4574
        %v4594 = vpack.c.bf16 %v4577, %v4576
        %v4595 = vpack.c.bf16 %v4579, %v4578
        %4596 = vst.msk [vmem:[#allocation5 + $0x10] sm:$0xff] %vm1306, %v4580
        %4597 = vst.msk [vmem:[#allocation5 + $0x38] sm:$0xff] %vm1306, %v4581
        %4598 = vst.msk [vmem:[#allocation5 + $0x60] sm:$0xff] %vm1306, %v4582
        %4599 = vst.msk [vmem:[#allocation5 + $0x88] sm:$0xff] %vm1306, %v4583
        %4600 = vst.msk [vmem:[#allocation5 + $0xb0] sm:$0xff] %vm1306, %v4584
        %4601 = vst.msk [vmem:[#allocation5 + $0xd8] sm:$0xff] %vm1306, %v4585
        %4602 = vst.msk [vmem:[#allocation5 + $0x100] sm:$0xff] %vm1306, %v4586
        %4603 = vst.msk [vmem:[#allocation5 + $0x128] sm:$0xff] %vm1306, %v4587
        %4604 = vst.msk [vmem:[#allocation5 + $0x150] sm:$0xff] %vm1306, %v4588
        %4605 = vst.msk [vmem:[#allocation5 + $0x178] sm:$0xff] %vm1306, %v4589
        %4606 = vst.msk [vmem:[#allocation5 + $0x1a0] sm:$0xff] %vm1306, %v4590
        %4607 = vst.msk [vmem:[#allocation5 + $0x1c8] sm:$0xff] %vm1306, %v4591
        %4608 = vst.msk [vmem:[#allocation5 + $0x1f0] sm:$0xff] %vm1306, %v4592
        %4609 = vst.msk [vmem:[#allocation5 + $0x218] sm:$0xff] %vm1306, %v4593
        %4610 = vst.msk [vmem:[#allocation5 + $0x240] sm:$0xff] %vm1306, %v4594
        %4611 = vst.msk [vmem:[#allocation5 + $0x268] sm:$0xff] %vm1306, %v4595
        %v4612 = vld [vmem:[%s4131 + $0x2] sm:$0xff]
        %v4613 = vld [vmem:[%s4131 + $0xa] sm:$0xff]
        %v4614 = vld [vmem:[%s4131 + $0x1a] sm:$0xff]
        %v4615 = vld [vmem:[%s4131 + $0x22] sm:$0xff]
        %v4616 = vld [vmem:[%s4131 + $0x32] sm:$0xff]
        %v4617 = vld [vmem:[%s4131 + $0x3a] sm:$0xff]
        %v4618 = vld [vmem:[%s4131 + $0x4a] sm:$0xff]
        %v4619 = vld [vmem:[%s4131 + $0x52] sm:$0xff]
        %v4620 = vld [vmem:[%s4131 + $0x62] sm:$0xff]
        %v4621 = vld [vmem:[%s4131 + $0x6a] sm:$0xff]
        %v4622 = vld [vmem:[%s4131 + $0x7a] sm:$0xff]
        %v4623 = vld [vmem:[%s4131 + $0x82] sm:$0xff]
        %v4624 = vld [vmem:[%s4131 + $0x92] sm:$0xff]
        %v4625 = vld [vmem:[%s4131 + $0x9a] sm:$0xff]
        %v4626 = vld [vmem:[%s4131 + $0xaa] sm:$0xff]
        %v4627 = vld [vmem:[%s4131 + $0xb2] sm:$0xff]
        %v4628 = vld [vmem:[%s4131 + $0xc2] sm:$0xff]
        %v4629 = vld [vmem:[%s4131 + $0xca] sm:$0xff]
        %v4630 = vld [vmem:[%s4131 + $0xda] sm:$0xff]
        %v4631 = vld [vmem:[%s4131 + $0xe2] sm:$0xff]
        %v4632 = vld [vmem:[%s4131 + $0xf2] sm:$0xff]
        %v4633 = vld [vmem:[%s4131 + $0xfa] sm:$0xff]
        %v4634 = vld [vmem:[%s4131 + $0x10a] sm:$0xff]
        %v4635 = vld [vmem:[%s4131 + $0x112] sm:$0xff]
        %v4636 = vld [vmem:[%s4131 + $0x122] sm:$0xff]
        %v4637 = vld [vmem:[%s4131 + $0x12a] sm:$0xff]
        %v4638 = vld [vmem:[%s4131 + $0x13a] sm:$0xff]
        %v4639 = vld [vmem:[%s4131 + $0x142] sm:$0xff]
        %v4640 = vld [vmem:[%s4131 + $0x152] sm:$0xff]
        %v4641 = vld [vmem:[%s4131 + $0x15a] sm:$0xff]
        %v4642 = vld [vmem:[%s4131 + $0x16a] sm:$0xff]
        %v4643 = vld [vmem:[%s4131 + $0x172] sm:$0xff]
        %v4644 = vpack.c.bf16 %v4613, %v4612
        %v4645 = vpack.c.bf16 %v4615, %v4614
        %v4646 = vpack.c.bf16 %v4617, %v4616
        %v4647 = vpack.c.bf16 %v4619, %v4618
        %v4648 = vpack.c.bf16 %v4621, %v4620
        %v4649 = vpack.c.bf16 %v4623, %v4622
        %v4650 = vpack.c.bf16 %v4625, %v4624
        %v4651 = vpack.c.bf16 %v4627, %v4626
        %v4652 = vpack.c.bf16 %v4629, %v4628
        %v4653 = vpack.c.bf16 %v4631, %v4630
        %v4654 = vpack.c.bf16 %v4633, %v4632
        %v4655 = vpack.c.bf16 %v4635, %v4634
        %v4656 = vpack.c.bf16 %v4637, %v4636
        %v4657 = vpack.c.bf16 %v4639, %v4638
        %v4658 = vpack.c.bf16 %v4641, %v4640
        %v4659 = vpack.c.bf16 %v4643, %v4642
        %4676 = vrot.lane.b32.xlu0 %v4644, 64
        %v4677 = vpop.permute.xlu0 %4676
        %4678 = vrot.lane.b32.xlu0 %v4645, 64
        %v4679 = vpop.permute.xlu0 %4678
        %4680 = vrot.lane.b32.xlu0 %v4646, 64
        %v4681 = vpop.permute.xlu0 %4680
        %4682 = vrot.lane.b32.xlu0 %v4647, 64
        %v4683 = vpop.permute.xlu0 %4682
        %4684 = vrot.lane.b32.xlu0 %v4648, 64
        %v4685 = vpop.permute.xlu0 %4684
        %4686 = vrot.lane.b32.xlu0 %v4649, 64
        %v4687 = vpop.permute.xlu0 %4686
        %4688 = vrot.lane.b32.xlu0 %v4650, 64
        %v4689 = vpop.permute.xlu0 %4688
        %4690 = vrot.lane.b32.xlu0 %v4651, 64
        %v4691 = vpop.permute.xlu0 %4690
        %4692 = vrot.lane.b32.xlu0 %v4652, 64
        %v4693 = vpop.permute.xlu0 %4692
        %4694 = vrot.lane.b32.xlu0 %v4653, 64
        %v4695 = vpop.permute.xlu0 %4694
        %4696 = vrot.lane.b32.xlu0 %v4654, 64
        %v4697 = vpop.permute.xlu0 %4696
        %4698 = vrot.lane.b32.xlu0 %v4655, 64
        %v4699 = vpop.permute.xlu0 %4698
        %4700 = vrot.lane.b32.xlu0 %v4656, 64
        %v4701 = vpop.permute.xlu0 %4700
        %4702 = vrot.lane.b32.xlu0 %v4657, 64
        %v4703 = vpop.permute.xlu0 %4702
        %4704 = vrot.lane.b32.xlu0 %v4658, 64
        %v4705 = vpop.permute.xlu0 %4704
        %4706 = vrot.lane.b32.xlu0 %v4659, 64
        %v4707 = vpop.permute.xlu0 %4706
        %4724 = vst.msk [vmem:[#allocation5 + $0x10] sm:$0xff] %vm1571, %v4677
        %4725 = vst.msk [vmem:[#allocation5 + $0x38] sm:$0xff] %vm1571, %v4679
        %4726 = vst.msk [vmem:[#allocation5 + $0x60] sm:$0xff] %vm1571, %v4681
        %4727 = vst.msk [vmem:[#allocation5 + $0x88] sm:$0xff] %vm1571, %v4683
        %4728 = vst.msk [vmem:[#allocation5 + $0xb0] sm:$0xff] %vm1571, %v4685
        %4729 = vst.msk [vmem:[#allocation5 + $0xd8] sm:$0xff] %vm1571, %v4687
        %4730 = vst.msk [vmem:[#allocation5 + $0x100] sm:$0xff] %vm1571, %v4689
        %4731 = vst.msk [vmem:[#allocation5 + $0x128] sm:$0xff] %vm1571, %v4691
        %4732 = vst.msk [vmem:[#allocation5 + $0x150] sm:$0xff] %vm1571, %v4693
        %4733 = vst.msk [vmem:[#allocation5 + $0x178] sm:$0xff] %vm1571, %v4695
        %4734 = vst.msk [vmem:[#allocation5 + $0x1a0] sm:$0xff] %vm1571, %v4697
        %4735 = vst.msk [vmem:[#allocation5 + $0x1c8] sm:$0xff] %vm1571, %v4699
        %4736 = vst.msk [vmem:[#allocation5 + $0x1f0] sm:$0xff] %vm1571, %v4701
        %4737 = vst.msk [vmem:[#allocation5 + $0x218] sm:$0xff] %vm1571, %v4703
        %4738 = vst.msk [vmem:[#allocation5 + $0x240] sm:$0xff] %vm1571, %v4705
        %4739 = vst.msk [vmem:[#allocation5 + $0x268] sm:$0xff] %vm1571, %v4707
        %s4740 = scalar_lea.vmem [#allocation4], 48
        %v4741 = vld [vmem:[%s4740] sm:$0xff]
        %v4742 = vld [vmem:[%s4740 + $0x8] sm:$0xff]
        %v4743 = vld [vmem:[%s4740 + $0x18] sm:$0xff]
        %v4744 = vld [vmem:[%s4740 + $0x20] sm:$0xff]
        %v4745 = vld [vmem:[%s4740 + $0x30] sm:$0xff]
        %v4746 = vld [vmem:[%s4740 + $0x38] sm:$0xff]
        %v4747 = vld [vmem:[%s4740 + $0x48] sm:$0xff]
        %v4748 = vld [vmem:[%s4740 + $0x50] sm:$0xff]
        %v4749 = vld [vmem:[%s4740 + $0x60] sm:$0xff]
        %v4750 = vld [vmem:[%s4740 + $0x68] sm:$0xff]
        %v4751 = vld [vmem:[%s4740 + $0x78] sm:$0xff]
        %v4752 = vld [vmem:[%s4740 + $0x80] sm:$0xff]
        %v4753 = vld [vmem:[%s4740 + $0x90] sm:$0xff]
        %v4754 = vld [vmem:[%s4740 + $0x98] sm:$0xff]
        %v4755 = vld [vmem:[%s4740 + $0xa8] sm:$0xff]
        %v4756 = vld [vmem:[%s4740 + $0xb0] sm:$0xff]
        %v4757 = vld [vmem:[%s4740 + $0xc0] sm:$0xff]
        %v4758 = vld [vmem:[%s4740 + $0xc8] sm:$0xff]
        %v4759 = vld [vmem:[%s4740 + $0xd8] sm:$0xff]
        %v4760 = vld [vmem:[%s4740 + $0xe0] sm:$0xff]
        %v4761 = vld [vmem:[%s4740 + $0xf0] sm:$0xff]
        %v4762 = vld [vmem:[%s4740 + $0xf8] sm:$0xff]
        %v4763 = vld [vmem:[%s4740 + $0x108] sm:$0xff]
        %v4764 = vld [vmem:[%s4740 + $0x110] sm:$0xff]
        %v4765 = vld [vmem:[%s4740 + $0x120] sm:$0xff]
        %v4766 = vld [vmem:[%s4740 + $0x128] sm:$0xff]
        %v4767 = vld [vmem:[%s4740 + $0x138] sm:$0xff]
        %v4768 = vld [vmem:[%s4740 + $0x140] sm:$0xff]
        %v4769 = vld [vmem:[%s4740 + $0x150] sm:$0xff]
        %v4770 = vld [vmem:[%s4740 + $0x158] sm:$0xff]
        %v4771 = vld [vmem:[%s4740 + $0x168] sm:$0xff]
        %v4772 = vld [vmem:[%s4740 + $0x170] sm:$0xff]
        %v4773 = vpack.c.bf16 %v4742, %v4741
        %v4774 = vpack.c.bf16 %v4744, %v4743
        %v4775 = vpack.c.bf16 %v4746, %v4745
        %v4776 = vpack.c.bf16 %v4748, %v4747
        %v4777 = vpack.c.bf16 %v4750, %v4749
        %v4778 = vpack.c.bf16 %v4752, %v4751
        %v4779 = vpack.c.bf16 %v4754, %v4753
        %v4780 = vpack.c.bf16 %v4756, %v4755
        %v4781 = vpack.c.bf16 %v4758, %v4757
        %v4782 = vpack.c.bf16 %v4760, %v4759
        %v4783 = vpack.c.bf16 %v4762, %v4761
        %v4784 = vpack.c.bf16 %v4764, %v4763
        %v4785 = vpack.c.bf16 %v4766, %v4765
        %v4786 = vpack.c.bf16 %v4768, %v4767
        %v4787 = vpack.c.bf16 %v4770, %v4769
        %v4788 = vpack.c.bf16 %v4772, %v4771
        %4789 = vst.msk [vmem:[#allocation5 + $0x18] sm:$0xff] %vm1306, %v4773
        %4790 = vst.msk [vmem:[#allocation5 + $0x40] sm:$0xff] %vm1306, %v4774
        %4791 = vst.msk [vmem:[#allocation5 + $0x68] sm:$0xff] %vm1306, %v4775
        %4792 = vst.msk [vmem:[#allocation5 + $0x90] sm:$0xff] %vm1306, %v4776
        %4793 = vst.msk [vmem:[#allocation5 + $0xb8] sm:$0xff] %vm1306, %v4777
        %4794 = vst.msk [vmem:[#allocation5 + $0xe0] sm:$0xff] %vm1306, %v4778
        %4795 = vst.msk [vmem:[#allocation5 + $0x108] sm:$0xff] %vm1306, %v4779
        %4796 = vst.msk [vmem:[#allocation5 + $0x130] sm:$0xff] %vm1306, %v4780
        %4797 = vst.msk [vmem:[#allocation5 + $0x158] sm:$0xff] %vm1306, %v4781
        %4798 = vst.msk [vmem:[#allocation5 + $0x180] sm:$0xff] %vm1306, %v4782
        %4799 = vst.msk [vmem:[#allocation5 + $0x1a8] sm:$0xff] %vm1306, %v4783
        %4800 = vst.msk [vmem:[#allocation5 + $0x1d0] sm:$0xff] %vm1306, %v4784
        %4801 = vst.msk [vmem:[#allocation5 + $0x1f8] sm:$0xff] %vm1306, %v4785
        %4802 = vst.msk [vmem:[#allocation5 + $0x220] sm:$0xff] %vm1306, %v4786
        %4803 = vst.msk [vmem:[#allocation5 + $0x248] sm:$0xff] %vm1306, %v4787
        %4804 = vst.msk [vmem:[#allocation5 + $0x270] sm:$0xff] %vm1306, %v4788
        %v4805 = vld [vmem:[%s4740 + $0x1] sm:$0xff]
        %v4806 = vld [vmem:[%s4740 + $0x9] sm:$0xff]
        %v4807 = vld [vmem:[%s4740 + $0x19] sm:$0xff]
        %v4808 = vld [vmem:[%s4740 + $0x21] sm:$0xff]
        %v4809 = vld [vmem:[%s4740 + $0x31] sm:$0xff]
        %v4810 = vld [vmem:[%s4740 + $0x39] sm:$0xff]
        %v4811 = vld [vmem:[%s4740 + $0x49] sm:$0xff]
        %v4812 = vld [vmem:[%s4740 + $0x51] sm:$0xff]
        %v4813 = vld [vmem:[%s4740 + $0x61] sm:$0xff]
        %v4814 = vld [vmem:[%s4740 + $0x69] sm:$0xff]
        %v4815 = vld [vmem:[%s4740 + $0x79] sm:$0xff]
        %v4816 = vld [vmem:[%s4740 + $0x81] sm:$0xff]
        %v4817 = vld [vmem:[%s4740 + $0x91] sm:$0xff]
        %v4818 = vld [vmem:[%s4740 + $0x99] sm:$0xff]
        %v4819 = vld [vmem:[%s4740 + $0xa9] sm:$0xff]
        %v4820 = vld [vmem:[%s4740 + $0xb1] sm:$0xff]
        %v4821 = vld [vmem:[%s4740 + $0xc1] sm:$0xff]
        %v4822 = vld [vmem:[%s4740 + $0xc9] sm:$0xff]
        %v4823 = vld [vmem:[%s4740 + $0xd9] sm:$0xff]
        %v4824 = vld [vmem:[%s4740 + $0xe1] sm:$0xff]
        %v4825 = vld [vmem:[%s4740 + $0xf1] sm:$0xff]
        %v4826 = vld [vmem:[%s4740 + $0xf9] sm:$0xff]
        %v4827 = vld [vmem:[%s4740 + $0x109] sm:$0xff]
        %v4828 = vld [vmem:[%s4740 + $0x111] sm:$0xff]
        %v4829 = vld [vmem:[%s4740 + $0x121] sm:$0xff]
        %v4830 = vld [vmem:[%s4740 + $0x129] sm:$0xff]
        %v4831 = vld [vmem:[%s4740 + $0x139] sm:$0xff]
        %v4832 = vld [vmem:[%s4740 + $0x141] sm:$0xff]
        %v4833 = vld [vmem:[%s4740 + $0x151] sm:$0xff]
        %v4834 = vld [vmem:[%s4740 + $0x159] sm:$0xff]
        %v4835 = vld [vmem:[%s4740 + $0x169] sm:$0xff]
        %v4836 = vld [vmem:[%s4740 + $0x171] sm:$0xff]
        %v4837 = vpack.c.bf16 %v4806, %v4805
        %v4838 = vpack.c.bf16 %v4808, %v4807
        %v4839 = vpack.c.bf16 %v4810, %v4809
        %v4840 = vpack.c.bf16 %v4812, %v4811
        %v4841 = vpack.c.bf16 %v4814, %v4813
        %v4842 = vpack.c.bf16 %v4816, %v4815
        %v4843 = vpack.c.bf16 %v4818, %v4817
        %v4844 = vpack.c.bf16 %v4820, %v4819
        %v4845 = vpack.c.bf16 %v4822, %v4821
        %v4846 = vpack.c.bf16 %v4824, %v4823
        %v4847 = vpack.c.bf16 %v4826, %v4825
        %v4848 = vpack.c.bf16 %v4828, %v4827
        %v4849 = vpack.c.bf16 %v4830, %v4829
        %v4850 = vpack.c.bf16 %v4832, %v4831
        %v4851 = vpack.c.bf16 %v4834, %v4833
        %v4852 = vpack.c.bf16 %v4836, %v4835
        %4869 = vrot.lane.b32.xlu0 %v4837, 64
        %v4870 = vpop.permute.xlu0 %4869
        %4871 = vrot.lane.b32.xlu0 %v4838, 64
        %v4872 = vpop.permute.xlu0 %4871
        %4873 = vrot.lane.b32.xlu0 %v4839, 64
        %v4874 = vpop.permute.xlu0 %4873
        %4875 = vrot.lane.b32.xlu0 %v4840, 64
        %v4876 = vpop.permute.xlu0 %4875
        %4877 = vrot.lane.b32.xlu0 %v4841, 64
        %v4878 = vpop.permute.xlu0 %4877
        %4879 = vrot.lane.b32.xlu0 %v4842, 64
        %v4880 = vpop.permute.xlu0 %4879
        %4881 = vrot.lane.b32.xlu0 %v4843, 64
        %v4882 = vpop.permute.xlu0 %4881
        %4883 = vrot.lane.b32.xlu0 %v4844, 64
        %v4884 = vpop.permute.xlu0 %4883
        %4885 = vrot.lane.b32.xlu0 %v4845, 64
        %v4886 = vpop.permute.xlu0 %4885
        %4887 = vrot.lane.b32.xlu0 %v4846, 64
        %v4888 = vpop.permute.xlu0 %4887
        %4889 = vrot.lane.b32.xlu0 %v4847, 64
        %v4890 = vpop.permute.xlu0 %4889
        %4891 = vrot.lane.b32.xlu0 %v4848, 64
        %v4892 = vpop.permute.xlu0 %4891
        %4893 = vrot.lane.b32.xlu0 %v4849, 64
        %v4894 = vpop.permute.xlu0 %4893
        %4895 = vrot.lane.b32.xlu0 %v4850, 64
        %v4896 = vpop.permute.xlu0 %4895
        %4897 = vrot.lane.b32.xlu0 %v4851, 64
        %v4898 = vpop.permute.xlu0 %4897
        %4899 = vrot.lane.b32.xlu0 %v4852, 64
        %v4900 = vpop.permute.xlu0 %4899
        %4917 = vst.msk [vmem:[#allocation5 + $0x18] sm:$0xff] %vm1571, %v4870
        %4918 = vst.msk [vmem:[#allocation5 + $0x40] sm:$0xff] %vm1571, %v4872
        %4919 = vst.msk [vmem:[#allocation5 + $0x68] sm:$0xff] %vm1571, %v4874
        %4920 = vst.msk [vmem:[#allocation5 + $0x90] sm:$0xff] %vm1571, %v4876
        %4921 = vst.msk [vmem:[#allocation5 + $0xb8] sm:$0xff] %vm1571, %v4878
        %4922 = vst.msk [vmem:[#allocation5 + $0xe0] sm:$0xff] %vm1571, %v4880
        %4923 = vst.msk [vmem:[#allocation5 + $0x108] sm:$0xff] %vm1571, %v4882
        %4924 = vst.msk [vmem:[#allocation5 + $0x130] sm:$0xff] %vm1571, %v4884
        %4925 = vst.msk [vmem:[#allocation5 + $0x158] sm:$0xff] %vm1571, %v4886
        %4926 = vst.msk [vmem:[#allocation5 + $0x180] sm:$0xff] %vm1571, %v4888
        %4927 = vst.msk [vmem:[#allocation5 + $0x1a8] sm:$0xff] %vm1571, %v4890
        %4928 = vst.msk [vmem:[#allocation5 + $0x1d0] sm:$0xff] %vm1571, %v4892
        %4929 = vst.msk [vmem:[#allocation5 + $0x1f8] sm:$0xff] %vm1571, %v4894
        %4930 = vst.msk [vmem:[#allocation5 + $0x220] sm:$0xff] %vm1571, %v4896
        %4931 = vst.msk [vmem:[#allocation5 + $0x248] sm:$0xff] %vm1571, %v4898
        %4932 = vst.msk [vmem:[#allocation5 + $0x270] sm:$0xff] %vm1571, %v4900
        %v4933 = vld [vmem:[%s4740 + $0x2] sm:$0xff]
        %v4934 = vld [vmem:[%s4740 + $0xa] sm:$0xff]
        %v4935 = vld [vmem:[%s4740 + $0x1a] sm:$0xff]
        %v4936 = vld [vmem:[%s4740 + $0x22] sm:$0xff]
        %v4937 = vld [vmem:[%s4740 + $0x32] sm:$0xff]
        %v4938 = vld [vmem:[%s4740 + $0x3a] sm:$0xff]
        %v4939 = vld [vmem:[%s4740 + $0x4a] sm:$0xff]
        %v4940 = vld [vmem:[%s4740 + $0x52] sm:$0xff]
        %v4941 = vld [vmem:[%s4740 + $0x62] sm:$0xff]
        %v4942 = vld [vmem:[%s4740 + $0x6a] sm:$0xff]
        %v4943 = vld [vmem:[%s4740 + $0x7a] sm:$0xff]
        %v4944 = vld [vmem:[%s4740 + $0x82] sm:$0xff]
        %v4945 = vld [vmem:[%s4740 + $0x92] sm:$0xff]
        %v4946 = vld [vmem:[%s4740 + $0x9a] sm:$0xff]
        %v4947 = vld [vmem:[%s4740 + $0xaa] sm:$0xff]
        %v4948 = vld [vmem:[%s4740 + $0xb2] sm:$0xff]
        %v4949 = vld [vmem:[%s4740 + $0xc2] sm:$0xff]
        %v4950 = vld [vmem:[%s4740 + $0xca] sm:$0xff]
        %v4951 = vld [vmem:[%s4740 + $0xda] sm:$0xff]
        %v4952 = vld [vmem:[%s4740 + $0xe2] sm:$0xff]
        %v4953 = vld [vmem:[%s4740 + $0xf2] sm:$0xff]
        %v4954 = vld [vmem:[%s4740 + $0xfa] sm:$0xff]
        %v4955 = vld [vmem:[%s4740 + $0x10a] sm:$0xff]
        %v4956 = vld [vmem:[%s4740 + $0x112] sm:$0xff]
        %v4957 = vld [vmem:[%s4740 + $0x122] sm:$0xff]
        %v4958 = vld [vmem:[%s4740 + $0x12a] sm:$0xff]
        %v4959 = vld [vmem:[%s4740 + $0x13a] sm:$0xff]
        %v4960 = vld [vmem:[%s4740 + $0x142] sm:$0xff]
        %v4961 = vld [vmem:[%s4740 + $0x152] sm:$0xff]
        %v4962 = vld [vmem:[%s4740 + $0x15a] sm:$0xff]
        %v4963 = vld [vmem:[%s4740 + $0x16a] sm:$0xff]
        %v4964 = vld [vmem:[%s4740 + $0x172] sm:$0xff]
        %v4965 = vpack.c.bf16 %v4934, %v4933
        %v4966 = vpack.c.bf16 %v4936, %v4935
        %v4967 = vpack.c.bf16 %v4938, %v4937
        %v4968 = vpack.c.bf16 %v4940, %v4939
        %v4969 = vpack.c.bf16 %v4942, %v4941
        %v4970 = vpack.c.bf16 %v4944, %v4943
        %v4971 = vpack.c.bf16 %v4946, %v4945
        %v4972 = vpack.c.bf16 %v4948, %v4947
        %v4973 = vpack.c.bf16 %v4950, %v4949
        %v4974 = vpack.c.bf16 %v4952, %v4951
        %v4975 = vpack.c.bf16 %v4954, %v4953
        %v4976 = vpack.c.bf16 %v4956, %v4955
        %v4977 = vpack.c.bf16 %v4958, %v4957
        %v4978 = vpack.c.bf16 %v4960, %v4959
        %v4979 = vpack.c.bf16 %v4962, %v4961
        %v4980 = vpack.c.bf16 %v4964, %v4963
        %4981 = vst.msk [vmem:[#allocation5 + $0x20] sm:$0xff] %vm1306, %v4965
        %4982 = vst.msk [vmem:[#allocation5 + $0x48] sm:$0xff] %vm1306, %v4966
        %4983 = vst.msk [vmem:[#allocation5 + $0x70] sm:$0xff] %vm1306, %v4967
        %4984 = vst.msk [vmem:[#allocation5 + $0x98] sm:$0xff] %vm1306, %v4968
        %4985 = vst.msk [vmem:[#allocation5 + $0xc0] sm:$0xff] %vm1306, %v4969
        %4986 = vst.msk [vmem:[#allocation5 + $0xe8] sm:$0xff] %vm1306, %v4970
        %4987 = vst.msk [vmem:[#allocation5 + $0x110] sm:$0xff] %vm1306, %v4971
        %4988 = vst.msk [vmem:[#allocation5 + $0x138] sm:$0xff] %vm1306, %v4972
        %4989 = vst.msk [vmem:[#allocation5 + $0x160] sm:$0xff] %vm1306, %v4973
        %4990 = vst.msk [vmem:[#allocation5 + $0x188] sm:$0xff] %vm1306, %v4974
        %4991 = vst.msk [vmem:[#allocation5 + $0x1b0] sm:$0xff] %vm1306, %v4975
        %4992 = vst.msk [vmem:[#allocation5 + $0x1d8] sm:$0xff] %vm1306, %v4976
        %4993 = vst.msk [vmem:[#allocation5 + $0x200] sm:$0xff] %vm1306, %v4977
        %4994 = vst.msk [vmem:[#allocation5 + $0x228] sm:$0xff] %vm1306, %v4978
        %4995 = vst.msk [vmem:[#allocation5 + $0x250] sm:$0xff] %vm1306, %v4979
        %4996 = vst.msk [vmem:[#allocation5 + $0x278] sm:$0xff] %vm1306, %v4980
        %v4997 = vld [vmem:[#allocation5] sm:$0xff]
        %v4998 = vld [vmem:[#allocation5 + $0x8] sm:$0xff]
        %v4999 = vld [vmem:[#allocation5 + $0x10] sm:$0xff]
        %v5000 = vld [vmem:[#allocation5 + $0x18] sm:$0xff]
        %v5001 = vld [vmem:[#allocation5 + $0x20] sm:$0xff]
        %v5002 = vld [vmem:[#allocation5 + $0x28] sm:$0xff]
        %v5003 = vld [vmem:[#allocation5 + $0x30] sm:$0xff]
        %v5004 = vld [vmem:[#allocation5 + $0x38] sm:$0xff]
        %v5005 = vld [vmem:[#allocation5 + $0x40] sm:$0xff]
        %v5006 = vld [vmem:[#allocation5 + $0x48] sm:$0xff]
        %v5007 = vld [vmem:[#allocation5 + $0x50] sm:$0xff]
        %v5008 = vld [vmem:[#allocation5 + $0x58] sm:$0xff]
        %v5009 = vld [vmem:[#allocation5 + $0x60] sm:$0xff]
        %v5010 = vld [vmem:[#allocation5 + $0x68] sm:$0xff]
        %v5011 = vld [vmem:[#allocation5 + $0x70] sm:$0xff]
        %v5012 = vld [vmem:[#allocation5 + $0x78] sm:$0xff]
        %v5013 = vld [vmem:[#allocation5 + $0x80] sm:$0xff]
        %v5014 = vld [vmem:[#allocation5 + $0x88] sm:$0xff]
        %v5015 = vld [vmem:[#allocation5 + $0x90] sm:$0xff]
        %v5016 = vld [vmem:[#allocation5 + $0x98] sm:$0xff]
        %v5017 = vld [vmem:[#allocation5 + $0xa0] sm:$0xff]
        %v5018 = vld [vmem:[#allocation5 + $0xa8] sm:$0xff]
        %v5019 = vld [vmem:[#allocation5 + $0xb0] sm:$0xff]
        %v5020 = vld [vmem:[#allocation5 + $0xb8] sm:$0xff]
        %v5021 = vld [vmem:[#allocation5 + $0xc0] sm:$0xff]
        %v5022 = vld [vmem:[#allocation5 + $0xc8] sm:$0xff]
        %v5023 = vld [vmem:[#allocation5 + $0xd0] sm:$0xff]
        %v5024 = vld [vmem:[#allocation5 + $0xd8] sm:$0xff]
        %v5025 = vld [vmem:[#allocation5 + $0xe0] sm:$0xff]
        %v5026 = vld [vmem:[#allocation5 + $0xe8] sm:$0xff]
        %v5027 = vld [vmem:[#allocation5 + $0xf0] sm:$0xff]
        %v5028 = vld [vmem:[#allocation5 + $0xf8] sm:$0xff]
        %v5029 = vld [vmem:[#allocation5 + $0x100] sm:$0xff]
        %v5030 = vld [vmem:[#allocation5 + $0x108] sm:$0xff]
        %v5031 = vld [vmem:[#allocation5 + $0x110] sm:$0xff]
        %v5032 = vld [vmem:[#allocation5 + $0x118] sm:$0xff]
        %v5033 = vld [vmem:[#allocation5 + $0x120] sm:$0xff]
        %v5034 = vld [vmem:[#allocation5 + $0x128] sm:$0xff]
        %v5035 = vld [vmem:[#allocation5 + $0x130] sm:$0xff]
        %v5036 = vld [vmem:[#allocation5 + $0x138] sm:$0xff]
        %v5037 = vld [vmem:[#allocation5 + $0x140] sm:$0xff]
        %v5038 = vld [vmem:[#allocation5 + $0x148] sm:$0xff]
        %v5039 = vld [vmem:[#allocation5 + $0x150] sm:$0xff]
        %v5040 = vld [vmem:[#allocation5 + $0x158] sm:$0xff]
        %v5041 = vld [vmem:[#allocation5 + $0x160] sm:$0xff]
        %v5042 = vld [vmem:[#allocation5 + $0x168] sm:$0xff]
        %v5043 = vld [vmem:[#allocation5 + $0x170] sm:$0xff]
        %v5044 = vld [vmem:[#allocation5 + $0x178] sm:$0xff]
        %v5045 = vld [vmem:[#allocation5 + $0x180] sm:$0xff]
        %v5046 = vld [vmem:[#allocation5 + $0x188] sm:$0xff]
        %v5047 = vld [vmem:[#allocation5 + $0x190] sm:$0xff]
        %v5048 = vld [vmem:[#allocation5 + $0x198] sm:$0xff]
        %v5049 = vld [vmem:[#allocation5 + $0x1a0] sm:$0xff]
        %v5050 = vld [vmem:[#allocation5 + $0x1a8] sm:$0xff]
        %v5051 = vld [vmem:[#allocation5 + $0x1b0] sm:$0xff]
        %v5052 = vld [vmem:[#allocation5 + $0x1b8] sm:$0xff]
        %v5053 = vld [vmem:[#allocation5 + $0x1c0] sm:$0xff]
        %v5054 = vld [vmem:[#allocation5 + $0x1c8] sm:$0xff]
        %v5055 = vld [vmem:[#allocation5 + $0x1d0] sm:$0xff]
        %v5056 = vld [vmem:[#allocation5 + $0x1d8] sm:$0xff]
        %v5057 = vld [vmem:[#allocation5 + $0x1e0] sm:$0xff]
        %v5058 = vld [vmem:[#allocation5 + $0x1e8] sm:$0xff]
        %v5059 = vld [vmem:[#allocation5 + $0x1f0] sm:$0xff]
        %v5060 = vld [vmem:[#allocation5 + $0x1f8] sm:$0xff]
        %v5061 = vld [vmem:[#allocation5 + $0x200] sm:$0xff]
        %v5062 = vld [vmem:[#allocation5 + $0x208] sm:$0xff]
        %v5063 = vld [vmem:[#allocation5 + $0x210] sm:$0xff]
        %v5064 = vld [vmem:[#allocation5 + $0x218] sm:$0xff]
        %v5065 = vld [vmem:[#allocation5 + $0x220] sm:$0xff]
        %v5066 = vld [vmem:[#allocation5 + $0x228] sm:$0xff]
        %v5067 = vld [vmem:[#allocation5 + $0x230] sm:$0xff]
        %v5068 = vld [vmem:[#allocation5 + $0x238] sm:$0xff]
        %v5069 = vld [vmem:[#allocation5 + $0x240] sm:$0xff]
        %v5070 = vld [vmem:[#allocation5 + $0x248] sm:$0xff]
        %v5071 = vld [vmem:[#allocation5 + $0x250] sm:$0xff]
        %v5072 = vld [vmem:[#allocation5 + $0x258] sm:$0xff]
        %v5073 = vld [vmem:[#allocation5 + $0x260] sm:$0xff]
        %v5074 = vld [vmem:[#allocation5 + $0x268] sm:$0xff]
        %v5075 = vld [vmem:[#allocation5 + $0x270] sm:$0xff]
        %v5076 = vld [vmem:[#allocation5 + $0x278] sm:$0xff]
        %v5077 = vld [vmem:[%s7] sm:$0xf]
        %v5078 = vld [vmem:[%s7 + $0x4] sm:$0xf]
        %v5079 = vld [vmem:[%s7 + $0x8] sm:$0xf]
        %v5080 = vld [vmem:[%s7 + $0xc] sm:$0xf]
        %v5081 = vld [vmem:[%s7 + $0x10] sm:$0xf]
        %v5082 = vld [vmem:[%s7 + $0x14] sm:$0xf]
        %v5083 = vld [vmem:[%s7 + $0x18] sm:$0xf]
        %v5084 = vld [vmem:[%s7 + $0x1c] sm:$0xf]
        %v5085 = vld [vmem:[%s7 + $0x20] sm:$0xf]
        %v5086 = vld [vmem:[%s7 + $0x24] sm:$0xf]
        %v5087 = vld [vmem:[%s7 + $0x28] sm:$0xf]
        %v5088 = vld [vmem:[%s7 + $0x2c] sm:$0xf]
        %v5089 = vld [vmem:[%s7 + $0x30] sm:$0xf]
        %v5090 = vld [vmem:[%s7 + $0x34] sm:$0xf]
        %v5091 = vld [vmem:[%s7 + $0x38] sm:$0xf]
        %v5092 = vld [vmem:[%s7 + $0x3c] sm:$0xf]
        %v5093 = vld [vmem:[%s7 + $0x40] sm:$0xf]
        %v5094 = vld [vmem:[%s7 + $0x44] sm:$0xf]
        %v5095 = vld [vmem:[%s7 + $0x48] sm:$0xf]
        %v5096 = vld [vmem:[%s7 + $0x4c] sm:$0xf]
        %v5097 = vld [vmem:[%s7 + $0x50] sm:$0xf]
        %v5098 = vld [vmem:[%s7 + $0x54] sm:$0xf]
        %v5099 = vld [vmem:[%s7 + $0x58] sm:$0xf]
        %v5100 = vld [vmem:[%s7 + $0x5c] sm:$0xf]
        %v5101 = vld [vmem:[%s7 + $0x60] sm:$0xf]
        %v5102 = vld [vmem:[%s7 + $0x64] sm:$0xf]
        %v5103 = vld [vmem:[%s7 + $0x68] sm:$0xf]
        %v5104 = vld [vmem:[%s7 + $0x6c] sm:$0xf]
        %v5105 = vld [vmem:[%s7 + $0x70] sm:$0xf]
        %v5106 = vld [vmem:[%s7 + $0x74] sm:$0xf]
        %v5107 = vld [vmem:[%s7 + $0x78] sm:$0xf]
        %v5108 = vld [vmem:[%s7 + $0x7c] sm:$0xf]
        %v5109 = vld [vmem:[%s7 + $0x80] sm:$0xf]
        %v5110 = vld [vmem:[%s7 + $0x84] sm:$0xf]
        %v5111 = vld [vmem:[%s7 + $0x88] sm:$0xf]
        %v5112 = vld [vmem:[%s7 + $0x8c] sm:$0xf]
        %v5113 = vld [vmem:[%s7 + $0x90] sm:$0xf]
        %v5114 = vld [vmem:[%s7 + $0x94] sm:$0xf]
        %v5115 = vld [vmem:[%s7 + $0x98] sm:$0xf]
        %v5116 = vld [vmem:[%s7 + $0x9c] sm:$0xf]
        %v5117 = vld [vmem:[%s7 + $0xa0] sm:$0xf]
        %v5118 = vld [vmem:[%s7 + $0xa4] sm:$0xf]
        %v5119 = vld [vmem:[%s7 + $0xa8] sm:$0xf]
        %v5120 = vld [vmem:[%s7 + $0xac] sm:$0xf]
        %v5121 = vld [vmem:[%s7 + $0xb0] sm:$0xf]
        %v5122 = vld [vmem:[%s7 + $0xb4] sm:$0xf]
        %v5123 = vld [vmem:[%s7 + $0xb8] sm:$0xf]
        %v5124 = vld [vmem:[%s7 + $0xbc] sm:$0xf]
        %v5125 = vld [vmem:[%s7 + $0xc0] sm:$0xf]
        %v5126 = vld [vmem:[%s7 + $0xc4] sm:$0xf]
        %v5127 = vld [vmem:[%s7 + $0xc8] sm:$0xf]
        %v5128 = vld [vmem:[%s7 + $0xcc] sm:$0xf]
        %v5129 = vld [vmem:[%s7 + $0xd0] sm:$0xf]
        %v5130 = vld [vmem:[%s7 + $0xd4] sm:$0xf]
        %v5131 = vld [vmem:[%s7 + $0xd8] sm:$0xf]
        %v5132 = vld [vmem:[%s7 + $0xdc] sm:$0xf]
        %v5133 = vld [vmem:[%s7 + $0xe0] sm:$0xf]
        %v5134 = vld [vmem:[%s7 + $0xe4] sm:$0xf]
        %v5135 = vld [vmem:[%s7 + $0xe8] sm:$0xf]
        %v5136 = vld [vmem:[%s7 + $0xec] sm:$0xf]
        %v5137 = vld [vmem:[%s7 + $0xf0] sm:$0xf]
        %v5138 = vld [vmem:[%s7 + $0xf4] sm:$0xf]
        %v5139 = vld [vmem:[%s7 + $0xf8] sm:$0xf]
        %v5140 = vld [vmem:[%s7 + $0xfc] sm:$0xf]
        %v5141 = vld [vmem:[%s7 + $0x100] sm:$0xf]
        %v5142 = vld [vmem:[%s7 + $0x104] sm:$0xf]
        %v5143 = vld [vmem:[%s7 + $0x108] sm:$0xf]
        %v5144 = vld [vmem:[%s7 + $0x10c] sm:$0xf]
        %v5145 = vld [vmem:[%s7 + $0x110] sm:$0xf]
        %v5146 = vld [vmem:[%s7 + $0x114] sm:$0xf]
        %v5147 = vld [vmem:[%s7 + $0x118] sm:$0xf]
        %v5148 = vld [vmem:[%s7 + $0x11c] sm:$0xf]
        %v5149 = vld [vmem:[%s8] sm:$0x1]
        %v5151 = vlaneseq
        %v5152 = vshrl.u32 %v5151, 7
        %v5153 = vsub.s32 0, %v5152
        %v5154 = vrot.slane %v5149, %v5153
        %v5228 = vunpack.c.l.b16 %v5077
        %v5229 = vunpack.c.l.b16 %v5078
        %v5230 = vunpack.c.l.b16 %v5079
        %v5231 = vunpack.c.l.b16 %v5080
        %v5232 = vunpack.c.l.b16 %v5081
        %v5233 = vunpack.c.l.b16 %v5082
        %v5234 = vunpack.c.l.b16 %v5083
        %v5235 = vunpack.c.l.b16 %v5084
        %v5236 = vunpack.c.l.b16 %v5085
        %v5237 = vunpack.c.l.b16 %v5086
        %v5238 = vunpack.c.l.b16 %v5087
        %v5239 = vunpack.c.l.b16 %v5088
        %v5240 = vunpack.c.l.b16 %v5089
        %v5241 = vunpack.c.l.b16 %v5090
        %v5242 = vunpack.c.l.b16 %v5091
        %v5243 = vunpack.c.l.b16 %v5092
        %v5244 = vunpack.c.l.b16 %v5093
        %v5245 = vunpack.c.l.b16 %v5094
        %v5246 = vunpack.c.l.b16 %v5095
        %v5247 = vunpack.c.l.b16 %v5096
        %v5248 = vunpack.c.l.b16 %v5097
        %v5249 = vunpack.c.l.b16 %v5098
        %v5250 = vunpack.c.l.b16 %v5099
        %v5251 = vunpack.c.l.b16 %v5100
        %v5252 = vunpack.c.l.b16 %v5101
        %v5253 = vunpack.c.l.b16 %v5102
        %v5254 = vunpack.c.l.b16 %v5103
        %v5255 = vunpack.c.l.b16 %v5104
        %v5256 = vunpack.c.l.b16 %v5105
        %v5257 = vunpack.c.l.b16 %v5106
        %v5258 = vunpack.c.l.b16 %v5107
        %v5259 = vunpack.c.l.b16 %v5108
        %v5260 = vunpack.c.l.b16 %v5109
        %v5261 = vunpack.c.l.b16 %v5110
        %v5262 = vunpack.c.l.b16 %v5111
        %v5263 = vunpack.c.l.b16 %v5112
        %v5264 = vunpack.c.l.b16 %v5113
        %v5265 = vunpack.c.l.b16 %v5114
        %v5266 = vunpack.c.l.b16 %v5115
        %v5267 = vunpack.c.l.b16 %v5116
        %v5268 = vunpack.c.l.b16 %v5117
        %v5269 = vunpack.c.l.b16 %v5118
        %v5270 = vunpack.c.l.b16 %v5119
        %v5271 = vunpack.c.l.b16 %v5120
        %v5272 = vunpack.c.l.b16 %v5121
        %v5273 = vunpack.c.l.b16 %v5122
        %v5274 = vunpack.c.l.b16 %v5123
        %v5275 = vunpack.c.l.b16 %v5124
        %v5276 = vunpack.c.l.b16 %v5125
        %v5277 = vunpack.c.l.b16 %v5126
        %v5278 = vunpack.c.l.b16 %v5127
        %v5279 = vunpack.c.l.b16 %v5128
        %v5280 = vunpack.c.l.b16 %v5129
        %v5281 = vunpack.c.l.b16 %v5130
        %v5282 = vunpack.c.l.b16 %v5131
        %v5283 = vunpack.c.l.b16 %v5132
        %v5284 = vunpack.c.l.b16 %v5133
        %v5285 = vunpack.c.l.b16 %v5134
        %v5286 = vunpack.c.l.b16 %v5135
        %v5287 = vunpack.c.l.b16 %v5136
        %v5288 = vunpack.c.l.b16 %v5137
        %v5289 = vunpack.c.l.b16 %v5138
        %v5290 = vunpack.c.l.b16 %v5139
        %v5291 = vunpack.c.l.b16 %v5140
        %v5292 = vunpack.c.l.b16 %v5141
        %v5293 = vunpack.c.l.b16 %v5142
        %v5294 = vunpack.c.l.b16 %v5143
        %v5295 = vunpack.c.l.b16 %v5144
        %v5296 = vunpack.c.l.b16 %v5145
        %v5297 = vunpack.c.l.b16 %v5146
        %v5298 = vunpack.c.l.b16 %v5147
        %v5299 = vunpack.c.l.b16 %v5148
        %v5300 = vpack.c.b16 %v5229, %v5228
        %v5301 = vpack.c.b16 %v5231, %v5230
        %v5302 = vpack.c.b16 %v5233, %v5232
        %v5303 = vpack.c.b16 %v5235, %v5234
        %v5304 = vpack.c.b16 %v5237, %v5236
        %v5305 = vpack.c.b16 %v5239, %v5238
        %v5306 = vpack.c.b16 %v5241, %v5240
        %v5307 = vpack.c.b16 %v5243, %v5242
        %v5308 = vpack.c.b16 %v5245, %v5244
        %v5309 = vpack.c.b16 %v5247, %v5246
        %v5310 = vpack.c.b16 %v5249, %v5248
        %v5311 = vpack.c.b16 %v5251, %v5250
        %v5312 = vpack.c.b16 %v5253, %v5252
        %v5313 = vpack.c.b16 %v5255, %v5254
        %v5314 = vpack.c.b16 %v5257, %v5256
        %v5315 = vpack.c.b16 %v5259, %v5258
        %v5316 = vpack.c.b16 %v5261, %v5260
        %v5317 = vpack.c.b16 %v5263, %v5262
        %v5318 = vpack.c.b16 %v5265, %v5264
        %v5319 = vpack.c.b16 %v5267, %v5266
        %v5320 = vpack.c.b16 %v5269, %v5268
        %v5321 = vpack.c.b16 %v5271, %v5270
        %v5322 = vpack.c.b16 %v5273, %v5272
        %v5323 = vpack.c.b16 %v5275, %v5274
        %v5324 = vpack.c.b16 %v5277, %v5276
        %v5325 = vpack.c.b16 %v5279, %v5278
        %v5326 = vpack.c.b16 %v5281, %v5280
        %v5327 = vpack.c.b16 %v5283, %v5282
        %v5328 = vpack.c.b16 %v5285, %v5284
        %v5329 = vpack.c.b16 %v5287, %v5286
        %v5330 = vpack.c.b16 %v5289, %v5288
        %v5331 = vpack.c.b16 %v5291, %v5290
        %v5332 = vpack.c.b16 %v5293, %v5292
        %v5333 = vpack.c.b16 %v5295, %v5294
        %v5334 = vpack.c.b16 %v5297, %v5296
        %v5335 = vpack.c.b16 %v5299, %v5298
        %v5373 = vsel %vm1306, %v5001, 0
        %v5376 = vsel %vm1306, %v5006, 0
        %v5379 = vsel %vm1306, %v5011, 0
        %v5382 = vsel %vm1306, %v5016, 0
        %v5385 = vsel %vm1306, %v5021, 0
        %v5388 = vsel %vm1306, %v5026, 0
        %v5391 = vsel %vm1306, %v5031, 0
        %v5394 = vsel %vm1306, %v5036, 0
        %v5397 = vsel %vm1306, %v5041, 0
        %v5400 = vsel %vm1306, %v5046, 0
        %v5403 = vsel %vm1306, %v5051, 0
        %v5406 = vsel %vm1306, %v5056, 0
        %v5409 = vsel %vm1306, %v5061, 0
        %v5412 = vsel %vm1306, %v5066, 0
        %v5415 = vsel %vm1306, %v5071, 0
        %v5418 = vsel %vm1306, %v5076, 0
        %5420 = vmatprep.subr.bf16.mxu0 0
        %5421 = vmatpush1.bf16.msra.mxu0 %v5300
        %5422 = vmatprep.subr.bf16.mxu0 0
        %5423 = vmatpush1.bf16.msra.mxu0 %v5301
        %5424 = vmatprep.subr.bf16.mxu0 0
        %5425 = vmatpush1.bf16.msra.mxu0 %v5302
        %5426 = vmatprep.subr.bf16.mxu0 0
        %5427 = vmatpush1.bf16.msra.mxu0 %v5303
        %5428 = vmatprep.subr.bf16.mxu0 0
        %5429 = vmatpush1.bf16.msra.mxu0 %v5304
        %5430 = vmatprep.subr.bf16.mxu0 0
        %5431 = vmatpush1.bf16.msra.mxu0 %v5305
        %5432 = vmatprep.subr.bf16.mxu0 0
        %5433 = vmatpush1.bf16.msra.mxu0 %v5306
        %5434 = vmatprep.subr.bf16.mxu0 0
        %5435 = vmatpush1.bf16.msra.mxu0 %v5307
        %5436 = vmatprep.subr.bf16.mxu0 0
        %5437 = vmatpush1.bf16.msra.mxu0 %v5308
        %5438 = vmatprep.subr.bf16.mxu0 0
        %5439 = vmatpush1.bf16.msra.mxu0 %v5309
        %5440 = vmatprep.subr.bf16.mxu0 0
        %5441 = vmatpush1.bf16.msra.mxu0 %v5310
        %5442 = vmatprep.subr.bf16.mxu0 0
        %5443 = vmatpush1.bf16.msra.mxu0 %v5311
        %5444 = vmatprep.subr.bf16.mxu0 0
        %5445 = vmatpush1.bf16.msra.mxu0 %v5312
        %5446 = vmatprep.subr.bf16.mxu0 0
        %5447 = vmatpush1.bf16.msra.mxu0 %v5313
        %5448 = vmatprep.subr.bf16.mxu0 0
        %5449 = vmatpush1.bf16.msra.mxu0 %v5314
        %5450 = vmatprep.subr.bf16.mxu0 0
        %5451 = vmatpush1.bf16.msra.mxu0 %v5315
        %5452 = vmatprep.mubr.bf16.mxu0 %v4998
        %5453 = vmatmul.mubr.bf16.gmra.mrb[0].mxu0 %v4997
        %v5454 = vpop.f32.mrb[0].mxu0
        %v5455 = vadd.f32 %v5154, %v5454
        %v5456 = vpop.f32.mrb[0].mxu0
        %v5457 = vpop.f32.mrb[0].mxu0
        %v5458 = vadd.f32 %v5154, %v5457
        %v5459 = vpop.f32.mrb[0].mxu0
        %5460 = vmatprep.mubr.bf16.mxu0 %v5003
        %5461 = vmatmul.mubr.bf16.gmra.mrb[0].mxu0 %v5002
        %v5462 = vpop.f32.mrb[0].mxu0
        %v5463 = vadd.f32 %v5154, %v5462
        %v5464 = vpop.f32.mrb[0].mxu0
        %v5465 = vpop.f32.mrb[0].mxu0
        %v5466 = vadd.f32 %v5154, %v5465
        %v5467 = vpop.f32.mrb[0].mxu0
        %5468 = vmatprep.mubr.bf16.mxu0 %v5008
        %5469 = vmatmul.mubr.bf16.gmra.mrb[0].mxu0 %v5007
        %v5470 = vpop.f32.mrb[0].mxu0
        %v5471 = vadd.f32 %v5154, %v5470
        %v5472 = vpop.f32.mrb[0].mxu0
        %v5473 = vpop.f32.mrb[0].mxu0
        %v5474 = vadd.f32 %v5154, %v5473
        %v5475 = vpop.f32.mrb[0].mxu0
        %5476 = vmatprep.mubr.bf16.mxu0 %v5013
        %5477 = vmatmul.mubr.bf16.gmra.mrb[0].mxu0 %v5012
        %v5478 = vpop.f32.mrb[0].mxu0
        %v5479 = vadd.f32 %v5154, %v5478
        %v5480 = vpop.f32.mrb[0].mxu0
        %v5481 = vpop.f32.mrb[0].mxu0
        %v5482 = vadd.f32 %v5154, %v5481
        %v5483 = vpop.f32.mrb[0].mxu0
        %5484 = vmatprep.mubr.bf16.mxu0 %v5018
        %5485 = vmatmul.mubr.bf16.gmra.mrb[0].mxu0 %v5017
        %v5486 = vpop.f32.mrb[0].mxu0
        %v5487 = vadd.f32 %v5154, %v5486
        %v5488 = vpop.f32.mrb[0].mxu0
        %v5489 = vpop.f32.mrb[0].mxu0
        %v5490 = vadd.f32 %v5154, %v5489
        %v5491 = vpop.f32.mrb[0].mxu0
        %5492 = vmatprep.mubr.bf16.mxu0 %v5023
        %5493 = vmatmul.mubr.bf16.gmra.mrb[0].mxu0 %v5022
        %v5494 = vpop.f32.mrb[0].mxu0
        %v5495 = vadd.f32 %v5154, %v5494
        %v5496 = vpop.f32.mrb[0].mxu0
        %v5497 = vpop.f32.mrb[0].mxu0
        %v5498 = vadd.f32 %v5154, %v5497
        %v5499 = vpop.f32.mrb[0].mxu0
        %5500 = vmatprep.mubr.bf16.mxu0 %v5028
        %5501 = vmatmul.mubr.bf16.gmra.mrb[0].mxu0 %v5027
        %v5502 = vpop.f32.mrb[0].mxu0
        %v5503 = vadd.f32 %v5154, %v5502
        %v5504 = vpop.f32.mrb[0].mxu0
        %v5505 = vpop.f32.mrb[0].mxu0
        %v5506 = vadd.f32 %v5154, %v5505
        %v5507 = vpop.f32.mrb[0].mxu0
        %5508 = vmatprep.mubr.bf16.mxu0 %v5033
        %5509 = vmatmul.mubr.bf16.gmra.mrb[0].mxu0 %v5032
        %v5510 = vpop.f32.mrb[0].mxu0
        %v5511 = vadd.f32 %v5154, %v5510
        %v5512 = vpop.f32.mrb[0].mxu0
        %v5513 = vpop.f32.mrb[0].mxu0
        %v5514 = vadd.f32 %v5154, %v5513
        %v5515 = vpop.f32.mrb[0].mxu0
        %5516 = vmatprep.mubr.bf16.mxu0 %v5038
        %5517 = vmatmul.mubr.bf16.gmra.mrb[0].mxu0 %v5037
        %v5518 = vpop.f32.mrb[0].mxu0
        %v5519 = vadd.f32 %v5154, %v5518
        %v5520 = vpop.f32.mrb[0].mxu0
        %v5521 = vpop.f32.mrb[0].mxu0
        %v5522 = vadd.f32 %v5154, %v5521
        %v5523 = vpop.f32.mrb[0].mxu0
        %5524 = vmatprep.mubr.bf16.mxu0 %v5043
        %5525 = vmatmul.mubr.bf16.gmra.mrb[0].mxu0 %v5042
        %v5526 = vpop.f32.mrb[0].mxu0
        %v5527 = vadd.f32 %v5154, %v5526
        %v5528 = vpop.f32.mrb[0].mxu0
        %v5529 = vpop.f32.mrb[0].mxu0
        %v5530 = vadd.f32 %v5154, %v5529
        %v5531 = vpop.f32.mrb[0].mxu0
        %5532 = vmatprep.mubr.bf16.mxu0 %v5048
        %5533 = vmatmul.mubr.bf16.gmra.mrb[0].mxu0 %v5047
        %v5534 = vpop.f32.mrb[0].mxu0
        %v5535 = vadd.f32 %v5154, %v5534
        %v5536 = vpop.f32.mrb[0].mxu0
        %v5537 = vpop.f32.mrb[0].mxu0
        %v5538 = vadd.f32 %v5154, %v5537
        %v5539 = vpop.f32.mrb[0].mxu0
        %5540 = vmatprep.mubr.bf16.mxu0 %v5053
        %5541 = vmatmul.mubr.bf16.gmra.mrb[0].mxu0 %v5052
        %v5542 = vpop.f32.mrb[0].mxu0
        %v5543 = vadd.f32 %v5154, %v5542
        %v5544 = vpop.f32.mrb[0].mxu0
        %v5545 = vpop.f32.mrb[0].mxu0
        %v5546 = vadd.f32 %v5154, %v5545
        %v5547 = vpop.f32.mrb[0].mxu0
        %5548 = vmatprep.mubr.bf16.mxu0 %v5058
        %5549 = vmatmul.mubr.bf16.gmra.mrb[0].mxu0 %v5057
        %v5550 = vpop.f32.mrb[0].mxu0
        %v5551 = vadd.f32 %v5154, %v5550
        %v5552 = vpop.f32.mrb[0].mxu0
        %v5553 = vpop.f32.mrb[0].mxu0
        %v5554 = vadd.f32 %v5154, %v5553
        %v5555 = vpop.f32.mrb[0].mxu0
        %5556 = vmatprep.mubr.bf16.mxu0 %v5063
        %5557 = vmatmul.mubr.bf16.gmra.mrb[0].mxu0 %v5062
        %v5558 = vpop.f32.mrb[0].mxu0
        %v5559 = vadd.f32 %v5154, %v5558
        %v5560 = vpop.f32.mrb[0].mxu0
        %v5561 = vpop.f32.mrb[0].mxu0
        %v5562 = vadd.f32 %v5154, %v5561
        %v5563 = vpop.f32.mrb[0].mxu0
        %5564 = vmatprep.mubr.bf16.mxu0 %v5068
        %5565 = vmatmul.mubr.bf16.gmra.mrb[0].mxu0 %v5067
        %v5566 = vpop.f32.mrb[0].mxu0
        %v5567 = vadd.f32 %v5154, %v5566
        %v5568 = vpop.f32.mrb[0].mxu0
        %v5569 = vpop.f32.mrb[0].mxu0
        %v5570 = vadd.f32 %v5154, %v5569
        %v5571 = vpop.f32.mrb[0].mxu0
        %5572 = vmatprep.mubr.bf16.mxu0 %v5073
        %5573 = vmatmul.mubr.bf16.gmra.mrb[0].mxu0 %v5072
        %v5574 = vpop.f32.mrb[0].mxu0
        %v5575 = vadd.f32 %v5154, %v5574
        %v5576 = vpop.f32.mrb[0].mxu0
        %v5577 = vpop.f32.mrb[0].mxu0
        %v5578 = vadd.f32 %v5154, %v5577
        %v5579 = vpop.f32.mrb[0].mxu0
        %5580 = vdwg.mxu0
        %5581 = vmatprep.subr.bf16.mxu0 0
        %5582 = vmatpush1.bf16.msra.mxu0 %v5316
        %5583 = vmatprep.subr.bf16.mxu0 0
        %5584 = vmatpush1.bf16.msra.mxu0 %v5317
        %5585 = vmatprep.subr.bf16.mxu0 0
        %5586 = vmatpush1.bf16.msra.mxu0 %v5318
        %5587 = vmatprep.subr.bf16.mxu0 0
        %5588 = vmatpush1.bf16.msra.mxu0 %v5319
        %5589 = vmatprep.subr.bf16.mxu0 0
        %5590 = vmatpush1.bf16.msra.mxu0 %v5320
        %5591 = vmatprep.subr.bf16.mxu0 0
        %5592 = vmatpush1.bf16.msra.mxu0 %v5321
        %5593 = vmatprep.subr.bf16.mxu0 0
        %5594 = vmatpush1.bf16.msra.mxu0 %v5322
        %5595 = vmatprep.subr.bf16.mxu0 0
        %5596 = vmatpush1.bf16.msra.mxu0 %v5323
        %5597 = vmatprep.subr.bf16.mxu0 0
        %5598 = vmatpush1.bf16.msra.mxu0 %v5324
        %5599 = vmatprep.subr.bf16.mxu0 0
        %5600 = vmatpush1.bf16.msra.mxu0 %v5325
        %5601 = vmatprep.subr.bf16.mxu0 0
        %5602 = vmatpush1.bf16.msra.mxu0 %v5326
        %5603 = vmatprep.subr.bf16.mxu0 0
        %5604 = vmatpush1.bf16.msra.mxu0 %v5327
        %5605 = vmatprep.subr.bf16.mxu0 0
        %5606 = vmatpush1.bf16.msra.mxu0 %v5328
        %5607 = vmatprep.subr.bf16.mxu0 0
        %5608 = vmatpush1.bf16.msra.mxu0 %v5329
        %5609 = vmatprep.subr.bf16.mxu0 0
        %5610 = vmatpush1.bf16.msra.mxu0 %v5330
        %5611 = vmatprep.subr.bf16.mxu0 0
        %5612 = vmatpush1.bf16.msra.mxu0 %v5331
        %5613 = vmatprep.mubr.bf16.mxu0 %v5000
        %5614 = vmatmul.mubr.bf16.gmra.mrb[0].mxu0 %v4999
        %v5615 = vpop.f32.mrb[0].mxu0
        %v5616 = vadd.f32 %v5455, %v5615
        %v5617 = vpop.f32.mrb[0].mxu0
        %v5618 = vpop.f32.mrb[0].mxu0
        %v5619 = vadd.f32 %v5458, %v5618
        %v5620 = vpop.f32.mrb[0].mxu0
        %5621 = vmatprep.mubr.bf16.mxu0 %v5005
        %5622 = vmatmul.mubr.bf16.gmra.mrb[0].mxu0 %v5004
        %v5623 = vpop.f32.mrb[0].mxu0
        %v5624 = vadd.f32 %v5463, %v5623
        %v5625 = vpop.f32.mrb[0].mxu0
        %v5626 = vpop.f32.mrb[0].mxu0
        %v5627 = vadd.f32 %v5466, %v5626
        %v5628 = vpop.f32.mrb[0].mxu0
        %5629 = vmatprep.mubr.bf16.mxu0 %v5010
        %5630 = vmatmul.mubr.bf16.gmra.mrb[0].mxu0 %v5009
        %v5631 = vpop.f32.mrb[0].mxu0
        %v5632 = vadd.f32 %v5471, %v5631
        %v5633 = vpop.f32.mrb[0].mxu0
        %v5634 = vpop.f32.mrb[0].mxu0
        %v5635 = vadd.f32 %v5474, %v5634
        %v5636 = vpop.f32.mrb[0].mxu0
        %5637 = vmatprep.mubr.bf16.mxu0 %v5015
        %5638 = vmatmul.mubr.bf16.gmra.mrb[0].mxu0 %v5014
        %v5639 = vpop.f32.mrb[0].mxu0
        %v5640 = vadd.f32 %v5479, %v5639
        %v5641 = vpop.f32.mrb[0].mxu0
        %v5642 = vpop.f32.mrb[0].mxu0
        %v5643 = vadd.f32 %v5482, %v5642
        %v5644 = vpop.f32.mrb[0].mxu0
        %5645 = vmatprep.mubr.bf16.mxu0 %v5020
        %5646 = vmatmul.mubr.bf16.gmra.mrb[0].mxu0 %v5019
        %v5647 = vpop.f32.mrb[0].mxu0
        %v5648 = vadd.f32 %v5487, %v5647
        %v5649 = vpop.f32.mrb[0].mxu0
        %v5650 = vpop.f32.mrb[0].mxu0
        %v5651 = vadd.f32 %v5490, %v5650
        %v5652 = vpop.f32.mrb[0].mxu0
        %5653 = vmatprep.mubr.bf16.mxu0 %v5025
        %5654 = vmatmul.mubr.bf16.gmra.mrb[0].mxu0 %v5024
        %v5655 = vpop.f32.mrb[0].mxu0
        %v5656 = vadd.f32 %v5495, %v5655
        %v5657 = vpop.f32.mrb[0].mxu0
        %v5658 = vpop.f32.mrb[0].mxu0
        %v5659 = vadd.f32 %v5498, %v5658
        %v5660 = vpop.f32.mrb[0].mxu0
        %5661 = vmatprep.mubr.bf16.mxu0 %v5030
        %5662 = vmatmul.mubr.bf16.gmra.mrb[0].mxu0 %v5029
        %v5663 = vpop.f32.mrb[0].mxu0
        %v5664 = vadd.f32 %v5503, %v5663
        %v5665 = vpop.f32.mrb[0].mxu0
        %v5666 = vpop.f32.mrb[0].mxu0
        %v5667 = vadd.f32 %v5506, %v5666
        %v5668 = vpop.f32.mrb[0].mxu0
        %5669 = vmatprep.mubr.bf16.mxu0 %v5035
        %5670 = vmatmul.mubr.bf16.gmra.mrb[0].mxu0 %v5034
        %v5671 = vpop.f32.mrb[0].mxu0
        %v5672 = vadd.f32 %v5511, %v5671
        %v5673 = vpop.f32.mrb[0].mxu0
        %v5674 = vpop.f32.mrb[0].mxu0
        %v5675 = vadd.f32 %v5514, %v5674
        %v5676 = vpop.f32.mrb[0].mxu0
        %5677 = vmatprep.mubr.bf16.mxu0 %v5040
        %5678 = vmatmul.mubr.bf16.gmra.mrb[0].mxu0 %v5039
        %v5679 = vpop.f32.mrb[0].mxu0
        %v5680 = vadd.f32 %v5519, %v5679
        %v5681 = vpop.f32.mrb[0].mxu0
        %v5682 = vpop.f32.mrb[0].mxu0
        %v5683 = vadd.f32 %v5522, %v5682
        %v5684 = vpop.f32.mrb[0].mxu0
        %5685 = vmatprep.mubr.bf16.mxu0 %v5045
        %5686 = vmatmul.mubr.bf16.gmra.mrb[0].mxu0 %v5044
        %v5687 = vpop.f32.mrb[0].mxu0
        %v5688 = vadd.f32 %v5527, %v5687
        %v5689 = vpop.f32.mrb[0].mxu0
        %v5690 = vpop.f32.mrb[0].mxu0
        %v5691 = vadd.f32 %v5530, %v5690
        %v5692 = vpop.f32.mrb[0].mxu0
        %5693 = vmatprep.mubr.bf16.mxu0 %v5050
        %5694 = vmatmul.mubr.bf16.gmra.mrb[0].mxu0 %v5049
        %v5695 = vpop.f32.mrb[0].mxu0
        %v5696 = vadd.f32 %v5535, %v5695
        %v5697 = vpop.f32.mrb[0].mxu0
        %v5698 = vpop.f32.mrb[0].mxu0
        %v5699 = vadd.f32 %v5538, %v5698
        %v5700 = vpop.f32.mrb[0].mxu0
        %5701 = vmatprep.mubr.bf16.mxu0 %v5055
        %5702 = vmatmul.mubr.bf16.gmra.mrb[0].mxu0 %v5054
        %v5703 = vpop.f32.mrb[0].mxu0
        %v5704 = vadd.f32 %v5543, %v5703
        %v5705 = vpop.f32.mrb[0].mxu0
        %v5706 = vpop.f32.mrb[0].mxu0
        %v5707 = vadd.f32 %v5546, %v5706
        %v5708 = vpop.f32.mrb[0].mxu0
        %5709 = vmatprep.mubr.bf16.mxu0 %v5060
        %5710 = vmatmul.mubr.bf16.gmra.mrb[0].mxu0 %v5059
        %v5711 = vpop.f32.mrb[0].mxu0
        %v5712 = vadd.f32 %v5551, %v5711
        %v5713 = vpop.f32.mrb[0].mxu0
        %v5714 = vpop.f32.mrb[0].mxu0
        %v5715 = vadd.f32 %v5554, %v5714
        %v5716 = vpop.f32.mrb[0].mxu0
        %5717 = vmatprep.mubr.bf16.mxu0 %v5065
        %5718 = vmatmul.mubr.bf16.gmra.mrb[0].mxu0 %v5064
        %v5719 = vpop.f32.mrb[0].mxu0
        %v5720 = vadd.f32 %v5559, %v5719
        %v5721 = vpop.f32.mrb[0].mxu0
        %v5722 = vpop.f32.mrb[0].mxu0
        %v5723 = vadd.f32 %v5562, %v5722
        %v5724 = vpop.f32.mrb[0].mxu0
        %5725 = vmatprep.mubr.bf16.mxu0 %v5070
        %5726 = vmatmul.mubr.bf16.gmra.mrb[0].mxu0 %v5069
        %v5727 = vpop.f32.mrb[0].mxu0
        %v5728 = vadd.f32 %v5567, %v5727
        %v5729 = vpop.f32.mrb[0].mxu0
        %v5730 = vpop.f32.mrb[0].mxu0
        %v5731 = vadd.f32 %v5570, %v5730
        %v5732 = vpop.f32.mrb[0].mxu0
        %5733 = vmatprep.mubr.bf16.mxu0 %v5075
        %5734 = vmatmul.mubr.bf16.gmra.mrb[0].mxu0 %v5074
        %v5735 = vpop.f32.mrb[0].mxu0
        %v5736 = vadd.f32 %v5575, %v5735
        %v5737 = vpop.f32.mrb[0].mxu0
        %v5738 = vpop.f32.mrb[0].mxu0
        %v5739 = vadd.f32 %v5578, %v5738
        %v5740 = vpop.f32.mrb[0].mxu0
        %5741 = vdwg.mxu0
        %5742 = vmatprep.subr.bf16.mxu0 0
        %5743 = vmatpush1.bf16.msra.mxu0 %v5332
        %5744 = vmatprep.subr.bf16.mxu0 0
        %5745 = vmatpush1.bf16.msra.mxu0 %v5333
        %5746 = vmatprep.subr.bf16.mxu0 0
        %5747 = vmatpush1.bf16.msra.mxu0 %v5334
        %5748 = vmatprep.subr.bf16.mxu0 0
        %5749 = vmatpush1.bf16.msra.mxu0 %v5335
        %5750 = vmatprep.subr.bf16.mxu0 0
        %5751 = vmatpush1.bf16.msra.mxu0 0
        %5752 = vmatprep.subr.bf16.mxu0 0
        %5753 = vmatpush1.bf16.msra.mxu0 0
        %5754 = vmatprep.subr.bf16.mxu0 0
        %5755 = vmatpush1.bf16.msra.mxu0 0
        %5756 = vmatprep.subr.bf16.mxu0 0
        %5757 = vmatpush1.bf16.msra.mxu0 0
        %5758 = vmatprep.subr.bf16.mxu0 0
        %5759 = vmatpush1.bf16.msra.mxu0 0
        %5760 = vmatprep.subr.bf16.mxu0 0
        %5761 = vmatpush1.bf16.msra.mxu0 0
        %5762 = vmatprep.subr.bf16.mxu0 0
        %5763 = vmatpush1.bf16.msra.mxu0 0
        %5764 = vmatprep.subr.bf16.mxu0 0
        %5765 = vmatpush1.bf16.msra.mxu0 0
        %5766 = vmatprep.subr.bf16.mxu0 0
        %5767 = vmatpush1.bf16.msra.mxu0 0
        %5768 = vmatprep.subr.bf16.mxu0 0
        %5769 = vmatpush1.bf16.msra.mxu0 0
        %5770 = vmatprep.subr.bf16.mxu0 0
        %5771 = vmatpush1.bf16.msra.mxu0 0
        %5772 = vmatprep.subr.bf16.mxu0 0
        %5773 = vmatpush1.bf16.msra.mxu0 0
        %5774 = vmatprep.mubr.bf16.mxu0 0
        %5775 = vmatmul.mubr.bf16.gmra.mrb[0].mxu0 %v5373
        %v5776 = vpop.f32.mrb[0].mxu0
        %v5777 = vadd.f32 %v5616, %v5776
        %v5778 = vpop.f32.mrb[0].mxu0
        %v5779 = vpop.f32.mrb[0].mxu0
        %v5780 = vadd.f32 %v5619, %v5779
        %v5781 = vpop.f32.mrb[0].mxu0
        %5782 = vmatprep.mubr.bf16.mxu0 0
        %5783 = vmatmul.mubr.bf16.gmra.mrb[0].mxu0 %v5376
        %v5784 = vpop.f32.mrb[0].mxu0
        %v5785 = vadd.f32 %v5624, %v5784
        %v5786 = vpop.f32.mrb[0].mxu0
        %v5787 = vpop.f32.mrb[0].mxu0
        %v5788 = vadd.f32 %v5627, %v5787
        %v5789 = vpop.f32.mrb[0].mxu0
        %5790 = vmatprep.mubr.bf16.mxu0 0
        %5791 = vmatmul.mubr.bf16.gmra.mrb[0].mxu0 %v5379
        %v5792 = vpop.f32.mrb[0].mxu0
        %v5793 = vadd.f32 %v5632, %v5792
        %v5794 = vpop.f32.mrb[0].mxu0
        %v5795 = vpop.f32.mrb[0].mxu0
        %v5796 = vadd.f32 %v5635, %v5795
        %v5797 = vpop.f32.mrb[0].mxu0
        %5798 = vmatprep.mubr.bf16.mxu0 0
        %5799 = vmatmul.mubr.bf16.gmra.mrb[0].mxu0 %v5382
        %v5800 = vpop.f32.mrb[0].mxu0
        %v5801 = vadd.f32 %v5640, %v5800
        %v5802 = vpop.f32.mrb[0].mxu0
        %v5803 = vpop.f32.mrb[0].mxu0
        %v5804 = vadd.f32 %v5643, %v5803
        %v5805 = vpop.f32.mrb[0].mxu0
        %5806 = vmatprep.mubr.bf16.mxu0 0
        %5807 = vmatmul.mubr.bf16.gmra.mrb[0].mxu0 %v5385
        %v5808 = vpop.f32.mrb[0].mxu0
        %v5809 = vadd.f32 %v5648, %v5808
        %v5810 = vpop.f32.mrb[0].mxu0
        %v5811 = vpop.f32.mrb[0].mxu0
        %v5812 = vadd.f32 %v5651, %v5811
        %v5813 = vpop.f32.mrb[0].mxu0
        %5814 = vmatprep.mubr.bf16.mxu0 0
        %5815 = vmatmul.mubr.bf16.gmra.mrb[0].mxu0 %v5388
        %v5816 = vpop.f32.mrb[0].mxu0
        %v5817 = vadd.f32 %v5656, %v5816
        %v5818 = vpop.f32.mrb[0].mxu0
        %v5819 = vpop.f32.mrb[0].mxu0
        %v5820 = vadd.f32 %v5659, %v5819
        %v5821 = vpop.f32.mrb[0].mxu0
        %5822 = vmatprep.mubr.bf16.mxu0 0
        %5823 = vmatmul.mubr.bf16.gmra.mrb[0].mxu0 %v5391
        %v5824 = vpop.f32.mrb[0].mxu0
        %v5825 = vadd.f32 %v5664, %v5824
        %v5826 = vpop.f32.mrb[0].mxu0
        %v5827 = vpop.f32.mrb[0].mxu0
        %v5828 = vadd.f32 %v5667, %v5827
        %v5829 = vpop.f32.mrb[0].mxu0
        %5830 = vmatprep.mubr.bf16.mxu0 0
        %5831 = vmatmul.mubr.bf16.gmra.mrb[0].mxu0 %v5394
        %v5832 = vpop.f32.mrb[0].mxu0
        %v5833 = vadd.f32 %v5672, %v5832
        %v5834 = vpop.f32.mrb[0].mxu0
        %v5835 = vpop.f32.mrb[0].mxu0
        %v5836 = vadd.f32 %v5675, %v5835
        %v5837 = vpop.f32.mrb[0].mxu0
        %5838 = vmatprep.mubr.bf16.mxu0 0
        %5839 = vmatmul.mubr.bf16.gmra.mrb[0].mxu0 %v5397
        %v5840 = vpop.f32.mrb[0].mxu0
        %v5841 = vadd.f32 %v5680, %v5840
        %v5842 = vpop.f32.mrb[0].mxu0
        %v5843 = vpop.f32.mrb[0].mxu0
        %v5844 = vadd.f32 %v5683, %v5843
        %v5845 = vpop.f32.mrb[0].mxu0
        %5846 = vmatprep.mubr.bf16.mxu0 0
        %5847 = vmatmul.mubr.bf16.gmra.mrb[0].mxu0 %v5400
        %v5848 = vpop.f32.mrb[0].mxu0
        %v5849 = vadd.f32 %v5688, %v5848
        %v5850 = vpop.f32.mrb[0].mxu0
        %v5851 = vpop.f32.mrb[0].mxu0
        %v5852 = vadd.f32 %v5691, %v5851
        %v5853 = vpop.f32.mrb[0].mxu0
        %5854 = vmatprep.mubr.bf16.mxu0 0
        %5855 = vmatmul.mubr.bf16.gmra.mrb[0].mxu0 %v5403
        %v5856 = vpop.f32.mrb[0].mxu0
        %v5857 = vadd.f32 %v5696, %v5856
        %v5858 = vpop.f32.mrb[0].mxu0
        %v5859 = vpop.f32.mrb[0].mxu0
        %v5860 = vadd.f32 %v5699, %v5859
        %v5861 = vpop.f32.mrb[0].mxu0
        %5862 = vmatprep.mubr.bf16.mxu0 0
        %5863 = vmatmul.mubr.bf16.gmra.mrb[0].mxu0 %v5406
        %v5864 = vpop.f32.mrb[0].mxu0
        %v5865 = vadd.f32 %v5704, %v5864
        %v5866 = vpop.f32.mrb[0].mxu0
        %v5867 = vpop.f32.mrb[0].mxu0
        %v5868 = vadd.f32 %v5707, %v5867
        %v5869 = vpop.f32.mrb[0].mxu0
        %5870 = vmatprep.mubr.bf16.mxu0 0
        %5871 = vmatmul.mubr.bf16.gmra.mrb[0].mxu0 %v5409
        %v5872 = vpop.f32.mrb[0].mxu0
        %v5873 = vadd.f32 %v5712, %v5872
        %v5874 = vpop.f32.mrb[0].mxu0
        %v5875 = vpop.f32.mrb[0].mxu0
        %v5876 = vadd.f32 %v5715, %v5875
        %v5877 = vpop.f32.mrb[0].mxu0
        %5878 = vmatprep.mubr.bf16.mxu0 0
        %5879 = vmatmul.mubr.bf16.gmra.mrb[0].mxu0 %v5412
        %v5880 = vpop.f32.mrb[0].mxu0
        %v5881 = vadd.f32 %v5720, %v5880
        %v5882 = vpop.f32.mrb[0].mxu0
        %v5883 = vpop.f32.mrb[0].mxu0
        %v5884 = vadd.f32 %v5723, %v5883
        %v5885 = vpop.f32.mrb[0].mxu0
        %5886 = vmatprep.mubr.bf16.mxu0 0
        %5887 = vmatmul.mubr.bf16.gmra.mrb[0].mxu0 %v5415
        %v5888 = vpop.f32.mrb[0].mxu0
        %v5889 = vadd.f32 %v5728, %v5888
        %v5890 = vpop.f32.mrb[0].mxu0
        %v5891 = vpop.f32.mrb[0].mxu0
        %v5892 = vadd.f32 %v5731, %v5891
        %v5893 = vpop.f32.mrb[0].mxu0
        %5894 = vmatprep.mubr.bf16.mxu0 0
        %5895 = vmatmul.mubr.bf16.gmra.mrb[0].mxu0 %v5418
        %v5896 = vpop.f32.mrb[0].mxu0
        %v5897 = vadd.f32 %v5736, %v5896
        %v5898 = vpop.f32.mrb[0].mxu0
        %v5899 = vpop.f32.mrb[0].mxu0
        %v5900 = vadd.f32 %v5739, %v5899
        %v5901 = vpop.f32.mrb[0].mxu0
        %5902 = vdwg.mxu0
        %v5903 = vadd.f32 %v5777, %v332
        %v5904 = vadd.f32 %v5780, %v333
        %v5905 = vadd.f32 %v5785, %v334
        %v5906 = vadd.f32 %v5788, %v335
        %v5907 = vadd.f32 %v5793, %v336
        %v5908 = vadd.f32 %v5796, %v337
        %v5909 = vadd.f32 %v5801, %v338
        %v5910 = vadd.f32 %v5804, %v339
        %v5911 = vadd.f32 %v5809, %v340
        %v5912 = vadd.f32 %v5812, %v341
        %v5913 = vadd.f32 %v5817, %v342
        %v5914 = vadd.f32 %v5820, %v343
        %v5915 = vadd.f32 %v5825, %v344
        %v5916 = vadd.f32 %v5828, %v345
        %v5917 = vadd.f32 %v5833, %v346
        %v5918 = vadd.f32 %v5836, %v347
        %v5919 = vadd.f32 %v5841, %v348
        %v5920 = vadd.f32 %v5844, %v349
        %v5921 = vadd.f32 %v5849, %v350
        %v5922 = vadd.f32 %v5852, %v351
        %v5923 = vadd.f32 %v5857, %v352
        %v5924 = vadd.f32 %v5860, %v353
        %v5925 = vadd.f32 %v5865, %v354
        %v5926 = vadd.f32 %v5868, %v355
        %v5927 = vadd.f32 %v5873, %v356
        %v5928 = vadd.f32 %v5876, %v357
        %v5929 = vadd.f32 %v5881, %v358
        %v5930 = vadd.f32 %v5884, %v359
        %v5931 = vadd.f32 %v5889, %v360
        %v5932 = vadd.f32 %v5892, %v361
        %v5933 = vadd.f32 %v5897, %v362
        %v5934 = vadd.f32 %v5900, %v363
        %5935 = vst.msk [vmem:[%s325] sm:$0xff] %vm1306, %v5903
        %5936 = vst.msk [vmem:[%s325 + $0x8] sm:$0xff] %vm1306, %v5904
        %5937 = vst.msk [vmem:[%s325 + $0x10] sm:$0xff] %vm1306, %v5905
        %5938 = vst.msk [vmem:[%s325 + $0x18] sm:$0xff] %vm1306, %v5906
        %5939 = vst.msk [vmem:[%s325 + $0x20] sm:$0xff] %vm1306, %v5907
        %5940 = vst.msk [vmem:[%s325 + $0x28] sm:$0xff] %vm1306, %v5908
        %5941 = vst.msk [vmem:[%s325 + $0x30] sm:$0xff] %vm1306, %v5909
        %5942 = vst.msk [vmem:[%s325 + $0x38] sm:$0xff] %vm1306, %v5910
        %5943 = vst.msk [vmem:[%s325 + $0x40] sm:$0xff] %vm1306, %v5911
        %5944 = vst.msk [vmem:[%s325 + $0x48] sm:$0xff] %vm1306, %v5912
        %5945 = vst.msk [vmem:[%s325 + $0x50] sm:$0xff] %vm1306, %v5913
        %5946 = vst.msk [vmem:[%s325 + $0x58] sm:$0xff] %vm1306, %v5914
        %5947 = vst.msk [vmem:[%s325 + $0x60] sm:$0xff] %vm1306, %v5915
        %5948 = vst.msk [vmem:[%s325 + $0x68] sm:$0xff] %vm1306, %v5916
        %5949 = vst.msk [vmem:[%s325 + $0x70] sm:$0xff] %vm1306, %v5917
        %5950 = vst.msk [vmem:[%s325 + $0x78] sm:$0xff] %vm1306, %v5918
        %5951 = vst.msk [vmem:[%s325 + $0x80] sm:$0xff] %vm1306, %v5919
        %5952 = vst.msk [vmem:[%s325 + $0x88] sm:$0xff] %vm1306, %v5920
        %5953 = vst.msk [vmem:[%s325 + $0x90] sm:$0xff] %vm1306, %v5921
        %5954 = vst.msk [vmem:[%s325 + $0x98] sm:$0xff] %vm1306, %v5922
        %5955 = vst.msk [vmem:[%s325 + $0xa0] sm:$0xff] %vm1306, %v5923
        %5956 = vst.msk [vmem:[%s325 + $0xa8] sm:$0xff] %vm1306, %v5924
        %5957 = vst.msk [vmem:[%s325 + $0xb0] sm:$0xff] %vm1306, %v5925
        %5958 = vst.msk [vmem:[%s325 + $0xb8] sm:$0xff] %vm1306, %v5926
        %5959 = vst.msk [vmem:[%s325 + $0xc0] sm:$0xff] %vm1306, %v5927
        %5960 = vst.msk [vmem:[%s325 + $0xc8] sm:$0xff] %vm1306, %v5928
        %5961 = vst.msk [vmem:[%s325 + $0xd0] sm:$0xff] %vm1306, %v5929
        %5962 = vst.msk [vmem:[%s325 + $0xd8] sm:$0xff] %vm1306, %v5930
        %5963 = vst.msk [vmem:[%s325 + $0xe0] sm:$0xff] %vm1306, %v5931
        %5964 = vst.msk [vmem:[%s325 + $0xe8] sm:$0xff] %vm1306, %v5932
        %5965 = vst.msk [vmem:[%s325 + $0xf0] sm:$0xff] %vm1306, %v5933
        %5966 = vst.msk [vmem:[%s325 + $0xf8] sm:$0xff] %vm1306, %v5934
        %s5967 = sand.u32 %s225, 1
        %s5968 = scalar_lea.sflag [#allocation7], %s5967
        %s5969 = sand.u32 %s225, 1
        %s5970 = smul.addr %s5969, 256
        %s5971 = scalar_lea.vmem [#allocation6], %s5970
        // Predicated region
        $region57: #{preact_basic_forward.1} parent=55 // pred_check
          %p5972 = pneg %p235
        $region58: #{preact_basic_forward.1} parent=55 // pred_check_branch
          %5974 = sbr.rel (%p5972) target = $region60
        $region59: #{preact_basic_forward.1} parent=55 // pred_region
          %s5976 = ssub.s32 4096, 4096
          %5977 = vsyncadd %s5968, %s5976
          %s5978 = smul.addr %s23, 32
          %s5979 = smul.addr %s5978, 128
          %s5980 = scalar_lea.hbm %s9, %s5979
          %s5981 = sshll.u32 %s5971, 4
          %s5982 = int_to_ptr.vmem [resolvable:$true] %s5981
          %5987 = dma.vmem_to_hbm [thread:$0]  %s5982, 4096, %s5980, %s5968, 128, 128, 8
        $region60: #{preact_basic_forward.1} parent=55 // pred_fallthru
          _
      $region56: #{preact_basic_forward.1} parent=5 // pred_fallthru
        _
      %p5988 = scmp.le.s32.totalorder 2, %s18
      // Predicated region
      $region61: #{preact_basic_forward.1} parent=5 // pred_check
        %p5989 = pneg %p5988
      $region62: #{preact_basic_forward.1} parent=5 // pred_check_branch
        %5991 = sbr.rel (%p5989) target = $region64
      $region63: #{preact_basic_forward.1} parent=5 // pred_region
        %s5992 = ssub.s32 %s18, 2
        // Predicated region
        $region65: #{preact_basic_forward.1} parent=63 // pred_check
          %p5993 = pneg %p241
        $region66: #{preact_basic_forward.1} parent=63 // pred_check_branch
          %5995 = sbr.rel (%p5993) target = $region68
        $region67: #{preact_basic_forward.1} parent=63 // pred_region
          %s5996 = sand.u32 %s226, 1
          %s5997 = scalar_lea.sflag [#allocation7], %s5996
          %s5998 = sand.u32 %s226, 1
          %s5999 = smul.addr %s5998, 256
          %s6000 = scalar_lea.vmem [#allocation6], %s5999
          %6001 = dma.done %s5997, 4096
        $region68: #{preact_basic_forward.1} parent=63 // pred_fallthru
          _
      $region64: #{preact_basic_forward.1} parent=5 // pred_fallthru
        _
    $region6: #{preact_basic_forward.1} parent=1 // loop_footer
      %s22 = sadd.s32 1, %s18
    $region7: #{preact_basic_forward.1} parent=1 // loop_footer_branch
      %17 = sbr.rel target = $region3
    $region8: #{preact_basic_forward.1} parent=1 // loop_exit
      _
    %6002 = vsyncpa [#allocation7], 1
    %s6003 = scalar_lea.sflag [#allocation7], 1
    %6004 = vsyncpa %s6003, 1

</llo_original>
